<compile_context>
chip_gen: v7x
topology: tpu7x:2x2x1
jax: 0.10.0
libtpu: 0.0.40
codegen_flags: <defaults>
</compile_context>

<pallas_src>
import functools

import jax
import jax.numpy as jnp
from jax.experimental import pallas as pl
from jax.experimental.pallas import tpu as pltpu

NUM_CLASSES = 48
HEAD_FEATURES = 2048
HI_CH = 64      # hrnet_w64 high-res branch width
LO_CH = 128     # next branch width


def _vmem_limit_bytes():
    try:
        cap = int(pltpu.get_tpu_info().vmem_capacity_bytes)
    except Exception:
        cap = 64 * 1024 * 1024   # v7x per-TC floor; safe on every generation
    return min(int(cap * 3 // 4), 100 * 1024 * 1024)


VMEM_LIMIT = _vmem_limit_bytes()
TM_MAX = 1024 if VMEM_LIMIT >= 80 * 1024 * 1024 else 512   # v5e/v6e vs v7x


def _round_up(x, m):
    return (x + m - 1) // m * m


def _pad2d(x, rows, cols):
    r, c = x.shape
    if r == rows and c == cols:
        return x
    return jnp.pad(x, ((0, rows - r), (0, cols - c)))


def _pick_tile(dim_padded, unit, cap):
    """Largest multiple of `unit` that exactly divides dim_padded and <= cap."""
    n = dim_padded // unit
    best = 1
    d = 1
    while d * d <= n:
        if n % d == 0:
            if d * unit <= cap:
                best = max(best, d)
            q = n // d
            if q * unit <= cap:
                best = max(best, q)
        d += 1
    return best * unit


def _choose_m_tile(M, cap):
    """Row tile: exact divisor of the 8-rounded M if possible, else pad."""
    Mp8 = _round_up(M, 8)
    tm = _pick_tile(Mp8, 8, cap)
    if tm < min(Mp8, 128):          # divisor too small -> pad instead
        tm = min(cap, Mp8)
        return tm, _round_up(Mp8, tm)
    return tm, Mp8


# ----------------------------------------------------------------------------
# Tiled matmul kernel: bf16 operands, f32 accumulator, fused BN scale/bias,
# optional fused residual add, optional ReLU, bf16 output.
# ----------------------------------------------------------------------------
def _matmul_fused_kernel(*refs, relu, has_residual):
    if has_residual:
        x_ref, w_ref, s_ref, b_ref, r_ref, o_ref, acc_ref = refs
    else:
        x_ref, w_ref, s_ref, b_ref, o_ref, acc_ref = refs
        r_ref = None

    k = pl.program_id(2)

    @pl.when(k == 0)
    def _init():
        acc_ref[...] = jnp.zeros_like(acc_ref)

    acc_ref[...] += jnp.dot(x_ref[...], w_ref[...],
                            preferred_element_type=jnp.float32)

    @pl.when(k == pl.num_programs(2) - 1)
    def _finalize():
        y = acc_ref[...] * s_ref[...] + b_ref[...]
        if has_residual:
            y = y + r_ref[...].astype(jnp.float32)   # residual add in f32
        if relu:
            y = jnp.maximum(y, 0.0)
        o_ref[...] = y.astype(o_ref.dtype)


def matmul_fused(x, w_pad, scale_pad, bias_pad, n_true, *, residual=None,
                 relu=True, out_dtype=jnp.bfloat16, tn_max=256, tk_max=2048):
    """(M,K)@(Kp,Np) with fused scale/bias[/residual][/relu].

    w_pad/scale_pad/bias_pad are pre-cast and pre-padded to 128-multiples at
    prepare time; K/N tiles are exact divisors of the padded dims (no zero-K
    blowup), M is tiled by an exact divisor when available.
    """
    M, K = x.shape
    Kp, Np = w_pad.shape
    assert Kp == _round_up(K, 128), (K, Kp)

    tn = _pick_tile(Np, 128, tn_max)
    tk = _pick_tile(Kp, 128, tk_max)
    tm, Mp = _choose_m_tile(M, TM_MAX)

    xp = _pad2d(x.astype(jnp.bfloat16), Mp, Kp)
    has_res = residual is not None
    operands = [xp, w_pad, scale_pad, bias_pad]
    in_specs = [
        pl.BlockSpec((tm, tk), lambda i, j, k: (i, k)),
        pl.BlockSpec((tk, tn), lambda i, j, k: (k, j)),
        pl.BlockSpec((1, tn), lambda i, j, k: (0, j)),
        pl.BlockSpec((1, tn), lambda i, j, k: (0, j)),
    ]
    if has_res:
        operands.append(_pad2d(residual.astype(jnp.bfloat16), Mp, Np))
        in_specs.append(pl.BlockSpec((tm, tn), lambda i, j, k: (i, j)))

    kernel = functools.partial(_matmul_fused_kernel, relu=relu,
                               has_residual=has_res)
    out = pl.pallas_call(
        kernel,
        out_shape=jax.ShapeDtypeStruct((Mp, Np), out_dtype),
        grid_spec=pltpu.PrefetchScalarGridSpec(
            num_scalar_prefetch=0,
            grid=(Mp // tm, Np // tn, Kp // tk),
            in_specs=in_specs,
            out_specs=pl.BlockSpec((tm, tn), lambda i, j, k: (i, j)),
            scratch_shapes=[pltpu.VMEM((tm, tn), jnp.float32)]),
        compiler_params=pltpu.CompilerParams(
            dimension_semantics=("parallel", "parallel", "arbitrary"),
            vmem_limit_bytes=VMEM_LIMIT),
    )(*operands)
    return out[:M, :n_true]


# ----------------------------------------------------------------------------
# Fused "add + 2x-nearest-upsample(H) + ReLU".
# lo_wup is already W-upsampled (produced by the 1x1 conv with duplicated
# weight columns).  The H-direction repeat is done by pairing consecutive hi
# rows along the lane axis: hi slab (R/2, 2*W*C) + lo slab (R/2, W*C), each
# half of the hi lanes gets the same lo row.  No 4x HBM intermediate, no
# in-kernel relayout.
# ----------------------------------------------------------------------------
def _add_up_relu_kernel(hi_ref, lo_ref, o_ref, *, L):
    lo = lo_ref[...].astype(jnp.float32)
    hi = hi_ref[...].astype(jnp.float32)
    o_ref[:, :L] = jnp.maximum(hi[:, :L] + lo, 0.0).astype(o_ref.dtype)
    o_ref[:, L:] = jnp.maximum(hi[:, L:] + lo, 0.0).astype(o_ref.dtype)


def add_upsample_relu(hi, lo_wup):
    N, H, W, C = hi.shape
    assert H % 2 == 0 and lo_wup.shape == (N, H // 2, W, C), (hi.shape,
                                                              lo_wup.shape)
    L = W * C
    R2 = N * H // 2
    hi2 = hi.reshape(R2, 2 * L).astype(jnp.bfloat16)
    lo2 = lo_wup.reshape(R2, L).astype(jnp.bfloat16)

    # Row tile from a byte budget (hi + lo + out blocks, double buffered) so
    # wide W*C slabs stay within the per-generation VMEM limit (v7x: 64 MiB/TC).
    bytes_per_row = (2 * L + L + 2 * L) * 2          # bf16
    cap = max(8, min(512, ((VMEM_LIMIT // 4) // bytes_per_row) // 8 * 8))
    tr = _pick_tile(_round_up(R2, 8), 8, cap)
    if tr < min(R2, 64):
        tr = min(cap, _round_up(R2, 8))
    Rp = _round_up(R2, tr)
    if Rp != R2:
        hi2 = jnp.pad(hi2, ((0, Rp - R2), (0, 0)))
        lo2 = jnp.pad(lo2, ((0, Rp - R2), (0, 0)))

    out = pl.pallas_call(
        functools.partial(_add_up_relu_kernel, L=L),
        out_shape=jax.ShapeDtypeStruct((Rp, 2 * L), jnp.bfloat16),
        grid_spec=pltpu.PrefetchScalarGridSpec(
            num_scalar_prefetch=0,
            grid=(Rp // tr,),
            in_specs=[pl.BlockSpec((tr, 2 * L), lambda i: (i, 0)),
                      pl.BlockSpec((tr, L), lambda i: (i, 0))],
            out_specs=pl.BlockSpec((tr, 2 * L), lambda i: (i, 0))),
        compiler_params=pltpu.CompilerParams(
            dimension_semantics=("parallel",),
            vmem_limit_bytes=VMEM_LIMIT),
    )(hi2, lo2)
    return out[:R2].reshape(N, H, W, C)


# ----------------------------------------------------------------------------
# Fused head: 1x1 conv -> 2048, ReLU, masked global-avg-pool via an in-kernel
# cross-sublane sum (no (N, R) pooling matmul), then f32 FC(2048 -> 48).
# Grid = (batch, row-chunks); padded rows are masked so any H*W works.
# ----------------------------------------------------------------------------
def _head_kernel(x_ref, wh_ref, s_ref, b_ref, wf_ref, bf_ref, o_ref,
                 acc_ref, pool_ref, *, hw, tr):
    n = pl.program_id(0)
    j = pl.program_id(1)
    n_last = pl.num_programs(0) - 1
    j_last = pl.num_programs(1) - 1

    @pl.when((n == 0) & (j == 0))
    def _init_pool():
        pool_ref[...] = jnp.zeros_like(pool_ref)

    @pl.when(j == 0)
    def _init_acc():
        acc_ref[...] = jnp.zeros_like(acc_ref)

    feat = jnp.dot(x_ref[...], wh_ref[...],
                   preferred_element_type=jnp.float32)          # (tr, 2048)
    feat = jnp.maximum(feat * s_ref[...] + b_ref[...], 0.0)
    # rows past the true H*W are zero-padded inputs, but relu(bias) != 0: mask.
    row = j * tr + jax.lax.broadcasted_iota(jnp.int32, (feat.shape[0], 1), 0)
    feat = jnp.where(row < hw, feat, 0.0)
    acc_ref[...] += jnp.sum(feat, axis=0, keepdims=True)        # (1, 2048)

    @pl.when(j == j_last)
    def _write_pool():
        nb = pool_ref.shape[0]
        sel = jax.lax.broadcasted_iota(jnp.int32, (nb, 1), 0) == n
        pool_ref[...] += jnp.where(sel, acc_ref[...] * (1.0 / hw), 0.0)

    @pl.when((n == n_last) & (j == j_last))
    def _fc():
        logits = jnp.dot(pool_ref[...], wf_ref[...],
                         preferred_element_type=jnp.float32) + bf_ref[...]
        o_ref[...] = logits


def head_fused(merged, head_pp, fc_w_pad, fc_b_pad):
    N, H, W, C = merged.shape
    HW = H * W
    Cp, F = head_pp["w"].shape
    NCp = fc_w_pad.shape[1]
    NP8 = _round_up(max(N, 1), 8)

    HW8 = _round_up(HW, 8)
    tr = _pick_tile(HW8, 8, 512)
    if tr < min(HW8, 64):
        tr = min(512, HW8)
    HWp = _round_up(HW, tr)
    nj = HWp // tr

    x3 = merged.reshape(N, HW, C).astype(jnp.bfloat16)
    x3 = jnp.pad(x3, ((0, 0), (0, HWp - HW), (0, Cp - C)))
    x2 = x3.reshape(N * HWp, Cp)

    kernel = functools.partial(_head_kernel, hw=HW, tr=tr)
    out = pl.pallas_call(
        kernel,
        out_shape=jax.ShapeDtypeStruct((NP8, NCp), jnp.float32),
        grid_spec=pltpu.PrefetchScalarGridSpec(
            num_scalar_prefetch=0,
            grid=(N, nj),
            in_specs=[
                pl.BlockSpec((tr, Cp), lambda n, j: (n * nj + j, 0)),
                pl.BlockSpec((Cp, F), lambda n, j: (0, 0)),
                pl.BlockSpec((1, F), lambda n, j: (0, 0)),
                pl.BlockSpec((1, F), lambda n, j: (0, 0)),
                pl.BlockSpec((F, NCp), lambda n, j: (0, 0)),
                pl.BlockSpec((1, NCp), lambda n, j: (0, 0)),
            ],
            out_specs=pl.BlockSpec((NP8, NCp), lambda n, j: (0, 0)),
            scratch_shapes=[pltpu.VMEM((1, F), jnp.float32),
                            pltpu.VMEM((NP8, F), jnp.float32)]),
        compiler_params=pltpu.CompilerParams(
            dimension_semantics=("arbitrary", "arbitrary"),
            vmem_limit_bytes=VMEM_LIMIT),
    )(x2, head_pp["w"], head_pp["scale"], head_pp["bias"], fc_w_pad, fc_b_pad)
    return out[:N, :NUM_CLASSES]


# ----------------------------------------------------------------------------
# Conv = im2col (plain-JAX data-movement glue, bf16) + tiled Pallas matmul
# with fused BN / residual / ReLU.
# ----------------------------------------------------------------------------
def conv2d_bn_act(x, pp, *, kh, kw, cout, stride=1, padding=0, relu=True,
                  residual=None):
    # x: (N, H, W, Cin) NHWC; pp holds pre-cast/pre-padded (K, Cout) weight.
    N, H, W, Cin = x.shape
    x = x.astype(jnp.bfloat16)
    OH = (H + 2 * padding - kh) // stride + 1
    OW = (W + 2 * padding - kw) // stride + 1
    if kh == 1 and kw == 1 and stride == 1 and padding == 0:
        patches = x.reshape(N * H * W, Cin)
    else:
        xp = jnp.pad(x, ((0, 0), (padding, padding), (padding, padding),
                         (0, 0)))
        # TODO(synk): move this im2col gather into the kernel (extra reduction
        # grid axis over the KH*KW taps) to kill the ~9x HBM amplification at
        # real HRNet resolutions.
        cols = [xp[:, i:i + stride * OH:stride, j:j + stride * OW:stride, :]
                for i in range(kh) for j in range(kw)]
        patches = jnp.concatenate(cols, axis=-1).reshape(N * OH * OW,
                                                         kh * kw * Cin)
    res2 = None if residual is None else residual.reshape(N * OH * OW, cout)
    y = matmul_fused(patches, pp["w"], pp["scale"], pp["bias"], cout,
                     residual=res2, relu=relu)
    return y.reshape(N, OH, OW, cout)


# ----------------------------------------------------------------------------
# Parameter init (deterministic, synthetic; folded BN as scale/bias) and
# one-time preparation (cast to bf16, reshape to matmul layout, pad to 128).
# ----------------------------------------------------------------------------
def _conv_params(key, kh, kw, cin, cout):
    kw_, kb_ = jax.random.split(key)
    w = 0.05 * jax.random.normal(kw_, (kh, kw, cin, cout), jnp.float32)
    scale = jnp.ones((cout,), jnp.float32)          # folded BN gamma/sqrt(var)
    bias = 0.01 * jax.random.normal(kb_, (cout,), jnp.float32)  # folded beta
    return {"w": w, "scale": scale, "bias": bias}


def init_params(key):
    ks = jax.random.split(key, 16)
    p = {}
    p["stem1"] = _conv_params(ks[0], 3, 3, 3, HI_CH)           # 3x3 s2
    p["stem2"] = _conv_params(ks[1], 3, 3, HI_CH, HI_CH)       # 3x3 s2
    p["hi_b1"] = _conv_params(ks[2], 3, 3, HI_CH, HI_CH)       # high-res block
    p["hi_b2"] = _conv_params(ks[3], 3, 3, HI_CH, HI_CH)
    p["trans_lo"] = _conv_params(ks[4], 3, 3, HI_CH, LO_CH)    # transition, s2
    p["lo_b1"] = _conv_params(ks[5], 3, 3, LO_CH, LO_CH)       # low-res block
    p["lo_b2"] = _conv_params(ks[6], 3, 3, LO_CH, LO_CH)
    p["fuse_lo2hi"] = _conv_params(ks[7], 1, 1, LO_CH, HI_CH)  # 1x1 + upsample
    p["fuse_hi2lo"] = _conv_params(ks[8], 3, 3, HI_CH, LO_CH)  # 3x3 s2
    p["head_down"] = _conv_params(ks[9], 3, 3, HI_CH, LO_CH)   # hi -> lo res
    p["head_final"] = _conv_params(ks[10], 1, 1, LO_CH, HEAD_FEATURES)
    # nn.Linear(2048, 48): weight stored pre-transposed to (2048, 48)
    p["fc_w"] = 0.02 * jax.random.normal(ks[11],
                                         (HEAD_FEATURES, NUM_CLASSES),
                                         jnp.float32)
    p["fc_b"] = 0.01 * jax.random.normal(ks[12], (NUM_CLASSES,), jnp.float32)
    return p


def _prep_conv(w, scale, bias):
    kh, kw, cin, cout = w.shape
    K = kh * kw * cin
    Kp, Np = _round_up(K, 128), _round_up(cout, 128)
    wm = _pad2d(w.reshape(K, cout).astype(jnp.bfloat16), Kp, Np)
    s = _pad2d(scale.reshape(1, cout).astype(jnp.float32), 1, Np)
    b = _pad2d(bias.reshape(1, cout).astype(jnp.float32), 1, Np)
    return {"w": wm, "scale": s, "bias": b}


def prepare_params(p):
    pp = {}
    for name in ("stem1", "stem2", "hi_b1", "hi_b2", "trans_lo",
                 "lo_b1", "lo_b2", "fuse_hi2lo", "head_down", "head_final"):
        q = p[name]
        pp[name] = _prep_conv(q["w"], q["scale"], q["bias"])
    # lo->hi fusion conv: duplicate the output columns so the matmul emits the
    # W-direction nearest-2x upsample directly ((R, 2C) row-major == (2R, C)).
    q = p["fuse_lo2hi"]
    w2 = jnp.concatenate([q["w"], q["w"]], axis=-1)
    s2 = jnp.concatenate([q["scale"], q["scale"]], axis=-1)
    b2 = jnp.concatenate([q["bias"], q["bias"]], axis=-1)
    pp["fuse_lo2hi_wup"] = _prep_conv(w2, s2, b2)
    # classifier: nn.Linear(2048, 48); kept f32 for fidelity, lane-padded.
    NCp = _round_up(NUM_CLASSES, 128)
    pp["fc_w"] = jnp.pad(p["fc_w"].astype(jnp.float32),
                         ((0, 0), (0, NCp - NUM_CLASSES)))
    pp["fc_b"] = jnp.pad(p["fc_b"].reshape(1, NUM_CLASSES).astype(jnp.float32),
                         ((0, 0), (0, NCp - NUM_CLASSES)))
    return pp


# ----------------------------------------------------------------------------
# Forward pass (mini HRNet + classifier head)
# ----------------------------------------------------------------------------
def basic_block(x, pp1, pp2, *, ch):
    y = conv2d_bn_act(x, pp1, kh=3, kw=3, cout=ch, stride=1, padding=1,
                      relu=True)
    # residual add + ReLU fused into the second conv's matmul kernel
    return conv2d_bn_act(y, pp2, kh=3, kw=3, cout=ch, stride=1, padding=1,
                         relu=True, residual=x)


def hrnet_forward(pp, x_nchw):
    x = jnp.transpose(x_nchw, (0, 2, 3, 1)).astype(jnp.bfloat16)  # NCHW->NHWC

    # --- stem: two stride-2 3x3 convs ---
    x = conv2d_bn_act(x, pp["stem1"], kh=3, kw=3, cout=HI_CH, stride=2,
                      padding=1, relu=True)
    x = conv2d_bn_act(x, pp["stem2"], kh=3, kw=3, cout=HI_CH, stride=2,
                      padding=1, relu=True)

    # --- multi-resolution stage: high-res branch + low-res branch ---
    hi = basic_block(x, pp["hi_b1"], pp["hi_b2"], ch=HI_CH)
    lo = conv2d_bn_act(x, pp["trans_lo"], kh=3, kw=3, cout=LO_CH, stride=2,
                       padding=1, relu=True)
    lo = basic_block(lo, pp["lo_b1"], pp["lo_b2"], ch=LO_CH)

    # --- cross-resolution fusion ---
    # 1x1 conv with duplicated columns -> output is already W-upsampled.
    lo2hi = conv2d_bn_act(lo, pp["fuse_lo2hi_wup"], kh=1, kw=1, cout=2 * HI_CH,
                          stride=1, padding=0, relu=False)
    Nb, Hl, Wl, _ = lo2hi.shape
    lo2hi_wup = lo2hi.reshape(Nb, Hl, 2 * Wl, HI_CH)
    # H-direction upsample fused into the add+ReLU kernel (lane-paired rows).
    hi_f = add_upsample_relu(hi, lo2hi_wup)
    # add + ReLU fused into the downsampling conv's matmul
    lo_f = conv2d_bn_act(hi, pp["fuse_hi2lo"], kh=3, kw=3, cout=LO_CH,
                         stride=2, padding=1, relu=True, residual=lo)

    # --- classification head: downsample + merge (fused add) ---
    merged = conv2d_bn_act(hi_f, pp["head_down"], kh=3, kw=3, cout=LO_CH,
                           stride=2, padding=1, relu=True, residual=lo_f)

    # --- fused: 1x1 conv to 2048 -> masked global-avg-pool -> Linear(2048,48)
    logits = head_fused(merged, pp["head_final"], pp["fc_w"], pp["fc_b"])
    return logits


# ----------------------------------------------------------------------------
if __name__ == "__main__":
    key = jax.random.PRNGKey(0)
    k_param, k_input = jax.random.split(key)

    params = init_params(k_param)
    prepared = prepare_params(params)      # one-time bf16 cast + tile padding

    # Small RGB image batch, NCHW like the PyTorch module expects.
    x = jax.random.normal(k_input, (2, 3, 32, 32), jnp.float32)

    fwd = jax.jit(hrnet_forward)
    logits = jax.block_until_ready(fwd(prepared, x))

    assert logits.shape == (2, NUM_CLASSES), logits.shape
    assert logits.dtype == jnp.float32
    print("KERNEL_OK")
</pallas_src>

<mosaic_0001>
module attributes {stable_mosaic.version = 11 : i64} {
  func.func @_matmul_fused_kernel(%arg0: i32, %arg1: i32, %arg2: i32, %arg3: memref<512x128xbf16, #tpu.memory_space<vmem>>, %arg4: memref<128x128xbf16, #tpu.memory_space<vmem>>, %arg5: memref<1x128xf32, #tpu.memory_space<vmem>>, %arg6: memref<1x128xf32, #tpu.memory_space<vmem>>, %arg7: memref<512x128xbf16, #tpu.memory_space<vmem>>, %arg8: memref<512x128xf32, #tpu.memory_space<vmem>>) attributes {dimension_semantics = [#tpu.dimension_semantics<parallel>, #tpu.dimension_semantics<parallel>, #tpu.dimension_semantics<arbitrary>], iteration_bounds = array<i64: 1, 1, 1>, scalar_prefetch = 0 : i64, scratch_operands = 1 : i64, tpu.core_type = #tpu.core_type<tc>, window_params = [{transform_indices = @transform_0, window_bounds = array<i64: 512, 128>}, {transform_indices = @transform_1, window_bounds = array<i64: 128, 128>}, {transform_indices = @transform_2, window_bounds = array<i64: 1, 128>}, {transform_indices = @transform_3, window_bounds = array<i64: 1, 128>}, {transform_indices = @transform_4, window_bounds = array<i64: 512, 128>}]} {
    %c0_i32 = arith.constant 0 : i32
    %0 = arith.cmpi eq, %arg2, %c0_i32 : i32
    %1 = arith.extui %0 : i1 to i32
    %c0_i32_0 = arith.constant 0 : i32
    %2 = arith.cmpi ne, %1, %c0_i32_0 : i32
    scf.if %2 {
      %cst_10 = arith.constant 0.000000e+00 : f32
      %12 = vector.broadcast %cst_10 : f32 to vector<512x128xf32>
      %c0_11 = arith.constant 0 : index
      %c0_12 = arith.constant 0 : index
      %13 = vector.load %arg8[%c0_11, %c0_12] : memref<512x128xf32, #tpu.memory_space<vmem>>, vector<512x128xf32>
      tpu.vector_store %arg8[%c0_11, %c0_12], %12 {strides = array<i32>} : memref<512x128xf32, #tpu.memory_space<vmem>>, vector<512x128xf32>,
    } else {
    }
    %c0 = arith.constant 0 : index
    %c0_1 = arith.constant 0 : index
    %3 = vector.load %arg8[%c0, %c0_1] : memref<512x128xf32, #tpu.memory_space<vmem>>, vector<512x128xf32>
    %c0_2 = arith.constant 0 : index
    %c0_3 = arith.constant 0 : index
    %4 = vector.load %arg3[%c0_2, %c0_3] : memref<512x128xbf16, #tpu.memory_space<vmem>>, vector<512x128xbf16>
    %c0_4 = arith.constant 0 : index
    %c0_5 = arith.constant 0 : index
    %5 = vector.load %arg4[%c0_4, %c0_5] : memref<128x128xbf16, #tpu.memory_space<vmem>>, vector<128x128xbf16>
    %cst = arith.constant dense<0.000000e+00> : vector<512x128xf32>
    %6 = tpu.matmul %4, %5, %cst {dimension_numbers = #tpu.dot_dimension_numbers<[1], [0], [0], [1], [0, 0, 1, 1], [], []>} : vector<512x128xbf16>, vector<128x128xbf16>, vector<512x128xf32> -> vector<512x128xf32>
    %7 = arith.addf %3, %6 : vector<512x128xf32>
    %c0_6 = arith.constant 0 : index
    %c0_7 = arith.constant 0 : index
    %8 = vector.load %arg8[%c0_6, %c0_7] : memref<512x128xf32, #tpu.memory_space<vmem>>, vector<512x128xf32>
    tpu.vector_store %arg8[%c0_6, %c0_7], %7 {strides = array<i32>} : memref<512x128xf32, #tpu.memory_space<vmem>>, vector<512x128xf32>,
    %c0_i32_8 = arith.constant 0 : i32
    %9 = arith.cmpi eq, %arg2, %c0_i32_8 : i32
    %10 = arith.extui %9 : i1 to i32
    %c0_i32_9 = arith.constant 0 : i32
    %11 = arith.cmpi ne, %10, %c0_i32_9 : i32
    scf.if %11 {
      %c0_10 = arith.constant 0 : index
      %c0_11 = arith.constant 0 : index
      %12 = vector.load %arg8[%c0_10, %c0_11] : memref<512x128xf32, #tpu.memory_space<vmem>>, vector<512x128xf32>
      %c0_12 = arith.constant 0 : index
      %c0_13 = arith.constant 0 : index
      %13 = vector.load %arg5[%c0_12, %c0_13] : memref<1x128xf32, #tpu.memory_space<vmem>>, vector<1x128xf32>
      %14 = vector.broadcast %13 : vector<1x128xf32> to vector<512x128xf32>
      %15 = arith.mulf %12, %14 : vector<512x128xf32>
      %c0_14 = arith.constant 0 : index
      %c0_15 = arith.constant 0 : index
      %16 = vector.load %arg6[%c0_14, %c0_15] : memref<1x128xf32, #tpu.memory_space<vmem>>, vector<1x128xf32>
      %17 = vector.broadcast %16 : vector<1x128xf32> to vector<512x128xf32>
      %18 = arith.addf %15, %17 : vector<512x128xf32>
      %cst_16 = arith.constant 0.000000e+00 : f32
      %19 = vector.broadcast %cst_16 : f32 to vector<512x128xf32>
      %20 = arith.maximumf %18, %19 : vector<512x128xf32>
      %21 = arith.truncf %20 : vector<512x128xf32> to vector<512x128xbf16>
      %c0_17 = arith.constant 0 : index
      %c0_18 = arith.constant 0 : index
      %22 = vector.load %arg7[%c0_17, %c0_18] : memref<512x128xbf16, #tpu.memory_space<vmem>>, vector<512x128xbf16>
      tpu.vector_store %arg7[%c0_17, %c0_18], %21 {strides = array<i32>} : memref<512x128xbf16, #tpu.memory_space<vmem>>, vector<512x128xbf16>,
    } else {
    }
    return
  }
  func.func @transform_0(%arg0: i32, %arg1: i32, %arg2: i32) -> (i32, i32) {
    %c0_i32 = arith.constant 0 : i32
    return %arg0, %arg2 : i32, i32
  }
  func.func @transform_1(%arg0: i32, %arg1: i32, %arg2: i32) -> (i32, i32) {
    %c0_i32 = arith.constant 0 : i32
    return %arg2, %arg1 : i32, i32
  }
  func.func @transform_2(%arg0: i32, %arg1: i32, %arg2: i32) -> (i32, i32) {
    %c0_i32 = arith.constant 0 : i32
    %c0_i32_0 = arith.constant 0 : i32
    return %c0_i32, %arg1 : i32, i32
  }
  func.func @transform_3(%arg0: i32, %arg1: i32, %arg2: i32) -> (i32, i32) {
    %c0_i32 = arith.constant 0 : i32
    %c0_i32_0 = arith.constant 0 : i32
    return %c0_i32, %arg1 : i32, i32
  }
  func.func @transform_4(%arg0: i32, %arg1: i32, %arg2: i32) -> (i32, i32) {
    %c0_i32 = arith.constant 0 : i32
    return %arg0, %arg1 : i32, i32
  }
}

module attributes {stable_mosaic.version = 11 : i64} {
  func.func @_matmul_fused_kernel(%arg0: i32, %arg1: i32, %arg2: i32, %arg3: memref<128x640xbf16, #tpu.memory_space<vmem>>, %arg4: memref<640x128xbf16, #tpu.memory_space<vmem>>, %arg5: memref<1x128xf32, #tpu.memory_space<vmem>>, %arg6: memref<1x128xf32, #tpu.memory_space<vmem>>, %arg7: memref<128x128xbf16, #tpu.memory_space<vmem>>, %arg8: memref<128x128xf32, #tpu.memory_space<vmem>>) attributes {dimension_semantics = [#tpu.dimension_semantics<parallel>, #tpu.dimension_semantics<parallel>, #tpu.dimension_semantics<arbitrary>], iteration_bounds = array<i64: 1, 1, 1>, scalar_prefetch = 0 : i64, scratch_operands = 1 : i64, tpu.core_type = #tpu.core_type<tc>, window_params = [{transform_indices = @transform_0, window_bounds = array<i64: 128, 640>}, {transform_indices = @transform_1, window_bounds = array<i64: 640, 128>}, {transform_indices = @transform_2, window_bounds = array<i64: 1, 128>}, {transform_indices = @transform_3, window_bounds = array<i64: 1, 128>}, {transform_indices = @transform_4, window_bounds = array<i64: 128, 128>}]} {
    %c0_i32 = arith.constant 0 : i32
    %0 = arith.cmpi eq, %arg2, %c0_i32 : i32
    %1 = arith.extui %0 : i1 to i32
    %c0_i32_0 = arith.constant 0 : i32
    %2 = arith.cmpi ne, %1, %c0_i32_0 : i32
    scf.if %2 {
      %cst_10 = arith.constant 0.000000e+00 : f32
      %12 = vector.broadcast %cst_10 : f32 to vector<128x128xf32>
      %c0_11 = arith.constant 0 : index
      %c0_12 = arith.constant 0 : index
      %13 = vector.load %arg8[%c0_11, %c0_12] : memref<128x128xf32, #tpu.memory_space<vmem>>, vector<128x128xf32>
      tpu.vector_store %arg8[%c0_11, %c0_12], %12 {strides = array<i32>} : memref<128x128xf32, #tpu.memory_space<vmem>>, vector<128x128xf32>,
    } else {
    }
    %c0 = arith.constant 0 : index
    %c0_1 = arith.constant 0 : index
    %3 = vector.load %arg8[%c0, %c0_1] : memref<128x128xf32, #tpu.memory_space<vmem>>, vector<128x128xf32>
    %c0_2 = arith.constant 0 : index
    %c0_3 = arith.constant 0 : index
    %4 = vector.load %arg3[%c0_2, %c0_3] : memref<128x640xbf16, #tpu.memory_space<vmem>>, vector<128x640xbf16>
    %c0_4 = arith.constant 0 : index
    %c0_5 = arith.constant 0 : index
    %5 = vector.load %arg4[%c0_4, %c0_5] : memref<640x128xbf16, #tpu.memory_space<vmem>>, vector<640x128xbf16>
    %cst = arith.constant dense<0.000000e+00> : vector<128x128xf32>
    %6 = tpu.matmul %4, %5, %cst {dimension_numbers = #tpu.dot_dimension_numbers<[1], [0], [0], [1], [0, 0, 1, 1], [], []>} : vector<128x640xbf16>, vector<640x128xbf16>, vector<128x128xf32> -> vector<128x128xf32>
    %7 = arith.addf %3, %6 : vector<128x128xf32>
    %c0_6 = arith.constant 0 : index
    %c0_7 = arith.constant 0 : index
    %8 = vector.load %arg8[%c0_6, %c0_7] : memref<128x128xf32, #tpu.memory_space<vmem>>, vector<128x128xf32>
    tpu.vector_store %arg8[%c0_6, %c0_7], %7 {strides = array<i32>} : memref<128x128xf32, #tpu.memory_space<vmem>>, vector<128x128xf32>,
    %c0_i32_8 = arith.constant 0 : i32
    %9 = arith.cmpi eq, %arg2, %c0_i32_8 : i32
    %10 = arith.extui %9 : i1 to i32
    %c0_i32_9 = arith.constant 0 : i32
    %11 = arith.cmpi ne, %10, %c0_i32_9 : i32
    scf.if %11 {
      %c0_10 = arith.constant 0 : index
      %c0_11 = arith.constant 0 : index
      %12 = vector.load %arg8[%c0_10, %c0_11] : memref<128x128xf32, #tpu.memory_space<vmem>>, vector<128x128xf32>
      %c0_12 = arith.constant 0 : index
      %c0_13 = arith.constant 0 : index
      %13 = vector.load %arg5[%c0_12, %c0_13] : memref<1x128xf32, #tpu.memory_space<vmem>>, vector<1x128xf32>
      %14 = vector.broadcast %13 : vector<1x128xf32> to vector<128x128xf32>
      %15 = arith.mulf %12, %14 : vector<128x128xf32>
      %c0_14 = arith.constant 0 : index
      %c0_15 = arith.constant 0 : index
      %16 = vector.load %arg6[%c0_14, %c0_15] : memref<1x128xf32, #tpu.memory_space<vmem>>, vector<1x128xf32>
      %17 = vector.broadcast %16 : vector<1x128xf32> to vector<128x128xf32>
      %18 = arith.addf %15, %17 : vector<128x128xf32>
      %cst_16 = arith.constant 0.000000e+00 : f32
      %19 = vector.broadcast %cst_16 : f32 to vector<128x128xf32>
      %20 = arith.maximumf %18, %19 : vector<128x128xf32>
      %21 = arith.truncf %20 : vector<128x128xf32> to vector<128x128xbf16>
      %c0_17 = arith.constant 0 : index
      %c0_18 = arith.constant 0 : index
      %22 = vector.load %arg7[%c0_17, %c0_18] : memref<128x128xbf16, #tpu.memory_space<vmem>>, vector<128x128xbf16>
      tpu.vector_store %arg7[%c0_17, %c0_18], %21 {strides = array<i32>} : memref<128x128xbf16, #tpu.memory_space<vmem>>, vector<128x128xbf16>,
    } else {
    }
    return
  }
  func.func @transform_0(%arg0: i32, %arg1: i32, %arg2: i32) -> (i32, i32) {
    %c0_i32 = arith.constant 0 : i32
    return %arg0, %arg2 : i32, i32
  }
  func.func @transform_1(%arg0: i32, %arg1: i32, %arg2: i32) -> (i32, i32) {
    %c0_i32 = arith.constant 0 : i32
    return %arg2, %arg1 : i32, i32
  }
  func.func @transform_2(%arg0: i32, %arg1: i32, %arg2: i32) -> (i32, i32) {
    %c0_i32 = arith.constant 0 : i32
    %c0_i32_0 = arith.constant 0 : i32
    return %c0_i32, %arg1 : i32, i32
  }
  func.func @transform_3(%arg0: i32, %arg1: i32, %arg2: i32) -> (i32, i32) {
    %c0_i32 = arith.constant 0 : i32
    %c0_i32_0 = arith.constant 0 : i32
    return %c0_i32, %arg1 : i32, i32
  }
  func.func @transform_4(%arg0: i32, %arg1: i32, %arg2: i32) -> (i32, i32) {
    %c0_i32 = arith.constant 0 : i32
    return %arg0, %arg1 : i32, i32
  }
}

module attributes {stable_mosaic.version = 11 : i64} {
  func.func @_matmul_fused_kernel(%arg0: i32, %arg1: i32, %arg2: i32, %arg3: memref<128x640xbf16, #tpu.memory_space<vmem>>, %arg4: memref<640x128xbf16, #tpu.memory_space<vmem>>, %arg5: memref<1x128xf32, #tpu.memory_space<vmem>>, %arg6: memref<1x128xf32, #tpu.memory_space<vmem>>, %arg7: memref<128x128xbf16, #tpu.memory_space<vmem>>, %arg8: memref<128x128xbf16, #tpu.memory_space<vmem>>, %arg9: memref<128x128xf32, #tpu.memory_space<vmem>>) attributes {dimension_semantics = [#tpu.dimension_semantics<parallel>, #tpu.dimension_semantics<parallel>, #tpu.dimension_semantics<arbitrary>], iteration_bounds = array<i64: 1, 1, 1>, scalar_prefetch = 0 : i64, scratch_operands = 1 : i64, tpu.core_type = #tpu.core_type<tc>, window_params = [{transform_indices = @transform_0, window_bounds = array<i64: 128, 640>}, {transform_indices = @transform_1, window_bounds = array<i64: 640, 128>}, {transform_indices = @transform_2, window_bounds = array<i64: 1, 128>}, {transform_indices = @transform_3, window_bounds = array<i64: 1, 128>}, {transform_indices = @transform_4, window_bounds = array<i64: 128, 128>}, {transform_indices = @transform_5, window_bounds = array<i64: 128, 128>}]} {
    %c0_i32 = arith.constant 0 : i32
    %0 = arith.cmpi eq, %arg2, %c0_i32 : i32
    %1 = arith.extui %0 : i1 to i32
    %c0_i32_0 = arith.constant 0 : i32
    %2 = arith.cmpi ne, %1, %c0_i32_0 : i32
    scf.if %2 {
      %cst_10 = arith.constant 0.000000e+00 : f32
      %12 = vector.broadcast %cst_10 : f32 to vector<128x128xf32>
      %c0_11 = arith.constant 0 : index
      %c0_12 = arith.constant 0 : index
      %13 = vector.load %arg9[%c0_11, %c0_12] : memref<128x128xf32, #tpu.memory_space<vmem>>, vector<128x128xf32>
      tpu.vector_store %arg9[%c0_11, %c0_12], %12 {strides = array<i32>} : memref<128x128xf32, #tpu.memory_space<vmem>>, vector<128x128xf32>,
    } else {
    }
    %c0 = arith.constant 0 : index
    %c0_1 = arith.constant 0 : index
    %3 = vector.load %arg9[%c0, %c0_1] : memref<128x128xf32, #tpu.memory_space<vmem>>, vector<128x128xf32>
    %c0_2 = arith.constant 0 : index
    %c0_3 = arith.constant 0 : index
    %4 = vector.load %arg3[%c0_2, %c0_3] : memref<128x640xbf16, #tpu.memory_space<vmem>>, vector<128x640xbf16>
    %c0_4 = arith.constant 0 : index
    %c0_5 = arith.constant 0 : index
    %5 = vector.load %arg4[%c0_4, %c0_5] : memref<640x128xbf16, #tpu.memory_space<vmem>>, vector<640x128xbf16>
    %cst = arith.constant dense<0.000000e+00> : vector<128x128xf32>
    %6 = tpu.matmul %4, %5, %cst {dimension_numbers = #tpu.dot_dimension_numbers<[1], [0], [0], [1], [0, 0, 1, 1], [], []>} : vector<128x640xbf16>, vector<640x128xbf16>, vector<128x128xf32> -> vector<128x128xf32>
    %7 = arith.addf %3, %6 : vector<128x128xf32>
    %c0_6 = arith.constant 0 : index
    %c0_7 = arith.constant 0 : index
    %8 = vector.load %arg9[%c0_6, %c0_7] : memref<128x128xf32, #tpu.memory_space<vmem>>, vector<128x128xf32>
    tpu.vector_store %arg9[%c0_6, %c0_7], %7 {strides = array<i32>} : memref<128x128xf32, #tpu.memory_space<vmem>>, vector<128x128xf32>,
    %c0_i32_8 = arith.constant 0 : i32
    %9 = arith.cmpi eq, %arg2, %c0_i32_8 : i32
    %10 = arith.extui %9 : i1 to i32
    %c0_i32_9 = arith.constant 0 : i32
    %11 = arith.cmpi ne, %10, %c0_i32_9 : i32
    scf.if %11 {
      %c0_10 = arith.constant 0 : index
      %c0_11 = arith.constant 0 : index
      %12 = vector.load %arg9[%c0_10, %c0_11] : memref<128x128xf32, #tpu.memory_space<vmem>>, vector<128x128xf32>
      %c0_12 = arith.constant 0 : index
      %c0_13 = arith.constant 0 : index
      %13 = vector.load %arg5[%c0_12, %c0_13] : memref<1x128xf32, #tpu.memory_space<vmem>>, vector<1x128xf32>
      %14 = vector.broadcast %13 : vector<1x128xf32> to vector<128x128xf32>
      %15 = arith.mulf %12, %14 : vector<128x128xf32>
      %c0_14 = arith.constant 0 : index
      %c0_15 = arith.constant 0 : index
      %16 = vector.load %arg6[%c0_14, %c0_15] : memref<1x128xf32, #tpu.memory_space<vmem>>, vector<1x128xf32>
      %17 = vector.broadcast %16 : vector<1x128xf32> to vector<128x128xf32>
      %18 = arith.addf %15, %17 : vector<128x128xf32>
      %c0_16 = arith.constant 0 : index
      %c0_17 = arith.constant 0 : index
      %19 = vector.load %arg7[%c0_16, %c0_17] : memref<128x128xbf16, #tpu.memory_space<vmem>>, vector<128x128xbf16>
      %20 = arith.extf %19 : vector<128x128xbf16> to vector<128x128xf32>
      %21 = arith.addf %18, %20 : vector<128x128xf32>
      %cst_18 = arith.constant 0.000000e+00 : f32
      %22 = vector.broadcast %cst_18 : f32 to vector<128x128xf32>
      %23 = arith.maximumf %21, %22 : vector<128x128xf32>
      %24 = arith.truncf %23 : vector<128x128xf32> to vector<128x128xbf16>
      %c0_19 = arith.constant 0 : index
      %c0_20 = arith.constant 0 : index
      %25 = vector.load %arg8[%c0_19, %c0_20] : memref<128x128xbf16, #tpu.memory_space<vmem>>, vector<128x128xbf16>
      tpu.vector_store %arg8[%c0_19, %c0_20], %24 {strides = array<i32>} : memref<128x128xbf16, #tpu.memory_space<vmem>>, vector<128x128xbf16>,
    } else {
    }
    return
  }
  func.func @transform_0(%arg0: i32, %arg1: i32, %arg2: i32) -> (i32, i32) {
    %c0_i32 = arith.constant 0 : i32
    return %arg0, %arg2 : i32, i32
  }
  func.func @transform_1(%arg0: i32, %arg1: i32, %arg2: i32) -> (i32, i32) {
    %c0_i32 = arith.constant 0 : i32
    return %arg2, %arg1 : i32, i32
  }
  func.func @transform_2(%arg0: i32, %arg1: i32, %arg2: i32) -> (i32, i32) {
    %c0_i32 = arith.constant 0 : i32
    %c0_i32_0 = arith.constant 0 : i32
    return %c0_i32, %arg1 : i32, i32
  }
  func.func @transform_3(%arg0: i32, %arg1: i32, %arg2: i32) -> (i32, i32) {
    %c0_i32 = arith.constant 0 : i32
    %c0_i32_0 = arith.constant 0 : i32
    return %c0_i32, %arg1 : i32, i32
  }
  func.func @transform_4(%arg0: i32, %arg1: i32, %arg2: i32) -> (i32, i32) {
    %c0_i32 = arith.constant 0 : i32
    return %arg0, %arg1 : i32, i32
  }
  func.func @transform_5(%arg0: i32, %arg1: i32, %arg2: i32) -> (i32, i32) {
    %c0_i32 = arith.constant 0 : i32
    return %arg0, %arg1 : i32, i32
  }
}

module attributes {stable_mosaic.version = 11 : i64} {
  func.func @_matmul_fused_kernel(%arg0: i32, %arg1: i32, %arg2: i32, %arg3: memref<32x640xbf16, #tpu.memory_space<vmem>>, %arg4: memref<640x128xbf16, #tpu.memory_space<vmem>>, %arg5: memref<1x128xf32, #tpu.memory_space<vmem>>, %arg6: memref<1x128xf32, #tpu.memory_space<vmem>>, %arg7: memref<32x128xbf16, #tpu.memory_space<vmem>>, %arg8: memref<32x128xf32, #tpu.memory_space<vmem>>) attributes {dimension_semantics = [#tpu.dimension_semantics<parallel>, #tpu.dimension_semantics<parallel>, #tpu.dimension_semantics<arbitrary>], iteration_bounds = array<i64: 1, 1, 1>, scalar_prefetch = 0 : i64, scratch_operands = 1 : i64, tpu.core_type = #tpu.core_type<tc>, window_params = [{transform_indices = @transform_0, window_bounds = array<i64: 32, 640>}, {transform_indices = @transform_1, window_bounds = array<i64: 640, 128>}, {transform_indices = @transform_2, window_bounds = array<i64: 1, 128>}, {transform_indices = @transform_3, window_bounds = array<i64: 1, 128>}, {transform_indices = @transform_4, window_bounds = array<i64: 32, 128>}]} {
    %c0_i32 = arith.constant 0 : i32
    %0 = arith.cmpi eq, %arg2, %c0_i32 : i32
    %1 = arith.extui %0 : i1 to i32
    %c0_i32_0 = arith.constant 0 : i32
    %2 = arith.cmpi ne, %1, %c0_i32_0 : i32
    scf.if %2 {
      %cst_10 = arith.constant 0.000000e+00 : f32
      %12 = vector.broadcast %cst_10 : f32 to vector<32x128xf32>
      %c0_11 = arith.constant 0 : index
      %c0_12 = arith.constant 0 : index
      %13 = vector.load %arg8[%c0_11, %c0_12] : memref<32x128xf32, #tpu.memory_space<vmem>>, vector<32x128xf32>
      tpu.vector_store %arg8[%c0_11, %c0_12], %12 {strides = array<i32>} : memref<32x128xf32, #tpu.memory_space<vmem>>, vector<32x128xf32>,
    } else {
    }
    %c0 = arith.constant 0 : index
    %c0_1 = arith.constant 0 : index
    %3 = vector.load %arg8[%c0, %c0_1] : memref<32x128xf32, #tpu.memory_space<vmem>>, vector<32x128xf32>
    %c0_2 = arith.constant 0 : index
    %c0_3 = arith.constant 0 : index
    %4 = vector.load %arg3[%c0_2, %c0_3] : memref<32x640xbf16, #tpu.memory_space<vmem>>, vector<32x640xbf16>
    %c0_4 = arith.constant 0 : index
    %c0_5 = arith.constant 0 : index
    %5 = vector.load %arg4[%c0_4, %c0_5] : memref<640x128xbf16, #tpu.memory_space<vmem>>, vector<640x128xbf16>
    %cst = arith.constant dense<0.000000e+00> : vector<32x128xf32>
    %6 = tpu.matmul %4, %5, %cst {dimension_numbers = #tpu.dot_dimension_numbers<[1], [0], [0], [1], [0, 0, 1, 1], [], []>} : vector<32x640xbf16>, vector<640x128xbf16>, vector<32x128xf32> -> vector<32x128xf32>
    %7 = arith.addf %3, %6 : vector<32x128xf32>
    %c0_6 = arith.constant 0 : index
    %c0_7 = arith.constant 0 : index
    %8 = vector.load %arg8[%c0_6, %c0_7] : memref<32x128xf32, #tpu.memory_space<vmem>>, vector<32x128xf32>
    tpu.vector_store %arg8[%c0_6, %c0_7], %7 {strides = array<i32>} : memref<32x128xf32, #tpu.memory_space<vmem>>, vector<32x128xf32>,
    %c0_i32_8 = arith.constant 0 : i32
    %9 = arith.cmpi eq, %arg2, %c0_i32_8 : i32
    %10 = arith.extui %9 : i1 to i32
    %c0_i32_9 = arith.constant 0 : i32
    %11 = arith.cmpi ne, %10, %c0_i32_9 : i32
    scf.if %11 {
      %c0_10 = arith.constant 0 : index
      %c0_11 = arith.constant 0 : index
      %12 = vector.load %arg8[%c0_10, %c0_11] : memref<32x128xf32, #tpu.memory_space<vmem>>, vector<32x128xf32>
      %c0_12 = arith.constant 0 : index
      %c0_13 = arith.constant 0 : index
      %13 = vector.load %arg5[%c0_12, %c0_13] : memref<1x128xf32, #tpu.memory_space<vmem>>, vector<1x128xf32>
      %14 = vector.broadcast %13 : vector<1x128xf32> to vector<32x128xf32>
      %15 = arith.mulf %12, %14 : vector<32x128xf32>
      %c0_14 = arith.constant 0 : index
      %c0_15 = arith.constant 0 : index
      %16 = vector.load %arg6[%c0_14, %c0_15] : memref<1x128xf32, #tpu.memory_space<vmem>>, vector<1x128xf32>
      %17 = vector.broadcast %16 : vector<1x128xf32> to vector<32x128xf32>
      %18 = arith.addf %15, %17 : vector<32x128xf32>
      %cst_16 = arith.constant 0.000000e+00 : f32
      %19 = vector.broadcast %cst_16 : f32 to vector<32x128xf32>
      %20 = arith.maximumf %18, %19 : vector<32x128xf32>
      %21 = arith.truncf %20 : vector<32x128xf32> to vector<32x128xbf16>
      %c0_17 = arith.constant 0 : index
      %c0_18 = arith.constant 0 : index
      %22 = vector.load %arg7[%c0_17, %c0_18] : memref<32x128xbf16, #tpu.memory_space<vmem>>, vector<32x128xbf16>
      tpu.vector_store %arg7[%c0_17, %c0_18], %21 {strides = array<i32>} : memref<32x128xbf16, #tpu.memory_space<vmem>>, vector<32x128xbf16>,
    } else {
    }
    return
  }
  func.func @transform_0(%arg0: i32, %arg1: i32, %arg2: i32) -> (i32, i32) {
    %c0_i32 = arith.constant 0 : i32
    return %arg0, %arg2 : i32, i32
  }
  func.func @transform_1(%arg0: i32, %arg1: i32, %arg2: i32) -> (i32, i32) {
    %c0_i32 = arith.constant 0 : i32
    return %arg2, %arg1 : i32, i32
  }
  func.func @transform_2(%arg0: i32, %arg1: i32, %arg2: i32) -> (i32, i32) {
    %c0_i32 = arith.constant 0 : i32
    %c0_i32_0 = arith.constant 0 : i32
    return %c0_i32, %arg1 : i32, i32
  }
  func.func @transform_3(%arg0: i32, %arg1: i32, %arg2: i32) -> (i32, i32) {
    %c0_i32 = arith.constant 0 : i32
    %c0_i32_0 = arith.constant 0 : i32
    return %c0_i32, %arg1 : i32, i32
  }
  func.func @transform_4(%arg0: i32, %arg1: i32, %arg2: i32) -> (i32, i32) {
    %c0_i32 = arith.constant 0 : i32
    return %arg0, %arg1 : i32, i32
  }
}

module attributes {stable_mosaic.version = 11 : i64} {
  func.func @_matmul_fused_kernel(%arg0: i32, %arg1: i32, %arg2: i32, %arg3: memref<32x1152xbf16, #tpu.memory_space<vmem>>, %arg4: memref<1152x128xbf16, #tpu.memory_space<vmem>>, %arg5: memref<1x128xf32, #tpu.memory_space<vmem>>, %arg6: memref<1x128xf32, #tpu.memory_space<vmem>>, %arg7: memref<32x128xbf16, #tpu.memory_space<vmem>>, %arg8: memref<32x128xf32, #tpu.memory_space<vmem>>) attributes {dimension_semantics = [#tpu.dimension_semantics<parallel>, #tpu.dimension_semantics<parallel>, #tpu.dimension_semantics<arbitrary>], iteration_bounds = array<i64: 1, 1, 1>, scalar_prefetch = 0 : i64, scratch_operands = 1 : i64, tpu.core_type = #tpu.core_type<tc>, window_params = [{transform_indices = @transform_0, window_bounds = array<i64: 32, 1152>}, {transform_indices = @transform_1, window_bounds = array<i64: 1152, 128>}, {transform_indices = @transform_2, window_bounds = array<i64: 1, 128>}, {transform_indices = @transform_3, window_bounds = array<i64: 1, 128>}, {transform_indices = @transform_4, window_bounds = array<i64: 32, 128>}]} {
    %c0_i32 = arith.constant 0 : i32
    %0 = arith.cmpi eq, %arg2, %c0_i32 : i32
    %1 = arith.extui %0 : i1 to i32
    %c0_i32_0 = arith.constant 0 : i32
    %2 = arith.cmpi ne, %1, %c0_i32_0 : i32
    scf.if %2 {
      %cst_10 = arith.constant 0.000000e+00 : f32
      %12 = vector.broadcast %cst_10 : f32 to vector<32x128xf32>
      %c0_11 = arith.constant 0 : index
      %c0_12 = arith.constant 0 : index
      %13 = vector.load %arg8[%c0_11, %c0_12] : memref<32x128xf32, #tpu.memory_space<vmem>>, vector<32x128xf32>
      tpu.vector_store %arg8[%c0_11, %c0_12], %12 {strides = array<i32>} : memref<32x128xf32, #tpu.memory_space<vmem>>, vector<32x128xf32>,
    } else {
    }
    %c0 = arith.constant 0 : index
    %c0_1 = arith.constant 0 : index
    %3 = vector.load %arg8[%c0, %c0_1] : memref<32x128xf32, #tpu.memory_space<vmem>>, vector<32x128xf32>
    %c0_2 = arith.constant 0 : index
    %c0_3 = arith.constant 0 : index
    %4 = vector.load %arg3[%c0_2, %c0_3] : memref<32x1152xbf16, #tpu.memory_space<vmem>>, vector<32x1152xbf16>
    %c0_4 = arith.constant 0 : index
    %c0_5 = arith.constant 0 : index
    %5 = vector.load %arg4[%c0_4, %c0_5] : memref<1152x128xbf16, #tpu.memory_space<vmem>>, vector<1152x128xbf16>
    %cst = arith.constant dense<0.000000e+00> : vector<32x128xf32>
    %6 = tpu.matmul %4, %5, %cst {dimension_numbers = #tpu.dot_dimension_numbers<[1], [0], [0], [1], [0, 0, 1, 1], [], []>} : vector<32x1152xbf16>, vector<1152x128xbf16>, vector<32x128xf32> -> vector<32x128xf32>
    %7 = arith.addf %3, %6 : vector<32x128xf32>
    %c0_6 = arith.constant 0 : index
    %c0_7 = arith.constant 0 : index
    %8 = vector.load %arg8[%c0_6, %c0_7] : memref<32x128xf32, #tpu.memory_space<vmem>>, vector<32x128xf32>
    tpu.vector_store %arg8[%c0_6, %c0_7], %7 {strides = array<i32>} : memref<32x128xf32, #tpu.memory_space<vmem>>, vector<32x128xf32>,
    %c0_i32_8 = arith.constant 0 : i32
    %9 = arith.cmpi eq, %arg2, %c0_i32_8 : i32
    %10 = arith.extui %9 : i1 to i32
    %c0_i32_9 = arith.constant 0 : i32
    %11 = arith.cmpi ne, %10, %c0_i32_9 : i32
    scf.if %11 {
      %c0_10 = arith.constant 0 : index
      %c0_11 = arith.constant 0 : index
      %12 = vector.load %arg8[%c0_10, %c0_11] : memref<32x128xf32, #tpu.memory_space<vmem>>, vector<32x128xf32>
      %c0_12 = arith.constant 0 : index
      %c0_13 = arith.constant 0 : index
      %13 = vector.load %arg5[%c0_12, %c0_13] : memref<1x128xf32, #tpu.memory_space<vmem>>, vector<1x128xf32>
      %14 = vector.broadcast %13 : vector<1x128xf32> to vector<32x128xf32>
      %15 = arith.mulf %12, %14 : vector<32x128xf32>
      %c0_14 = arith.constant 0 : index
      %c0_15 = arith.constant 0 : index
      %16 = vector.load %arg6[%c0_14, %c0_15] : memref<1x128xf32, #tpu.memory_space<vmem>>, vector<1x128xf32>
      %17 = vector.broadcast %16 : vector<1x128xf32> to vector<32x128xf32>
      %18 = arith.addf %15, %17 : vector<32x128xf32>
      %cst_16 = arith.constant 0.000000e+00 : f32
      %19 = vector.broadcast %cst_16 : f32 to vector<32x128xf32>
      %20 = arith.maximumf %18, %19 : vector<32x128xf32>
      %21 = arith.truncf %20 : vector<32x128xf32> to vector<32x128xbf16>
      %c0_17 = arith.constant 0 : index
      %c0_18 = arith.constant 0 : index
      %22 = vector.load %arg7[%c0_17, %c0_18] : memref<32x128xbf16, #tpu.memory_space<vmem>>, vector<32x128xbf16>
      tpu.vector_store %arg7[%c0_17, %c0_18], %21 {strides = array<i32>} : memref<32x128xbf16, #tpu.memory_space<vmem>>, vector<32x128xbf16>,
    } else {
    }
    return
  }
  func.func @transform_0(%arg0: i32, %arg1: i32, %arg2: i32) -> (i32, i32) {
    %c0_i32 = arith.constant 0 : i32
    return %arg0, %arg2 : i32, i32
  }
  func.func @transform_1(%arg0: i32, %arg1: i32, %arg2: i32) -> (i32, i32) {
    %c0_i32 = arith.constant 0 : i32
    return %arg2, %arg1 : i32, i32
  }
  func.func @transform_2(%arg0: i32, %arg1: i32, %arg2: i32) -> (i32, i32) {
    %c0_i32 = arith.constant 0 : i32
    %c0_i32_0 = arith.constant 0 : i32
    return %c0_i32, %arg1 : i32, i32
  }
  func.func @transform_3(%arg0: i32, %arg1: i32, %arg2: i32) -> (i32, i32) {
    %c0_i32 = arith.constant 0 : i32
    %c0_i32_0 = arith.constant 0 : i32
    return %c0_i32, %arg1 : i32, i32
  }
  func.func @transform_4(%arg0: i32, %arg1: i32, %arg2: i32) -> (i32, i32) {
    %c0_i32 = arith.constant 0 : i32
    return %arg0, %arg1 : i32, i32
  }
}

module attributes {stable_mosaic.version = 11 : i64} {
  func.func @_matmul_fused_kernel(%arg0: i32, %arg1: i32, %arg2: i32, %arg3: memref<32x640xbf16, #tpu.memory_space<vmem>>, %arg4: memref<640x128xbf16, #tpu.memory_space<vmem>>, %arg5: memref<1x128xf32, #tpu.memory_space<vmem>>, %arg6: memref<1x128xf32, #tpu.memory_space<vmem>>, %arg7: memref<32x128xbf16, #tpu.memory_space<vmem>>, %arg8: memref<32x128xbf16, #tpu.memory_space<vmem>>, %arg9: memref<32x128xf32, #tpu.memory_space<vmem>>) attributes {dimension_semantics = [#tpu.dimension_semantics<parallel>, #tpu.dimension_semantics<parallel>, #tpu.dimension_semantics<arbitrary>], iteration_bounds = array<i64: 1, 1, 1>, scalar_prefetch = 0 : i64, scratch_operands = 1 : i64, tpu.core_type = #tpu.core_type<tc>, window_params = [{transform_indices = @transform_0, window_bounds = array<i64: 32, 640>}, {transform_indices = @transform_1, window_bounds = array<i64: 640, 128>}, {transform_indices = @transform_2, window_bounds = array<i64: 1, 128>}, {transform_indices = @transform_3, window_bounds = array<i64: 1, 128>}, {transform_indices = @transform_4, window_bounds = array<i64: 32, 128>}, {transform_indices = @transform_5, window_bounds = array<i64: 32, 128>}]} {
    %c0_i32 = arith.constant 0 : i32
    %0 = arith.cmpi eq, %arg2, %c0_i32 : i32
    %1 = arith.extui %0 : i1 to i32
    %c0_i32_0 = arith.constant 0 : i32
    %2 = arith.cmpi ne, %1, %c0_i32_0 : i32
    scf.if %2 {
      %cst_10 = arith.constant 0.000000e+00 : f32
      %12 = vector.broadcast %cst_10 : f32 to vector<32x128xf32>
      %c0_11 = arith.constant 0 : index
      %c0_12 = arith.constant 0 : index
      %13 = vector.load %arg9[%c0_11, %c0_12] : memref<32x128xf32, #tpu.memory_space<vmem>>, vector<32x128xf32>
      tpu.vector_store %arg9[%c0_11, %c0_12], %12 {strides = array<i32>} : memref<32x128xf32, #tpu.memory_space<vmem>>, vector<32x128xf32>,
    } else {
    }
    %c0 = arith.constant 0 : index
    %c0_1 = arith.constant 0 : index
    %3 = vector.load %arg9[%c0, %c0_1] : memref<32x128xf32, #tpu.memory_space<vmem>>, vector<32x128xf32>
    %c0_2 = arith.constant 0 : index
    %c0_3 = arith.constant 0 : index
    %4 = vector.load %arg3[%c0_2, %c0_3] : memref<32x640xbf16, #tpu.memory_space<vmem>>, vector<32x640xbf16>
    %c0_4 = arith.constant 0 : index
    %c0_5 = arith.constant 0 : index
    %5 = vector.load %arg4[%c0_4, %c0_5] : memref<640x128xbf16, #tpu.memory_space<vmem>>, vector<640x128xbf16>
    %cst = arith.constant dense<0.000000e+00> : vector<32x128xf32>
    %6 = tpu.matmul %4, %5, %cst {dimension_numbers = #tpu.dot_dimension_numbers<[1], [0], [0], [1], [0, 0, 1, 1], [], []>} : vector<32x640xbf16>, vector<640x128xbf16>, vector<32x128xf32> -> vector<32x128xf32>
    %7 = arith.addf %3, %6 : vector<32x128xf32>
    %c0_6 = arith.constant 0 : index
    %c0_7 = arith.constant 0 : index
    %8 = vector.load %arg9[%c0_6, %c0_7] : memref<32x128xf32, #tpu.memory_space<vmem>>, vector<32x128xf32>
    tpu.vector_store %arg9[%c0_6, %c0_7], %7 {strides = array<i32>} : memref<32x128xf32, #tpu.memory_space<vmem>>, vector<32x128xf32>,
    %c0_i32_8 = arith.constant 0 : i32
    %9 = arith.cmpi eq, %arg2, %c0_i32_8 : i32
    %10 = arith.extui %9 : i1 to i32
    %c0_i32_9 = arith.constant 0 : i32
    %11 = arith.cmpi ne, %10, %c0_i32_9 : i32
    scf.if %11 {
      %c0_10 = arith.constant 0 : index
      %c0_11 = arith.constant 0 : index
      %12 = vector.load %arg9[%c0_10, %c0_11] : memref<32x128xf32, #tpu.memory_space<vmem>>, vector<32x128xf32>
      %c0_12 = arith.constant 0 : index
      %c0_13 = arith.constant 0 : index
      %13 = vector.load %arg5[%c0_12, %c0_13] : memref<1x128xf32, #tpu.memory_space<vmem>>, vector<1x128xf32>
      %14 = vector.broadcast %13 : vector<1x128xf32> to vector<32x128xf32>
      %15 = arith.mulf %12, %14 : vector<32x128xf32>
      %c0_14 = arith.constant 0 : index
      %c0_15 = arith.constant 0 : index
      %16 = vector.load %arg6[%c0_14, %c0_15] : memref<1x128xf32, #tpu.memory_space<vmem>>, vector<1x128xf32>
      %17 = vector.broadcast %16 : vector<1x128xf32> to vector<32x128xf32>
      %18 = arith.addf %15, %17 : vector<32x128xf32>
      %c0_16 = arith.constant 0 : index
      %c0_17 = arith.constant 0 : index
      %19 = vector.load %arg7[%c0_16, %c0_17] : memref<32x128xbf16, #tpu.memory_space<vmem>>, vector<32x128xbf16>
      %20 = arith.extf %19 : vector<32x128xbf16> to vector<32x128xf32>
      %21 = arith.addf %18, %20 : vector<32x128xf32>
      %cst_18 = arith.constant 0.000000e+00 : f32
      %22 = vector.broadcast %cst_18 : f32 to vector<32x128xf32>
      %23 = arith.maximumf %21, %22 : vector<32x128xf32>
      %24 = arith.truncf %23 : vector<32x128xf32> to vector<32x128xbf16>
      %c0_19 = arith.constant 0 : index
      %c0_20 = arith.constant 0 : index
      %25 = vector.load %arg8[%c0_19, %c0_20] : memref<32x128xbf16, #tpu.memory_space<vmem>>, vector<32x128xbf16>
      tpu.vector_store %arg8[%c0_19, %c0_20], %24 {strides = array<i32>} : memref<32x128xbf16, #tpu.memory_space<vmem>>, vector<32x128xbf16>,
    } else {
    }
    return
  }
  func.func @transform_0(%arg0: i32, %arg1: i32, %arg2: i32) -> (i32, i32) {
    %c0_i32 = arith.constant 0 : i32
    return %arg0, %arg2 : i32, i32
  }
  func.func @transform_1(%arg0: i32, %arg1: i32, %arg2: i32) -> (i32, i32) {
    %c0_i32 = arith.constant 0 : i32
    return %arg2, %arg1 : i32, i32
  }
  func.func @transform_2(%arg0: i32, %arg1: i32, %arg2: i32) -> (i32, i32) {
    %c0_i32 = arith.constant 0 : i32
    %c0_i32_0 = arith.constant 0 : i32
    return %c0_i32, %arg1 : i32, i32
  }
  func.func @transform_3(%arg0: i32, %arg1: i32, %arg2: i32) -> (i32, i32) {
    %c0_i32 = arith.constant 0 : i32
    %c0_i32_0 = arith.constant 0 : i32
    return %c0_i32, %arg1 : i32, i32
  }
  func.func @transform_4(%arg0: i32, %arg1: i32, %arg2: i32) -> (i32, i32) {
    %c0_i32 = arith.constant 0 : i32
    return %arg0, %arg1 : i32, i32
  }
  func.func @transform_5(%arg0: i32, %arg1: i32, %arg2: i32) -> (i32, i32) {
    %c0_i32 = arith.constant 0 : i32
    return %arg0, %arg1 : i32, i32
  }
}

module attributes {stable_mosaic.version = 11 : i64} {
  func.func @_matmul_fused_kernel(%arg0: i32, %arg1: i32, %arg2: i32, %arg3: memref<32x1152xbf16, #tpu.memory_space<vmem>>, %arg4: memref<1152x128xbf16, #tpu.memory_space<vmem>>, %arg5: memref<1x128xf32, #tpu.memory_space<vmem>>, %arg6: memref<1x128xf32, #tpu.memory_space<vmem>>, %arg7: memref<32x128xbf16, #tpu.memory_space<vmem>>, %arg8: memref<32x128xbf16, #tpu.memory_space<vmem>>, %arg9: memref<32x128xf32, #tpu.memory_space<vmem>>) attributes {dimension_semantics = [#tpu.dimension_semantics<parallel>, #tpu.dimension_semantics<parallel>, #tpu.dimension_semantics<arbitrary>], iteration_bounds = array<i64: 1, 1, 1>, scalar_prefetch = 0 : i64, scratch_operands = 1 : i64, tpu.core_type = #tpu.core_type<tc>, window_params = [{transform_indices = @transform_0, window_bounds = array<i64: 32, 1152>}, {transform_indices = @transform_1, window_bounds = array<i64: 1152, 128>}, {transform_indices = @transform_2, window_bounds = array<i64: 1, 128>}, {transform_indices = @transform_3, window_bounds = array<i64: 1, 128>}, {transform_indices = @transform_4, window_bounds = array<i64: 32, 128>}, {transform_indices = @transform_5, window_bounds = array<i64: 32, 128>}]} {
    %c0_i32 = arith.constant 0 : i32
    %0 = arith.cmpi eq, %arg2, %c0_i32 : i32
    %1 = arith.extui %0 : i1 to i32
    %c0_i32_0 = arith.constant 0 : i32
    %2 = arith.cmpi ne, %1, %c0_i32_0 : i32
    scf.if %2 {
      %cst_10 = arith.constant 0.000000e+00 : f32
      %12 = vector.broadcast %cst_10 : f32 to vector<32x128xf32>
      %c0_11 = arith.constant 0 : index
      %c0_12 = arith.constant 0 : index
      %13 = vector.load %arg9[%c0_11, %c0_12] : memref<32x128xf32, #tpu.memory_space<vmem>>, vector<32x128xf32>
      tpu.vector_store %arg9[%c0_11, %c0_12], %12 {strides = array<i32>} : memref<32x128xf32, #tpu.memory_space<vmem>>, vector<32x128xf32>,
    } else {
    }
    %c0 = arith.constant 0 : index
    %c0_1 = arith.constant 0 : index
    %3 = vector.load %arg9[%c0, %c0_1] : memref<32x128xf32, #tpu.memory_space<vmem>>, vector<32x128xf32>
    %c0_2 = arith.constant 0 : index
    %c0_3 = arith.constant 0 : index
    %4 = vector.load %arg3[%c0_2, %c0_3] : memref<32x1152xbf16, #tpu.memory_space<vmem>>, vector<32x1152xbf16>
    %c0_4 = arith.constant 0 : index
    %c0_5 = arith.constant 0 : index
    %5 = vector.load %arg4[%c0_4, %c0_5] : memref<1152x128xbf16, #tpu.memory_space<vmem>>, vector<1152x128xbf16>
    %cst = arith.constant dense<0.000000e+00> : vector<32x128xf32>
    %6 = tpu.matmul %4, %5, %cst {dimension_numbers = #tpu.dot_dimension_numbers<[1], [0], [0], [1], [0, 0, 1, 1], [], []>} : vector<32x1152xbf16>, vector<1152x128xbf16>, vector<32x128xf32> -> vector<32x128xf32>
    %7 = arith.addf %3, %6 : vector<32x128xf32>
    %c0_6 = arith.constant 0 : index
    %c0_7 = arith.constant 0 : index
    %8 = vector.load %arg9[%c0_6, %c0_7] : memref<32x128xf32, #tpu.memory_space<vmem>>, vector<32x128xf32>
    tpu.vector_store %arg9[%c0_6, %c0_7], %7 {strides = array<i32>} : memref<32x128xf32, #tpu.memory_space<vmem>>, vector<32x128xf32>,
    %c0_i32_8 = arith.constant 0 : i32
    %9 = arith.cmpi eq, %arg2, %c0_i32_8 : i32
    %10 = arith.extui %9 : i1 to i32
    %c0_i32_9 = arith.constant 0 : i32
    %11 = arith.cmpi ne, %10, %c0_i32_9 : i32
    scf.if %11 {
      %c0_10 = arith.constant 0 : index
      %c0_11 = arith.constant 0 : index
      %12 = vector.load %arg9[%c0_10, %c0_11] : memref<32x128xf32, #tpu.memory_space<vmem>>, vector<32x128xf32>
      %c0_12 = arith.constant 0 : index
      %c0_13 = arith.constant 0 : index
      %13 = vector.load %arg5[%c0_12, %c0_13] : memref<1x128xf32, #tpu.memory_space<vmem>>, vector<1x128xf32>
      %14 = vector.broadcast %13 : vector<1x128xf32> to vector<32x128xf32>
      %15 = arith.mulf %12, %14 : vector<32x128xf32>
      %c0_14 = arith.constant 0 : index
      %c0_15 = arith.constant 0 : index
      %16 = vector.load %arg6[%c0_14, %c0_15] : memref<1x128xf32, #tpu.memory_space<vmem>>, vector<1x128xf32>
      %17 = vector.broadcast %16 : vector<1x128xf32> to vector<32x128xf32>
      %18 = arith.addf %15, %17 : vector<32x128xf32>
      %c0_16 = arith.constant 0 : index
      %c0_17 = arith.constant 0 : index
      %19 = vector.load %arg7[%c0_16, %c0_17] : memref<32x128xbf16, #tpu.memory_space<vmem>>, vector<32x128xbf16>
      %20 = arith.extf %19 : vector<32x128xbf16> to vector<32x128xf32>
      %21 = arith.addf %18, %20 : vector<32x128xf32>
      %cst_18 = arith.constant 0.000000e+00 : f32
      %22 = vector.broadcast %cst_18 : f32 to vector<32x128xf32>
      %23 = arith.maximumf %21, %22 : vector<32x128xf32>
      %24 = arith.truncf %23 : vector<32x128xf32> to vector<32x128xbf16>
      %c0_19 = arith.constant 0 : index
      %c0_20 = arith.constant 0 : index
      %25 = vector.load %arg8[%c0_19, %c0_20] : memref<32x128xbf16, #tpu.memory_space<vmem>>, vector<32x128xbf16>
      tpu.vector_store %arg8[%c0_19, %c0_20], %24 {strides = array<i32>} : memref<32x128xbf16, #tpu.memory_space<vmem>>, vector<32x128xbf16>,
    } else {
    }
    return
  }
  func.func @transform_0(%arg0: i32, %arg1: i32, %arg2: i32) -> (i32, i32) {
    %c0_i32 = arith.constant 0 : i32
    return %arg0, %arg2 : i32, i32
  }
  func.func @transform_1(%arg0: i32, %arg1: i32, %arg2: i32) -> (i32, i32) {
    %c0_i32 = arith.constant 0 : i32
    return %arg2, %arg1 : i32, i32
  }
  func.func @transform_2(%arg0: i32, %arg1: i32, %arg2: i32) -> (i32, i32) {
    %c0_i32 = arith.constant 0 : i32
    %c0_i32_0 = arith.constant 0 : i32
    return %c0_i32, %arg1 : i32, i32
  }
  func.func @transform_3(%arg0: i32, %arg1: i32, %arg2: i32) -> (i32, i32) {
    %c0_i32 = arith.constant 0 : i32
    %c0_i32_0 = arith.constant 0 : i32
    return %c0_i32, %arg1 : i32, i32
  }
  func.func @transform_4(%arg0: i32, %arg1: i32, %arg2: i32) -> (i32, i32) {
    %c0_i32 = arith.constant 0 : i32
    return %arg0, %arg1 : i32, i32
  }
  func.func @transform_5(%arg0: i32, %arg1: i32, %arg2: i32) -> (i32, i32) {
    %c0_i32 = arith.constant 0 : i32
    return %arg0, %arg1 : i32, i32
  }
}

module attributes {stable_mosaic.version = 11 : i64} {
  func.func @_matmul_fused_kernel(%arg0: i32, %arg1: i32, %arg2: i32, %arg3: memref<32x128xbf16, #tpu.memory_space<vmem>>, %arg4: memref<128x128xbf16, #tpu.memory_space<vmem>>, %arg5: memref<1x128xf32, #tpu.memory_space<vmem>>, %arg6: memref<1x128xf32, #tpu.memory_space<vmem>>, %arg7: memref<32x128xbf16, #tpu.memory_space<vmem>>, %arg8: memref<32x128xf32, #tpu.memory_space<vmem>>) attributes {dimension_semantics = [#tpu.dimension_semantics<parallel>, #tpu.dimension_semantics<parallel>, #tpu.dimension_semantics<arbitrary>], iteration_bounds = array<i64: 1, 1, 1>, scalar_prefetch = 0 : i64, scratch_operands = 1 : i64, tpu.core_type = #tpu.core_type<tc>, window_params = [{transform_indices = @transform_0, window_bounds = array<i64: 32, 128>}, {transform_indices = @transform_1, window_bounds = array<i64: 128, 128>}, {transform_indices = @transform_2, window_bounds = array<i64: 1, 128>}, {transform_indices = @transform_3, window_bounds = array<i64: 1, 128>}, {transform_indices = @transform_4, window_bounds = array<i64: 32, 128>}]} {
    %c0_i32 = arith.constant 0 : i32
    %0 = arith.cmpi eq, %arg2, %c0_i32 : i32
    %1 = arith.extui %0 : i1 to i32
    %c0_i32_0 = arith.constant 0 : i32
    %2 = arith.cmpi ne, %1, %c0_i32_0 : i32
    scf.if %2 {
      %cst_10 = arith.constant 0.000000e+00 : f32
      %12 = vector.broadcast %cst_10 : f32 to vector<32x128xf32>
      %c0_11 = arith.constant 0 : index
      %c0_12 = arith.constant 0 : index
      %13 = vector.load %arg8[%c0_11, %c0_12] : memref<32x128xf32, #tpu.memory_space<vmem>>, vector<32x128xf32>
      tpu.vector_store %arg8[%c0_11, %c0_12], %12 {strides = array<i32>} : memref<32x128xf32, #tpu.memory_space<vmem>>, vector<32x128xf32>,
    } else {
    }
    %c0 = arith.constant 0 : index
    %c0_1 = arith.constant 0 : index
    %3 = vector.load %arg8[%c0, %c0_1] : memref<32x128xf32, #tpu.memory_space<vmem>>, vector<32x128xf32>
    %c0_2 = arith.constant 0 : index
    %c0_3 = arith.constant 0 : index
    %4 = vector.load %arg3[%c0_2, %c0_3] : memref<32x128xbf16, #tpu.memory_space<vmem>>, vector<32x128xbf16>
    %c0_4 = arith.constant 0 : index
    %c0_5 = arith.constant 0 : index
    %5 = vector.load %arg4[%c0_4, %c0_5] : memref<128x128xbf16, #tpu.memory_space<vmem>>, vector<128x128xbf16>
    %cst = arith.constant dense<0.000000e+00> : vector<32x128xf32>
    %6 = tpu.matmul %4, %5, %cst {dimension_numbers = #tpu.dot_dimension_numbers<[1], [0], [0], [1], [0, 0, 1, 1], [], []>} : vector<32x128xbf16>, vector<128x128xbf16>, vector<32x128xf32> -> vector<32x128xf32>
    %7 = arith.addf %3, %6 : vector<32x128xf32>
    %c0_6 = arith.constant 0 : index
    %c0_7 = arith.constant 0 : index
    %8 = vector.load %arg8[%c0_6, %c0_7] : memref<32x128xf32, #tpu.memory_space<vmem>>, vector<32x128xf32>
    tpu.vector_store %arg8[%c0_6, %c0_7], %7 {strides = array<i32>} : memref<32x128xf32, #tpu.memory_space<vmem>>, vector<32x128xf32>,
    %c0_i32_8 = arith.constant 0 : i32
    %9 = arith.cmpi eq, %arg2, %c0_i32_8 : i32
    %10 = arith.extui %9 : i1 to i32
    %c0_i32_9 = arith.constant 0 : i32
    %11 = arith.cmpi ne, %10, %c0_i32_9 : i32
    scf.if %11 {
      %c0_10 = arith.constant 0 : index
      %c0_11 = arith.constant 0 : index
      %12 = vector.load %arg8[%c0_10, %c0_11] : memref<32x128xf32, #tpu.memory_space<vmem>>, vector<32x128xf32>
      %c0_12 = arith.constant 0 : index
      %c0_13 = arith.constant 0 : index
      %13 = vector.load %arg5[%c0_12, %c0_13] : memref<1x128xf32, #tpu.memory_space<vmem>>, vector<1x128xf32>
      %14 = vector.broadcast %13 : vector<1x128xf32> to vector<32x128xf32>
      %15 = arith.mulf %12, %14 : vector<32x128xf32>
      %c0_14 = arith.constant 0 : index
      %c0_15 = arith.constant 0 : index
      %16 = vector.load %arg6[%c0_14, %c0_15] : memref<1x128xf32, #tpu.memory_space<vmem>>, vector<1x128xf32>
      %17 = vector.broadcast %16 : vector<1x128xf32> to vector<32x128xf32>
      %18 = arith.addf %15, %17 : vector<32x128xf32>
      %19 = arith.truncf %18 : vector<32x128xf32> to vector<32x128xbf16>
      %c0_16 = arith.constant 0 : index
      %c0_17 = arith.constant 0 : index
      %20 = vector.load %arg7[%c0_16, %c0_17] : memref<32x128xbf16, #tpu.memory_space<vmem>>, vector<32x128xbf16>
      tpu.vector_store %arg7[%c0_16, %c0_17], %19 {strides = array<i32>} : memref<32x128xbf16, #tpu.memory_space<vmem>>, vector<32x128xbf16>,
    } else {
    }
    return
  }
  func.func @transform_0(%arg0: i32, %arg1: i32, %arg2: i32) -> (i32, i32) {
    %c0_i32 = arith.constant 0 : i32
    return %arg0, %arg2 : i32, i32
  }
  func.func @transform_1(%arg0: i32, %arg1: i32, %arg2: i32) -> (i32, i32) {
    %c0_i32 = arith.constant 0 : i32
    return %arg2, %arg1 : i32, i32
  }
  func.func @transform_2(%arg0: i32, %arg1: i32, %arg2: i32) -> (i32, i32) {
    %c0_i32 = arith.constant 0 : i32
    %c0_i32_0 = arith.constant 0 : i32
    return %c0_i32, %arg1 : i32, i32
  }
  func.func @transform_3(%arg0: i32, %arg1: i32, %arg2: i32) -> (i32, i32) {
    %c0_i32 = arith.constant 0 : i32
    %c0_i32_0 = arith.constant 0 : i32
    return %c0_i32, %arg1 : i32, i32
  }
  func.func @transform_4(%arg0: i32, %arg1: i32, %arg2: i32) -> (i32, i32) {
    %c0_i32 = arith.constant 0 : i32
    return %arg0, %arg1 : i32, i32
  }
}

module attributes {stable_mosaic.version = 11 : i64} {
  func.func @_add_up_relu_kernel(%arg0: i32, %arg1: memref<8x1024xbf16, #tpu.memory_space<vmem>>, %arg2: memref<8x512xbf16, #tpu.memory_space<vmem>>, %arg3: memref<8x1024xbf16, #tpu.memory_space<vmem>>) attributes {dimension_semantics = [#tpu.dimension_semantics<parallel>], iteration_bounds = array<i64: 1>, scalar_prefetch = 0 : i64, scratch_operands = 0 : i64, tpu.core_type = #tpu.core_type<tc>, window_params = [{transform_indices = @transform_0, window_bounds = array<i64: 8, 1024>}, {transform_indices = @transform_1, window_bounds = array<i64: 8, 512>}, {transform_indices = @transform_2, window_bounds = array<i64: 8, 1024>}]} {
    %c0 = arith.constant 0 : index
    %c0_0 = arith.constant 0 : index
    %0 = vector.load %arg2[%c0, %c0_0] : memref<8x512xbf16, #tpu.memory_space<vmem>>, vector<8x512xbf16>
    %1 = arith.extf %0 : vector<8x512xbf16> to vector<8x512xf32>
    %c0_1 = arith.constant 0 : index
    %c0_2 = arith.constant 0 : index
    %2 = vector.load %arg1[%c0_1, %c0_2] : memref<8x1024xbf16, #tpu.memory_space<vmem>>, vector<8x1024xbf16>
    %3 = arith.extf %2 : vector<8x1024xbf16> to vector<8x1024xf32>
    %4 = vector.extract_strided_slice %3 {offsets = [0, 0], sizes = [8, 512], strides = [1, 1]} : vector<8x1024xf32> to vector<8x512xf32>
    %5 = arith.addf %4, %1 : vector<8x512xf32>
    %cst = arith.constant 0.000000e+00 : f32
    %6 = vector.broadcast %cst : f32 to vector<8x512xf32>
    %7 = arith.maximumf %5, %6 : vector<8x512xf32>
    %8 = arith.truncf %7 : vector<8x512xf32> to vector<8x512xbf16>
    %c0_3 = arith.constant 0 : index
    %c0_4 = arith.constant 0 : index
    %9 = vector.load %arg3[%c0_3, %c0_4] : memref<8x1024xbf16, #tpu.memory_space<vmem>>, vector<8x512xbf16>
    tpu.vector_store %arg3[%c0_3, %c0_4], %8 {strides = array<i32>} : memref<8x1024xbf16, #tpu.memory_space<vmem>>, vector<8x512xbf16>,
    %10 = vector.extract_strided_slice %3 {offsets = [0, 512], sizes = [8, 512], strides = [1, 1]} : vector<8x1024xf32> to vector<8x512xf32>
    %11 = arith.addf %10, %1 : vector<8x512xf32>
    %cst_5 = arith.constant 0.000000e+00 : f32
    %12 = vector.broadcast %cst_5 : f32 to vector<8x512xf32>
    %13 = arith.maximumf %11, %12 : vector<8x512xf32>
    %14 = arith.truncf %13 : vector<8x512xf32> to vector<8x512xbf16>
    %c0_6 = arith.constant 0 : index
    %c512 = arith.constant 512 : index
    %15 = vector.load %arg3[%c0_6, %c512] : memref<8x1024xbf16, #tpu.memory_space<vmem>>, vector<8x512xbf16>
    tpu.vector_store %arg3[%c0_6, %c512], %14 {strides = array<i32>} : memref<8x1024xbf16, #tpu.memory_space<vmem>>, vector<8x512xbf16>,
    return
  }
  func.func @transform_0(%arg0: i32) -> (i32, i32) {
    %c0_i32 = arith.constant 0 : i32
    %c0_i32_0 = arith.constant 0 : i32
    return %arg0, %c0_i32 : i32, i32
  }
  func.func @transform_1(%arg0: i32) -> (i32, i32) {
    %c0_i32 = arith.constant 0 : i32
    %c0_i32_0 = arith.constant 0 : i32
    return %arg0, %c0_i32 : i32, i32
  }
  func.func @transform_2(%arg0: i32) -> (i32, i32) {
    %c0_i32 = arith.constant 0 : i32
    %c0_i32_0 = arith.constant 0 : i32
    return %arg0, %c0_i32 : i32, i32
  }
}

module attributes {stable_mosaic.version = 11 : i64} {
  func.func @_head_kernel(%arg0: i32, %arg1: i32, %arg2: memref<16x128xbf16, #tpu.memory_space<vmem>>, %arg3: memref<128x2048xbf16, #tpu.memory_space<vmem>>, %arg4: memref<1x2048xf32, #tpu.memory_space<vmem>>, %arg5: memref<1x2048xf32, #tpu.memory_space<vmem>>, %arg6: memref<2048x128xf32, #tpu.memory_space<vmem>>, %arg7: memref<1x128xf32, #tpu.memory_space<vmem>>, %arg8: memref<8x128xf32, #tpu.memory_space<vmem>>, %arg9: memref<1x2048xf32, #tpu.memory_space<vmem>>, %arg10: memref<8x2048xf32, #tpu.memory_space<vmem>>) attributes {dimension_semantics = [#tpu.dimension_semantics<arbitrary>, #tpu.dimension_semantics<arbitrary>], iteration_bounds = array<i64: 2, 1>, scalar_prefetch = 0 : i64, scratch_operands = 2 : i64, tpu.core_type = #tpu.core_type<tc>, window_params = [{transform_indices = @transform_0, window_bounds = array<i64: 16, 128>}, {pipeline_mode = #tpu.pipeline_mode<synchronous>, transform_indices = @transform_1, window_bounds = array<i64: 128, 2048>}, {pipeline_mode = #tpu.pipeline_mode<synchronous>, transform_indices = @transform_2, window_bounds = array<i64: 1, 2048>}, {pipeline_mode = #tpu.pipeline_mode<synchronous>, transform_indices = @transform_3, window_bounds = array<i64: 1, 2048>}, {pipeline_mode = #tpu.pipeline_mode<synchronous>, transform_indices = @transform_4, window_bounds = array<i64: 2048, 128>}, {pipeline_mode = #tpu.pipeline_mode<synchronous>, transform_indices = @transform_5, window_bounds = array<i64: 1, 128>}, {pipeline_mode = #tpu.pipeline_mode<synchronous>, transform_indices = @transform_6, window_bounds = array<i64: 8, 128>}]} {
    %c0_i32 = arith.constant 0 : i32
    %0 = arith.cmpi eq, %arg0, %c0_i32 : i32
    %c0_i32_0 = arith.constant 0 : i32
    %1 = arith.cmpi eq, %arg1, %c0_i32_0 : i32
    %2 = arith.andi %0, %1 : i1
    %3 = arith.extui %2 : i1 to i32
    %c0_i32_1 = arith.constant 0 : i32
    %4 = arith.cmpi ne, %3, %c0_i32_1 : i32
    scf.if %4 {
      %cst_23 = arith.constant 0.000000e+00 : f32
      %42 = vector.broadcast %cst_23 : f32 to vector<8x2048xf32>
      %c0_24 = arith.constant 0 : index
      %c0_25 = arith.constant 0 : index
      %43 = vector.load %arg10[%c0_24, %c0_25] : memref<8x2048xf32, #tpu.memory_space<vmem>>, vector<8x2048xf32>
      tpu.vector_store %arg10[%c0_24, %c0_25], %42 {strides = array<i32>} : memref<8x2048xf32, #tpu.memory_space<vmem>>, vector<8x2048xf32>,
    } else {
    }
    %c0_i32_2 = arith.constant 0 : i32
    %5 = arith.cmpi eq, %arg1, %c0_i32_2 : i32
    %6 = arith.extui %5 : i1 to i32
    %c0_i32_3 = arith.constant 0 : i32
    %7 = arith.cmpi ne, %6, %c0_i32_3 : i32
    scf.if %7 {
      %cst_23 = arith.constant 0.000000e+00 : f32
      %42 = vector.broadcast %cst_23 : f32 to vector<1x2048xf32>
      %c0_24 = arith.constant 0 : index
      %c0_25 = arith.constant 0 : index
      %43 = vector.load %arg9[%c0_24, %c0_25] : memref<1x2048xf32, #tpu.memory_space<vmem>>, vector<1x2048xf32>
      tpu.vector_store %arg9[%c0_24, %c0_25], %42 {strides = array<i32>} : memref<1x2048xf32, #tpu.memory_space<vmem>>, vector<1x2048xf32>,
    } else {
    }
    %c0 = arith.constant 0 : index
    %c0_4 = arith.constant 0 : index
    %8 = vector.load %arg2[%c0, %c0_4] : memref<16x128xbf16, #tpu.memory_space<vmem>>, vector<16x128xbf16>
    %c0_5 = arith.constant 0 : index
    %c0_6 = arith.constant 0 : index
    %9 = vector.load %arg3[%c0_5, %c0_6] : memref<128x2048xbf16, #tpu.memory_space<vmem>>, vector<128x2048xbf16>
    %cst = arith.constant dense<0.000000e+00> : vector<16x2048xf32>
    %10 = tpu.matmul %8, %9, %cst {dimension_numbers = #tpu.dot_dimension_numbers<[1], [0], [0], [1], [0, 0, 1, 1], [], []>} : vector<16x128xbf16>, vector<128x2048xbf16>, vector<16x2048xf32> -> vector<16x2048xf32>
    %c0_7 = arith.constant 0 : index
    %c0_8 = arith.constant 0 : index
    %11 = vector.load %arg4[%c0_7, %c0_8] : memref<1x2048xf32, #tpu.memory_space<vmem>>, vector<1x2048xf32>
    %12 = vector.broadcast %11 : vector<1x2048xf32> to vector<16x2048xf32>
    %13 = arith.mulf %10, %12 : vector<16x2048xf32>
    %c0_9 = arith.constant 0 : index
    %c0_10 = arith.constant 0 : index
    %14 = vector.load %arg5[%c0_9, %c0_10] : memref<1x2048xf32, #tpu.memory_space<vmem>>, vector<1x2048xf32>
    %15 = vector.broadcast %14 : vector<1x2048xf32> to vector<16x2048xf32>
    %16 = arith.addf %13, %15 : vector<16x2048xf32>
    %cst_11 = arith.constant 0.000000e+00 : f32
    %17 = vector.broadcast %cst_11 : f32 to vector<16x2048xf32>
    %18 = arith.maximumf %16, %17 : vector<16x2048xf32>
    %c16_i32 = arith.constant 16 : i32
    %19 = arith.muli %arg1, %c16_i32 : i32
    %20 = tpu.iota {dimensions = array<i32: 0>} : vector<16x1xi32>
    %21 = vector.broadcast %19 : i32 to vector<16x1xi32>
    %22 = arith.addi %21, %20 : vector<16x1xi32>
    %c16_i32_12 = arith.constant 16 : i32
    %23 = vector.broadcast %c16_i32_12 : i32 to vector<16x1xi32>
    %24 = arith.cmpi slt, %22, %23 : vector<16x1xi32>
    %cst_13 = arith.constant 0.000000e+00 : f32
    %25 = vector.shape_cast %24 : vector<16x1xi1> to vector<16x1xi1>
    %26 = vector.broadcast %25 : vector<16x1xi1> to vector<16x2048xi1>
    %27 = vector.broadcast %cst_13 : f32 to vector<16x2048xf32>
    %28 = arith.select %26, %18, %27 : vector<16x2048xi1>, vector<16x2048xf32>
    %c0_14 = arith.constant 0 : index
    %c0_15 = arith.constant 0 : index
    %29 = vector.load %arg9[%c0_14, %c0_15] : memref<1x2048xf32, #tpu.memory_space<vmem>>, vector<1x2048xf32>
    %cst_16 = arith.constant dense<0.000000e+00> : vector<2048xf32>
    %30 = vector.multi_reduction <add>, %28, %cst_16 [0] : vector<16x2048xf32> to vector<2048xf32>
    %31 = vector.shape_cast %30 : vector<2048xf32> to vector<1x2048xf32>
    %32 = arith.addf %29, %31 : vector<1x2048xf32>
    %c0_17 = arith.constant 0 : index
    %c0_18 = arith.constant 0 : index
    %33 = vector.load %arg9[%c0_17, %c0_18] : memref<1x2048xf32, #tpu.memory_space<vmem>>, vector<1x2048xf32>
    tpu.vector_store %arg9[%c0_17, %c0_18], %32 {strides = array<i32>} : memref<1x2048xf32, #tpu.memory_space<vmem>>, vector<1x2048xf32>,
    %c0_i32_19 = arith.constant 0 : i32
    %34 = arith.cmpi eq, %arg1, %c0_i32_19 : i32
    %35 = arith.extui %34 : i1 to i32
    %c0_i32_20 = arith.constant 0 : i32
    %36 = arith.cmpi ne, %35, %c0_i32_20 : i32
    scf.if %36 {
      %42 = tpu.iota {dimensions = array<i32: 0>} : vector<8x1xi32>
      %43 = vector.broadcast %arg0 : i32 to vector<8x1xi32>
      %44 = arith.cmpi eq, %42, %43 : vector<8x1xi32>
      %c0_23 = arith.constant 0 : index
      %c0_24 = arith.constant 0 : index
      %45 = vector.load %arg10[%c0_23, %c0_24] : memref<8x2048xf32, #tpu.memory_space<vmem>>, vector<8x2048xf32>
      %c0_25 = arith.constant 0 : index
      %c0_26 = arith.constant 0 : index
      %46 = vector.load %arg9[%c0_25, %c0_26] : memref<1x2048xf32, #tpu.memory_space<vmem>>, vector<1x2048xf32>
      %cst_27 = arith.constant 6.250000e-02 : f32
      %47 = vector.broadcast %cst_27 : f32 to vector<1x2048xf32>
      %48 = arith.mulf %46, %47 : vector<1x2048xf32>
      %cst_28 = arith.constant 0.000000e+00 : f32
      %49 = vector.shape_cast %44 : vector<8x1xi1> to vector<8x1xi1>
      %50 = vector.broadcast %49 : vector<8x1xi1> to vector<8x2048xi1>
      %51 = vector.shape_cast %48 : vector<1x2048xf32> to vector<1x2048xf32>
      %52 = vector.broadcast %51 : vector<1x2048xf32> to vector<8x2048xf32>
      %53 = vector.broadcast %cst_28 : f32 to vector<8x2048xf32>
      %54 = arith.select %50, %52, %53 : vector<8x2048xi1>, vector<8x2048xf32>
      %55 = arith.addf %45, %54 : vector<8x2048xf32>
      %c0_29 = arith.constant 0 : index
      %c0_30 = arith.constant 0 : index
      %56 = vector.load %arg10[%c0_29, %c0_30] : memref<8x2048xf32, #tpu.memory_space<vmem>>, vector<8x2048xf32>
      tpu.vector_store %arg10[%c0_29, %c0_30], %55 {strides = array<i32>} : memref<8x2048xf32, #tpu.memory_space<vmem>>, vector<8x2048xf32>,
    } else {
    }
    %c1_i32 = arith.constant 1 : i32
    %37 = arith.cmpi eq, %arg0, %c1_i32 : i32
    %c0_i32_21 = arith.constant 0 : i32
    %38 = arith.cmpi eq, %arg1, %c0_i32_21 : i32
    %39 = arith.andi %37, %38 : i1
    %40 = arith.extui %39 : i1 to i32
    %c0_i32_22 = arith.constant 0 : i32
    %41 = arith.cmpi ne, %40, %c0_i32_22 : i32
    scf.if %41 {
      %c0_23 = arith.constant 0 : index
      %c0_24 = arith.constant 0 : index
      %42 = vector.load %arg10[%c0_23, %c0_24] : memref<8x2048xf32, #tpu.memory_space<vmem>>, vector<8x2048xf32>
      %c0_25 = arith.constant 0 : index
      %c0_26 = arith.constant 0 : index
      %43 = vector.load %arg6[%c0_25, %c0_26] : memref<2048x128xf32, #tpu.memory_space<vmem>>, vector<2048x128xf32>
      %cst_27 = arith.constant dense<0.000000e+00> : vector<8x128xf32>
      %44 = tpu.matmul %42, %43, %cst_27 {dimension_numbers = #tpu.dot_dimension_numbers<[1], [0], [0], [1], [0, 0, 1, 1], [], []>} : vector<8x2048xf32>, vector<2048x128xf32>, vector<8x128xf32> -> vector<8x128xf32>
      %c0_28 = arith.constant 0 : index
      %c0_29 = arith.constant 0 : index
      %45 = vector.load %arg7[%c0_28, %c0_29] : memref<1x128xf32, #tpu.memory_space<vmem>>, vector<1x128xf32>
      %46 = vector.broadcast %45 : vector<1x128xf32> to vector<8x128xf32>
      %47 = arith.addf %44, %46 : vector<8x128xf32>
      %c0_30 = arith.constant 0 : index
      %c0_31 = arith.constant 0 : index
      %48 = vector.load %arg8[%c0_30, %c0_31] : memref<8x128xf32, #tpu.memory_space<vmem>>, vector<8x128xf32>
      tpu.vector_store %arg8[%c0_30, %c0_31], %47 {strides = array<i32>} : memref<8x128xf32, #tpu.memory_space<vmem>>, vector<8x128xf32>,
    } else {
    }
    return
  }
  func.func @transform_0(%arg0: i32, %arg1: i32) -> (i32, i32) {
    %c1_i32 = arith.constant 1 : i32
    %0 = arith.muli %arg0, %c1_i32 : i32
    %1 = arith.addi %0, %arg1 : i32
    %c0_i32 = arith.constant 0 : i32
    %c0_i32_0 = arith.constant 0 : i32
    return %1, %c0_i32 : i32, i32
  }
  func.func @transform_1(%arg0: i32, %arg1: i32) -> (i32, i32) {
    %c0_i32 = arith.constant 0 : i32
    %c0_i32_0 = arith.constant 0 : i32
    %c0_i32_1 = arith.constant 0 : i32
    return %c0_i32, %c0_i32_0 : i32, i32
  }
  func.func @transform_2(%arg0: i32, %arg1: i32) -> (i32, i32) {
    %c0_i32 = arith.constant 0 : i32
    %c0_i32_0 = arith.constant 0 : i32
    %c0_i32_1 = arith.constant 0 : i32
    return %c0_i32, %c0_i32_0 : i32, i32
  }
  func.func @transform_3(%arg0: i32, %arg1: i32) -> (i32, i32) {
    %c0_i32 = arith.constant 0 : i32
    %c0_i32_0 = arith.constant 0 : i32
    %c0_i32_1 = arith.constant 0 : i32
    return %c0_i32, %c0_i32_0 : i32, i32
  }
  func.func @transform_4(%arg0: i32, %arg1: i32) -> (i32, i32) {
    %c0_i32 = arith.constant 0 : i32
    %c0_i32_0 = arith.constant 0 : i32
    %c0_i32_1 = arith.constant 0 : i32
    return %c0_i32, %c0_i32_0 : i32, i32
  }
  func.func @transform_5(%arg0: i32, %arg1: i32) -> (i32, i32) {
    %c0_i32 = arith.constant 0 : i32
    %c0_i32_0 = arith.constant 0 : i32
    %c0_i32_1 = arith.constant 0 : i32
    return %c0_i32, %c0_i32_0 : i32, i32
  }
  func.func @transform_6(%arg0: i32, %arg1: i32) -> (i32, i32) {
    %c0_i32 = arith.constant 0 : i32
    %c0_i32_0 = arith.constant 0 : i32
    %c0_i32_1 = arith.constant 0 : i32
    return %c0_i32, %c0_i32_0 : i32, i32
  }
}

</mosaic_0001>

<llo_original>
// kernel: hrnet_forward.12
$region0: #{hrnet_forward.12}
  #allocation0 [shape = 'u32[]', space=smem, size = 0x4, offset = 0x4, fixed_abs, tag = 'smem constant byte address 0x4 - core index']
  #allocation1 [shape = 'u32[144,128]{1,0:T(1,128)}', space=vmem, size = 0x12000, scoped, tag = 'internal scratch']
  #allocation2 [shape = 'f32[512,128]{1,0:T(8,128)}', space=vmem, size = 0x40000, scoped, tag = 'scratch operand']
  %s0 = inlined_call_operand.vmem [shape: bf16[512,128], index: 0, kind: input, shape index: {}]
  %s1 = inlined_call_operand.vmem [shape: bf16[128,128], index: 1, kind: input, shape index: {}]
  %s2 = inlined_call_operand.vmem [shape: f32[1,128], index: 2, kind: input, shape index: {}]
  %s3 = inlined_call_operand.vmem [shape: f32[1,128], index: 3, kind: input, shape index: {}]
  %s4 = inlined_call_operand.vmem [shape: bf16[512,128], index: 4, kind: output, shape index: {}]
  %s5 = sld [smem:[#allocation0]]
  $region34: #{hrnet_forward.12} parent=0
    _
  %s7 = ssub.s32 1, %s5
  %s8 = scalar_select 0, %s7, %s5
  // Predicated region
  $region2: #{hrnet_forward.12} parent=0 // pred_check
    _
  $region3: #{hrnet_forward.12} parent=0 // pred_check_branch
    %10 = sbr.rel (0) target = $region5
  $region4: #{hrnet_forward.12} parent=0 // pred_region
    _
  $region5: #{hrnet_forward.12} parent=0 // pred_fallthru
    _
  // Predicated region
  $region6: #{hrnet_forward.12} parent=0 // pred_check
    _
  $region7: #{hrnet_forward.12} parent=0 // pred_check_branch
    %12 = sbr.rel (0) target = $region9
  $region8: #{hrnet_forward.12} parent=0 // pred_region
    _
  $region9: #{hrnet_forward.12} parent=0 // pred_fallthru
    _
  // Predicated region
  $region10: #{hrnet_forward.12} parent=0 // pred_check
    _
  $region11: #{hrnet_forward.12} parent=0 // pred_check_branch
    %14 = sbr.rel (0) target = $region13
  $region12: #{hrnet_forward.12} parent=0 // pred_region
    _
  $region13: #{hrnet_forward.12} parent=0 // pred_fallthru
    _
  // Predicated region
  $region14: #{hrnet_forward.12} parent=0 // pred_check
    _
  $region15: #{hrnet_forward.12} parent=0 // pred_check_branch
    %16 = sbr.rel (0) target = $region17
  $region16: #{hrnet_forward.12} parent=0 // pred_region
    _
  $region17: #{hrnet_forward.12} parent=0 // pred_fallthru
    _
  %p18 = scmp.eq.s32.totalorder 0, 0
  // Predicated region
  $region18: #{hrnet_forward.12} parent=0 // pred_check
    %p19 = pneg %p18
  $region19: #{hrnet_forward.12} parent=0 // pred_check_branch
    %21 = sbr.rel (%p19) target = $region21
  $region20: #{hrnet_forward.12} parent=0 // pred_region
    %22 = vst [vmem:[#allocation2] sm:$0xff] 0.0
    %23 = vst [vmem:[#allocation2 + $0x8] sm:$0xff] 0.0
    %24 = vst [vmem:[#allocation2 + $0x10] sm:$0xff] 0.0
    %25 = vst [vmem:[#allocation2 + $0x18] sm:$0xff] 0.0
    %26 = vst [vmem:[#allocation2 + $0x20] sm:$0xff] 0.0
    %27 = vst [vmem:[#allocation2 + $0x28] sm:$0xff] 0.0
    %28 = vst [vmem:[#allocation2 + $0x30] sm:$0xff] 0.0
    %29 = vst [vmem:[#allocation2 + $0x38] sm:$0xff] 0.0
    %30 = vst [vmem:[#allocation2 + $0x40] sm:$0xff] 0.0
    %31 = vst [vmem:[#allocation2 + $0x48] sm:$0xff] 0.0
    %32 = vst [vmem:[#allocation2 + $0x50] sm:$0xff] 0.0
    %33 = vst [vmem:[#allocation2 + $0x58] sm:$0xff] 0.0
    %34 = vst [vmem:[#allocation2 + $0x60] sm:$0xff] 0.0
    %35 = vst [vmem:[#allocation2 + $0x68] sm:$0xff] 0.0
    %36 = vst [vmem:[#allocation2 + $0x70] sm:$0xff] 0.0
    %37 = vst [vmem:[#allocation2 + $0x78] sm:$0xff] 0.0
    %38 = vst [vmem:[#allocation2 + $0x80] sm:$0xff] 0.0
    %39 = vst [vmem:[#allocation2 + $0x88] sm:$0xff] 0.0
    %40 = vst [vmem:[#allocation2 + $0x90] sm:$0xff] 0.0
    %41 = vst [vmem:[#allocation2 + $0x98] sm:$0xff] 0.0
    %42 = vst [vmem:[#allocation2 + $0xa0] sm:$0xff] 0.0
    %43 = vst [vmem:[#allocation2 + $0xa8] sm:$0xff] 0.0
    %44 = vst [vmem:[#allocation2 + $0xb0] sm:$0xff] 0.0
    %45 = vst [vmem:[#allocation2 + $0xb8] sm:$0xff] 0.0
    %46 = vst [vmem:[#allocation2 + $0xc0] sm:$0xff] 0.0
    %47 = vst [vmem:[#allocation2 + $0xc8] sm:$0xff] 0.0
    %48 = vst [vmem:[#allocation2 + $0xd0] sm:$0xff] 0.0
    %49 = vst [vmem:[#allocation2 + $0xd8] sm:$0xff] 0.0
    %50 = vst [vmem:[#allocation2 + $0xe0] sm:$0xff] 0.0
    %51 = vst [vmem:[#allocation2 + $0xe8] sm:$0xff] 0.0
    %52 = vst [vmem:[#allocation2 + $0xf0] sm:$0xff] 0.0
    %53 = vst [vmem:[#allocation2 + $0xf8] sm:$0xff] 0.0
    %54 = vst [vmem:[#allocation2 + $0x100] sm:$0xff] 0.0
    %55 = vst [vmem:[#allocation2 + $0x108] sm:$0xff] 0.0
    %56 = vst [vmem:[#allocation2 + $0x110] sm:$0xff] 0.0
    %57 = vst [vmem:[#allocation2 + $0x118] sm:$0xff] 0.0
    %58 = vst [vmem:[#allocation2 + $0x120] sm:$0xff] 0.0
    %59 = vst [vmem:[#allocation2 + $0x128] sm:$0xff] 0.0
    %60 = vst [vmem:[#allocation2 + $0x130] sm:$0xff] 0.0
    %61 = vst [vmem:[#allocation2 + $0x138] sm:$0xff] 0.0
    %62 = vst [vmem:[#allocation2 + $0x140] sm:$0xff] 0.0
    %63 = vst [vmem:[#allocation2 + $0x148] sm:$0xff] 0.0
    %64 = vst [vmem:[#allocation2 + $0x150] sm:$0xff] 0.0
    %65 = vst [vmem:[#allocation2 + $0x158] sm:$0xff] 0.0
    %66 = vst [vmem:[#allocation2 + $0x160] sm:$0xff] 0.0
    %67 = vst [vmem:[#allocation2 + $0x168] sm:$0xff] 0.0
    %68 = vst [vmem:[#allocation2 + $0x170] sm:$0xff] 0.0
    %69 = vst [vmem:[#allocation2 + $0x178] sm:$0xff] 0.0
    %70 = vst [vmem:[#allocation2 + $0x180] sm:$0xff] 0.0
    %71 = vst [vmem:[#allocation2 + $0x188] sm:$0xff] 0.0
    %72 = vst [vmem:[#allocation2 + $0x190] sm:$0xff] 0.0
    %73 = vst [vmem:[#allocation2 + $0x198] sm:$0xff] 0.0
    %74 = vst [vmem:[#allocation2 + $0x1a0] sm:$0xff] 0.0
    %75 = vst [vmem:[#allocation2 + $0x1a8] sm:$0xff] 0.0
    %76 = vst [vmem:[#allocation2 + $0x1b0] sm:$0xff] 0.0
    %77 = vst [vmem:[#allocation2 + $0x1b8] sm:$0xff] 0.0
    %78 = vst [vmem:[#allocation2 + $0x1c0] sm:$0xff] 0.0
    %79 = vst [vmem:[#allocation2 + $0x1c8] sm:$0xff] 0.0
    %80 = vst [vmem:[#allocation2 + $0x1d0] sm:$0xff] 0.0
    %81 = vst [vmem:[#allocation2 + $0x1d8] sm:$0xff] 0.0
    %82 = vst [vmem:[#allocation2 + $0x1e0] sm:$0xff] 0.0
    %83 = vst [vmem:[#allocation2 + $0x1e8] sm:$0xff] 0.0
    %84 = vst [vmem:[#allocation2 + $0x1f0] sm:$0xff] 0.0
    %85 = vst [vmem:[#allocation2 + $0x1f8] sm:$0xff] 0.0
  $region21: #{hrnet_forward.12} parent=0 // pred_fallthru
    _
  %v86 = vld [vmem:[#allocation2] sm:$0xff]
  %v87 = vld [vmem:[#allocation2 + $0x8] sm:$0xff]
  %v88 = vld [vmem:[#allocation2 + $0x10] sm:$0xff]
  %v89 = vld [vmem:[#allocation2 + $0x18] sm:$0xff]
  %v90 = vld [vmem:[#allocation2 + $0x20] sm:$0xff]
  %v91 = vld [vmem:[#allocation2 + $0x28] sm:$0xff]
  %v92 = vld [vmem:[#allocation2 + $0x30] sm:$0xff]
  %v93 = vld [vmem:[#allocation2 + $0x38] sm:$0xff]
  %v94 = vld [vmem:[#allocation2 + $0x40] sm:$0xff]
  %v95 = vld [vmem:[#allocation2 + $0x48] sm:$0xff]
  %v96 = vld [vmem:[#allocation2 + $0x50] sm:$0xff]
  %v97 = vld [vmem:[#allocation2 + $0x58] sm:$0xff]
  %v98 = vld [vmem:[#allocation2 + $0x60] sm:$0xff]
  %v99 = vld [vmem:[#allocation2 + $0x68] sm:$0xff]
  %v100 = vld [vmem:[#allocation2 + $0x70] sm:$0xff]
  %v101 = vld [vmem:[#allocation2 + $0x78] sm:$0xff]
  %v102 = vld [vmem:[#allocation2 + $0x80] sm:$0xff]
  %v103 = vld [vmem:[#allocation2 + $0x88] sm:$0xff]
  %v104 = vld [vmem:[#allocation2 + $0x90] sm:$0xff]
  %v105 = vld [vmem:[#allocation2 + $0x98] sm:$0xff]
  %v106 = vld [vmem:[#allocation2 + $0xa0] sm:$0xff]
  %v107 = vld [vmem:[#allocation2 + $0xa8] sm:$0xff]
  %v108 = vld [vmem:[#allocation2 + $0xb0] sm:$0xff]
  %v109 = vld [vmem:[#allocation2 + $0xb8] sm:$0xff]
  %v110 = vld [vmem:[#allocation2 + $0xc0] sm:$0xff]
  %v111 = vld [vmem:[#allocation2 + $0xc8] sm:$0xff]
  %v112 = vld [vmem:[#allocation2 + $0xd0] sm:$0xff]
  %v113 = vld [vmem:[#allocation2 + $0xd8] sm:$0xff]
  %v114 = vld [vmem:[#allocation2 + $0xe0] sm:$0xff]
  %v115 = vld [vmem:[#allocation2 + $0xe8] sm:$0xff]
  %v116 = vld [vmem:[#allocation2 + $0xf0] sm:$0xff]
  %v117 = vld [vmem:[#allocation2 + $0xf8] sm:$0xff]
  %v118 = vld [vmem:[#allocation2 + $0x100] sm:$0xff]
  %v119 = vld [vmem:[#allocation2 + $0x108] sm:$0xff]
  %v120 = vld [vmem:[#allocation2 + $0x110] sm:$0xff]
  %v121 = vld [vmem:[#allocation2 + $0x118] sm:$0xff]
  %v122 = vld [vmem:[#allocation2 + $0x120] sm:$0xff]
  %v123 = vld [vmem:[#allocation2 + $0x128] sm:$0xff]
  %v124 = vld [vmem:[#allocation2 + $0x130] sm:$0xff]
  %v125 = vld [vmem:[#allocation2 + $0x138] sm:$0xff]
  %v126 = vld [vmem:[#allocation2 + $0x140] sm:$0xff]
  %v127 = vld [vmem:[#allocation2 + $0x148] sm:$0xff]
  %v128 = vld [vmem:[#allocation2 + $0x150] sm:$0xff]
  %v129 = vld [vmem:[#allocation2 + $0x158] sm:$0xff]
  %v130 = vld [vmem:[#allocation2 + $0x160] sm:$0xff]
  %v131 = vld [vmem:[#allocation2 + $0x168] sm:$0xff]
  %v132 = vld [vmem:[#allocation2 + $0x170] sm:$0xff]
  %v133 = vld [vmem:[#allocation2 + $0x178] sm:$0xff]
  %v134 = vld [vmem:[#allocation2 + $0x180] sm:$0xff]
  %v135 = vld [vmem:[#allocation2 + $0x188] sm:$0xff]
  %v136 = vld [vmem:[#allocation2 + $0x190] sm:$0xff]
  %v137 = vld [vmem:[#allocation2 + $0x198] sm:$0xff]
  %v138 = vld [vmem:[#allocation2 + $0x1a0] sm:$0xff]
  %v139 = vld [vmem:[#allocation2 + $0x1a8] sm:$0xff]
  %v140 = vld [vmem:[#allocation2 + $0x1b0] sm:$0xff]
  %v141 = vld [vmem:[#allocation2 + $0x1b8] sm:$0xff]
  %v142 = vld [vmem:[#allocation2 + $0x1c0] sm:$0xff]
  %v143 = vld [vmem:[#allocation2 + $0x1c8] sm:$0xff]
  %v144 = vld [vmem:[#allocation2 + $0x1d0] sm:$0xff]
  %v145 = vld [vmem:[#allocation2 + $0x1d8] sm:$0xff]
  %v146 = vld [vmem:[#allocation2 + $0x1e0] sm:$0xff]
  %v147 = vld [vmem:[#allocation2 + $0x1e8] sm:$0xff]
  %v148 = vld [vmem:[#allocation2 + $0x1f0] sm:$0xff]
  %v149 = vld [vmem:[#allocation2 + $0x1f8] sm:$0xff]
  %v150 = vld [vmem:[%s0] sm:$0xf]
  %v151 = vld [vmem:[%s0 + $0x4] sm:$0xf]
  %v152 = vld [vmem:[%s0 + $0x8] sm:$0xf]
  %v153 = vld [vmem:[%s0 + $0xc] sm:$0xf]
  %v154 = vld [vmem:[%s0 + $0x10] sm:$0xf]
  %v155 = vld [vmem:[%s0 + $0x14] sm:$0xf]
  %v156 = vld [vmem:[%s0 + $0x18] sm:$0xf]
  %v157 = vld [vmem:[%s0 + $0x1c] sm:$0xf]
  %v158 = vld [vmem:[%s0 + $0x20] sm:$0xf]
  %v159 = vld [vmem:[%s0 + $0x24] sm:$0xf]
  %v160 = vld [vmem:[%s0 + $0x28] sm:$0xf]
  %v161 = vld [vmem:[%s0 + $0x2c] sm:$0xf]
  %v162 = vld [vmem:[%s0 + $0x30] sm:$0xf]
  %v163 = vld [vmem:[%s0 + $0x34] sm:$0xf]
  %v164 = vld [vmem:[%s0 + $0x38] sm:$0xf]
  %v165 = vld [vmem:[%s0 + $0x3c] sm:$0xf]
  %v166 = vld [vmem:[%s0 + $0x40] sm:$0xf]
  %v167 = vld [vmem:[%s0 + $0x44] sm:$0xf]
  %v168 = vld [vmem:[%s0 + $0x48] sm:$0xf]
  %v169 = vld [vmem:[%s0 + $0x4c] sm:$0xf]
  %v170 = vld [vmem:[%s0 + $0x50] sm:$0xf]
  %v171 = vld [vmem:[%s0 + $0x54] sm:$0xf]
  %v172 = vld [vmem:[%s0 + $0x58] sm:$0xf]
  %v173 = vld [vmem:[%s0 + $0x5c] sm:$0xf]
  %v174 = vld [vmem:[%s0 + $0x60] sm:$0xf]
  %v175 = vld [vmem:[%s0 + $0x64] sm:$0xf]
  %v176 = vld [vmem:[%s0 + $0x68] sm:$0xf]
  %v177 = vld [vmem:[%s0 + $0x6c] sm:$0xf]
  %v178 = vld [vmem:[%s0 + $0x70] sm:$0xf]
  %v179 = vld [vmem:[%s0 + $0x74] sm:$0xf]
  %v180 = vld [vmem:[%s0 + $0x78] sm:$0xf]
  %v181 = vld [vmem:[%s0 + $0x7c] sm:$0xf]
  %v182 = vld [vmem:[%s0 + $0x80] sm:$0xf]
  %v183 = vld [vmem:[%s0 + $0x84] sm:$0xf]
  %v184 = vld [vmem:[%s0 + $0x88] sm:$0xf]
  %v185 = vld [vmem:[%s0 + $0x8c] sm:$0xf]
  %v186 = vld [vmem:[%s0 + $0x90] sm:$0xf]
  %v187 = vld [vmem:[%s0 + $0x94] sm:$0xf]
  %v188 = vld [vmem:[%s0 + $0x98] sm:$0xf]
  %v189 = vld [vmem:[%s0 + $0x9c] sm:$0xf]
  %v190 = vld [vmem:[%s0 + $0xa0] sm:$0xf]
  %v191 = vld [vmem:[%s0 + $0xa4] sm:$0xf]
  %v192 = vld [vmem:[%s0 + $0xa8] sm:$0xf]
  %v193 = vld [vmem:[%s0 + $0xac] sm:$0xf]
  %v194 = vld [vmem:[%s0 + $0xb0] sm:$0xf]
  %v195 = vld [vmem:[%s0 + $0xb4] sm:$0xf]
  %v196 = vld [vmem:[%s0 + $0xb8] sm:$0xf]
  %v197 = vld [vmem:[%s0 + $0xbc] sm:$0xf]
  %v198 = vld [vmem:[%s0 + $0xc0] sm:$0xf]
  %v199 = vld [vmem:[%s0 + $0xc4] sm:$0xf]
  %v200 = vld [vmem:[%s0 + $0xc8] sm:$0xf]
  %v201 = vld [vmem:[%s0 + $0xcc] sm:$0xf]
  %v202 = vld [vmem:[%s0 + $0xd0] sm:$0xf]
  %v203 = vld [vmem:[%s0 + $0xd4] sm:$0xf]
  %v204 = vld [vmem:[%s0 + $0xd8] sm:$0xf]
  %v205 = vld [vmem:[%s0 + $0xdc] sm:$0xf]
  %v206 = vld [vmem:[%s0 + $0xe0] sm:$0xf]
  %v207 = vld [vmem:[%s0 + $0xe4] sm:$0xf]
  %v208 = vld [vmem:[%s0 + $0xe8] sm:$0xf]
  %v209 = vld [vmem:[%s0 + $0xec] sm:$0xf]
  %v210 = vld [vmem:[%s0 + $0xf0] sm:$0xf]
  %v211 = vld [vmem:[%s0 + $0xf4] sm:$0xf]
  %v212 = vld [vmem:[%s0 + $0xf8] sm:$0xf]
  %v213 = vld [vmem:[%s0 + $0xfc] sm:$0xf]
  %v214 = vld [vmem:[%s1] sm:$0xf]
  %v215 = vld [vmem:[%s1 + $0x4] sm:$0xf]
  %v216 = vld [vmem:[%s1 + $0x8] sm:$0xf]
  %v217 = vld [vmem:[%s1 + $0xc] sm:$0xf]
  %v218 = vld [vmem:[%s1 + $0x10] sm:$0xf]
  %v219 = vld [vmem:[%s1 + $0x14] sm:$0xf]
  %v220 = vld [vmem:[%s1 + $0x18] sm:$0xf]
  %v221 = vld [vmem:[%s1 + $0x1c] sm:$0xf]
  %v222 = vld [vmem:[%s1 + $0x20] sm:$0xf]
  %v223 = vld [vmem:[%s1 + $0x24] sm:$0xf]
  %v224 = vld [vmem:[%s1 + $0x28] sm:$0xf]
  %v225 = vld [vmem:[%s1 + $0x2c] sm:$0xf]
  %v226 = vld [vmem:[%s1 + $0x30] sm:$0xf]
  %v227 = vld [vmem:[%s1 + $0x34] sm:$0xf]
  %v228 = vld [vmem:[%s1 + $0x38] sm:$0xf]
  %v229 = vld [vmem:[%s1 + $0x3c] sm:$0xf]
  %v294 = vunpack.c.l.b16 %v150
  %v295 = vunpack.c.l.b16 %v151
  %v296 = vunpack.c.l.b16 %v152
  %v297 = vunpack.c.l.b16 %v153
  %v298 = vunpack.c.l.b16 %v154
  %v299 = vunpack.c.l.b16 %v155
  %v300 = vunpack.c.l.b16 %v156
  %v301 = vunpack.c.l.b16 %v157
  %v302 = vunpack.c.l.b16 %v158
  %v303 = vunpack.c.l.b16 %v159
  %v304 = vunpack.c.l.b16 %v160
  %v305 = vunpack.c.l.b16 %v161
  %v306 = vunpack.c.l.b16 %v162
  %v307 = vunpack.c.l.b16 %v163
  %v308 = vunpack.c.l.b16 %v164
  %v309 = vunpack.c.l.b16 %v165
  %v310 = vunpack.c.l.b16 %v166
  %v311 = vunpack.c.l.b16 %v167
  %v312 = vunpack.c.l.b16 %v168
  %v313 = vunpack.c.l.b16 %v169
  %v314 = vunpack.c.l.b16 %v170
  %v315 = vunpack.c.l.b16 %v171
  %v316 = vunpack.c.l.b16 %v172
  %v317 = vunpack.c.l.b16 %v173
  %v318 = vunpack.c.l.b16 %v174
  %v319 = vunpack.c.l.b16 %v175
  %v320 = vunpack.c.l.b16 %v176
  %v321 = vunpack.c.l.b16 %v177
  %v322 = vunpack.c.l.b16 %v178
  %v323 = vunpack.c.l.b16 %v179
  %v324 = vunpack.c.l.b16 %v180
  %v325 = vunpack.c.l.b16 %v181
  %v326 = vunpack.c.l.b16 %v182
  %v327 = vunpack.c.l.b16 %v183
  %v328 = vunpack.c.l.b16 %v184
  %v329 = vunpack.c.l.b16 %v185
  %v330 = vunpack.c.l.b16 %v186
  %v331 = vunpack.c.l.b16 %v187
  %v332 = vunpack.c.l.b16 %v188
  %v333 = vunpack.c.l.b16 %v189
  %v334 = vunpack.c.l.b16 %v190
  %v335 = vunpack.c.l.b16 %v191
  %v336 = vunpack.c.l.b16 %v192
  %v337 = vunpack.c.l.b16 %v193
  %v338 = vunpack.c.l.b16 %v194
  %v339 = vunpack.c.l.b16 %v195
  %v340 = vunpack.c.l.b16 %v196
  %v341 = vunpack.c.l.b16 %v197
  %v342 = vunpack.c.l.b16 %v198
  %v343 = vunpack.c.l.b16 %v199
  %v344 = vunpack.c.l.b16 %v200
  %v345 = vunpack.c.l.b16 %v201
  %v346 = vunpack.c.l.b16 %v202
  %v347 = vunpack.c.l.b16 %v203
  %v348 = vunpack.c.l.b16 %v204
  %v349 = vunpack.c.l.b16 %v205
  %v350 = vunpack.c.l.b16 %v206
  %v351 = vunpack.c.l.b16 %v207
  %v352 = vunpack.c.l.b16 %v208
  %v353 = vunpack.c.l.b16 %v209
  %v354 = vunpack.c.l.b16 %v210
  %v355 = vunpack.c.l.b16 %v211
  %v356 = vunpack.c.l.b16 %v212
  %v357 = vunpack.c.l.b16 %v213
  %v358 = vpack.c.b16 %v295, %v294
  %v359 = vpack.c.b16 %v297, %v296
  %v360 = vpack.c.b16 %v299, %v298
  %v361 = vpack.c.b16 %v301, %v300
  %v362 = vpack.c.b16 %v303, %v302
  %v363 = vpack.c.b16 %v305, %v304
  %v364 = vpack.c.b16 %v307, %v306
  %v365 = vpack.c.b16 %v309, %v308
  %v366 = vpack.c.b16 %v311, %v310
  %v367 = vpack.c.b16 %v313, %v312
  %v368 = vpack.c.b16 %v315, %v314
  %v369 = vpack.c.b16 %v317, %v316
  %v370 = vpack.c.b16 %v319, %v318
  %v371 = vpack.c.b16 %v321, %v320
  %v372 = vpack.c.b16 %v323, %v322
  %v373 = vpack.c.b16 %v325, %v324
  %v374 = vpack.c.b16 %v327, %v326
  %v375 = vpack.c.b16 %v329, %v328
  %v376 = vpack.c.b16 %v331, %v330
  %v377 = vpack.c.b16 %v333, %v332
  %v378 = vpack.c.b16 %v335, %v334
  %v379 = vpack.c.b16 %v337, %v336
  %v380 = vpack.c.b16 %v339, %v338
  %v381 = vpack.c.b16 %v341, %v340
  %v382 = vpack.c.b16 %v343, %v342
  %v383 = vpack.c.b16 %v345, %v344
  %v384 = vpack.c.b16 %v347, %v346
  %v385 = vpack.c.b16 %v349, %v348
  %v386 = vpack.c.b16 %v351, %v350
  %v387 = vpack.c.b16 %v353, %v352
  %v388 = vpack.c.b16 %v355, %v354
  %v389 = vpack.c.b16 %v357, %v356
  %v438 = vunpack.c.l.b16 %v214
  %v439 = vunpack.c.l.b16 %v215
  %v440 = vunpack.c.l.b16 %v216
  %v441 = vunpack.c.l.b16 %v217
  %v442 = vunpack.c.l.b16 %v218
  %v443 = vunpack.c.l.b16 %v219
  %v444 = vunpack.c.l.b16 %v220
  %v445 = vunpack.c.l.b16 %v221
  %v446 = vunpack.c.l.b16 %v222
  %v447 = vunpack.c.l.b16 %v223
  %v448 = vunpack.c.l.b16 %v224
  %v449 = vunpack.c.l.b16 %v225
  %v450 = vunpack.c.l.b16 %v226
  %v451 = vunpack.c.l.b16 %v227
  %v452 = vunpack.c.l.b16 %v228
  %v453 = vunpack.c.l.b16 %v229
  %v454 = vpack.c.b16 %v439, %v438
  %v455 = vpack.c.b16 %v441, %v440
  %v456 = vpack.c.b16 %v443, %v442
  %v457 = vpack.c.b16 %v445, %v444
  %v458 = vpack.c.b16 %v447, %v446
  %v459 = vpack.c.b16 %v449, %v448
  %v460 = vpack.c.b16 %v451, %v450
  %v461 = vpack.c.b16 %v453, %v452
  %470 = vmatprep.subr.bf16.mxu0 0
  %471 = vmatpush1.bf16.msra.mxu0 %v454
  %472 = vmatprep.subr.bf16.mxu0 0
  %473 = vmatpush1.bf16.msra.mxu0 %v455
  %474 = vmatprep.subr.bf16.mxu0 0
  %475 = vmatpush1.bf16.msra.mxu0 %v456
  %476 = vmatprep.subr.bf16.mxu0 0
  %477 = vmatpush1.bf16.msra.mxu0 %v457
  %478 = vmatprep.subr.bf16.mxu0 0
  %479 = vmatpush1.bf16.msra.mxu0 %v458
  %480 = vmatprep.subr.bf16.mxu0 0
  %481 = vmatpush1.bf16.msra.mxu0 %v459
  %482 = vmatprep.subr.bf16.mxu0 0
  %483 = vmatpush1.bf16.msra.mxu0 %v460
  %484 = vmatprep.subr.bf16.mxu0 0
  %485 = vmatpush1.bf16.msra.mxu0 %v461
  %486 = vmatprep.subr.bf16.mxu0 0
  %487 = vmatpush1.bf16.msra.mxu0 0
  %488 = vmatprep.subr.bf16.mxu0 0
  %489 = vmatpush1.bf16.msra.mxu0 0
  %490 = vmatprep.subr.bf16.mxu0 0
  %491 = vmatpush1.bf16.msra.mxu0 0
  %492 = vmatprep.subr.bf16.mxu0 0
  %493 = vmatpush1.bf16.msra.mxu0 0
  %494 = vmatprep.subr.bf16.mxu0 0
  %495 = vmatpush1.bf16.msra.mxu0 0
  %496 = vmatprep.subr.bf16.mxu0 0
  %497 = vmatpush1.bf16.msra.mxu0 0
  %498 = vmatprep.subr.bf16.mxu0 0
  %499 = vmatpush1.bf16.msra.mxu0 0
  %500 = vmatprep.subr.bf16.mxu0 0
  %501 = vmatpush1.bf16.msra.mxu0 0
  %502 = vmatprep.mubr.bf16.mxu0 0
  %503 = vmatmul.mubr.bf16.gmra.mrb[0].mxu0 %v358
  %v504 = vpop.f32.mrb[0].mxu0
  %v505 = vadd.f32 0.0, %v504
  %v506 = vpop.f32.mrb[0].mxu0
  %v507 = vpop.f32.mrb[0].mxu0
  %v508 = vadd.f32 0.0, %v507
  %v509 = vpop.f32.mrb[0].mxu0
  %510 = vmatprep.mubr.bf16.mxu0 0
  %511 = vmatmul.mubr.bf16.gmra.mrb[0].mxu0 %v359
  %v512 = vpop.f32.mrb[0].mxu0
  %v513 = vadd.f32 0.0, %v512
  %v514 = vpop.f32.mrb[0].mxu0
  %v515 = vpop.f32.mrb[0].mxu0
  %v516 = vadd.f32 0.0, %v515
  %v517 = vpop.f32.mrb[0].mxu0
  %518 = vmatprep.mubr.bf16.mxu0 0
  %519 = vmatmul.mubr.bf16.gmra.mrb[0].mxu0 %v360
  %v520 = vpop.f32.mrb[0].mxu0
  %v521 = vadd.f32 0.0, %v520
  %v522 = vpop.f32.mrb[0].mxu0
  %v523 = vpop.f32.mrb[0].mxu0
  %v524 = vadd.f32 0.0, %v523
  %v525 = vpop.f32.mrb[0].mxu0
  %526 = vmatprep.mubr.bf16.mxu0 0
  %527 = vmatmul.mubr.bf16.gmra.mrb[0].mxu0 %v361
  %v528 = vpop.f32.mrb[0].mxu0
  %v529 = vadd.f32 0.0, %v528
  %v530 = vpop.f32.mrb[0].mxu0
  %v531 = vpop.f32.mrb[0].mxu0
  %v532 = vadd.f32 0.0, %v531
  %v533 = vpop.f32.mrb[0].mxu0
  %534 = vmatprep.mubr.bf16.mxu0 0
  %535 = vmatmul.mubr.bf16.gmra.mrb[0].mxu0 %v362
  %v536 = vpop.f32.mrb[0].mxu0
  %v537 = vadd.f32 0.0, %v536
  %v538 = vpop.f32.mrb[0].mxu0
  %v539 = vpop.f32.mrb[0].mxu0
  %v540 = vadd.f32 0.0, %v539
  %v541 = vpop.f32.mrb[0].mxu0
  %542 = vmatprep.mubr.bf16.mxu0 0
  %543 = vmatmul.mubr.bf16.gmra.mrb[0].mxu0 %v363
  %v544 = vpop.f32.mrb[0].mxu0
  %v545 = vadd.f32 0.0, %v544
  %v546 = vpop.f32.mrb[0].mxu0
  %v547 = vpop.f32.mrb[0].mxu0
  %v548 = vadd.f32 0.0, %v547
  %v549 = vpop.f32.mrb[0].mxu0
  %550 = vmatprep.mubr.bf16.mxu0 0
  %551 = vmatmul.mubr.bf16.gmra.mrb[0].mxu0 %v364
  %v552 = vpop.f32.mrb[0].mxu0
  %v553 = vadd.f32 0.0, %v552
  %v554 = vpop.f32.mrb[0].mxu0
  %v555 = vpop.f32.mrb[0].mxu0
  %v556 = vadd.f32 0.0, %v555
  %v557 = vpop.f32.mrb[0].mxu0
  %558 = vmatprep.mubr.bf16.mxu0 0
  %559 = vmatmul.mubr.bf16.gmra.mrb[0].mxu0 %v365
  %v560 = vpop.f32.mrb[0].mxu0
  %v561 = vadd.f32 0.0, %v560
  %v562 = vpop.f32.mrb[0].mxu0
  %v563 = vpop.f32.mrb[0].mxu0
  %v564 = vadd.f32 0.0, %v563
  %v565 = vpop.f32.mrb[0].mxu0
  %566 = vmatprep.mubr.bf16.mxu0 0
  %567 = vmatmul.mubr.bf16.gmra.mrb[0].mxu0 %v366
  %v568 = vpop.f32.mrb[0].mxu0
  %v569 = vadd.f32 0.0, %v568
  %v570 = vpop.f32.mrb[0].mxu0
  %v571 = vpop.f32.mrb[0].mxu0
  %v572 = vadd.f32 0.0, %v571
  %v573 = vpop.f32.mrb[0].mxu0
  %574 = vmatprep.mubr.bf16.mxu0 0
  %575 = vmatmul.mubr.bf16.gmra.mrb[0].mxu0 %v367
  %v576 = vpop.f32.mrb[0].mxu0
  %v577 = vadd.f32 0.0, %v576
  %v578 = vpop.f32.mrb[0].mxu0
  %v579 = vpop.f32.mrb[0].mxu0
  %v580 = vadd.f32 0.0, %v579
  %v581 = vpop.f32.mrb[0].mxu0
  %582 = vmatprep.mubr.bf16.mxu0 0
  %583 = vmatmul.mubr.bf16.gmra.mrb[0].mxu0 %v368
  %v584 = vpop.f32.mrb[0].mxu0
  %v585 = vadd.f32 0.0, %v584
  %v586 = vpop.f32.mrb[0].mxu0
  %v587 = vpop.f32.mrb[0].mxu0
  %v588 = vadd.f32 0.0, %v587
  %v589 = vpop.f32.mrb[0].mxu0
  %590 = vmatprep.mubr.bf16.mxu0 0
  %591 = vmatmul.mubr.bf16.gmra.mrb[0].mxu0 %v369
  %v592 = vpop.f32.mrb[0].mxu0
  %v593 = vadd.f32 0.0, %v592
  %v594 = vpop.f32.mrb[0].mxu0
  %v595 = vpop.f32.mrb[0].mxu0
  %v596 = vadd.f32 0.0, %v595
  %v597 = vpop.f32.mrb[0].mxu0
  %598 = vmatprep.mubr.bf16.mxu0 0
  %599 = vmatmul.mubr.bf16.gmra.mrb[0].mxu0 %v370
  %v600 = vpop.f32.mrb[0].mxu0
  %v601 = vadd.f32 0.0, %v600
  %v602 = vpop.f32.mrb[0].mxu0
  %v603 = vpop.f32.mrb[0].mxu0
  %v604 = vadd.f32 0.0, %v603
  %v605 = vpop.f32.mrb[0].mxu0
  %606 = vmatprep.mubr.bf16.mxu0 0
  %607 = vmatmul.mubr.bf16.gmra.mrb[0].mxu0 %v371
  %v608 = vpop.f32.mrb[0].mxu0
  %v609 = vadd.f32 0.0, %v608
  %v610 = vpop.f32.mrb[0].mxu0
  %v611 = vpop.f32.mrb[0].mxu0
  %v612 = vadd.f32 0.0, %v611
  %v613 = vpop.f32.mrb[0].mxu0
  %614 = vmatprep.mubr.bf16.mxu0 0
  %615 = vmatmul.mubr.bf16.gmra.mrb[0].mxu0 %v372
  %v616 = vpop.f32.mrb[0].mxu0
  %v617 = vadd.f32 0.0, %v616
  %v618 = vpop.f32.mrb[0].mxu0
  %v619 = vpop.f32.mrb[0].mxu0
  %v620 = vadd.f32 0.0, %v619
  %v621 = vpop.f32.mrb[0].mxu0
  %622 = vmatprep.mubr.bf16.mxu0 0
  %623 = vmatmul.mubr.bf16.gmra.mrb[0].mxu0 %v373
  %v624 = vpop.f32.mrb[0].mxu0
  %v625 = vadd.f32 0.0, %v624
  %v626 = vpop.f32.mrb[0].mxu0
  %v627 = vpop.f32.mrb[0].mxu0
  %v628 = vadd.f32 0.0, %v627
  %v629 = vpop.f32.mrb[0].mxu0
  %630 = vmatprep.mubr.bf16.mxu0 0
  %631 = vmatmul.mubr.bf16.gmra.mrb[0].mxu0 %v374
  %v632 = vpop.f32.mrb[0].mxu0
  %v633 = vadd.f32 0.0, %v632
  %v634 = vpop.f32.mrb[0].mxu0
  %v635 = vpop.f32.mrb[0].mxu0
  %v636 = vadd.f32 0.0, %v635
  %v637 = vpop.f32.mrb[0].mxu0
  %638 = vmatprep.mubr.bf16.mxu0 0
  %639 = vmatmul.mubr.bf16.gmra.mrb[0].mxu0 %v375
  %v640 = vpop.f32.mrb[0].mxu0
  %v641 = vadd.f32 0.0, %v640
  %v642 = vpop.f32.mrb[0].mxu0
  %v643 = vpop.f32.mrb[0].mxu0
  %v644 = vadd.f32 0.0, %v643
  %v645 = vpop.f32.mrb[0].mxu0
  %646 = vmatprep.mubr.bf16.mxu0 0
  %647 = vmatmul.mubr.bf16.gmra.mrb[0].mxu0 %v376
  %v648 = vpop.f32.mrb[0].mxu0
  %v649 = vadd.f32 0.0, %v648
  %v650 = vpop.f32.mrb[0].mxu0
  %v651 = vpop.f32.mrb[0].mxu0
  %v652 = vadd.f32 0.0, %v651
  %v653 = vpop.f32.mrb[0].mxu0
  %654 = vmatprep.mubr.bf16.mxu0 0
  %655 = vmatmul.mubr.bf16.gmra.mrb[0].mxu0 %v377
  %v656 = vpop.f32.mrb[0].mxu0
  %v657 = vadd.f32 0.0, %v656
  %v658 = vpop.f32.mrb[0].mxu0
  %v659 = vpop.f32.mrb[0].mxu0
  %v660 = vadd.f32 0.0, %v659
  %v661 = vpop.f32.mrb[0].mxu0
  %662 = vmatprep.mubr.bf16.mxu0 0
  %663 = vmatmul.mubr.bf16.gmra.mrb[0].mxu0 %v378
  %v664 = vpop.f32.mrb[0].mxu0
  %v665 = vadd.f32 0.0, %v664
  %v666 = vpop.f32.mrb[0].mxu0
  %v667 = vpop.f32.mrb[0].mxu0
  %v668 = vadd.f32 0.0, %v667
  %v669 = vpop.f32.mrb[0].mxu0
  %670 = vmatprep.mubr.bf16.mxu0 0
  %671 = vmatmul.mubr.bf16.gmra.mrb[0].mxu0 %v379
  %v672 = vpop.f32.mrb[0].mxu0
  %v673 = vadd.f32 0.0, %v672
  %v674 = vpop.f32.mrb[0].mxu0
  %v675 = vpop.f32.mrb[0].mxu0
  %v676 = vadd.f32 0.0, %v675
  %v677 = vpop.f32.mrb[0].mxu0
  %678 = vmatprep.mubr.bf16.mxu0 0
  %679 = vmatmul.mubr.bf16.gmra.mrb[0].mxu0 %v380
  %v680 = vpop.f32.mrb[0].mxu0
  %v681 = vadd.f32 0.0, %v680
  %v682 = vpop.f32.mrb[0].mxu0
  %v683 = vpop.f32.mrb[0].mxu0
  %v684 = vadd.f32 0.0, %v683
  %v685 = vpop.f32.mrb[0].mxu0
  %686 = vmatprep.mubr.bf16.mxu0 0
  %687 = vmatmul.mubr.bf16.gmra.mrb[0].mxu0 %v381
  %v688 = vpop.f32.mrb[0].mxu0
  %v689 = vadd.f32 0.0, %v688
  %v690 = vpop.f32.mrb[0].mxu0
  %v691 = vpop.f32.mrb[0].mxu0
  %v692 = vadd.f32 0.0, %v691
  %v693 = vpop.f32.mrb[0].mxu0
  %694 = vmatprep.mubr.bf16.mxu0 0
  %695 = vmatmul.mubr.bf16.gmra.mrb[0].mxu0 %v382
  %v696 = vpop.f32.mrb[0].mxu0
  %v697 = vadd.f32 0.0, %v696
  %v698 = vpop.f32.mrb[0].mxu0
  %v699 = vpop.f32.mrb[0].mxu0
  %v700 = vadd.f32 0.0, %v699
  %v701 = vpop.f32.mrb[0].mxu0
  %702 = vmatprep.mubr.bf16.mxu0 0
  %703 = vmatmul.mubr.bf16.gmra.mrb[0].mxu0 %v383
  %v704 = vpop.f32.mrb[0].mxu0
  %v705 = vadd.f32 0.0, %v704
  %v706 = vpop.f32.mrb[0].mxu0
  %v707 = vpop.f32.mrb[0].mxu0
  %v708 = vadd.f32 0.0, %v707
  %v709 = vpop.f32.mrb[0].mxu0
  %710 = vmatprep.mubr.bf16.mxu0 0
  %711 = vmatmul.mubr.bf16.gmra.mrb[0].mxu0 %v384
  %v712 = vpop.f32.mrb[0].mxu0
  %v713 = vadd.f32 0.0, %v712
  %v714 = vpop.f32.mrb[0].mxu0
  %v715 = vpop.f32.mrb[0].mxu0
  %v716 = vadd.f32 0.0, %v715
  %v717 = vpop.f32.mrb[0].mxu0
  %718 = vmatprep.mubr.bf16.mxu0 0
  %719 = vmatmul.mubr.bf16.gmra.mrb[0].mxu0 %v385
  %v720 = vpop.f32.mrb[0].mxu0
  %v721 = vadd.f32 0.0, %v720
  %v722 = vpop.f32.mrb[0].mxu0
  %v723 = vpop.f32.mrb[0].mxu0
  %v724 = vadd.f32 0.0, %v723
  %v725 = vpop.f32.mrb[0].mxu0
  %726 = vmatprep.mubr.bf16.mxu0 0
  %727 = vmatmul.mubr.bf16.gmra.mrb[0].mxu0 %v386
  %v728 = vpop.f32.mrb[0].mxu0
  %v729 = vadd.f32 0.0, %v728
  %v730 = vpop.f32.mrb[0].mxu0
  %v731 = vpop.f32.mrb[0].mxu0
  %v732 = vadd.f32 0.0, %v731
  %v733 = vpop.f32.mrb[0].mxu0
  %734 = vmatprep.mubr.bf16.mxu0 0
  %735 = vmatmul.mubr.bf16.gmra.mrb[0].mxu0 %v387
  %v736 = vpop.f32.mrb[0].mxu0
  %v737 = vadd.f32 0.0, %v736
  %v738 = vpop.f32.mrb[0].mxu0
  %v739 = vpop.f32.mrb[0].mxu0
  %v740 = vadd.f32 0.0, %v739
  %v741 = vpop.f32.mrb[0].mxu0
  %742 = vmatprep.mubr.bf16.mxu0 0
  %743 = vmatmul.mubr.bf16.gmra.mrb[0].mxu0 %v388
  %v744 = vpop.f32.mrb[0].mxu0
  %v745 = vadd.f32 0.0, %v744
  %v746 = vpop.f32.mrb[0].mxu0
  %v747 = vpop.f32.mrb[0].mxu0
  %v748 = vadd.f32 0.0, %v747
  %v749 = vpop.f32.mrb[0].mxu0
  %750 = vmatprep.mubr.bf16.mxu0 0
  %751 = vmatmul.mubr.bf16.gmra.mrb[0].mxu0 %v389
  %v752 = vpop.f32.mrb[0].mxu0
  %v753 = vadd.f32 0.0, %v752
  %v754 = vpop.f32.mrb[0].mxu0
  %v755 = vpop.f32.mrb[0].mxu0
  %v756 = vadd.f32 0.0, %v755
  %v757 = vpop.f32.mrb[0].mxu0
  %758 = vdwg.mxu0
  %v759 = vadd.f32 %v86, %v505
  %v760 = vadd.f32 %v87, %v508
  %v761 = vadd.f32 %v88, %v513
  %v762 = vadd.f32 %v89, %v516
  %v763 = vadd.f32 %v90, %v521
  %v764 = vadd.f32 %v91, %v524
  %v765 = vadd.f32 %v92, %v529
  %v766 = vadd.f32 %v93, %v532
  %v767 = vadd.f32 %v94, %v537
  %v768 = vadd.f32 %v95, %v540
  %v769 = vadd.f32 %v96, %v545
  %v770 = vadd.f32 %v97, %v548
  %v771 = vadd.f32 %v98, %v553
  %v772 = vadd.f32 %v99, %v556
  %v773 = vadd.f32 %v100, %v561
  %v774 = vadd.f32 %v101, %v564
  %v775 = vadd.f32 %v102, %v569
  %v776 = vadd.f32 %v103, %v572
  %v777 = vadd.f32 %v104, %v577
  %v778 = vadd.f32 %v105, %v580
  %v779 = vadd.f32 %v106, %v585
  %v780 = vadd.f32 %v107, %v588
  %v781 = vadd.f32 %v108, %v593
  %v782 = vadd.f32 %v109, %v596
  %v783 = vadd.f32 %v110, %v601
  %v784 = vadd.f32 %v111, %v604
  %v785 = vadd.f32 %v112, %v609
  %v786 = vadd.f32 %v113, %v612
  %v787 = vadd.f32 %v114, %v617
  %v788 = vadd.f32 %v115, %v620
  %v789 = vadd.f32 %v116, %v625
  %v790 = vadd.f32 %v117, %v628
  %v791 = vadd.f32 %v118, %v633
  %v792 = vadd.f32 %v119, %v636
  %v793 = vadd.f32 %v120, %v641
  %v794 = vadd.f32 %v121, %v644
  %v795 = vadd.f32 %v122, %v649
  %v796 = vadd.f32 %v123, %v652
  %v797 = vadd.f32 %v124, %v657
  %v798 = vadd.f32 %v125, %v660
  %v799 = vadd.f32 %v126, %v665
  %v800 = vadd.f32 %v127, %v668
  %v801 = vadd.f32 %v128, %v673
  %v802 = vadd.f32 %v129, %v676
  %v803 = vadd.f32 %v130, %v681
  %v804 = vadd.f32 %v131, %v684
  %v805 = vadd.f32 %v132, %v689
  %v806 = vadd.f32 %v133, %v692
  %v807 = vadd.f32 %v134, %v697
  %v808 = vadd.f32 %v135, %v700
  %v809 = vadd.f32 %v136, %v705
  %v810 = vadd.f32 %v137, %v708
  %v811 = vadd.f32 %v138, %v713
  %v812 = vadd.f32 %v139, %v716
  %v813 = vadd.f32 %v140, %v721
  %v814 = vadd.f32 %v141, %v724
  %v815 = vadd.f32 %v142, %v729
  %v816 = vadd.f32 %v143, %v732
  %v817 = vadd.f32 %v144, %v737
  %v818 = vadd.f32 %v145, %v740
  %v819 = vadd.f32 %v146, %v745
  %v820 = vadd.f32 %v147, %v748
  %v821 = vadd.f32 %v148, %v753
  %v822 = vadd.f32 %v149, %v756
  %823 = vst [vmem:[#allocation2] sm:$0xff] %v759
  %824 = vst [vmem:[#allocation2 + $0x8] sm:$0xff] %v760
  %825 = vst [vmem:[#allocation2 + $0x10] sm:$0xff] %v761
  %826 = vst [vmem:[#allocation2 + $0x18] sm:$0xff] %v762
  %827 = vst [vmem:[#allocation2 + $0x20] sm:$0xff] %v763
  %828 = vst [vmem:[#allocation2 + $0x28] sm:$0xff] %v764
  %829 = vst [vmem:[#allocation2 + $0x30] sm:$0xff] %v765
  %830 = vst [vmem:[#allocation2 + $0x38] sm:$0xff] %v766
  %831 = vst [vmem:[#allocation2 + $0x40] sm:$0xff] %v767
  %832 = vst [vmem:[#allocation2 + $0x48] sm:$0xff] %v768
  %833 = vst [vmem:[#allocation2 + $0x50] sm:$0xff] %v769
  %834 = vst [vmem:[#allocation2 + $0x58] sm:$0xff] %v770
  %835 = vst [vmem:[#allocation2 + $0x60] sm:$0xff] %v771
  %836 = vst [vmem:[#allocation2 + $0x68] sm:$0xff] %v772
  %837 = vst [vmem:[#allocation2 + $0x70] sm:$0xff] %v773
  %838 = vst [vmem:[#allocation2 + $0x78] sm:$0xff] %v774
  %839 = vst [vmem:[#allocation2 + $0x80] sm:$0xff] %v775
  %840 = vst [vmem:[#allocation2 + $0x88] sm:$0xff] %v776
  %841 = vst [vmem:[#allocation2 + $0x90] sm:$0xff] %v777
  %842 = vst [vmem:[#allocation2 + $0x98] sm:$0xff] %v778
  %843 = vst [vmem:[#allocation2 + $0xa0] sm:$0xff] %v779
  %844 = vst [vmem:[#allocation2 + $0xa8] sm:$0xff] %v780
  %845 = vst [vmem:[#allocation2 + $0xb0] sm:$0xff] %v781
  %846 = vst [vmem:[#allocation2 + $0xb8] sm:$0xff] %v782
  %847 = vst [vmem:[#allocation2 + $0xc0] sm:$0xff] %v783
  %848 = vst [vmem:[#allocation2 + $0xc8] sm:$0xff] %v784
  %849 = vst [vmem:[#allocation2 + $0xd0] sm:$0xff] %v785
  %850 = vst [vmem:[#allocation2 + $0xd8] sm:$0xff] %v786
  %851 = vst [vmem:[#allocation2 + $0xe0] sm:$0xff] %v787
  %852 = vst [vmem:[#allocation2 + $0xe8] sm:$0xff] %v788
  %853 = vst [vmem:[#allocation2 + $0xf0] sm:$0xff] %v789
  %854 = vst [vmem:[#allocation2 + $0xf8] sm:$0xff] %v790
  %855 = vst [vmem:[#allocation2 + $0x100] sm:$0xff] %v791
  %856 = vst [vmem:[#allocation2 + $0x108] sm:$0xff] %v792
  %857 = vst [vmem:[#allocation2 + $0x110] sm:$0xff] %v793
  %858 = vst [vmem:[#allocation2 + $0x118] sm:$0xff] %v794
  %859 = vst [vmem:[#allocation2 + $0x120] sm:$0xff] %v795
  %860 = vst [vmem:[#allocation2 + $0x128] sm:$0xff] %v796
  %861 = vst [vmem:[#allocation2 + $0x130] sm:$0xff] %v797
  %862 = vst [vmem:[#allocation2 + $0x138] sm:$0xff] %v798
  %863 = vst [vmem:[#allocation2 + $0x140] sm:$0xff] %v799
  %864 = vst [vmem:[#allocation2 + $0x148] sm:$0xff] %v800
  %865 = vst [vmem:[#allocation2 + $0x150] sm:$0xff] %v801
  %866 = vst [vmem:[#allocation2 + $0x158] sm:$0xff] %v802
  %867 = vst [vmem:[#allocation2 + $0x160] sm:$0xff] %v803
  %868 = vst [vmem:[#allocation2 + $0x168] sm:$0xff] %v804
  %869 = vst [vmem:[#allocation2 + $0x170] sm:$0xff] %v805
  %870 = vst [vmem:[#allocation2 + $0x178] sm:$0xff] %v806
  %871 = vst [vmem:[#allocation2 + $0x180] sm:$0xff] %v807
  %872 = vst [vmem:[#allocation2 + $0x188] sm:$0xff] %v808
  %873 = vst [vmem:[#allocation2 + $0x190] sm:$0xff] %v809
  %874 = vst [vmem:[#allocation2 + $0x198] sm:$0xff] %v810
  %875 = vst [vmem:[#allocation2 + $0x1a0] sm:$0xff] %v811
  %876 = vst [vmem:[#allocation2 + $0x1a8] sm:$0xff] %v812
  %877 = vst [vmem:[#allocation2 + $0x1b0] sm:$0xff] %v813
  %878 = vst [vmem:[#allocation2 + $0x1b8] sm:$0xff] %v814
  %879 = vst [vmem:[#allocation2 + $0x1c0] sm:$0xff] %v815
  %880 = vst [vmem:[#allocation2 + $0x1c8] sm:$0xff] %v816
  %881 = vst [vmem:[#allocation2 + $0x1d0] sm:$0xff] %v817
  %882 = vst [vmem:[#allocation2 + $0x1d8] sm:$0xff] %v818
  %883 = vst [vmem:[#allocation2 + $0x1e0] sm:$0xff] %v819
  %884 = vst [vmem:[#allocation2 + $0x1e8] sm:$0xff] %v820
  %885 = vst [vmem:[#allocation2 + $0x1f0] sm:$0xff] %v821
  %886 = vst [vmem:[#allocation2 + $0x1f8] sm:$0xff] %v822
  // Predicated region
  $region22: #{hrnet_forward.12} parent=0 // pred_check
    %p887 = pneg %p18
  $region23: #{hrnet_forward.12} parent=0 // pred_check_branch
    %889 = sbr.rel (%p887) target = $region25
  $region24: #{hrnet_forward.12} parent=0 // pred_region
    %v890 = vld [vmem:[#allocation2] sm:$0xff]
    %v891 = vld [vmem:[#allocation2 + $0x8] sm:$0xff]
    %v892 = vld [vmem:[#allocation2 + $0x10] sm:$0xff]
    %v893 = vld [vmem:[#allocation2 + $0x18] sm:$0xff]
    %v894 = vld [vmem:[#allocation2 + $0x20] sm:$0xff]
    %v895 = vld [vmem:[#allocation2 + $0x28] sm:$0xff]
    %v896 = vld [vmem:[#allocation2 + $0x30] sm:$0xff]
    %v897 = vld [vmem:[#allocation2 + $0x38] sm:$0xff]
    %v898 = vld [vmem:[#allocation2 + $0x40] sm:$0xff]
    %v899 = vld [vmem:[#allocation2 + $0x48] sm:$0xff]
    %v900 = vld [vmem:[#allocation2 + $0x50] sm:$0xff]
    %v901 = vld [vmem:[#allocation2 + $0x58] sm:$0xff]
    %v902 = vld [vmem:[#allocation2 + $0x60] sm:$0xff]
    %v903 = vld [vmem:[#allocation2 + $0x68] sm:$0xff]
    %v904 = vld [vmem:[#allocation2 + $0x70] sm:$0xff]
    %v905 = vld [vmem:[#allocation2 + $0x78] sm:$0xff]
    %v906 = vld [vmem:[#allocation2 + $0x80] sm:$0xff]
    %v907 = vld [vmem:[#allocation2 + $0x88] sm:$0xff]
    %v908 = vld [vmem:[#allocation2 + $0x90] sm:$0xff]
    %v909 = vld [vmem:[#allocation2 + $0x98] sm:$0xff]
    %v910 = vld [vmem:[#allocation2 + $0xa0] sm:$0xff]
    %v911 = vld [vmem:[#allocation2 + $0xa8] sm:$0xff]
    %v912 = vld [vmem:[#allocation2 + $0xb0] sm:$0xff]
    %v913 = vld [vmem:[#allocation2 + $0xb8] sm:$0xff]
    %v914 = vld [vmem:[#allocation2 + $0xc0] sm:$0xff]
    %v915 = vld [vmem:[#allocation2 + $0xc8] sm:$0xff]
    %v916 = vld [vmem:[#allocation2 + $0xd0] sm:$0xff]
    %v917 = vld [vmem:[#allocation2 + $0xd8] sm:$0xff]
    %v918 = vld [vmem:[#allocation2 + $0xe0] sm:$0xff]
    %v919 = vld [vmem:[#allocation2 + $0xe8] sm:$0xff]
    %v920 = vld [vmem:[#allocation2 + $0xf0] sm:$0xff]
    %v921 = vld [vmem:[#allocation2 + $0xf8] sm:$0xff]
    %v922 = vld [vmem:[#allocation2 + $0x100] sm:$0xff]
    %v923 = vld [vmem:[#allocation2 + $0x108] sm:$0xff]
    %v924 = vld [vmem:[#allocation2 + $0x110] sm:$0xff]
    %v925 = vld [vmem:[#allocation2 + $0x118] sm:$0xff]
    %v926 = vld [vmem:[#allocation2 + $0x120] sm:$0xff]
    %v927 = vld [vmem:[#allocation2 + $0x128] sm:$0xff]
    %v928 = vld [vmem:[#allocation2 + $0x130] sm:$0xff]
    %v929 = vld [vmem:[#allocation2 + $0x138] sm:$0xff]
    %v930 = vld [vmem:[#allocation2 + $0x140] sm:$0xff]
    %v931 = vld [vmem:[#allocation2 + $0x148] sm:$0xff]
    %v932 = vld [vmem:[#allocation2 + $0x150] sm:$0xff]
    %v933 = vld [vmem:[#allocation2 + $0x158] sm:$0xff]
    %v934 = vld [vmem:[#allocation2 + $0x160] sm:$0xff]
    %v935 = vld [vmem:[#allocation2 + $0x168] sm:$0xff]
    %v936 = vld [vmem:[#allocation2 + $0x170] sm:$0xff]
    %v937 = vld [vmem:[#allocation2 + $0x178] sm:$0xff]
    %v938 = vld [vmem:[#allocation2 + $0x180] sm:$0xff]
    %v939 = vld [vmem:[#allocation2 + $0x188] sm:$0xff]
    %v940 = vld [vmem:[#allocation2 + $0x190] sm:$0xff]
    %v941 = vld [vmem:[#allocation2 + $0x198] sm:$0xff]
    %v942 = vld [vmem:[#allocation2 + $0x1a0] sm:$0xff]
    %v943 = vld [vmem:[#allocation2 + $0x1a8] sm:$0xff]
    %v944 = vld [vmem:[#allocation2 + $0x1b0] sm:$0xff]
    %v945 = vld [vmem:[#allocation2 + $0x1b8] sm:$0xff]
    %v946 = vld [vmem:[#allocation2 + $0x1c0] sm:$0xff]
    %v947 = vld [vmem:[#allocation2 + $0x1c8] sm:$0xff]
    %v948 = vld [vmem:[#allocation2 + $0x1d0] sm:$0xff]
    %v949 = vld [vmem:[#allocation2 + $0x1d8] sm:$0xff]
    %v950 = vld [vmem:[#allocation2 + $0x1e0] sm:$0xff]
    %v951 = vld [vmem:[#allocation2 + $0x1e8] sm:$0xff]
    %v952 = vld [vmem:[#allocation2 + $0x1f0] sm:$0xff]
    %v953 = vld [vmem:[#allocation2 + $0x1f8] sm:$0xff]
    %v954 = vld [vmem:[%s2] sm:$0x1]
    %v956 = vlaneseq
    %v957 = vshrl.u32 %v956, 7
    %v958 = vsub.s32 0, %v957
    %v959 = vrot.slane %v954, %v958
    %v961 = vmul.f32 %v890, %v959
    %v962 = vmul.f32 %v891, %v959
    %v963 = vmul.f32 %v892, %v959
    %v964 = vmul.f32 %v893, %v959
    %v965 = vmul.f32 %v894, %v959
    %v966 = vmul.f32 %v895, %v959
    %v967 = vmul.f32 %v896, %v959
    %v968 = vmul.f32 %v897, %v959
    %v969 = vmul.f32 %v898, %v959
    %v970 = vmul.f32 %v899, %v959
    %v971 = vmul.f32 %v900, %v959
    %v972 = vmul.f32 %v901, %v959
    %v973 = vmul.f32 %v902, %v959
    %v974 = vmul.f32 %v903, %v959
    %v975 = vmul.f32 %v904, %v959
    %v976 = vmul.f32 %v905, %v959
    %v977 = vmul.f32 %v906, %v959
    %v978 = vmul.f32 %v907, %v959
    %v979 = vmul.f32 %v908, %v959
    %v980 = vmul.f32 %v909, %v959
    %v981 = vmul.f32 %v910, %v959
    %v982 = vmul.f32 %v911, %v959
    %v983 = vmul.f32 %v912, %v959
    %v984 = vmul.f32 %v913, %v959
    %v985 = vmul.f32 %v914, %v959
    %v986 = vmul.f32 %v915, %v959
    %v987 = vmul.f32 %v916, %v959
    %v988 = vmul.f32 %v917, %v959
    %v989 = vmul.f32 %v918, %v959
    %v990 = vmul.f32 %v919, %v959
    %v991 = vmul.f32 %v920, %v959
    %v992 = vmul.f32 %v921, %v959
    %v993 = vmul.f32 %v922, %v959
    %v994 = vmul.f32 %v923, %v959
    %v995 = vmul.f32 %v924, %v959
    %v996 = vmul.f32 %v925, %v959
    %v997 = vmul.f32 %v926, %v959
    %v998 = vmul.f32 %v927, %v959
    %v999 = vmul.f32 %v928, %v959
    %v1000 = vmul.f32 %v929, %v959
    %v1001 = vmul.f32 %v930, %v959
    %v1002 = vmul.f32 %v931, %v959
    %v1003 = vmul.f32 %v932, %v959
    %v1004 = vmul.f32 %v933, %v959
    %v1005 = vmul.f32 %v934, %v959
    %v1006 = vmul.f32 %v935, %v959
    %v1007 = vmul.f32 %v936, %v959
    %v1008 = vmul.f32 %v937, %v959
    %v1009 = vmul.f32 %v938, %v959
    %v1010 = vmul.f32 %v939, %v959
    %v1011 = vmul.f32 %v940, %v959
    %v1012 = vmul.f32 %v941, %v959
    %v1013 = vmul.f32 %v942, %v959
    %v1014 = vmul.f32 %v943, %v959
    %v1015 = vmul.f32 %v944, %v959
    %v1016 = vmul.f32 %v945, %v959
    %v1017 = vmul.f32 %v946, %v959
    %v1018 = vmul.f32 %v947, %v959
    %v1019 = vmul.f32 %v948, %v959
    %v1020 = vmul.f32 %v949, %v959
    %v1021 = vmul.f32 %v950, %v959
    %v1022 = vmul.f32 %v951, %v959
    %v1023 = vmul.f32 %v952, %v959
    %v1024 = vmul.f32 %v953, %v959
    %v1025 = vld [vmem:[%s3] sm:$0x1]
    %v1027 = vlaneseq
    %v1028 = vshrl.u32 %v1027, 7
    %v1029 = vsub.s32 0, %v1028
    %v1030 = vrot.slane %v1025, %v1029
    %v1032 = vadd.f32 %v961, %v1030
    %v1033 = vadd.f32 %v962, %v1030
    %v1034 = vadd.f32 %v963, %v1030
    %v1035 = vadd.f32 %v964, %v1030
    %v1036 = vadd.f32 %v965, %v1030
    %v1037 = vadd.f32 %v966, %v1030
    %v1038 = vadd.f32 %v967, %v1030
    %v1039 = vadd.f32 %v968, %v1030
    %v1040 = vadd.f32 %v969, %v1030
    %v1041 = vadd.f32 %v970, %v1030
    %v1042 = vadd.f32 %v971, %v1030
    %v1043 = vadd.f32 %v972, %v1030
    %v1044 = vadd.f32 %v973, %v1030
    %v1045 = vadd.f32 %v974, %v1030
    %v1046 = vadd.f32 %v975, %v1030
    %v1047 = vadd.f32 %v976, %v1030
    %v1048 = vadd.f32 %v977, %v1030
    %v1049 = vadd.f32 %v978, %v1030
    %v1050 = vadd.f32 %v979, %v1030
    %v1051 = vadd.f32 %v980, %v1030
    %v1052 = vadd.f32 %v981, %v1030
    %v1053 = vadd.f32 %v982, %v1030
    %v1054 = vadd.f32 %v983, %v1030
    %v1055 = vadd.f32 %v984, %v1030
    %v1056 = vadd.f32 %v985, %v1030
    %v1057 = vadd.f32 %v986, %v1030
    %v1058 = vadd.f32 %v987, %v1030
    %v1059 = vadd.f32 %v988, %v1030
    %v1060 = vadd.f32 %v989, %v1030
    %v1061 = vadd.f32 %v990, %v1030
    %v1062 = vadd.f32 %v991, %v1030
    %v1063 = vadd.f32 %v992, %v1030
    %v1064 = vadd.f32 %v993, %v1030
    %v1065 = vadd.f32 %v994, %v1030
    %v1066 = vadd.f32 %v995, %v1030
    %v1067 = vadd.f32 %v996, %v1030
    %v1068 = vadd.f32 %v997, %v1030
    %v1069 = vadd.f32 %v998, %v1030
    %v1070 = vadd.f32 %v999, %v1030
    %v1071 = vadd.f32 %v1000, %v1030
    %v1072 = vadd.f32 %v1001, %v1030
    %v1073 = vadd.f32 %v1002, %v1030
    %v1074 = vadd.f32 %v1003, %v1030
    %v1075 = vadd.f32 %v1004, %v1030
    %v1076 = vadd.f32 %v1005, %v1030
    %v1077 = vadd.f32 %v1006, %v1030
    %v1078 = vadd.f32 %v1007, %v1030
    %v1079 = vadd.f32 %v1008, %v1030
    %v1080 = vadd.f32 %v1009, %v1030
    %v1081 = vadd.f32 %v1010, %v1030
    %v1082 = vadd.f32 %v1011, %v1030
    %v1083 = vadd.f32 %v1012, %v1030
    %v1084 = vadd.f32 %v1013, %v1030
    %v1085 = vadd.f32 %v1014, %v1030
    %v1086 = vadd.f32 %v1015, %v1030
    %v1087 = vadd.f32 %v1016, %v1030
    %v1088 = vadd.f32 %v1017, %v1030
    %v1089 = vadd.f32 %v1018, %v1030
    %v1090 = vadd.f32 %v1019, %v1030
    %v1091 = vadd.f32 %v1020, %v1030
    %v1092 = vadd.f32 %v1021, %v1030
    %v1093 = vadd.f32 %v1022, %v1030
    %v1094 = vadd.f32 %v1023, %v1030
    %v1095 = vadd.f32 %v1024, %v1030
    %v1096 = vmax.f32 %v1032, 0.0
    %v1097 = vmax.f32 %v1033, 0.0
    %v1098 = vmax.f32 %v1034, 0.0
    %v1099 = vmax.f32 %v1035, 0.0
    %v1100 = vmax.f32 %v1036, 0.0
    %v1101 = vmax.f32 %v1037, 0.0
    %v1102 = vmax.f32 %v1038, 0.0
    %v1103 = vmax.f32 %v1039, 0.0
    %v1104 = vmax.f32 %v1040, 0.0
    %v1105 = vmax.f32 %v1041, 0.0
    %v1106 = vmax.f32 %v1042, 0.0
    %v1107 = vmax.f32 %v1043, 0.0
    %v1108 = vmax.f32 %v1044, 0.0
    %v1109 = vmax.f32 %v1045, 0.0
    %v1110 = vmax.f32 %v1046, 0.0
    %v1111 = vmax.f32 %v1047, 0.0
    %v1112 = vmax.f32 %v1048, 0.0
    %v1113 = vmax.f32 %v1049, 0.0
    %v1114 = vmax.f32 %v1050, 0.0
    %v1115 = vmax.f32 %v1051, 0.0
    %v1116 = vmax.f32 %v1052, 0.0
    %v1117 = vmax.f32 %v1053, 0.0
    %v1118 = vmax.f32 %v1054, 0.0
    %v1119 = vmax.f32 %v1055, 0.0
    %v1120 = vmax.f32 %v1056, 0.0
    %v1121 = vmax.f32 %v1057, 0.0
    %v1122 = vmax.f32 %v1058, 0.0
    %v1123 = vmax.f32 %v1059, 0.0
    %v1124 = vmax.f32 %v1060, 0.0
    %v1125 = vmax.f32 %v1061, 0.0
    %v1126 = vmax.f32 %v1062, 0.0
    %v1127 = vmax.f32 %v1063, 0.0
    %v1128 = vmax.f32 %v1064, 0.0
    %v1129 = vmax.f32 %v1065, 0.0
    %v1130 = vmax.f32 %v1066, 0.0
    %v1131 = vmax.f32 %v1067, 0.0
    %v1132 = vmax.f32 %v1068, 0.0
    %v1133 = vmax.f32 %v1069, 0.0
    %v1134 = vmax.f32 %v1070, 0.0
    %v1135 = vmax.f32 %v1071, 0.0
    %v1136 = vmax.f32 %v1072, 0.0
    %v1137 = vmax.f32 %v1073, 0.0
    %v1138 = vmax.f32 %v1074, 0.0
    %v1139 = vmax.f32 %v1075, 0.0
    %v1140 = vmax.f32 %v1076, 0.0
    %v1141 = vmax.f32 %v1077, 0.0
    %v1142 = vmax.f32 %v1078, 0.0
    %v1143 = vmax.f32 %v1079, 0.0
    %v1144 = vmax.f32 %v1080, 0.0
    %v1145 = vmax.f32 %v1081, 0.0
    %v1146 = vmax.f32 %v1082, 0.0
    %v1147 = vmax.f32 %v1083, 0.0
    %v1148 = vmax.f32 %v1084, 0.0
    %v1149 = vmax.f32 %v1085, 0.0
    %v1150 = vmax.f32 %v1086, 0.0
    %v1151 = vmax.f32 %v1087, 0.0
    %v1152 = vmax.f32 %v1088, 0.0
    %v1153 = vmax.f32 %v1089, 0.0
    %v1154 = vmax.f32 %v1090, 0.0
    %v1155 = vmax.f32 %v1091, 0.0
    %v1156 = vmax.f32 %v1092, 0.0
    %v1157 = vmax.f32 %v1093, 0.0
    %v1158 = vmax.f32 %v1094, 0.0
    %v1159 = vmax.f32 %v1095, 0.0
    %v1160 = vpack.c.bf16 %v1097, %v1096
    %v1161 = vpack.c.bf16 %v1099, %v1098
    %v1162 = vpack.c.bf16 %v1101, %v1100
    %v1163 = vpack.c.bf16 %v1103, %v1102
    %v1164 = vpack.c.bf16 %v1105, %v1104
    %v1165 = vpack.c.bf16 %v1107, %v1106
    %v1166 = vpack.c.bf16 %v1109, %v1108
    %v1167 = vpack.c.bf16 %v1111, %v1110
    %v1168 = vpack.c.bf16 %v1113, %v1112
    %v1169 = vpack.c.bf16 %v1115, %v1114
    %v1170 = vpack.c.bf16 %v1117, %v1116
    %v1171 = vpack.c.bf16 %v1119, %v1118
    %v1172 = vpack.c.bf16 %v1121, %v1120
    %v1173 = vpack.c.bf16 %v1123, %v1122
    %v1174 = vpack.c.bf16 %v1125, %v1124
    %v1175 = vpack.c.bf16 %v1127, %v1126
    %v1176 = vpack.c.bf16 %v1129, %v1128
    %v1177 = vpack.c.bf16 %v1131, %v1130
    %v1178 = vpack.c.bf16 %v1133, %v1132
    %v1179 = vpack.c.bf16 %v1135, %v1134
    %v1180 = vpack.c.bf16 %v1137, %v1136
    %v1181 = vpack.c.bf16 %v1139, %v1138
    %v1182 = vpack.c.bf16 %v1141, %v1140
    %v1183 = vpack.c.bf16 %v1143, %v1142
    %v1184 = vpack.c.bf16 %v1145, %v1144
    %v1185 = vpack.c.bf16 %v1147, %v1146
    %v1186 = vpack.c.bf16 %v1149, %v1148
    %v1187 = vpack.c.bf16 %v1151, %v1150
    %v1188 = vpack.c.bf16 %v1153, %v1152
    %v1189 = vpack.c.bf16 %v1155, %v1154
    %v1190 = vpack.c.bf16 %v1157, %v1156
    %v1191 = vpack.c.bf16 %v1159, %v1158
    %v1224 = vunpack.c.l.b16 %v1160
    %v1225 = vunpack.c.h.b16 %v1160
    %v1226 = vunpack.c.l.b16 %v1161
    %v1227 = vunpack.c.h.b16 %v1161
    %v1228 = vunpack.c.l.b16 %v1162
    %v1229 = vunpack.c.h.b16 %v1162
    %v1230 = vunpack.c.l.b16 %v1163
    %v1231 = vunpack.c.h.b16 %v1163
    %v1232 = vunpack.c.l.b16 %v1164
    %v1233 = vunpack.c.h.b16 %v1164
    %v1234 = vunpack.c.l.b16 %v1165
    %v1235 = vunpack.c.h.b16 %v1165
    %v1236 = vunpack.c.l.b16 %v1166
    %v1237 = vunpack.c.h.b16 %v1166
    %v1238 = vunpack.c.l.b16 %v1167
    %v1239 = vunpack.c.h.b16 %v1167
    %v1240 = vunpack.c.l.b16 %v1168
    %v1241 = vunpack.c.h.b16 %v1168
    %v1242 = vunpack.c.l.b16 %v1169
    %v1243 = vunpack.c.h.b16 %v1169
    %v1244 = vunpack.c.l.b16 %v1170
    %v1245 = vunpack.c.h.b16 %v1170
    %v1246 = vunpack.c.l.b16 %v1171
    %v1247 = vunpack.c.h.b16 %v1171
    %v1248 = vunpack.c.l.b16 %v1172
    %v1249 = vunpack.c.h.b16 %v1172
    %v1250 = vunpack.c.l.b16 %v1173
    %v1251 = vunpack.c.h.b16 %v1173
    %v1252 = vunpack.c.l.b16 %v1174
    %v1253 = vunpack.c.h.b16 %v1174
    %v1254 = vunpack.c.l.b16 %v1175
    %v1255 = vunpack.c.h.b16 %v1175
    %v1256 = vunpack.c.l.b16 %v1176
    %v1257 = vunpack.c.h.b16 %v1176
    %v1258 = vunpack.c.l.b16 %v1177
    %v1259 = vunpack.c.h.b16 %v1177
    %v1260 = vunpack.c.l.b16 %v1178
    %v1261 = vunpack.c.h.b16 %v1178
    %v1262 = vunpack.c.l.b16 %v1179
    %v1263 = vunpack.c.h.b16 %v1179
    %v1264 = vunpack.c.l.b16 %v1180
    %v1265 = vunpack.c.h.b16 %v1180
    %v1266 = vunpack.c.l.b16 %v1181
    %v1267 = vunpack.c.h.b16 %v1181
    %v1268 = vunpack.c.l.b16 %v1182
    %v1269 = vunpack.c.h.b16 %v1182
    %v1270 = vunpack.c.l.b16 %v1183
    %v1271 = vunpack.c.h.b16 %v1183
    %v1272 = vunpack.c.l.b16 %v1184
    %v1273 = vunpack.c.h.b16 %v1184
    %v1274 = vunpack.c.l.b16 %v1185
    %v1275 = vunpack.c.h.b16 %v1185
    %v1276 = vunpack.c.l.b16 %v1186
    %v1277 = vunpack.c.h.b16 %v1186
    %v1278 = vunpack.c.l.b16 %v1187
    %v1279 = vunpack.c.h.b16 %v1187
    %v1280 = vunpack.c.l.b16 %v1188
    %v1281 = vunpack.c.h.b16 %v1188
    %v1282 = vunpack.c.l.b16 %v1189
    %v1283 = vunpack.c.h.b16 %v1189
    %v1284 = vunpack.c.l.b16 %v1190
    %v1285 = vunpack.c.h.b16 %v1190
    %v1286 = vunpack.c.l.b16 %v1191
    %v1287 = vunpack.c.h.b16 %v1191
    %v1288 = vpack.c.b16 %v1224, %v1224
    %v1289 = vpack.c.b16 %v1225, %v1225
    %v1290 = vpack.c.b16 %v1226, %v1226
    %v1291 = vpack.c.b16 %v1227, %v1227
    %v1292 = vpack.c.b16 %v1228, %v1228
    %v1293 = vpack.c.b16 %v1229, %v1229
    %v1294 = vpack.c.b16 %v1230, %v1230
    %v1295 = vpack.c.b16 %v1231, %v1231
    %v1296 = vpack.c.b16 %v1232, %v1232
    %v1297 = vpack.c.b16 %v1233, %v1233
    %v1298 = vpack.c.b16 %v1234, %v1234
    %v1299 = vpack.c.b16 %v1235, %v1235
    %v1300 = vpack.c.b16 %v1236, %v1236
    %v1301 = vpack.c.b16 %v1237, %v1237
    %v1302 = vpack.c.b16 %v1238, %v1238
    %v1303 = vpack.c.b16 %v1239, %v1239
    %v1304 = vpack.c.b16 %v1240, %v1240
    %v1305 = vpack.c.b16 %v1241, %v1241
    %v1306 = vpack.c.b16 %v1242, %v1242
    %v1307 = vpack.c.b16 %v1243, %v1243
    %v1308 = vpack.c.b16 %v1244, %v1244
    %v1309 = vpack.c.b16 %v1245, %v1245
    %v1310 = vpack.c.b16 %v1246, %v1246
    %v1311 = vpack.c.b16 %v1247, %v1247
    %v1312 = vpack.c.b16 %v1248, %v1248
    %v1313 = vpack.c.b16 %v1249, %v1249
    %v1314 = vpack.c.b16 %v1250, %v1250
    %v1315 = vpack.c.b16 %v1251, %v1251
    %v1316 = vpack.c.b16 %v1252, %v1252
    %v1317 = vpack.c.b16 %v1253, %v1253
    %v1318 = vpack.c.b16 %v1254, %v1254
    %v1319 = vpack.c.b16 %v1255, %v1255
    %v1320 = vpack.c.b16 %v1256, %v1256
    %v1321 = vpack.c.b16 %v1257, %v1257
    %v1322 = vpack.c.b16 %v1258, %v1258
    %v1323 = vpack.c.b16 %v1259, %v1259
    %v1324 = vpack.c.b16 %v1260, %v1260
    %v1325 = vpack.c.b16 %v1261, %v1261
    %v1326 = vpack.c.b16 %v1262, %v1262
    %v1327 = vpack.c.b16 %v1263, %v1263
    %v1328 = vpack.c.b16 %v1264, %v1264
    %v1329 = vpack.c.b16 %v1265, %v1265
    %v1330 = vpack.c.b16 %v1266, %v1266
    %v1331 = vpack.c.b16 %v1267, %v1267
    %v1332 = vpack.c.b16 %v1268, %v1268
    %v1333 = vpack.c.b16 %v1269, %v1269
    %v1334 = vpack.c.b16 %v1270, %v1270
    %v1335 = vpack.c.b16 %v1271, %v1271
    %v1336 = vpack.c.b16 %v1272, %v1272
    %v1337 = vpack.c.b16 %v1273, %v1273
    %v1338 = vpack.c.b16 %v1274, %v1274
    %v1339 = vpack.c.b16 %v1275, %v1275
    %v1340 = vpack.c.b16 %v1276, %v1276
    %v1341 = vpack.c.b16 %v1277, %v1277
    %v1342 = vpack.c.b16 %v1278, %v1278
    %v1343 = vpack.c.b16 %v1279, %v1279
    %v1344 = vpack.c.b16 %v1280, %v1280
    %v1345 = vpack.c.b16 %v1281, %v1281
    %v1346 = vpack.c.b16 %v1282, %v1282
    %v1347 = vpack.c.b16 %v1283, %v1283
    %v1348 = vpack.c.b16 %v1284, %v1284
    %v1349 = vpack.c.b16 %v1285, %v1285
    %v1350 = vpack.c.b16 %v1286, %v1286
    %v1351 = vpack.c.b16 %v1287, %v1287
    %1416 = vst [vmem:[%s4] sm:$0xf] %v1288
    %1417 = vst [vmem:[%s4 + $0x4] sm:$0xf] %v1289
    %1418 = vst [vmem:[%s4 + $0x8] sm:$0xf] %v1290
    %1419 = vst [vmem:[%s4 + $0xc] sm:$0xf] %v1291
    %1420 = vst [vmem:[%s4 + $0x10] sm:$0xf] %v1292
    %1421 = vst [vmem:[%s4 + $0x14] sm:$0xf] %v1293
    %1422 = vst [vmem:[%s4 + $0x18] sm:$0xf] %v1294
    %1423 = vst [vmem:[%s4 + $0x1c] sm:$0xf] %v1295
    %1424 = vst [vmem:[%s4 + $0x20] sm:$0xf] %v1296
    %1425 = vst [vmem:[%s4 + $0x24] sm:$0xf] %v1297
    %1426 = vst [vmem:[%s4 + $0x28] sm:$0xf] %v1298
    %1427 = vst [vmem:[%s4 + $0x2c] sm:$0xf] %v1299
    %1428 = vst [vmem:[%s4 + $0x30] sm:$0xf] %v1300
    %1429 = vst [vmem:[%s4 + $0x34] sm:$0xf] %v1301
    %1430 = vst [vmem:[%s4 + $0x38] sm:$0xf] %v1302
    %1431 = vst [vmem:[%s4 + $0x3c] sm:$0xf] %v1303
    %1432 = vst [vmem:[%s4 + $0x40] sm:$0xf] %v1304
    %1433 = vst [vmem:[%s4 + $0x44] sm:$0xf] %v1305
    %1434 = vst [vmem:[%s4 + $0x48] sm:$0xf] %v1306
    %1435 = vst [vmem:[%s4 + $0x4c] sm:$0xf] %v1307
    %1436 = vst [vmem:[%s4 + $0x50] sm:$0xf] %v1308
    %1437 = vst [vmem:[%s4 + $0x54] sm:$0xf] %v1309
    %1438 = vst [vmem:[%s4 + $0x58] sm:$0xf] %v1310
    %1439 = vst [vmem:[%s4 + $0x5c] sm:$0xf] %v1311
    %1440 = vst [vmem:[%s4 + $0x60] sm:$0xf] %v1312
    %1441 = vst [vmem:[%s4 + $0x64] sm:$0xf] %v1313
    %1442 = vst [vmem:[%s4 + $0x68] sm:$0xf] %v1314
    %1443 = vst [vmem:[%s4 + $0x6c] sm:$0xf] %v1315
    %1444 = vst [vmem:[%s4 + $0x70] sm:$0xf] %v1316
    %1445 = vst [vmem:[%s4 + $0x74] sm:$0xf] %v1317
    %1446 = vst [vmem:[%s4 + $0x78] sm:$0xf] %v1318
    %1447 = vst [vmem:[%s4 + $0x7c] sm:$0xf] %v1319
    %1448 = vst [vmem:[%s4 + $0x80] sm:$0xf] %v1320
    %1449 = vst [vmem:[%s4 + $0x84] sm:$0xf] %v1321
    %1450 = vst [vmem:[%s4 + $0x88] sm:$0xf] %v1322
    %1451 = vst [vmem:[%s4 + $0x8c] sm:$0xf] %v1323
    %1452 = vst [vmem:[%s4 + $0x90] sm:$0xf] %v1324
    %1453 = vst [vmem:[%s4 + $0x94] sm:$0xf] %v1325
    %1454 = vst [vmem:[%s4 + $0x98] sm:$0xf] %v1326
    %1455 = vst [vmem:[%s4 + $0x9c] sm:$0xf] %v1327
    %1456 = vst [vmem:[%s4 + $0xa0] sm:$0xf] %v1328
    %1457 = vst [vmem:[%s4 + $0xa4] sm:$0xf] %v1329
    %1458 = vst [vmem:[%s4 + $0xa8] sm:$0xf] %v1330
    %1459 = vst [vmem:[%s4 + $0xac] sm:$0xf] %v1331
    %1460 = vst [vmem:[%s4 + $0xb0] sm:$0xf] %v1332
    %1461 = vst [vmem:[%s4 + $0xb4] sm:$0xf] %v1333
    %1462 = vst [vmem:[%s4 + $0xb8] sm:$0xf] %v1334
    %1463 = vst [vmem:[%s4 + $0xbc] sm:$0xf] %v1335
    %1464 = vst [vmem:[%s4 + $0xc0] sm:$0xf] %v1336
    %1465 = vst [vmem:[%s4 + $0xc4] sm:$0xf] %v1337
    %1466 = vst [vmem:[%s4 + $0xc8] sm:$0xf] %v1338
    %1467 = vst [vmem:[%s4 + $0xcc] sm:$0xf] %v1339
    %1468 = vst [vmem:[%s4 + $0xd0] sm:$0xf] %v1340
    %1469 = vst [vmem:[%s4 + $0xd4] sm:$0xf] %v1341
    %1470 = vst [vmem:[%s4 + $0xd8] sm:$0xf] %v1342
    %1471 = vst [vmem:[%s4 + $0xdc] sm:$0xf] %v1343
    %1472 = vst [vmem:[%s4 + $0xe0] sm:$0xf] %v1344
    %1473 = vst [vmem:[%s4 + $0xe4] sm:$0xf] %v1345
    %1474 = vst [vmem:[%s4 + $0xe8] sm:$0xf] %v1346
    %1475 = vst [vmem:[%s4 + $0xec] sm:$0xf] %v1347
    %1476 = vst [vmem:[%s4 + $0xf0] sm:$0xf] %v1348
    %1477 = vst [vmem:[%s4 + $0xf4] sm:$0xf] %v1349
    %1478 = vst [vmem:[%s4 + $0xf8] sm:$0xf] %v1350
    %1479 = vst [vmem:[%s4 + $0xfc] sm:$0xf] %v1351
  $region25: #{hrnet_forward.12} parent=0 // pred_fallthru
    _
  // Predicated region
  $region26: #{hrnet_forward.12} parent=0 // pred_check
    _
  $region27: #{hrnet_forward.12} parent=0 // pred_check_branch
    %1481 = sbr.rel (0) target = $region29
  $region28: #{hrnet_forward.12} parent=0 // pred_region
    _
  $region29: #{hrnet_forward.12} parent=0 // pred_fallthru
    _
  // Predicated region
  $region30: #{hrnet_forward.12} parent=0 // pred_check
    _
  $region31: #{hrnet_forward.12} parent=0 // pred_check_branch
    %1483 = sbr.rel (0) target = $region33
  $region32: #{hrnet_forward.12} parent=0 // pred_region
    _
  $region33: #{hrnet_forward.12} parent=0 // pred_fallthru
    _

// kernel: hrnet_forward.13
$region0: #{hrnet_forward.13}
  #allocation0 [shape = 'u32[]', space=smem, size = 0x4, offset = 0x4, fixed_abs, tag = 'smem constant byte address 0x4 - core index']
  #allocation1 [shape = 'u32[144,128]{1,0:T(1,128)}', space=vmem, size = 0x12000, scoped, tag = 'internal scratch']
  #allocation2 [shape = 'f32[128,128]{1,0:T(8,128)}', space=vmem, size = 0x10000, scoped, tag = 'scratch operand']
  %s0 = inlined_call_operand.vmem [shape: bf16[128,640], index: 0, kind: input, shape index: {}]
  %s1 = inlined_call_operand.vmem [shape: bf16[640,128], index: 1, kind: input, shape index: {}]
  %s2 = inlined_call_operand.vmem [shape: f32[1,128], index: 2, kind: input, shape index: {}]
  %s3 = inlined_call_operand.vmem [shape: f32[1,128], index: 3, kind: input, shape index: {}]
  %s4 = inlined_call_operand.vmem [shape: bf16[128,128], index: 4, kind: output, shape index: {}]
  %s5 = sld [smem:[#allocation0]]
  $region34: #{hrnet_forward.13} parent=0
    _
  %s7 = ssub.s32 1, %s5
  %s8 = scalar_select 0, %s7, %s5
  // Predicated region
  $region2: #{hrnet_forward.13} parent=0 // pred_check
    _
  $region3: #{hrnet_forward.13} parent=0 // pred_check_branch
    %10 = sbr.rel (0) target = $region5
  $region4: #{hrnet_forward.13} parent=0 // pred_region
    _
  $region5: #{hrnet_forward.13} parent=0 // pred_fallthru
    _
  // Predicated region
  $region6: #{hrnet_forward.13} parent=0 // pred_check
    _
  $region7: #{hrnet_forward.13} parent=0 // pred_check_branch
    %12 = sbr.rel (0) target = $region9
  $region8: #{hrnet_forward.13} parent=0 // pred_region
    _
  $region9: #{hrnet_forward.13} parent=0 // pred_fallthru
    _
  // Predicated region
  $region10: #{hrnet_forward.13} parent=0 // pred_check
    _
  $region11: #{hrnet_forward.13} parent=0 // pred_check_branch
    %14 = sbr.rel (0) target = $region13
  $region12: #{hrnet_forward.13} parent=0 // pred_region
    _
  $region13: #{hrnet_forward.13} parent=0 // pred_fallthru
    _
  // Predicated region
  $region14: #{hrnet_forward.13} parent=0 // pred_check
    _
  $region15: #{hrnet_forward.13} parent=0 // pred_check_branch
    %16 = sbr.rel (0) target = $region17
  $region16: #{hrnet_forward.13} parent=0 // pred_region
    _
  $region17: #{hrnet_forward.13} parent=0 // pred_fallthru
    _
  %p18 = scmp.eq.s32.totalorder 0, 0
  // Predicated region
  $region18: #{hrnet_forward.13} parent=0 // pred_check
    %p19 = pneg %p18
  $region19: #{hrnet_forward.13} parent=0 // pred_check_branch
    %21 = sbr.rel (%p19) target = $region21
  $region20: #{hrnet_forward.13} parent=0 // pred_region
    %22 = vst [vmem:[#allocation2] sm:$0xff] 0.0
    %23 = vst [vmem:[#allocation2 + $0x8] sm:$0xff] 0.0
    %24 = vst [vmem:[#allocation2 + $0x10] sm:$0xff] 0.0
    %25 = vst [vmem:[#allocation2 + $0x18] sm:$0xff] 0.0
    %26 = vst [vmem:[#allocation2 + $0x20] sm:$0xff] 0.0
    %27 = vst [vmem:[#allocation2 + $0x28] sm:$0xff] 0.0
    %28 = vst [vmem:[#allocation2 + $0x30] sm:$0xff] 0.0
    %29 = vst [vmem:[#allocation2 + $0x38] sm:$0xff] 0.0
    %30 = vst [vmem:[#allocation2 + $0x40] sm:$0xff] 0.0
    %31 = vst [vmem:[#allocation2 + $0x48] sm:$0xff] 0.0
    %32 = vst [vmem:[#allocation2 + $0x50] sm:$0xff] 0.0
    %33 = vst [vmem:[#allocation2 + $0x58] sm:$0xff] 0.0
    %34 = vst [vmem:[#allocation2 + $0x60] sm:$0xff] 0.0
    %35 = vst [vmem:[#allocation2 + $0x68] sm:$0xff] 0.0
    %36 = vst [vmem:[#allocation2 + $0x70] sm:$0xff] 0.0
    %37 = vst [vmem:[#allocation2 + $0x78] sm:$0xff] 0.0
  $region21: #{hrnet_forward.13} parent=0 // pred_fallthru
    _
  %v38 = vld [vmem:[#allocation2] sm:$0xff]
  %v39 = vld [vmem:[#allocation2 + $0x8] sm:$0xff]
  %v40 = vld [vmem:[#allocation2 + $0x10] sm:$0xff]
  %v41 = vld [vmem:[#allocation2 + $0x18] sm:$0xff]
  %v42 = vld [vmem:[#allocation2 + $0x20] sm:$0xff]
  %v43 = vld [vmem:[#allocation2 + $0x28] sm:$0xff]
  %v44 = vld [vmem:[#allocation2 + $0x30] sm:$0xff]
  %v45 = vld [vmem:[#allocation2 + $0x38] sm:$0xff]
  %v46 = vld [vmem:[#allocation2 + $0x40] sm:$0xff]
  %v47 = vld [vmem:[#allocation2 + $0x48] sm:$0xff]
  %v48 = vld [vmem:[#allocation2 + $0x50] sm:$0xff]
  %v49 = vld [vmem:[#allocation2 + $0x58] sm:$0xff]
  %v50 = vld [vmem:[#allocation2 + $0x60] sm:$0xff]
  %v51 = vld [vmem:[#allocation2 + $0x68] sm:$0xff]
  %v52 = vld [vmem:[#allocation2 + $0x70] sm:$0xff]
  %v53 = vld [vmem:[#allocation2 + $0x78] sm:$0xff]
  %v54 = vld [vmem:[%s0] sm:$0xff]
  %v55 = vld [vmem:[%s0 + $0x8] sm:$0xff]
  %v56 = vld [vmem:[%s0 + $0x10] sm:$0xf]
  %v57 = vld [vmem:[%s0 + $0x14] sm:$0xff]
  %v58 = vld [vmem:[%s0 + $0x1c] sm:$0xff]
  %v59 = vld [vmem:[%s0 + $0x24] sm:$0xf]
  %v60 = vld [vmem:[%s0 + $0x28] sm:$0xff]
  %v61 = vld [vmem:[%s0 + $0x30] sm:$0xff]
  %v62 = vld [vmem:[%s0 + $0x38] sm:$0xf]
  %v63 = vld [vmem:[%s0 + $0x3c] sm:$0xff]
  %v64 = vld [vmem:[%s0 + $0x44] sm:$0xff]
  %v65 = vld [vmem:[%s0 + $0x4c] sm:$0xf]
  %v66 = vld [vmem:[%s0 + $0x50] sm:$0xff]
  %v67 = vld [vmem:[%s0 + $0x58] sm:$0xff]
  %v68 = vld [vmem:[%s0 + $0x60] sm:$0xf]
  %v69 = vld [vmem:[%s0 + $0x64] sm:$0xff]
  %v70 = vld [vmem:[%s0 + $0x6c] sm:$0xff]
  %v71 = vld [vmem:[%s0 + $0x74] sm:$0xf]
  %v72 = vld [vmem:[%s0 + $0x78] sm:$0xff]
  %v73 = vld [vmem:[%s0 + $0x80] sm:$0xff]
  %v74 = vld [vmem:[%s0 + $0x88] sm:$0xf]
  %v75 = vld [vmem:[%s0 + $0x8c] sm:$0xff]
  %v76 = vld [vmem:[%s0 + $0x94] sm:$0xff]
  %v77 = vld [vmem:[%s0 + $0x9c] sm:$0xf]
  %v78 = vld [vmem:[%s0 + $0xa0] sm:$0xff]
  %v79 = vld [vmem:[%s0 + $0xa8] sm:$0xff]
  %v80 = vld [vmem:[%s0 + $0xb0] sm:$0xf]
  %v81 = vld [vmem:[%s0 + $0xb4] sm:$0xff]
  %v82 = vld [vmem:[%s0 + $0xbc] sm:$0xff]
  %v83 = vld [vmem:[%s0 + $0xc4] sm:$0xf]
  %v84 = vld [vmem:[%s0 + $0xc8] sm:$0xff]
  %v85 = vld [vmem:[%s0 + $0xd0] sm:$0xff]
  %v86 = vld [vmem:[%s0 + $0xd8] sm:$0xf]
  %v87 = vld [vmem:[%s0 + $0xdc] sm:$0xff]
  %v88 = vld [vmem:[%s0 + $0xe4] sm:$0xff]
  %v89 = vld [vmem:[%s0 + $0xec] sm:$0xf]
  %v90 = vld [vmem:[%s0 + $0xf0] sm:$0xff]
  %v91 = vld [vmem:[%s0 + $0xf8] sm:$0xff]
  %v92 = vld [vmem:[%s0 + $0x100] sm:$0xf]
  %v93 = vld [vmem:[%s0 + $0x104] sm:$0xff]
  %v94 = vld [vmem:[%s0 + $0x10c] sm:$0xff]
  %v95 = vld [vmem:[%s0 + $0x114] sm:$0xf]
  %v96 = vld [vmem:[%s0 + $0x118] sm:$0xff]
  %v97 = vld [vmem:[%s0 + $0x120] sm:$0xff]
  %v98 = vld [vmem:[%s0 + $0x128] sm:$0xf]
  %v99 = vld [vmem:[%s0 + $0x12c] sm:$0xff]
  %v100 = vld [vmem:[%s0 + $0x134] sm:$0xff]
  %v101 = vld [vmem:[%s0 + $0x13c] sm:$0xf]
  %v102 = vld [vmem:[%s1] sm:$0xf]
  %v103 = vld [vmem:[%s1 + $0x4] sm:$0xf]
  %v104 = vld [vmem:[%s1 + $0x8] sm:$0xf]
  %v105 = vld [vmem:[%s1 + $0xc] sm:$0xf]
  %v106 = vld [vmem:[%s1 + $0x10] sm:$0xf]
  %v107 = vld [vmem:[%s1 + $0x14] sm:$0xf]
  %v108 = vld [vmem:[%s1 + $0x18] sm:$0xf]
  %v109 = vld [vmem:[%s1 + $0x1c] sm:$0xf]
  %v110 = vld [vmem:[%s1 + $0x20] sm:$0xf]
  %v111 = vld [vmem:[%s1 + $0x24] sm:$0xf]
  %v112 = vld [vmem:[%s1 + $0x28] sm:$0xf]
  %v113 = vld [vmem:[%s1 + $0x2c] sm:$0xf]
  %v114 = vld [vmem:[%s1 + $0x30] sm:$0xf]
  %v115 = vld [vmem:[%s1 + $0x34] sm:$0xf]
  %v116 = vld [vmem:[%s1 + $0x38] sm:$0xf]
  %v117 = vld [vmem:[%s1 + $0x3c] sm:$0xf]
  %v118 = vld [vmem:[%s1 + $0x40] sm:$0xf]
  %v119 = vld [vmem:[%s1 + $0x44] sm:$0xf]
  %v120 = vld [vmem:[%s1 + $0x48] sm:$0xf]
  %v121 = vld [vmem:[%s1 + $0x4c] sm:$0xf]
  %v122 = vld [vmem:[%s1 + $0x50] sm:$0xf]
  %v123 = vld [vmem:[%s1 + $0x54] sm:$0xf]
  %v124 = vld [vmem:[%s1 + $0x58] sm:$0xf]
  %v125 = vld [vmem:[%s1 + $0x5c] sm:$0xf]
  %v126 = vld [vmem:[%s1 + $0x60] sm:$0xf]
  %v127 = vld [vmem:[%s1 + $0x64] sm:$0xf]
  %v128 = vld [vmem:[%s1 + $0x68] sm:$0xf]
  %v129 = vld [vmem:[%s1 + $0x6c] sm:$0xf]
  %v130 = vld [vmem:[%s1 + $0x70] sm:$0xf]
  %v131 = vld [vmem:[%s1 + $0x74] sm:$0xf]
  %v132 = vld [vmem:[%s1 + $0x78] sm:$0xf]
  %v133 = vld [vmem:[%s1 + $0x7c] sm:$0xf]
  %v134 = vld [vmem:[%s1 + $0x80] sm:$0xf]
  %v135 = vld [vmem:[%s1 + $0x84] sm:$0xf]
  %v136 = vld [vmem:[%s1 + $0x88] sm:$0xf]
  %v137 = vld [vmem:[%s1 + $0x8c] sm:$0xf]
  %v138 = vld [vmem:[%s1 + $0x90] sm:$0xf]
  %v139 = vld [vmem:[%s1 + $0x94] sm:$0xf]
  %v140 = vld [vmem:[%s1 + $0x98] sm:$0xf]
  %v141 = vld [vmem:[%s1 + $0x9c] sm:$0xf]
  %v142 = vld [vmem:[%s1 + $0xa0] sm:$0xf]
  %v143 = vld [vmem:[%s1 + $0xa4] sm:$0xf]
  %v144 = vld [vmem:[%s1 + $0xa8] sm:$0xf]
  %v145 = vld [vmem:[%s1 + $0xac] sm:$0xf]
  %v146 = vld [vmem:[%s1 + $0xb0] sm:$0xf]
  %v147 = vld [vmem:[%s1 + $0xb4] sm:$0xf]
  %v148 = vld [vmem:[%s1 + $0xb8] sm:$0xf]
  %v149 = vld [vmem:[%s1 + $0xbc] sm:$0xf]
  %v150 = vld [vmem:[%s1 + $0xc0] sm:$0xf]
  %v151 = vld [vmem:[%s1 + $0xc4] sm:$0xf]
  %v152 = vld [vmem:[%s1 + $0xc8] sm:$0xf]
  %v153 = vld [vmem:[%s1 + $0xcc] sm:$0xf]
  %v154 = vld [vmem:[%s1 + $0xd0] sm:$0xf]
  %v155 = vld [vmem:[%s1 + $0xd4] sm:$0xf]
  %v156 = vld [vmem:[%s1 + $0xd8] sm:$0xf]
  %v157 = vld [vmem:[%s1 + $0xdc] sm:$0xf]
  %v158 = vld [vmem:[%s1 + $0xe0] sm:$0xf]
  %v159 = vld [vmem:[%s1 + $0xe4] sm:$0xf]
  %v160 = vld [vmem:[%s1 + $0xe8] sm:$0xf]
  %v161 = vld [vmem:[%s1 + $0xec] sm:$0xf]
  %v162 = vld [vmem:[%s1 + $0xf0] sm:$0xf]
  %v163 = vld [vmem:[%s1 + $0xf4] sm:$0xf]
  %v164 = vld [vmem:[%s1 + $0xf8] sm:$0xf]
  %v165 = vld [vmem:[%s1 + $0xfc] sm:$0xf]
  %v166 = vld [vmem:[%s1 + $0x100] sm:$0xf]
  %v167 = vld [vmem:[%s1 + $0x104] sm:$0xf]
  %v168 = vld [vmem:[%s1 + $0x108] sm:$0xf]
  %v169 = vld [vmem:[%s1 + $0x10c] sm:$0xf]
  %v170 = vld [vmem:[%s1 + $0x110] sm:$0xf]
  %v171 = vld [vmem:[%s1 + $0x114] sm:$0xf]
  %v172 = vld [vmem:[%s1 + $0x118] sm:$0xf]
  %v173 = vld [vmem:[%s1 + $0x11c] sm:$0xf]
  %v174 = vld [vmem:[%s1 + $0x120] sm:$0xf]
  %v175 = vld [vmem:[%s1 + $0x124] sm:$0xf]
  %v176 = vld [vmem:[%s1 + $0x128] sm:$0xf]
  %v177 = vld [vmem:[%s1 + $0x12c] sm:$0xf]
  %v178 = vld [vmem:[%s1 + $0x130] sm:$0xf]
  %v179 = vld [vmem:[%s1 + $0x134] sm:$0xf]
  %v180 = vld [vmem:[%s1 + $0x138] sm:$0xf]
  %v181 = vld [vmem:[%s1 + $0x13c] sm:$0xf]
  %v230 = vunpack.c.l.b16 %v54
  %v231 = vunpack.c.h.b16 %v54
  %v232 = vunpack.c.l.b16 %v55
  %v233 = vunpack.c.h.b16 %v55
  %v234 = vunpack.c.l.b16 %v56
  %v235 = vunpack.c.l.b16 %v57
  %v236 = vunpack.c.h.b16 %v57
  %v237 = vunpack.c.l.b16 %v58
  %v238 = vunpack.c.h.b16 %v58
  %v239 = vunpack.c.l.b16 %v59
  %v240 = vunpack.c.l.b16 %v60
  %v241 = vunpack.c.h.b16 %v60
  %v242 = vunpack.c.l.b16 %v61
  %v243 = vunpack.c.h.b16 %v61
  %v244 = vunpack.c.l.b16 %v62
  %v245 = vunpack.c.l.b16 %v63
  %v246 = vunpack.c.h.b16 %v63
  %v247 = vunpack.c.l.b16 %v64
  %v248 = vunpack.c.h.b16 %v64
  %v249 = vunpack.c.l.b16 %v65
  %v250 = vunpack.c.l.b16 %v66
  %v251 = vunpack.c.h.b16 %v66
  %v252 = vunpack.c.l.b16 %v67
  %v253 = vunpack.c.h.b16 %v67
  %v254 = vunpack.c.l.b16 %v68
  %v255 = vunpack.c.l.b16 %v69
  %v256 = vunpack.c.h.b16 %v69
  %v257 = vunpack.c.l.b16 %v70
  %v258 = vunpack.c.h.b16 %v70
  %v259 = vunpack.c.l.b16 %v71
  %v260 = vunpack.c.l.b16 %v72
  %v261 = vunpack.c.h.b16 %v72
  %v262 = vunpack.c.l.b16 %v73
  %v263 = vunpack.c.h.b16 %v73
  %v264 = vunpack.c.l.b16 %v74
  %v265 = vunpack.c.l.b16 %v75
  %v266 = vunpack.c.h.b16 %v75
  %v267 = vunpack.c.l.b16 %v76
  %v268 = vunpack.c.h.b16 %v76
  %v269 = vunpack.c.l.b16 %v77
  %v270 = vunpack.c.l.b16 %v78
  %v271 = vunpack.c.h.b16 %v78
  %v272 = vunpack.c.l.b16 %v79
  %v273 = vunpack.c.h.b16 %v79
  %v274 = vunpack.c.l.b16 %v80
  %v275 = vunpack.c.l.b16 %v81
  %v276 = vunpack.c.h.b16 %v81
  %v277 = vunpack.c.l.b16 %v82
  %v278 = vunpack.c.h.b16 %v82
  %v279 = vunpack.c.l.b16 %v83
  %v280 = vunpack.c.l.b16 %v84
  %v281 = vunpack.c.h.b16 %v84
  %v282 = vunpack.c.l.b16 %v85
  %v283 = vunpack.c.h.b16 %v85
  %v284 = vunpack.c.l.b16 %v86
  %v285 = vunpack.c.l.b16 %v87
  %v286 = vunpack.c.h.b16 %v87
  %v287 = vunpack.c.l.b16 %v88
  %v288 = vunpack.c.h.b16 %v88
  %v289 = vunpack.c.l.b16 %v89
  %v290 = vunpack.c.l.b16 %v90
  %v291 = vunpack.c.h.b16 %v90
  %v292 = vunpack.c.l.b16 %v91
  %v293 = vunpack.c.h.b16 %v91
  %v294 = vunpack.c.l.b16 %v92
  %v295 = vunpack.c.l.b16 %v93
  %v296 = vunpack.c.h.b16 %v93
  %v297 = vunpack.c.l.b16 %v94
  %v298 = vunpack.c.h.b16 %v94
  %v299 = vunpack.c.l.b16 %v95
  %v300 = vunpack.c.l.b16 %v96
  %v301 = vunpack.c.h.b16 %v96
  %v302 = vunpack.c.l.b16 %v97
  %v303 = vunpack.c.h.b16 %v97
  %v304 = vunpack.c.l.b16 %v98
  %v305 = vunpack.c.l.b16 %v99
  %v306 = vunpack.c.h.b16 %v99
  %v307 = vunpack.c.l.b16 %v100
  %v308 = vunpack.c.h.b16 %v100
  %v309 = vunpack.c.l.b16 %v101
  %v310 = vpack.c.b16 %v235, %v230
  %v311 = vpack.c.b16 %v236, %v231
  %v312 = vpack.c.b16 %v237, %v232
  %v313 = vpack.c.b16 %v238, %v233
  %v314 = vpack.c.b16 %v239, %v234
  %v315 = vpack.c.b16 %v245, %v240
  %v316 = vpack.c.b16 %v246, %v241
  %v317 = vpack.c.b16 %v247, %v242
  %v318 = vpack.c.b16 %v248, %v243
  %v319 = vpack.c.b16 %v249, %v244
  %v320 = vpack.c.b16 %v255, %v250
  %v321 = vpack.c.b16 %v256, %v251
  %v322 = vpack.c.b16 %v257, %v252
  %v323 = vpack.c.b16 %v258, %v253
  %v324 = vpack.c.b16 %v259, %v254
  %v325 = vpack.c.b16 %v265, %v260
  %v326 = vpack.c.b16 %v266, %v261
  %v327 = vpack.c.b16 %v267, %v262
  %v328 = vpack.c.b16 %v268, %v263
  %v329 = vpack.c.b16 %v269, %v264
  %v330 = vpack.c.b16 %v275, %v270
  %v331 = vpack.c.b16 %v276, %v271
  %v332 = vpack.c.b16 %v277, %v272
  %v333 = vpack.c.b16 %v278, %v273
  %v334 = vpack.c.b16 %v279, %v274
  %v335 = vpack.c.b16 %v285, %v280
  %v336 = vpack.c.b16 %v286, %v281
  %v337 = vpack.c.b16 %v287, %v282
  %v338 = vpack.c.b16 %v288, %v283
  %v339 = vpack.c.b16 %v289, %v284
  %v340 = vpack.c.b16 %v295, %v290
  %v341 = vpack.c.b16 %v296, %v291
  %v342 = vpack.c.b16 %v297, %v292
  %v343 = vpack.c.b16 %v298, %v293
  %v344 = vpack.c.b16 %v299, %v294
  %v345 = vpack.c.b16 %v305, %v300
  %v346 = vpack.c.b16 %v306, %v301
  %v347 = vpack.c.b16 %v307, %v302
  %v348 = vpack.c.b16 %v308, %v303
  %v349 = vpack.c.b16 %v309, %v304
  %v470 = vunpack.c.l.b16 %v102
  %v471 = vunpack.c.l.b16 %v103
  %v472 = vunpack.c.l.b16 %v104
  %v473 = vunpack.c.l.b16 %v105
  %v474 = vunpack.c.l.b16 %v106
  %v475 = vunpack.c.l.b16 %v107
  %v476 = vunpack.c.l.b16 %v108
  %v477 = vunpack.c.l.b16 %v109
  %v478 = vunpack.c.l.b16 %v110
  %v479 = vunpack.c.l.b16 %v111
  %v480 = vunpack.c.l.b16 %v112
  %v481 = vunpack.c.l.b16 %v113
  %v482 = vunpack.c.l.b16 %v114
  %v483 = vunpack.c.l.b16 %v115
  %v484 = vunpack.c.l.b16 %v116
  %v485 = vunpack.c.l.b16 %v117
  %v486 = vunpack.c.l.b16 %v118
  %v487 = vunpack.c.l.b16 %v119
  %v488 = vunpack.c.l.b16 %v120
  %v489 = vunpack.c.l.b16 %v121
  %v490 = vunpack.c.l.b16 %v122
  %v491 = vunpack.c.l.b16 %v123
  %v492 = vunpack.c.l.b16 %v124
  %v493 = vunpack.c.l.b16 %v125
  %v494 = vunpack.c.l.b16 %v126
  %v495 = vunpack.c.l.b16 %v127
  %v496 = vunpack.c.l.b16 %v128
  %v497 = vunpack.c.l.b16 %v129
  %v498 = vunpack.c.l.b16 %v130
  %v499 = vunpack.c.l.b16 %v131
  %v500 = vunpack.c.l.b16 %v132
  %v501 = vunpack.c.l.b16 %v133
  %v502 = vunpack.c.l.b16 %v134
  %v503 = vunpack.c.l.b16 %v135
  %v504 = vunpack.c.l.b16 %v136
  %v505 = vunpack.c.l.b16 %v137
  %v506 = vunpack.c.l.b16 %v138
  %v507 = vunpack.c.l.b16 %v139
  %v508 = vunpack.c.l.b16 %v140
  %v509 = vunpack.c.l.b16 %v141
  %v510 = vunpack.c.l.b16 %v142
  %v511 = vunpack.c.l.b16 %v143
  %v512 = vunpack.c.l.b16 %v144
  %v513 = vunpack.c.l.b16 %v145
  %v514 = vunpack.c.l.b16 %v146
  %v515 = vunpack.c.l.b16 %v147
  %v516 = vunpack.c.l.b16 %v148
  %v517 = vunpack.c.l.b16 %v149
  %v518 = vunpack.c.l.b16 %v150
  %v519 = vunpack.c.l.b16 %v151
  %v520 = vunpack.c.l.b16 %v152
  %v521 = vunpack.c.l.b16 %v153
  %v522 = vunpack.c.l.b16 %v154
  %v523 = vunpack.c.l.b16 %v155
  %v524 = vunpack.c.l.b16 %v156
  %v525 = vunpack.c.l.b16 %v157
  %v526 = vunpack.c.l.b16 %v158
  %v527 = vunpack.c.l.b16 %v159
  %v528 = vunpack.c.l.b16 %v160
  %v529 = vunpack.c.l.b16 %v161
  %v530 = vunpack.c.l.b16 %v162
  %v531 = vunpack.c.l.b16 %v163
  %v532 = vunpack.c.l.b16 %v164
  %v533 = vunpack.c.l.b16 %v165
  %v534 = vunpack.c.l.b16 %v166
  %v535 = vunpack.c.l.b16 %v167
  %v536 = vunpack.c.l.b16 %v168
  %v537 = vunpack.c.l.b16 %v169
  %v538 = vunpack.c.l.b16 %v170
  %v539 = vunpack.c.l.b16 %v171
  %v540 = vunpack.c.l.b16 %v172
  %v541 = vunpack.c.l.b16 %v173
  %v542 = vunpack.c.l.b16 %v174
  %v543 = vunpack.c.l.b16 %v175
  %v544 = vunpack.c.l.b16 %v176
  %v545 = vunpack.c.l.b16 %v177
  %v546 = vunpack.c.l.b16 %v178
  %v547 = vunpack.c.l.b16 %v179
  %v548 = vunpack.c.l.b16 %v180
  %v549 = vunpack.c.l.b16 %v181
  %v550 = vpack.c.b16 %v471, %v470
  %v551 = vpack.c.b16 %v473, %v472
  %v552 = vpack.c.b16 %v475, %v474
  %v553 = vpack.c.b16 %v477, %v476
  %v554 = vpack.c.b16 %v479, %v478
  %v555 = vpack.c.b16 %v481, %v480
  %v556 = vpack.c.b16 %v483, %v482
  %v557 = vpack.c.b16 %v485, %v484
  %v558 = vpack.c.b16 %v487, %v486
  %v559 = vpack.c.b16 %v489, %v488
  %v560 = vpack.c.b16 %v491, %v490
  %v561 = vpack.c.b16 %v493, %v492
  %v562 = vpack.c.b16 %v495, %v494
  %v563 = vpack.c.b16 %v497, %v496
  %v564 = vpack.c.b16 %v499, %v498
  %v565 = vpack.c.b16 %v501, %v500
  %v566 = vpack.c.b16 %v503, %v502
  %v567 = vpack.c.b16 %v505, %v504
  %v568 = vpack.c.b16 %v507, %v506
  %v569 = vpack.c.b16 %v509, %v508
  %v570 = vpack.c.b16 %v511, %v510
  %v571 = vpack.c.b16 %v513, %v512
  %v572 = vpack.c.b16 %v515, %v514
  %v573 = vpack.c.b16 %v517, %v516
  %v574 = vpack.c.b16 %v519, %v518
  %v575 = vpack.c.b16 %v521, %v520
  %v576 = vpack.c.b16 %v523, %v522
  %v577 = vpack.c.b16 %v525, %v524
  %v578 = vpack.c.b16 %v527, %v526
  %v579 = vpack.c.b16 %v529, %v528
  %v580 = vpack.c.b16 %v531, %v530
  %v581 = vpack.c.b16 %v533, %v532
  %v582 = vpack.c.b16 %v535, %v534
  %v583 = vpack.c.b16 %v537, %v536
  %v584 = vpack.c.b16 %v539, %v538
  %v585 = vpack.c.b16 %v541, %v540
  %v586 = vpack.c.b16 %v543, %v542
  %v587 = vpack.c.b16 %v545, %v544
  %v588 = vpack.c.b16 %v547, %v546
  %v589 = vpack.c.b16 %v549, %v548
  %630 = vmatprep.subr.bf16.mxu0 0
  %631 = vmatpush1.bf16.msra.mxu0 %v550
  %632 = vmatprep.subr.bf16.mxu0 0
  %633 = vmatpush1.bf16.msra.mxu0 %v551
  %634 = vmatprep.subr.bf16.mxu0 0
  %635 = vmatpush1.bf16.msra.mxu0 %v552
  %636 = vmatprep.subr.bf16.mxu0 0
  %637 = vmatpush1.bf16.msra.mxu0 %v553
  %638 = vmatprep.subr.bf16.mxu0 0
  %639 = vmatpush1.bf16.msra.mxu0 %v554
  %640 = vmatprep.subr.bf16.mxu0 0
  %641 = vmatpush1.bf16.msra.mxu0 %v555
  %642 = vmatprep.subr.bf16.mxu0 0
  %643 = vmatpush1.bf16.msra.mxu0 %v556
  %644 = vmatprep.subr.bf16.mxu0 0
  %645 = vmatpush1.bf16.msra.mxu0 %v557
  %646 = vmatprep.subr.bf16.mxu0 0
  %647 = vmatpush1.bf16.msra.mxu0 %v558
  %648 = vmatprep.subr.bf16.mxu0 0
  %649 = vmatpush1.bf16.msra.mxu0 %v559
  %650 = vmatprep.subr.bf16.mxu0 0
  %651 = vmatpush1.bf16.msra.mxu0 %v560
  %652 = vmatprep.subr.bf16.mxu0 0
  %653 = vmatpush1.bf16.msra.mxu0 %v561
  %654 = vmatprep.subr.bf16.mxu0 0
  %655 = vmatpush1.bf16.msra.mxu0 %v562
  %656 = vmatprep.subr.bf16.mxu0 0
  %657 = vmatpush1.bf16.msra.mxu0 %v563
  %658 = vmatprep.subr.bf16.mxu0 0
  %659 = vmatpush1.bf16.msra.mxu0 %v564
  %660 = vmatprep.subr.bf16.mxu0 0
  %661 = vmatpush1.bf16.msra.mxu0 %v565
  %662 = vmatprep.mubr.bf16.mxu0 %v311
  %663 = vmatmul.mubr.bf16.gmra.mrb[0].mxu0 %v310
  %v664 = vpop.f32.mrb[0].mxu0
  %v665 = vadd.f32 0.0, %v664
  %v666 = vpop.f32.mrb[0].mxu0
  %v667 = vpop.f32.mrb[0].mxu0
  %v668 = vadd.f32 0.0, %v667
  %v669 = vpop.f32.mrb[0].mxu0
  %670 = vmatprep.mubr.bf16.mxu0 %v316
  %671 = vmatmul.mubr.bf16.gmra.mrb[0].mxu0 %v315
  %v672 = vpop.f32.mrb[0].mxu0
  %v673 = vadd.f32 0.0, %v672
  %v674 = vpop.f32.mrb[0].mxu0
  %v675 = vpop.f32.mrb[0].mxu0
  %v676 = vadd.f32 0.0, %v675
  %v677 = vpop.f32.mrb[0].mxu0
  %678 = vmatprep.mubr.bf16.mxu0 %v321
  %679 = vmatmul.mubr.bf16.gmra.mrb[0].mxu0 %v320
  %v680 = vpop.f32.mrb[0].mxu0
  %v681 = vadd.f32 0.0, %v680
  %v682 = vpop.f32.mrb[0].mxu0
  %v683 = vpop.f32.mrb[0].mxu0
  %v684 = vadd.f32 0.0, %v683
  %v685 = vpop.f32.mrb[0].mxu0
  %686 = vmatprep.mubr.bf16.mxu0 %v326
  %687 = vmatmul.mubr.bf16.gmra.mrb[0].mxu0 %v325
  %v688 = vpop.f32.mrb[0].mxu0
  %v689 = vadd.f32 0.0, %v688
  %v690 = vpop.f32.mrb[0].mxu0
  %v691 = vpop.f32.mrb[0].mxu0
  %v692 = vadd.f32 0.0, %v691
  %v693 = vpop.f32.mrb[0].mxu0
  %694 = vmatprep.mubr.bf16.mxu0 %v331
  %695 = vmatmul.mubr.bf16.gmra.mrb[0].mxu0 %v330
  %v696 = vpop.f32.mrb[0].mxu0
  %v697 = vadd.f32 0.0, %v696
  %v698 = vpop.f32.mrb[0].mxu0
  %v699 = vpop.f32.mrb[0].mxu0
  %v700 = vadd.f32 0.0, %v699
  %v701 = vpop.f32.mrb[0].mxu0
  %702 = vmatprep.mubr.bf16.mxu0 %v336
  %703 = vmatmul.mubr.bf16.gmra.mrb[0].mxu0 %v335
  %v704 = vpop.f32.mrb[0].mxu0
  %v705 = vadd.f32 0.0, %v704
  %v706 = vpop.f32.mrb[0].mxu0
  %v707 = vpop.f32.mrb[0].mxu0
  %v708 = vadd.f32 0.0, %v707
  %v709 = vpop.f32.mrb[0].mxu0
  %710 = vmatprep.mubr.bf16.mxu0 %v341
  %711 = vmatmul.mubr.bf16.gmra.mrb[0].mxu0 %v340
  %v712 = vpop.f32.mrb[0].mxu0
  %v713 = vadd.f32 0.0, %v712
  %v714 = vpop.f32.mrb[0].mxu0
  %v715 = vpop.f32.mrb[0].mxu0
  %v716 = vadd.f32 0.0, %v715
  %v717 = vpop.f32.mrb[0].mxu0
  %718 = vmatprep.mubr.bf16.mxu0 %v346
  %719 = vmatmul.mubr.bf16.gmra.mrb[0].mxu0 %v345
  %v720 = vpop.f32.mrb[0].mxu0
  %v721 = vadd.f32 0.0, %v720
  %v722 = vpop.f32.mrb[0].mxu0
  %v723 = vpop.f32.mrb[0].mxu0
  %v724 = vadd.f32 0.0, %v723
  %v725 = vpop.f32.mrb[0].mxu0
  %726 = vdwg.mxu0
  %727 = vmatprep.subr.bf16.mxu0 0
  %728 = vmatpush1.bf16.msra.mxu0 %v566
  %729 = vmatprep.subr.bf16.mxu0 0
  %730 = vmatpush1.bf16.msra.mxu0 %v567
  %731 = vmatprep.subr.bf16.mxu0 0
  %732 = vmatpush1.bf16.msra.mxu0 %v568
  %733 = vmatprep.subr.bf16.mxu0 0
  %734 = vmatpush1.bf16.msra.mxu0 %v569
  %735 = vmatprep.subr.bf16.mxu0 0
  %736 = vmatpush1.bf16.msra.mxu0 %v570
  %737 = vmatprep.subr.bf16.mxu0 0
  %738 = vmatpush1.bf16.msra.mxu0 %v571
  %739 = vmatprep.subr.bf16.mxu0 0
  %740 = vmatpush1.bf16.msra.mxu0 %v572
  %741 = vmatprep.subr.bf16.mxu0 0
  %742 = vmatpush1.bf16.msra.mxu0 %v573
  %743 = vmatprep.subr.bf16.mxu0 0
  %744 = vmatpush1.bf16.msra.mxu0 %v574
  %745 = vmatprep.subr.bf16.mxu0 0
  %746 = vmatpush1.bf16.msra.mxu0 %v575
  %747 = vmatprep.subr.bf16.mxu0 0
  %748 = vmatpush1.bf16.msra.mxu0 %v576
  %749 = vmatprep.subr.bf16.mxu0 0
  %750 = vmatpush1.bf16.msra.mxu0 %v577
  %751 = vmatprep.subr.bf16.mxu0 0
  %752 = vmatpush1.bf16.msra.mxu0 %v578
  %753 = vmatprep.subr.bf16.mxu0 0
  %754 = vmatpush1.bf16.msra.mxu0 %v579
  %755 = vmatprep.subr.bf16.mxu0 0
  %756 = vmatpush1.bf16.msra.mxu0 %v580
  %757 = vmatprep.subr.bf16.mxu0 0
  %758 = vmatpush1.bf16.msra.mxu0 %v581
  %759 = vmatprep.mubr.bf16.mxu0 %v313
  %760 = vmatmul.mubr.bf16.gmra.mrb[0].mxu0 %v312
  %v761 = vpop.f32.mrb[0].mxu0
  %v762 = vadd.f32 %v665, %v761
  %v763 = vpop.f32.mrb[0].mxu0
  %v764 = vpop.f32.mrb[0].mxu0
  %v765 = vadd.f32 %v668, %v764
  %v766 = vpop.f32.mrb[0].mxu0
  %767 = vmatprep.mubr.bf16.mxu0 %v318
  %768 = vmatmul.mubr.bf16.gmra.mrb[0].mxu0 %v317
  %v769 = vpop.f32.mrb[0].mxu0
  %v770 = vadd.f32 %v673, %v769
  %v771 = vpop.f32.mrb[0].mxu0
  %v772 = vpop.f32.mrb[0].mxu0
  %v773 = vadd.f32 %v676, %v772
  %v774 = vpop.f32.mrb[0].mxu0
  %775 = vmatprep.mubr.bf16.mxu0 %v323
  %776 = vmatmul.mubr.bf16.gmra.mrb[0].mxu0 %v322
  %v777 = vpop.f32.mrb[0].mxu0
  %v778 = vadd.f32 %v681, %v777
  %v779 = vpop.f32.mrb[0].mxu0
  %v780 = vpop.f32.mrb[0].mxu0
  %v781 = vadd.f32 %v684, %v780
  %v782 = vpop.f32.mrb[0].mxu0
  %783 = vmatprep.mubr.bf16.mxu0 %v328
  %784 = vmatmul.mubr.bf16.gmra.mrb[0].mxu0 %v327
  %v785 = vpop.f32.mrb[0].mxu0
  %v786 = vadd.f32 %v689, %v785
  %v787 = vpop.f32.mrb[0].mxu0
  %v788 = vpop.f32.mrb[0].mxu0
  %v789 = vadd.f32 %v692, %v788
  %v790 = vpop.f32.mrb[0].mxu0
  %791 = vmatprep.mubr.bf16.mxu0 %v333
  %792 = vmatmul.mubr.bf16.gmra.mrb[0].mxu0 %v332
  %v793 = vpop.f32.mrb[0].mxu0
  %v794 = vadd.f32 %v697, %v793
  %v795 = vpop.f32.mrb[0].mxu0
  %v796 = vpop.f32.mrb[0].mxu0
  %v797 = vadd.f32 %v700, %v796
  %v798 = vpop.f32.mrb[0].mxu0
  %799 = vmatprep.mubr.bf16.mxu0 %v338
  %800 = vmatmul.mubr.bf16.gmra.mrb[0].mxu0 %v337
  %v801 = vpop.f32.mrb[0].mxu0
  %v802 = vadd.f32 %v705, %v801
  %v803 = vpop.f32.mrb[0].mxu0
  %v804 = vpop.f32.mrb[0].mxu0
  %v805 = vadd.f32 %v708, %v804
  %v806 = vpop.f32.mrb[0].mxu0
  %807 = vmatprep.mubr.bf16.mxu0 %v343
  %808 = vmatmul.mubr.bf16.gmra.mrb[0].mxu0 %v342
  %v809 = vpop.f32.mrb[0].mxu0
  %v810 = vadd.f32 %v713, %v809
  %v811 = vpop.f32.mrb[0].mxu0
  %v812 = vpop.f32.mrb[0].mxu0
  %v813 = vadd.f32 %v716, %v812
  %v814 = vpop.f32.mrb[0].mxu0
  %815 = vmatprep.mubr.bf16.mxu0 %v348
  %816 = vmatmul.mubr.bf16.gmra.mrb[0].mxu0 %v347
  %v817 = vpop.f32.mrb[0].mxu0
  %v818 = vadd.f32 %v721, %v817
  %v819 = vpop.f32.mrb[0].mxu0
  %v820 = vpop.f32.mrb[0].mxu0
  %v821 = vadd.f32 %v724, %v820
  %v822 = vpop.f32.mrb[0].mxu0
  %823 = vdwg.mxu0
  %824 = vmatprep.subr.bf16.mxu0 0
  %825 = vmatpush1.bf16.msra.mxu0 %v582
  %826 = vmatprep.subr.bf16.mxu0 0
  %827 = vmatpush1.bf16.msra.mxu0 %v583
  %828 = vmatprep.subr.bf16.mxu0 0
  %829 = vmatpush1.bf16.msra.mxu0 %v584
  %830 = vmatprep.subr.bf16.mxu0 0
  %831 = vmatpush1.bf16.msra.mxu0 %v585
  %832 = vmatprep.subr.bf16.mxu0 0
  %833 = vmatpush1.bf16.msra.mxu0 %v586
  %834 = vmatprep.subr.bf16.mxu0 0
  %835 = vmatpush1.bf16.msra.mxu0 %v587
  %836 = vmatprep.subr.bf16.mxu0 0
  %837 = vmatpush1.bf16.msra.mxu0 %v588
  %838 = vmatprep.subr.bf16.mxu0 0
  %839 = vmatpush1.bf16.msra.mxu0 %v589
  %840 = vmatprep.subr.bf16.mxu0 0
  %841 = vmatpush1.bf16.msra.mxu0 0
  %842 = vmatprep.subr.bf16.mxu0 0
  %843 = vmatpush1.bf16.msra.mxu0 0
  %844 = vmatprep.subr.bf16.mxu0 0
  %845 = vmatpush1.bf16.msra.mxu0 0
  %846 = vmatprep.subr.bf16.mxu0 0
  %847 = vmatpush1.bf16.msra.mxu0 0
  %848 = vmatprep.subr.bf16.mxu0 0
  %849 = vmatpush1.bf16.msra.mxu0 0
  %850 = vmatprep.subr.bf16.mxu0 0
  %851 = vmatpush1.bf16.msra.mxu0 0
  %852 = vmatprep.subr.bf16.mxu0 0
  %853 = vmatpush1.bf16.msra.mxu0 0
  %854 = vmatprep.subr.bf16.mxu0 0
  %855 = vmatpush1.bf16.msra.mxu0 0
  %856 = vmatprep.mubr.bf16.mxu0 0
  %857 = vmatmul.mubr.bf16.gmra.mrb[0].mxu0 %v314
  %v858 = vpop.f32.mrb[0].mxu0
  %v859 = vadd.f32 %v762, %v858
  %v860 = vpop.f32.mrb[0].mxu0
  %v861 = vpop.f32.mrb[0].mxu0
  %v862 = vadd.f32 %v765, %v861
  %v863 = vpop.f32.mrb[0].mxu0
  %864 = vmatprep.mubr.bf16.mxu0 0
  %865 = vmatmul.mubr.bf16.gmra.mrb[0].mxu0 %v319
  %v866 = vpop.f32.mrb[0].mxu0
  %v867 = vadd.f32 %v770, %v866
  %v868 = vpop.f32.mrb[0].mxu0
  %v869 = vpop.f32.mrb[0].mxu0
  %v870 = vadd.f32 %v773, %v869
  %v871 = vpop.f32.mrb[0].mxu0
  %872 = vmatprep.mubr.bf16.mxu0 0
  %873 = vmatmul.mubr.bf16.gmra.mrb[0].mxu0 %v324
  %v874 = vpop.f32.mrb[0].mxu0
  %v875 = vadd.f32 %v778, %v874
  %v876 = vpop.f32.mrb[0].mxu0
  %v877 = vpop.f32.mrb[0].mxu0
  %v878 = vadd.f32 %v781, %v877
  %v879 = vpop.f32.mrb[0].mxu0
  %880 = vmatprep.mubr.bf16.mxu0 0
  %881 = vmatmul.mubr.bf16.gmra.mrb[0].mxu0 %v329
  %v882 = vpop.f32.mrb[0].mxu0
  %v883 = vadd.f32 %v786, %v882
  %v884 = vpop.f32.mrb[0].mxu0
  %v885 = vpop.f32.mrb[0].mxu0
  %v886 = vadd.f32 %v789, %v885
  %v887 = vpop.f32.mrb[0].mxu0
  %888 = vmatprep.mubr.bf16.mxu0 0
  %889 = vmatmul.mubr.bf16.gmra.mrb[0].mxu0 %v334
  %v890 = vpop.f32.mrb[0].mxu0
  %v891 = vadd.f32 %v794, %v890
  %v892 = vpop.f32.mrb[0].mxu0
  %v893 = vpop.f32.mrb[0].mxu0
  %v894 = vadd.f32 %v797, %v893
  %v895 = vpop.f32.mrb[0].mxu0
  %896 = vmatprep.mubr.bf16.mxu0 0
  %897 = vmatmul.mubr.bf16.gmra.mrb[0].mxu0 %v339
  %v898 = vpop.f32.mrb[0].mxu0
  %v899 = vadd.f32 %v802, %v898
  %v900 = vpop.f32.mrb[0].mxu0
  %v901 = vpop.f32.mrb[0].mxu0
  %v902 = vadd.f32 %v805, %v901
  %v903 = vpop.f32.mrb[0].mxu0
  %904 = vmatprep.mubr.bf16.mxu0 0
  %905 = vmatmul.mubr.bf16.gmra.mrb[0].mxu0 %v344
  %v906 = vpop.f32.mrb[0].mxu0
  %v907 = vadd.f32 %v810, %v906
  %v908 = vpop.f32.mrb[0].mxu0
  %v909 = vpop.f32.mrb[0].mxu0
  %v910 = vadd.f32 %v813, %v909
  %v911 = vpop.f32.mrb[0].mxu0
  %912 = vmatprep.mubr.bf16.mxu0 0
  %913 = vmatmul.mubr.bf16.gmra.mrb[0].mxu0 %v349
  %v914 = vpop.f32.mrb[0].mxu0
  %v915 = vadd.f32 %v818, %v914
  %v916 = vpop.f32.mrb[0].mxu0
  %v917 = vpop.f32.mrb[0].mxu0
  %v918 = vadd.f32 %v821, %v917
  %v919 = vpop.f32.mrb[0].mxu0
  %920 = vdwg.mxu0
  %v921 = vadd.f32 %v38, %v859
  %v922 = vadd.f32 %v39, %v862
  %v923 = vadd.f32 %v40, %v867
  %v924 = vadd.f32 %v41, %v870
  %v925 = vadd.f32 %v42, %v875
  %v926 = vadd.f32 %v43, %v878
  %v927 = vadd.f32 %v44, %v883
  %v928 = vadd.f32 %v45, %v886
  %v929 = vadd.f32 %v46, %v891
  %v930 = vadd.f32 %v47, %v894
  %v931 = vadd.f32 %v48, %v899
  %v932 = vadd.f32 %v49, %v902
  %v933 = vadd.f32 %v50, %v907
  %v934 = vadd.f32 %v51, %v910
  %v935 = vadd.f32 %v52, %v915
  %v936 = vadd.f32 %v53, %v918
  %937 = vst [vmem:[#allocation2] sm:$0xff] %v921
  %938 = vst [vmem:[#allocation2 + $0x8] sm:$0xff] %v922
  %939 = vst [vmem:[#allocation2 + $0x10] sm:$0xff] %v923
  %940 = vst [vmem:[#allocation2 + $0x18] sm:$0xff] %v924
  %941 = vst [vmem:[#allocation2 + $0x20] sm:$0xff] %v925
  %942 = vst [vmem:[#allocation2 + $0x28] sm:$0xff] %v926
  %943 = vst [vmem:[#allocation2 + $0x30] sm:$0xff] %v927
  %944 = vst [vmem:[#allocation2 + $0x38] sm:$0xff] %v928
  %945 = vst [vmem:[#allocation2 + $0x40] sm:$0xff] %v929
  %946 = vst [vmem:[#allocation2 + $0x48] sm:$0xff] %v930
  %947 = vst [vmem:[#allocation2 + $0x50] sm:$0xff] %v931
  %948 = vst [vmem:[#allocation2 + $0x58] sm:$0xff] %v932
  %949 = vst [vmem:[#allocation2 + $0x60] sm:$0xff] %v933
  %950 = vst [vmem:[#allocation2 + $0x68] sm:$0xff] %v934
  %951 = vst [vmem:[#allocation2 + $0x70] sm:$0xff] %v935
  %952 = vst [vmem:[#allocation2 + $0x78] sm:$0xff] %v936
  // Predicated region
  $region22: #{hrnet_forward.13} parent=0 // pred_check
    %p953 = pneg %p18
  $region23: #{hrnet_forward.13} parent=0 // pred_check_branch
    %955 = sbr.rel (%p953) target = $region25
  $region24: #{hrnet_forward.13} parent=0 // pred_region
    %v956 = vld [vmem:[#allocation2] sm:$0xff]
    %v957 = vld [vmem:[#allocation2 + $0x8] sm:$0xff]
    %v958 = vld [vmem:[#allocation2 + $0x10] sm:$0xff]
    %v959 = vld [vmem:[#allocation2 + $0x18] sm:$0xff]
    %v960 = vld [vmem:[#allocation2 + $0x20] sm:$0xff]
    %v961 = vld [vmem:[#allocation2 + $0x28] sm:$0xff]
    %v962 = vld [vmem:[#allocation2 + $0x30] sm:$0xff]
    %v963 = vld [vmem:[#allocation2 + $0x38] sm:$0xff]
    %v964 = vld [vmem:[#allocation2 + $0x40] sm:$0xff]
    %v965 = vld [vmem:[#allocation2 + $0x48] sm:$0xff]
    %v966 = vld [vmem:[#allocation2 + $0x50] sm:$0xff]
    %v967 = vld [vmem:[#allocation2 + $0x58] sm:$0xff]
    %v968 = vld [vmem:[#allocation2 + $0x60] sm:$0xff]
    %v969 = vld [vmem:[#allocation2 + $0x68] sm:$0xff]
    %v970 = vld [vmem:[#allocation2 + $0x70] sm:$0xff]
    %v971 = vld [vmem:[#allocation2 + $0x78] sm:$0xff]
    %v972 = vld [vmem:[%s2] sm:$0x1]
    %v974 = vlaneseq
    %v975 = vshrl.u32 %v974, 7
    %v976 = vsub.s32 0, %v975
    %v977 = vrot.slane %v972, %v976
    %v979 = vmul.f32 %v956, %v977
    %v980 = vmul.f32 %v957, %v977
    %v981 = vmul.f32 %v958, %v977
    %v982 = vmul.f32 %v959, %v977
    %v983 = vmul.f32 %v960, %v977
    %v984 = vmul.f32 %v961, %v977
    %v985 = vmul.f32 %v962, %v977
    %v986 = vmul.f32 %v963, %v977
    %v987 = vmul.f32 %v964, %v977
    %v988 = vmul.f32 %v965, %v977
    %v989 = vmul.f32 %v966, %v977
    %v990 = vmul.f32 %v967, %v977
    %v991 = vmul.f32 %v968, %v977
    %v992 = vmul.f32 %v969, %v977
    %v993 = vmul.f32 %v970, %v977
    %v994 = vmul.f32 %v971, %v977
    %v995 = vld [vmem:[%s3] sm:$0x1]
    %v997 = vlaneseq
    %v998 = vshrl.u32 %v997, 7
    %v999 = vsub.s32 0, %v998
    %v1000 = vrot.slane %v995, %v999
    %v1002 = vadd.f32 %v979, %v1000
    %v1003 = vadd.f32 %v980, %v1000
    %v1004 = vadd.f32 %v981, %v1000
    %v1005 = vadd.f32 %v982, %v1000
    %v1006 = vadd.f32 %v983, %v1000
    %v1007 = vadd.f32 %v984, %v1000
    %v1008 = vadd.f32 %v985, %v1000
    %v1009 = vadd.f32 %v986, %v1000
    %v1010 = vadd.f32 %v987, %v1000
    %v1011 = vadd.f32 %v988, %v1000
    %v1012 = vadd.f32 %v989, %v1000
    %v1013 = vadd.f32 %v990, %v1000
    %v1014 = vadd.f32 %v991, %v1000
    %v1015 = vadd.f32 %v992, %v1000
    %v1016 = vadd.f32 %v993, %v1000
    %v1017 = vadd.f32 %v994, %v1000
    %v1018 = vmax.f32 %v1002, 0.0
    %v1019 = vmax.f32 %v1003, 0.0
    %v1020 = vmax.f32 %v1004, 0.0
    %v1021 = vmax.f32 %v1005, 0.0
    %v1022 = vmax.f32 %v1006, 0.0
    %v1023 = vmax.f32 %v1007, 0.0
    %v1024 = vmax.f32 %v1008, 0.0
    %v1025 = vmax.f32 %v1009, 0.0
    %v1026 = vmax.f32 %v1010, 0.0
    %v1027 = vmax.f32 %v1011, 0.0
    %v1028 = vmax.f32 %v1012, 0.0
    %v1029 = vmax.f32 %v1013, 0.0
    %v1030 = vmax.f32 %v1014, 0.0
    %v1031 = vmax.f32 %v1015, 0.0
    %v1032 = vmax.f32 %v1016, 0.0
    %v1033 = vmax.f32 %v1017, 0.0
    %v1034 = vpack.c.bf16 %v1019, %v1018
    %v1035 = vpack.c.bf16 %v1021, %v1020
    %v1036 = vpack.c.bf16 %v1023, %v1022
    %v1037 = vpack.c.bf16 %v1025, %v1024
    %v1038 = vpack.c.bf16 %v1027, %v1026
    %v1039 = vpack.c.bf16 %v1029, %v1028
    %v1040 = vpack.c.bf16 %v1031, %v1030
    %v1041 = vpack.c.bf16 %v1033, %v1032
    %v1050 = vunpack.c.l.b16 %v1034
    %v1051 = vunpack.c.h.b16 %v1034
    %v1052 = vunpack.c.l.b16 %v1035
    %v1053 = vunpack.c.h.b16 %v1035
    %v1054 = vunpack.c.l.b16 %v1036
    %v1055 = vunpack.c.h.b16 %v1036
    %v1056 = vunpack.c.l.b16 %v1037
    %v1057 = vunpack.c.h.b16 %v1037
    %v1058 = vunpack.c.l.b16 %v1038
    %v1059 = vunpack.c.h.b16 %v1038
    %v1060 = vunpack.c.l.b16 %v1039
    %v1061 = vunpack.c.h.b16 %v1039
    %v1062 = vunpack.c.l.b16 %v1040
    %v1063 = vunpack.c.h.b16 %v1040
    %v1064 = vunpack.c.l.b16 %v1041
    %v1065 = vunpack.c.h.b16 %v1041
    %v1066 = vpack.c.b16 %v1050, %v1050
    %v1067 = vpack.c.b16 %v1051, %v1051
    %v1068 = vpack.c.b16 %v1052, %v1052
    %v1069 = vpack.c.b16 %v1053, %v1053
    %v1070 = vpack.c.b16 %v1054, %v1054
    %v1071 = vpack.c.b16 %v1055, %v1055
    %v1072 = vpack.c.b16 %v1056, %v1056
    %v1073 = vpack.c.b16 %v1057, %v1057
    %v1074 = vpack.c.b16 %v1058, %v1058
    %v1075 = vpack.c.b16 %v1059, %v1059
    %v1076 = vpack.c.b16 %v1060, %v1060
    %v1077 = vpack.c.b16 %v1061, %v1061
    %v1078 = vpack.c.b16 %v1062, %v1062
    %v1079 = vpack.c.b16 %v1063, %v1063
    %v1080 = vpack.c.b16 %v1064, %v1064
    %v1081 = vpack.c.b16 %v1065, %v1065
    %1098 = vst [vmem:[%s4] sm:$0xf] %v1066
    %1099 = vst [vmem:[%s4 + $0x4] sm:$0xf] %v1067
    %1100 = vst [vmem:[%s4 + $0x8] sm:$0xf] %v1068
    %1101 = vst [vmem:[%s4 + $0xc] sm:$0xf] %v1069
    %1102 = vst [vmem:[%s4 + $0x10] sm:$0xf] %v1070
    %1103 = vst [vmem:[%s4 + $0x14] sm:$0xf] %v1071
    %1104 = vst [vmem:[%s4 + $0x18] sm:$0xf] %v1072
    %1105 = vst [vmem:[%s4 + $0x1c] sm:$0xf] %v1073
    %1106 = vst [vmem:[%s4 + $0x20] sm:$0xf] %v1074
    %1107 = vst [vmem:[%s4 + $0x24] sm:$0xf] %v1075
    %1108 = vst [vmem:[%s4 + $0x28] sm:$0xf] %v1076
    %1109 = vst [vmem:[%s4 + $0x2c] sm:$0xf] %v1077
    %1110 = vst [vmem:[%s4 + $0x30] sm:$0xf] %v1078
    %1111 = vst [vmem:[%s4 + $0x34] sm:$0xf] %v1079
    %1112 = vst [vmem:[%s4 + $0x38] sm:$0xf] %v1080
    %1113 = vst [vmem:[%s4 + $0x3c] sm:$0xf] %v1081
  $region25: #{hrnet_forward.13} parent=0 // pred_fallthru
    _
  // Predicated region
  $region26: #{hrnet_forward.13} parent=0 // pred_check
    _
  $region27: #{hrnet_forward.13} parent=0 // pred_check_branch
    %1115 = sbr.rel (0) target = $region29
  $region28: #{hrnet_forward.13} parent=0 // pred_region
    _
  $region29: #{hrnet_forward.13} parent=0 // pred_fallthru
    _
  // Predicated region
  $region30: #{hrnet_forward.13} parent=0 // pred_check
    _
  $region31: #{hrnet_forward.13} parent=0 // pred_check_branch
    %1117 = sbr.rel (0) target = $region33
  $region32: #{hrnet_forward.13} parent=0 // pred_region
    _
  $region33: #{hrnet_forward.13} parent=0 // pred_fallthru
    _

// kernel: hrnet_forward.15
$region0: #{hrnet_forward.15}
  #allocation0 [shape = 'u32[]', space=smem, size = 0x4, offset = 0x4, fixed_abs, tag = 'smem constant byte address 0x4 - core index']
  #allocation1 [shape = 'u32[144,128]{1,0:T(1,128)}', space=vmem, size = 0x12000, scoped, tag = 'internal scratch']
  #allocation2 [shape = 'f32[128,128]{1,0:T(8,128)}', space=vmem, size = 0x10000, scoped, tag = 'scratch operand']
  %s0 = inlined_call_operand.vmem [shape: bf16[128,640], index: 0, kind: input, shape index: {}]
  %s1 = inlined_call_operand.vmem [shape: bf16[640,128], index: 1, kind: input, shape index: {}]
  %s2 = inlined_call_operand.vmem [shape: f32[1,128], index: 2, kind: input, shape index: {}]
  %s3 = inlined_call_operand.vmem [shape: f32[1,128], index: 3, kind: input, shape index: {}]
  %s4 = inlined_call_operand.vmem [shape: bf16[128,128], index: 4, kind: input, shape index: {}]
  %s5 = inlined_call_operand.vmem [shape: bf16[128,128], index: 5, kind: output, shape index: {}]
  %s6 = sld [smem:[#allocation0]]
  $region38: #{hrnet_forward.15} parent=0
    _
  %s8 = ssub.s32 1, %s6
  %s9 = scalar_select 0, %s8, %s6
  // Predicated region
  $region2: #{hrnet_forward.15} parent=0 // pred_check
    _
  $region3: #{hrnet_forward.15} parent=0 // pred_check_branch
    %11 = sbr.rel (0) target = $region5
  $region4: #{hrnet_forward.15} parent=0 // pred_region
    _
  $region5: #{hrnet_forward.15} parent=0 // pred_fallthru
    _
  // Predicated region
  $region6: #{hrnet_forward.15} parent=0 // pred_check
    _
  $region7: #{hrnet_forward.15} parent=0 // pred_check_branch
    %13 = sbr.rel (0) target = $region9
  $region8: #{hrnet_forward.15} parent=0 // pred_region
    _
  $region9: #{hrnet_forward.15} parent=0 // pred_fallthru
    _
  // Predicated region
  $region10: #{hrnet_forward.15} parent=0 // pred_check
    _
  $region11: #{hrnet_forward.15} parent=0 // pred_check_branch
    %15 = sbr.rel (0) target = $region13
  $region12: #{hrnet_forward.15} parent=0 // pred_region
    _
  $region13: #{hrnet_forward.15} parent=0 // pred_fallthru
    _
  // Predicated region
  $region14: #{hrnet_forward.15} parent=0 // pred_check
    _
  $region15: #{hrnet_forward.15} parent=0 // pred_check_branch
    %17 = sbr.rel (0) target = $region17
  $region16: #{hrnet_forward.15} parent=0 // pred_region
    _
  $region17: #{hrnet_forward.15} parent=0 // pred_fallthru
    _
  // Predicated region
  $region18: #{hrnet_forward.15} parent=0 // pred_check
    _
  $region19: #{hrnet_forward.15} parent=0 // pred_check_branch
    %19 = sbr.rel (0) target = $region21
  $region20: #{hrnet_forward.15} parent=0 // pred_region
    _
  $region21: #{hrnet_forward.15} parent=0 // pred_fallthru
    _
  %p21 = scmp.eq.s32.totalorder 0, 0
  // Predicated region
  $region22: #{hrnet_forward.15} parent=0 // pred_check
    %p22 = pneg %p21
  $region23: #{hrnet_forward.15} parent=0 // pred_check_branch
    %24 = sbr.rel (%p22) target = $region25
  $region24: #{hrnet_forward.15} parent=0 // pred_region
    %25 = vst [vmem:[#allocation2] sm:$0xff] 0.0
    %26 = vst [vmem:[#allocation2 + $0x8] sm:$0xff] 0.0
    %27 = vst [vmem:[#allocation2 + $0x10] sm:$0xff] 0.0
    %28 = vst [vmem:[#allocation2 + $0x18] sm:$0xff] 0.0
    %29 = vst [vmem:[#allocation2 + $0x20] sm:$0xff] 0.0
    %30 = vst [vmem:[#allocation2 + $0x28] sm:$0xff] 0.0
    %31 = vst [vmem:[#allocation2 + $0x30] sm:$0xff] 0.0
    %32 = vst [vmem:[#allocation2 + $0x38] sm:$0xff] 0.0
    %33 = vst [vmem:[#allocation2 + $0x40] sm:$0xff] 0.0
    %34 = vst [vmem:[#allocation2 + $0x48] sm:$0xff] 0.0
    %35 = vst [vmem:[#allocation2 + $0x50] sm:$0xff] 0.0
    %36 = vst [vmem:[#allocation2 + $0x58] sm:$0xff] 0.0
    %37 = vst [vmem:[#allocation2 + $0x60] sm:$0xff] 0.0
    %38 = vst [vmem:[#allocation2 + $0x68] sm:$0xff] 0.0
    %39 = vst [vmem:[#allocation2 + $0x70] sm:$0xff] 0.0
    %40 = vst [vmem:[#allocation2 + $0x78] sm:$0xff] 0.0
  $region25: #{hrnet_forward.15} parent=0 // pred_fallthru
    _
  %v41 = vld [vmem:[#allocation2] sm:$0xff]
  %v42 = vld [vmem:[#allocation2 + $0x8] sm:$0xff]
  %v43 = vld [vmem:[#allocation2 + $0x10] sm:$0xff]
  %v44 = vld [vmem:[#allocation2 + $0x18] sm:$0xff]
  %v45 = vld [vmem:[#allocation2 + $0x20] sm:$0xff]
  %v46 = vld [vmem:[#allocation2 + $0x28] sm:$0xff]
  %v47 = vld [vmem:[#allocation2 + $0x30] sm:$0xff]
  %v48 = vld [vmem:[#allocation2 + $0x38] sm:$0xff]
  %v49 = vld [vmem:[#allocation2 + $0x40] sm:$0xff]
  %v50 = vld [vmem:[#allocation2 + $0x48] sm:$0xff]
  %v51 = vld [vmem:[#allocation2 + $0x50] sm:$0xff]
  %v52 = vld [vmem:[#allocation2 + $0x58] sm:$0xff]
  %v53 = vld [vmem:[#allocation2 + $0x60] sm:$0xff]
  %v54 = vld [vmem:[#allocation2 + $0x68] sm:$0xff]
  %v55 = vld [vmem:[#allocation2 + $0x70] sm:$0xff]
  %v56 = vld [vmem:[#allocation2 + $0x78] sm:$0xff]
  %v57 = vld [vmem:[%s0] sm:$0xff]
  %v58 = vld [vmem:[%s0 + $0x8] sm:$0xff]
  %v59 = vld [vmem:[%s0 + $0x10] sm:$0xf]
  %v60 = vld [vmem:[%s0 + $0x14] sm:$0xff]
  %v61 = vld [vmem:[%s0 + $0x1c] sm:$0xff]
  %v62 = vld [vmem:[%s0 + $0x24] sm:$0xf]
  %v63 = vld [vmem:[%s0 + $0x28] sm:$0xff]
  %v64 = vld [vmem:[%s0 + $0x30] sm:$0xff]
  %v65 = vld [vmem:[%s0 + $0x38] sm:$0xf]
  %v66 = vld [vmem:[%s0 + $0x3c] sm:$0xff]
  %v67 = vld [vmem:[%s0 + $0x44] sm:$0xff]
  %v68 = vld [vmem:[%s0 + $0x4c] sm:$0xf]
  %v69 = vld [vmem:[%s0 + $0x50] sm:$0xff]
  %v70 = vld [vmem:[%s0 + $0x58] sm:$0xff]
  %v71 = vld [vmem:[%s0 + $0x60] sm:$0xf]
  %v72 = vld [vmem:[%s0 + $0x64] sm:$0xff]
  %v73 = vld [vmem:[%s0 + $0x6c] sm:$0xff]
  %v74 = vld [vmem:[%s0 + $0x74] sm:$0xf]
  %v75 = vld [vmem:[%s0 + $0x78] sm:$0xff]
  %v76 = vld [vmem:[%s0 + $0x80] sm:$0xff]
  %v77 = vld [vmem:[%s0 + $0x88] sm:$0xf]
  %v78 = vld [vmem:[%s0 + $0x8c] sm:$0xff]
  %v79 = vld [vmem:[%s0 + $0x94] sm:$0xff]
  %v80 = vld [vmem:[%s0 + $0x9c] sm:$0xf]
  %v81 = vld [vmem:[%s0 + $0xa0] sm:$0xff]
  %v82 = vld [vmem:[%s0 + $0xa8] sm:$0xff]
  %v83 = vld [vmem:[%s0 + $0xb0] sm:$0xf]
  %v84 = vld [vmem:[%s0 + $0xb4] sm:$0xff]
  %v85 = vld [vmem:[%s0 + $0xbc] sm:$0xff]
  %v86 = vld [vmem:[%s0 + $0xc4] sm:$0xf]
  %v87 = vld [vmem:[%s0 + $0xc8] sm:$0xff]
  %v88 = vld [vmem:[%s0 + $0xd0] sm:$0xff]
  %v89 = vld [vmem:[%s0 + $0xd8] sm:$0xf]
  %v90 = vld [vmem:[%s0 + $0xdc] sm:$0xff]
  %v91 = vld [vmem:[%s0 + $0xe4] sm:$0xff]
  %v92 = vld [vmem:[%s0 + $0xec] sm:$0xf]
  %v93 = vld [vmem:[%s0 + $0xf0] sm:$0xff]
  %v94 = vld [vmem:[%s0 + $0xf8] sm:$0xff]
  %v95 = vld [vmem:[%s0 + $0x100] sm:$0xf]
  %v96 = vld [vmem:[%s0 + $0x104] sm:$0xff]
  %v97 = vld [vmem:[%s0 + $0x10c] sm:$0xff]
  %v98 = vld [vmem:[%s0 + $0x114] sm:$0xf]
  %v99 = vld [vmem:[%s0 + $0x118] sm:$0xff]
  %v100 = vld [vmem:[%s0 + $0x120] sm:$0xff]
  %v101 = vld [vmem:[%s0 + $0x128] sm:$0xf]
  %v102 = vld [vmem:[%s0 + $0x12c] sm:$0xff]
  %v103 = vld [vmem:[%s0 + $0x134] sm:$0xff]
  %v104 = vld [vmem:[%s0 + $0x13c] sm:$0xf]
  %v105 = vld [vmem:[%s1] sm:$0xf]
  %v106 = vld [vmem:[%s1 + $0x4] sm:$0xf]
  %v107 = vld [vmem:[%s1 + $0x8] sm:$0xf]
  %v108 = vld [vmem:[%s1 + $0xc] sm:$0xf]
  %v109 = vld [vmem:[%s1 + $0x10] sm:$0xf]
  %v110 = vld [vmem:[%s1 + $0x14] sm:$0xf]
  %v111 = vld [vmem:[%s1 + $0x18] sm:$0xf]
  %v112 = vld [vmem:[%s1 + $0x1c] sm:$0xf]
  %v113 = vld [vmem:[%s1 + $0x20] sm:$0xf]
  %v114 = vld [vmem:[%s1 + $0x24] sm:$0xf]
  %v115 = vld [vmem:[%s1 + $0x28] sm:$0xf]
  %v116 = vld [vmem:[%s1 + $0x2c] sm:$0xf]
  %v117 = vld [vmem:[%s1 + $0x30] sm:$0xf]
  %v118 = vld [vmem:[%s1 + $0x34] sm:$0xf]
  %v119 = vld [vmem:[%s1 + $0x38] sm:$0xf]
  %v120 = vld [vmem:[%s1 + $0x3c] sm:$0xf]
  %v121 = vld [vmem:[%s1 + $0x40] sm:$0xf]
  %v122 = vld [vmem:[%s1 + $0x44] sm:$0xf]
  %v123 = vld [vmem:[%s1 + $0x48] sm:$0xf]
  %v124 = vld [vmem:[%s1 + $0x4c] sm:$0xf]
  %v125 = vld [vmem:[%s1 + $0x50] sm:$0xf]
  %v126 = vld [vmem:[%s1 + $0x54] sm:$0xf]
  %v127 = vld [vmem:[%s1 + $0x58] sm:$0xf]
  %v128 = vld [vmem:[%s1 + $0x5c] sm:$0xf]
  %v129 = vld [vmem:[%s1 + $0x60] sm:$0xf]
  %v130 = vld [vmem:[%s1 + $0x64] sm:$0xf]
  %v131 = vld [vmem:[%s1 + $0x68] sm:$0xf]
  %v132 = vld [vmem:[%s1 + $0x6c] sm:$0xf]
  %v133 = vld [vmem:[%s1 + $0x70] sm:$0xf]
  %v134 = vld [vmem:[%s1 + $0x74] sm:$0xf]
  %v135 = vld [vmem:[%s1 + $0x78] sm:$0xf]
  %v136 = vld [vmem:[%s1 + $0x7c] sm:$0xf]
  %v137 = vld [vmem:[%s1 + $0x80] sm:$0xf]
  %v138 = vld [vmem:[%s1 + $0x84] sm:$0xf]
  %v139 = vld [vmem:[%s1 + $0x88] sm:$0xf]
  %v140 = vld [vmem:[%s1 + $0x8c] sm:$0xf]
  %v141 = vld [vmem:[%s1 + $0x90] sm:$0xf]
  %v142 = vld [vmem:[%s1 + $0x94] sm:$0xf]
  %v143 = vld [vmem:[%s1 + $0x98] sm:$0xf]
  %v144 = vld [vmem:[%s1 + $0x9c] sm:$0xf]
  %v145 = vld [vmem:[%s1 + $0xa0] sm:$0xf]
  %v146 = vld [vmem:[%s1 + $0xa4] sm:$0xf]
  %v147 = vld [vmem:[%s1 + $0xa8] sm:$0xf]
  %v148 = vld [vmem:[%s1 + $0xac] sm:$0xf]
  %v149 = vld [vmem:[%s1 + $0xb0] sm:$0xf]
  %v150 = vld [vmem:[%s1 + $0xb4] sm:$0xf]
  %v151 = vld [vmem:[%s1 + $0xb8] sm:$0xf]
  %v152 = vld [vmem:[%s1 + $0xbc] sm:$0xf]
  %v153 = vld [vmem:[%s1 + $0xc0] sm:$0xf]
  %v154 = vld [vmem:[%s1 + $0xc4] sm:$0xf]
  %v155 = vld [vmem:[%s1 + $0xc8] sm:$0xf]
  %v156 = vld [vmem:[%s1 + $0xcc] sm:$0xf]
  %v157 = vld [vmem:[%s1 + $0xd0] sm:$0xf]
  %v158 = vld [vmem:[%s1 + $0xd4] sm:$0xf]
  %v159 = vld [vmem:[%s1 + $0xd8] sm:$0xf]
  %v160 = vld [vmem:[%s1 + $0xdc] sm:$0xf]
  %v161 = vld [vmem:[%s1 + $0xe0] sm:$0xf]
  %v162 = vld [vmem:[%s1 + $0xe4] sm:$0xf]
  %v163 = vld [vmem:[%s1 + $0xe8] sm:$0xf]
  %v164 = vld [vmem:[%s1 + $0xec] sm:$0xf]
  %v165 = vld [vmem:[%s1 + $0xf0] sm:$0xf]
  %v166 = vld [vmem:[%s1 + $0xf4] sm:$0xf]
  %v167 = vld [vmem:[%s1 + $0xf8] sm:$0xf]
  %v168 = vld [vmem:[%s1 + $0xfc] sm:$0xf]
  %v169 = vld [vmem:[%s1 + $0x100] sm:$0xf]
  %v170 = vld [vmem:[%s1 + $0x104] sm:$0xf]
  %v171 = vld [vmem:[%s1 + $0x108] sm:$0xf]
  %v172 = vld [vmem:[%s1 + $0x10c] sm:$0xf]
  %v173 = vld [vmem:[%s1 + $0x110] sm:$0xf]
  %v174 = vld [vmem:[%s1 + $0x114] sm:$0xf]
  %v175 = vld [vmem:[%s1 + $0x118] sm:$0xf]
  %v176 = vld [vmem:[%s1 + $0x11c] sm:$0xf]
  %v177 = vld [vmem:[%s1 + $0x120] sm:$0xf]
  %v178 = vld [vmem:[%s1 + $0x124] sm:$0xf]
  %v179 = vld [vmem:[%s1 + $0x128] sm:$0xf]
  %v180 = vld [vmem:[%s1 + $0x12c] sm:$0xf]
  %v181 = vld [vmem:[%s1 + $0x130] sm:$0xf]
  %v182 = vld [vmem:[%s1 + $0x134] sm:$0xf]
  %v183 = vld [vmem:[%s1 + $0x138] sm:$0xf]
  %v184 = vld [vmem:[%s1 + $0x13c] sm:$0xf]
  %v233 = vunpack.c.l.b16 %v57
  %v234 = vunpack.c.h.b16 %v57
  %v235 = vunpack.c.l.b16 %v58
  %v236 = vunpack.c.h.b16 %v58
  %v237 = vunpack.c.l.b16 %v59
  %v238 = vunpack.c.l.b16 %v60
  %v239 = vunpack.c.h.b16 %v60
  %v240 = vunpack.c.l.b16 %v61
  %v241 = vunpack.c.h.b16 %v61
  %v242 = vunpack.c.l.b16 %v62
  %v243 = vunpack.c.l.b16 %v63
  %v244 = vunpack.c.h.b16 %v63
  %v245 = vunpack.c.l.b16 %v64
  %v246 = vunpack.c.h.b16 %v64
  %v247 = vunpack.c.l.b16 %v65
  %v248 = vunpack.c.l.b16 %v66
  %v249 = vunpack.c.h.b16 %v66
  %v250 = vunpack.c.l.b16 %v67
  %v251 = vunpack.c.h.b16 %v67
  %v252 = vunpack.c.l.b16 %v68
  %v253 = vunpack.c.l.b16 %v69
  %v254 = vunpack.c.h.b16 %v69
  %v255 = vunpack.c.l.b16 %v70
  %v256 = vunpack.c.h.b16 %v70
  %v257 = vunpack.c.l.b16 %v71
  %v258 = vunpack.c.l.b16 %v72
  %v259 = vunpack.c.h.b16 %v72
  %v260 = vunpack.c.l.b16 %v73
  %v261 = vunpack.c.h.b16 %v73
  %v262 = vunpack.c.l.b16 %v74
  %v263 = vunpack.c.l.b16 %v75
  %v264 = vunpack.c.h.b16 %v75
  %v265 = vunpack.c.l.b16 %v76
  %v266 = vunpack.c.h.b16 %v76
  %v267 = vunpack.c.l.b16 %v77
  %v268 = vunpack.c.l.b16 %v78
  %v269 = vunpack.c.h.b16 %v78
  %v270 = vunpack.c.l.b16 %v79
  %v271 = vunpack.c.h.b16 %v79
  %v272 = vunpack.c.l.b16 %v80
  %v273 = vunpack.c.l.b16 %v81
  %v274 = vunpack.c.h.b16 %v81
  %v275 = vunpack.c.l.b16 %v82
  %v276 = vunpack.c.h.b16 %v82
  %v277 = vunpack.c.l.b16 %v83
  %v278 = vunpack.c.l.b16 %v84
  %v279 = vunpack.c.h.b16 %v84
  %v280 = vunpack.c.l.b16 %v85
  %v281 = vunpack.c.h.b16 %v85
  %v282 = vunpack.c.l.b16 %v86
  %v283 = vunpack.c.l.b16 %v87
  %v284 = vunpack.c.h.b16 %v87
  %v285 = vunpack.c.l.b16 %v88
  %v286 = vunpack.c.h.b16 %v88
  %v287 = vunpack.c.l.b16 %v89
  %v288 = vunpack.c.l.b16 %v90
  %v289 = vunpack.c.h.b16 %v90
  %v290 = vunpack.c.l.b16 %v91
  %v291 = vunpack.c.h.b16 %v91
  %v292 = vunpack.c.l.b16 %v92
  %v293 = vunpack.c.l.b16 %v93
  %v294 = vunpack.c.h.b16 %v93
  %v295 = vunpack.c.l.b16 %v94
  %v296 = vunpack.c.h.b16 %v94
  %v297 = vunpack.c.l.b16 %v95
  %v298 = vunpack.c.l.b16 %v96
  %v299 = vunpack.c.h.b16 %v96
  %v300 = vunpack.c.l.b16 %v97
  %v301 = vunpack.c.h.b16 %v97
  %v302 = vunpack.c.l.b16 %v98
  %v303 = vunpack.c.l.b16 %v99
  %v304 = vunpack.c.h.b16 %v99
  %v305 = vunpack.c.l.b16 %v100
  %v306 = vunpack.c.h.b16 %v100
  %v307 = vunpack.c.l.b16 %v101
  %v308 = vunpack.c.l.b16 %v102
  %v309 = vunpack.c.h.b16 %v102
  %v310 = vunpack.c.l.b16 %v103
  %v311 = vunpack.c.h.b16 %v103
  %v312 = vunpack.c.l.b16 %v104
  %v313 = vpack.c.b16 %v238, %v233
  %v314 = vpack.c.b16 %v239, %v234
  %v315 = vpack.c.b16 %v240, %v235
  %v316 = vpack.c.b16 %v241, %v236
  %v317 = vpack.c.b16 %v242, %v237
  %v318 = vpack.c.b16 %v248, %v243
  %v319 = vpack.c.b16 %v249, %v244
  %v320 = vpack.c.b16 %v250, %v245
  %v321 = vpack.c.b16 %v251, %v246
  %v322 = vpack.c.b16 %v252, %v247
  %v323 = vpack.c.b16 %v258, %v253
  %v324 = vpack.c.b16 %v259, %v254
  %v325 = vpack.c.b16 %v260, %v255
  %v326 = vpack.c.b16 %v261, %v256
  %v327 = vpack.c.b16 %v262, %v257
  %v328 = vpack.c.b16 %v268, %v263
  %v329 = vpack.c.b16 %v269, %v264
  %v330 = vpack.c.b16 %v270, %v265
  %v331 = vpack.c.b16 %v271, %v266
  %v332 = vpack.c.b16 %v272, %v267
  %v333 = vpack.c.b16 %v278, %v273
  %v334 = vpack.c.b16 %v279, %v274
  %v335 = vpack.c.b16 %v280, %v275
  %v336 = vpack.c.b16 %v281, %v276
  %v337 = vpack.c.b16 %v282, %v277
  %v338 = vpack.c.b16 %v288, %v283
  %v339 = vpack.c.b16 %v289, %v284
  %v340 = vpack.c.b16 %v290, %v285
  %v341 = vpack.c.b16 %v291, %v286
  %v342 = vpack.c.b16 %v292, %v287
  %v343 = vpack.c.b16 %v298, %v293
  %v344 = vpack.c.b16 %v299, %v294
  %v345 = vpack.c.b16 %v300, %v295
  %v346 = vpack.c.b16 %v301, %v296
  %v347 = vpack.c.b16 %v302, %v297
  %v348 = vpack.c.b16 %v308, %v303
  %v349 = vpack.c.b16 %v309, %v304
  %v350 = vpack.c.b16 %v310, %v305
  %v351 = vpack.c.b16 %v311, %v306
  %v352 = vpack.c.b16 %v312, %v307
  %v473 = vunpack.c.l.b16 %v105
  %v474 = vunpack.c.l.b16 %v106
  %v475 = vunpack.c.l.b16 %v107
  %v476 = vunpack.c.l.b16 %v108
  %v477 = vunpack.c.l.b16 %v109
  %v478 = vunpack.c.l.b16 %v110
  %v479 = vunpack.c.l.b16 %v111
  %v480 = vunpack.c.l.b16 %v112
  %v481 = vunpack.c.l.b16 %v113
  %v482 = vunpack.c.l.b16 %v114
  %v483 = vunpack.c.l.b16 %v115
  %v484 = vunpack.c.l.b16 %v116
  %v485 = vunpack.c.l.b16 %v117
  %v486 = vunpack.c.l.b16 %v118
  %v487 = vunpack.c.l.b16 %v119
  %v488 = vunpack.c.l.b16 %v120
  %v489 = vunpack.c.l.b16 %v121
  %v490 = vunpack.c.l.b16 %v122
  %v491 = vunpack.c.l.b16 %v123
  %v492 = vunpack.c.l.b16 %v124
  %v493 = vunpack.c.l.b16 %v125
  %v494 = vunpack.c.l.b16 %v126
  %v495 = vunpack.c.l.b16 %v127
  %v496 = vunpack.c.l.b16 %v128
  %v497 = vunpack.c.l.b16 %v129
  %v498 = vunpack.c.l.b16 %v130
  %v499 = vunpack.c.l.b16 %v131
  %v500 = vunpack.c.l.b16 %v132
  %v501 = vunpack.c.l.b16 %v133
  %v502 = vunpack.c.l.b16 %v134
  %v503 = vunpack.c.l.b16 %v135
  %v504 = vunpack.c.l.b16 %v136
  %v505 = vunpack.c.l.b16 %v137
  %v506 = vunpack.c.l.b16 %v138
  %v507 = vunpack.c.l.b16 %v139
  %v508 = vunpack.c.l.b16 %v140
  %v509 = vunpack.c.l.b16 %v141
  %v510 = vunpack.c.l.b16 %v142
  %v511 = vunpack.c.l.b16 %v143
  %v512 = vunpack.c.l.b16 %v144
  %v513 = vunpack.c.l.b16 %v145
  %v514 = vunpack.c.l.b16 %v146
  %v515 = vunpack.c.l.b16 %v147
  %v516 = vunpack.c.l.b16 %v148
  %v517 = vunpack.c.l.b16 %v149
  %v518 = vunpack.c.l.b16 %v150
  %v519 = vunpack.c.l.b16 %v151
  %v520 = vunpack.c.l.b16 %v152
  %v521 = vunpack.c.l.b16 %v153
  %v522 = vunpack.c.l.b16 %v154
  %v523 = vunpack.c.l.b16 %v155
  %v524 = vunpack.c.l.b16 %v156
  %v525 = vunpack.c.l.b16 %v157
  %v526 = vunpack.c.l.b16 %v158
  %v527 = vunpack.c.l.b16 %v159
  %v528 = vunpack.c.l.b16 %v160
  %v529 = vunpack.c.l.b16 %v161
  %v530 = vunpack.c.l.b16 %v162
  %v531 = vunpack.c.l.b16 %v163
  %v532 = vunpack.c.l.b16 %v164
  %v533 = vunpack.c.l.b16 %v165
  %v534 = vunpack.c.l.b16 %v166
  %v535 = vunpack.c.l.b16 %v167
  %v536 = vunpack.c.l.b16 %v168
  %v537 = vunpack.c.l.b16 %v169
  %v538 = vunpack.c.l.b16 %v170
  %v539 = vunpack.c.l.b16 %v171
  %v540 = vunpack.c.l.b16 %v172
  %v541 = vunpack.c.l.b16 %v173
  %v542 = vunpack.c.l.b16 %v174
  %v543 = vunpack.c.l.b16 %v175
  %v544 = vunpack.c.l.b16 %v176
  %v545 = vunpack.c.l.b16 %v177
  %v546 = vunpack.c.l.b16 %v178
  %v547 = vunpack.c.l.b16 %v179
  %v548 = vunpack.c.l.b16 %v180
  %v549 = vunpack.c.l.b16 %v181
  %v550 = vunpack.c.l.b16 %v182
  %v551 = vunpack.c.l.b16 %v183
  %v552 = vunpack.c.l.b16 %v184
  %v553 = vpack.c.b16 %v474, %v473
  %v554 = vpack.c.b16 %v476, %v475
  %v555 = vpack.c.b16 %v478, %v477
  %v556 = vpack.c.b16 %v480, %v479
  %v557 = vpack.c.b16 %v482, %v481
  %v558 = vpack.c.b16 %v484, %v483
  %v559 = vpack.c.b16 %v486, %v485
  %v560 = vpack.c.b16 %v488, %v487
  %v561 = vpack.c.b16 %v490, %v489
  %v562 = vpack.c.b16 %v492, %v491
  %v563 = vpack.c.b16 %v494, %v493
  %v564 = vpack.c.b16 %v496, %v495
  %v565 = vpack.c.b16 %v498, %v497
  %v566 = vpack.c.b16 %v500, %v499
  %v567 = vpack.c.b16 %v502, %v501
  %v568 = vpack.c.b16 %v504, %v503
  %v569 = vpack.c.b16 %v506, %v505
  %v570 = vpack.c.b16 %v508, %v507
  %v571 = vpack.c.b16 %v510, %v509
  %v572 = vpack.c.b16 %v512, %v511
  %v573 = vpack.c.b16 %v514, %v513
  %v574 = vpack.c.b16 %v516, %v515
  %v575 = vpack.c.b16 %v518, %v517
  %v576 = vpack.c.b16 %v520, %v519
  %v577 = vpack.c.b16 %v522, %v521
  %v578 = vpack.c.b16 %v524, %v523
  %v579 = vpack.c.b16 %v526, %v525
  %v580 = vpack.c.b16 %v528, %v527
  %v581 = vpack.c.b16 %v530, %v529
  %v582 = vpack.c.b16 %v532, %v531
  %v583 = vpack.c.b16 %v534, %v533
  %v584 = vpack.c.b16 %v536, %v535
  %v585 = vpack.c.b16 %v538, %v537
  %v586 = vpack.c.b16 %v540, %v539
  %v587 = vpack.c.b16 %v542, %v541
  %v588 = vpack.c.b16 %v544, %v543
  %v589 = vpack.c.b16 %v546, %v545
  %v590 = vpack.c.b16 %v548, %v547
  %v591 = vpack.c.b16 %v550, %v549
  %v592 = vpack.c.b16 %v552, %v551
  %633 = vmatprep.subr.bf16.mxu0 0
  %634 = vmatpush1.bf16.msra.mxu0 %v553
  %635 = vmatprep.subr.bf16.mxu0 0
  %636 = vmatpush1.bf16.msra.mxu0 %v554
  %637 = vmatprep.subr.bf16.mxu0 0
  %638 = vmatpush1.bf16.msra.mxu0 %v555
  %639 = vmatprep.subr.bf16.mxu0 0
  %640 = vmatpush1.bf16.msra.mxu0 %v556
  %641 = vmatprep.subr.bf16.mxu0 0
  %642 = vmatpush1.bf16.msra.mxu0 %v557
  %643 = vmatprep.subr.bf16.mxu0 0
  %644 = vmatpush1.bf16.msra.mxu0 %v558
  %645 = vmatprep.subr.bf16.mxu0 0
  %646 = vmatpush1.bf16.msra.mxu0 %v559
  %647 = vmatprep.subr.bf16.mxu0 0
  %648 = vmatpush1.bf16.msra.mxu0 %v560
  %649 = vmatprep.subr.bf16.mxu0 0
  %650 = vmatpush1.bf16.msra.mxu0 %v561
  %651 = vmatprep.subr.bf16.mxu0 0
  %652 = vmatpush1.bf16.msra.mxu0 %v562
  %653 = vmatprep.subr.bf16.mxu0 0
  %654 = vmatpush1.bf16.msra.mxu0 %v563
  %655 = vmatprep.subr.bf16.mxu0 0
  %656 = vmatpush1.bf16.msra.mxu0 %v564
  %657 = vmatprep.subr.bf16.mxu0 0
  %658 = vmatpush1.bf16.msra.mxu0 %v565
  %659 = vmatprep.subr.bf16.mxu0 0
  %660 = vmatpush1.bf16.msra.mxu0 %v566
  %661 = vmatprep.subr.bf16.mxu0 0
  %662 = vmatpush1.bf16.msra.mxu0 %v567
  %663 = vmatprep.subr.bf16.mxu0 0
  %664 = vmatpush1.bf16.msra.mxu0 %v568
  %665 = vmatprep.mubr.bf16.mxu0 %v314
  %666 = vmatmul.mubr.bf16.gmra.mrb[0].mxu0 %v313
  %v667 = vpop.f32.mrb[0].mxu0
  %v668 = vadd.f32 0.0, %v667
  %v669 = vpop.f32.mrb[0].mxu0
  %v670 = vpop.f32.mrb[0].mxu0
  %v671 = vadd.f32 0.0, %v670
  %v672 = vpop.f32.mrb[0].mxu0
  %673 = vmatprep.mubr.bf16.mxu0 %v319
  %674 = vmatmul.mubr.bf16.gmra.mrb[0].mxu0 %v318
  %v675 = vpop.f32.mrb[0].mxu0
  %v676 = vadd.f32 0.0, %v675
  %v677 = vpop.f32.mrb[0].mxu0
  %v678 = vpop.f32.mrb[0].mxu0
  %v679 = vadd.f32 0.0, %v678
  %v680 = vpop.f32.mrb[0].mxu0
  %681 = vmatprep.mubr.bf16.mxu0 %v324
  %682 = vmatmul.mubr.bf16.gmra.mrb[0].mxu0 %v323
  %v683 = vpop.f32.mrb[0].mxu0
  %v684 = vadd.f32 0.0, %v683
  %v685 = vpop.f32.mrb[0].mxu0
  %v686 = vpop.f32.mrb[0].mxu0
  %v687 = vadd.f32 0.0, %v686
  %v688 = vpop.f32.mrb[0].mxu0
  %689 = vmatprep.mubr.bf16.mxu0 %v329
  %690 = vmatmul.mubr.bf16.gmra.mrb[0].mxu0 %v328
  %v691 = vpop.f32.mrb[0].mxu0
  %v692 = vadd.f32 0.0, %v691
  %v693 = vpop.f32.mrb[0].mxu0
  %v694 = vpop.f32.mrb[0].mxu0
  %v695 = vadd.f32 0.0, %v694
  %v696 = vpop.f32.mrb[0].mxu0
  %697 = vmatprep.mubr.bf16.mxu0 %v334
  %698 = vmatmul.mubr.bf16.gmra.mrb[0].mxu0 %v333
  %v699 = vpop.f32.mrb[0].mxu0
  %v700 = vadd.f32 0.0, %v699
  %v701 = vpop.f32.mrb[0].mxu0
  %v702 = vpop.f32.mrb[0].mxu0
  %v703 = vadd.f32 0.0, %v702
  %v704 = vpop.f32.mrb[0].mxu0
  %705 = vmatprep.mubr.bf16.mxu0 %v339
  %706 = vmatmul.mubr.bf16.gmra.mrb[0].mxu0 %v338
  %v707 = vpop.f32.mrb[0].mxu0
  %v708 = vadd.f32 0.0, %v707
  %v709 = vpop.f32.mrb[0].mxu0
  %v710 = vpop.f32.mrb[0].mxu0
  %v711 = vadd.f32 0.0, %v710
  %v712 = vpop.f32.mrb[0].mxu0
  %713 = vmatprep.mubr.bf16.mxu0 %v344
  %714 = vmatmul.mubr.bf16.gmra.mrb[0].mxu0 %v343
  %v715 = vpop.f32.mrb[0].mxu0
  %v716 = vadd.f32 0.0, %v715
  %v717 = vpop.f32.mrb[0].mxu0
  %v718 = vpop.f32.mrb[0].mxu0
  %v719 = vadd.f32 0.0, %v718
  %v720 = vpop.f32.mrb[0].mxu0
  %721 = vmatprep.mubr.bf16.mxu0 %v349
  %722 = vmatmul.mubr.bf16.gmra.mrb[0].mxu0 %v348
  %v723 = vpop.f32.mrb[0].mxu0
  %v724 = vadd.f32 0.0, %v723
  %v725 = vpop.f32.mrb[0].mxu0
  %v726 = vpop.f32.mrb[0].mxu0
  %v727 = vadd.f32 0.0, %v726
  %v728 = vpop.f32.mrb[0].mxu0
  %729 = vdwg.mxu0
  %730 = vmatprep.subr.bf16.mxu0 0
  %731 = vmatpush1.bf16.msra.mxu0 %v569
  %732 = vmatprep.subr.bf16.mxu0 0
  %733 = vmatpush1.bf16.msra.mxu0 %v570
  %734 = vmatprep.subr.bf16.mxu0 0
  %735 = vmatpush1.bf16.msra.mxu0 %v571
  %736 = vmatprep.subr.bf16.mxu0 0
  %737 = vmatpush1.bf16.msra.mxu0 %v572
  %738 = vmatprep.subr.bf16.mxu0 0
  %739 = vmatpush1.bf16.msra.mxu0 %v573
  %740 = vmatprep.subr.bf16.mxu0 0
  %741 = vmatpush1.bf16.msra.mxu0 %v574
  %742 = vmatprep.subr.bf16.mxu0 0
  %743 = vmatpush1.bf16.msra.mxu0 %v575
  %744 = vmatprep.subr.bf16.mxu0 0
  %745 = vmatpush1.bf16.msra.mxu0 %v576
  %746 = vmatprep.subr.bf16.mxu0 0
  %747 = vmatpush1.bf16.msra.mxu0 %v577
  %748 = vmatprep.subr.bf16.mxu0 0
  %749 = vmatpush1.bf16.msra.mxu0 %v578
  %750 = vmatprep.subr.bf16.mxu0 0
  %751 = vmatpush1.bf16.msra.mxu0 %v579
  %752 = vmatprep.subr.bf16.mxu0 0
  %753 = vmatpush1.bf16.msra.mxu0 %v580
  %754 = vmatprep.subr.bf16.mxu0 0
  %755 = vmatpush1.bf16.msra.mxu0 %v581
  %756 = vmatprep.subr.bf16.mxu0 0
  %757 = vmatpush1.bf16.msra.mxu0 %v582
  %758 = vmatprep.subr.bf16.mxu0 0
  %759 = vmatpush1.bf16.msra.mxu0 %v583
  %760 = vmatprep.subr.bf16.mxu0 0
  %761 = vmatpush1.bf16.msra.mxu0 %v584
  %762 = vmatprep.mubr.bf16.mxu0 %v316
  %763 = vmatmul.mubr.bf16.gmra.mrb[0].mxu0 %v315
  %v764 = vpop.f32.mrb[0].mxu0
  %v765 = vadd.f32 %v668, %v764
  %v766 = vpop.f32.mrb[0].mxu0
  %v767 = vpop.f32.mrb[0].mxu0
  %v768 = vadd.f32 %v671, %v767
  %v769 = vpop.f32.mrb[0].mxu0
  %770 = vmatprep.mubr.bf16.mxu0 %v321
  %771 = vmatmul.mubr.bf16.gmra.mrb[0].mxu0 %v320
  %v772 = vpop.f32.mrb[0].mxu0
  %v773 = vadd.f32 %v676, %v772
  %v774 = vpop.f32.mrb[0].mxu0
  %v775 = vpop.f32.mrb[0].mxu0
  %v776 = vadd.f32 %v679, %v775
  %v777 = vpop.f32.mrb[0].mxu0
  %778 = vmatprep.mubr.bf16.mxu0 %v326
  %779 = vmatmul.mubr.bf16.gmra.mrb[0].mxu0 %v325
  %v780 = vpop.f32.mrb[0].mxu0
  %v781 = vadd.f32 %v684, %v780
  %v782 = vpop.f32.mrb[0].mxu0
  %v783 = vpop.f32.mrb[0].mxu0
  %v784 = vadd.f32 %v687, %v783
  %v785 = vpop.f32.mrb[0].mxu0
  %786 = vmatprep.mubr.bf16.mxu0 %v331
  %787 = vmatmul.mubr.bf16.gmra.mrb[0].mxu0 %v330
  %v788 = vpop.f32.mrb[0].mxu0
  %v789 = vadd.f32 %v692, %v788
  %v790 = vpop.f32.mrb[0].mxu0
  %v791 = vpop.f32.mrb[0].mxu0
  %v792 = vadd.f32 %v695, %v791
  %v793 = vpop.f32.mrb[0].mxu0
  %794 = vmatprep.mubr.bf16.mxu0 %v336
  %795 = vmatmul.mubr.bf16.gmra.mrb[0].mxu0 %v335
  %v796 = vpop.f32.mrb[0].mxu0
  %v797 = vadd.f32 %v700, %v796
  %v798 = vpop.f32.mrb[0].mxu0
  %v799 = vpop.f32.mrb[0].mxu0
  %v800 = vadd.f32 %v703, %v799
  %v801 = vpop.f32.mrb[0].mxu0
  %802 = vmatprep.mubr.bf16.mxu0 %v341
  %803 = vmatmul.mubr.bf16.gmra.mrb[0].mxu0 %v340
  %v804 = vpop.f32.mrb[0].mxu0
  %v805 = vadd.f32 %v708, %v804
  %v806 = vpop.f32.mrb[0].mxu0
  %v807 = vpop.f32.mrb[0].mxu0
  %v808 = vadd.f32 %v711, %v807
  %v809 = vpop.f32.mrb[0].mxu0
  %810 = vmatprep.mubr.bf16.mxu0 %v346
  %811 = vmatmul.mubr.bf16.gmra.mrb[0].mxu0 %v345
  %v812 = vpop.f32.mrb[0].mxu0
  %v813 = vadd.f32 %v716, %v812
  %v814 = vpop.f32.mrb[0].mxu0
  %v815 = vpop.f32.mrb[0].mxu0
  %v816 = vadd.f32 %v719, %v815
  %v817 = vpop.f32.mrb[0].mxu0
  %818 = vmatprep.mubr.bf16.mxu0 %v351
  %819 = vmatmul.mubr.bf16.gmra.mrb[0].mxu0 %v350
  %v820 = vpop.f32.mrb[0].mxu0
  %v821 = vadd.f32 %v724, %v820
  %v822 = vpop.f32.mrb[0].mxu0
  %v823 = vpop.f32.mrb[0].mxu0
  %v824 = vadd.f32 %v727, %v823
  %v825 = vpop.f32.mrb[0].mxu0
  %826 = vdwg.mxu0
  %827 = vmatprep.subr.bf16.mxu0 0
  %828 = vmatpush1.bf16.msra.mxu0 %v585
  %829 = vmatprep.subr.bf16.mxu0 0
  %830 = vmatpush1.bf16.msra.mxu0 %v586
  %831 = vmatprep.subr.bf16.mxu0 0
  %832 = vmatpush1.bf16.msra.mxu0 %v587
  %833 = vmatprep.subr.bf16.mxu0 0
  %834 = vmatpush1.bf16.msra.mxu0 %v588
  %835 = vmatprep.subr.bf16.mxu0 0
  %836 = vmatpush1.bf16.msra.mxu0 %v589
  %837 = vmatprep.subr.bf16.mxu0 0
  %838 = vmatpush1.bf16.msra.mxu0 %v590
  %839 = vmatprep.subr.bf16.mxu0 0
  %840 = vmatpush1.bf16.msra.mxu0 %v591
  %841 = vmatprep.subr.bf16.mxu0 0
  %842 = vmatpush1.bf16.msra.mxu0 %v592
  %843 = vmatprep.subr.bf16.mxu0 0
  %844 = vmatpush1.bf16.msra.mxu0 0
  %845 = vmatprep.subr.bf16.mxu0 0
  %846 = vmatpush1.bf16.msra.mxu0 0
  %847 = vmatprep.subr.bf16.mxu0 0
  %848 = vmatpush1.bf16.msra.mxu0 0
  %849 = vmatprep.subr.bf16.mxu0 0
  %850 = vmatpush1.bf16.msra.mxu0 0
  %851 = vmatprep.subr.bf16.mxu0 0
  %852 = vmatpush1.bf16.msra.mxu0 0
  %853 = vmatprep.subr.bf16.mxu0 0
  %854 = vmatpush1.bf16.msra.mxu0 0
  %855 = vmatprep.subr.bf16.mxu0 0
  %856 = vmatpush1.bf16.msra.mxu0 0
  %857 = vmatprep.subr.bf16.mxu0 0
  %858 = vmatpush1.bf16.msra.mxu0 0
  %859 = vmatprep.mubr.bf16.mxu0 0
  %860 = vmatmul.mubr.bf16.gmra.mrb[0].mxu0 %v317
  %v861 = vpop.f32.mrb[0].mxu0
  %v862 = vadd.f32 %v765, %v861
  %v863 = vpop.f32.mrb[0].mxu0
  %v864 = vpop.f32.mrb[0].mxu0
  %v865 = vadd.f32 %v768, %v864
  %v866 = vpop.f32.mrb[0].mxu0
  %867 = vmatprep.mubr.bf16.mxu0 0
  %868 = vmatmul.mubr.bf16.gmra.mrb[0].mxu0 %v322
  %v869 = vpop.f32.mrb[0].mxu0
  %v870 = vadd.f32 %v773, %v869
  %v871 = vpop.f32.mrb[0].mxu0
  %v872 = vpop.f32.mrb[0].mxu0
  %v873 = vadd.f32 %v776, %v872
  %v874 = vpop.f32.mrb[0].mxu0
  %875 = vmatprep.mubr.bf16.mxu0 0
  %876 = vmatmul.mubr.bf16.gmra.mrb[0].mxu0 %v327
  %v877 = vpop.f32.mrb[0].mxu0
  %v878 = vadd.f32 %v781, %v877
  %v879 = vpop.f32.mrb[0].mxu0
  %v880 = vpop.f32.mrb[0].mxu0
  %v881 = vadd.f32 %v784, %v880
  %v882 = vpop.f32.mrb[0].mxu0
  %883 = vmatprep.mubr.bf16.mxu0 0
  %884 = vmatmul.mubr.bf16.gmra.mrb[0].mxu0 %v332
  %v885 = vpop.f32.mrb[0].mxu0
  %v886 = vadd.f32 %v789, %v885
  %v887 = vpop.f32.mrb[0].mxu0
  %v888 = vpop.f32.mrb[0].mxu0
  %v889 = vadd.f32 %v792, %v888
  %v890 = vpop.f32.mrb[0].mxu0
  %891 = vmatprep.mubr.bf16.mxu0 0
  %892 = vmatmul.mubr.bf16.gmra.mrb[0].mxu0 %v337
  %v893 = vpop.f32.mrb[0].mxu0
  %v894 = vadd.f32 %v797, %v893
  %v895 = vpop.f32.mrb[0].mxu0
  %v896 = vpop.f32.mrb[0].mxu0
  %v897 = vadd.f32 %v800, %v896
  %v898 = vpop.f32.mrb[0].mxu0
  %899 = vmatprep.mubr.bf16.mxu0 0
  %900 = vmatmul.mubr.bf16.gmra.mrb[0].mxu0 %v342
  %v901 = vpop.f32.mrb[0].mxu0
  %v902 = vadd.f32 %v805, %v901
  %v903 = vpop.f32.mrb[0].mxu0
  %v904 = vpop.f32.mrb[0].mxu0
  %v905 = vadd.f32 %v808, %v904
  %v906 = vpop.f32.mrb[0].mxu0
  %907 = vmatprep.mubr.bf16.mxu0 0
  %908 = vmatmul.mubr.bf16.gmra.mrb[0].mxu0 %v347
  %v909 = vpop.f32.mrb[0].mxu0
  %v910 = vadd.f32 %v813, %v909
  %v911 = vpop.f32.mrb[0].mxu0
  %v912 = vpop.f32.mrb[0].mxu0
  %v913 = vadd.f32 %v816, %v912
  %v914 = vpop.f32.mrb[0].mxu0
  %915 = vmatprep.mubr.bf16.mxu0 0
  %916 = vmatmul.mubr.bf16.gmra.mrb[0].mxu0 %v352
  %v917 = vpop.f32.mrb[0].mxu0
  %v918 = vadd.f32 %v821, %v917
  %v919 = vpop.f32.mrb[0].mxu0
  %v920 = vpop.f32.mrb[0].mxu0
  %v921 = vadd.f32 %v824, %v920
  %v922 = vpop.f32.mrb[0].mxu0
  %923 = vdwg.mxu0
  %v924 = vadd.f32 %v41, %v862
  %v925 = vadd.f32 %v42, %v865
  %v926 = vadd.f32 %v43, %v870
  %v927 = vadd.f32 %v44, %v873
  %v928 = vadd.f32 %v45, %v878
  %v929 = vadd.f32 %v46, %v881
  %v930 = vadd.f32 %v47, %v886
  %v931 = vadd.f32 %v48, %v889
  %v932 = vadd.f32 %v49, %v894
  %v933 = vadd.f32 %v50, %v897
  %v934 = vadd.f32 %v51, %v902
  %v935 = vadd.f32 %v52, %v905
  %v936 = vadd.f32 %v53, %v910
  %v937 = vadd.f32 %v54, %v913
  %v938 = vadd.f32 %v55, %v918
  %v939 = vadd.f32 %v56, %v921
  %940 = vst [vmem:[#allocation2] sm:$0xff] %v924
  %941 = vst [vmem:[#allocation2 + $0x8] sm:$0xff] %v925
  %942 = vst [vmem:[#allocation2 + $0x10] sm:$0xff] %v926
  %943 = vst [vmem:[#allocation2 + $0x18] sm:$0xff] %v927
  %944 = vst [vmem:[#allocation2 + $0x20] sm:$0xff] %v928
  %945 = vst [vmem:[#allocation2 + $0x28] sm:$0xff] %v929
  %946 = vst [vmem:[#allocation2 + $0x30] sm:$0xff] %v930
  %947 = vst [vmem:[#allocation2 + $0x38] sm:$0xff] %v931
  %948 = vst [vmem:[#allocation2 + $0x40] sm:$0xff] %v932
  %949 = vst [vmem:[#allocation2 + $0x48] sm:$0xff] %v933
  %950 = vst [vmem:[#allocation2 + $0x50] sm:$0xff] %v934
  %951 = vst [vmem:[#allocation2 + $0x58] sm:$0xff] %v935
  %952 = vst [vmem:[#allocation2 + $0x60] sm:$0xff] %v936
  %953 = vst [vmem:[#allocation2 + $0x68] sm:$0xff] %v937
  %954 = vst [vmem:[#allocation2 + $0x70] sm:$0xff] %v938
  %955 = vst [vmem:[#allocation2 + $0x78] sm:$0xff] %v939
  // Predicated region
  $region26: #{hrnet_forward.15} parent=0 // pred_check
    %p956 = pneg %p21
  $region27: #{hrnet_forward.15} parent=0 // pred_check_branch
    %958 = sbr.rel (%p956) target = $region29
  $region28: #{hrnet_forward.15} parent=0 // pred_region
    %v959 = vld [vmem:[#allocation2] sm:$0xff]
    %v960 = vld [vmem:[#allocation2 + $0x8] sm:$0xff]
    %v961 = vld [vmem:[#allocation2 + $0x10] sm:$0xff]
    %v962 = vld [vmem:[#allocation2 + $0x18] sm:$0xff]
    %v963 = vld [vmem:[#allocation2 + $0x20] sm:$0xff]
    %v964 = vld [vmem:[#allocation2 + $0x28] sm:$0xff]
    %v965 = vld [vmem:[#allocation2 + $0x30] sm:$0xff]
    %v966 = vld [vmem:[#allocation2 + $0x38] sm:$0xff]
    %v967 = vld [vmem:[#allocation2 + $0x40] sm:$0xff]
    %v968 = vld [vmem:[#allocation2 + $0x48] sm:$0xff]
    %v969 = vld [vmem:[#allocation2 + $0x50] sm:$0xff]
    %v970 = vld [vmem:[#allocation2 + $0x58] sm:$0xff]
    %v971 = vld [vmem:[#allocation2 + $0x60] sm:$0xff]
    %v972 = vld [vmem:[#allocation2 + $0x68] sm:$0xff]
    %v973 = vld [vmem:[#allocation2 + $0x70] sm:$0xff]
    %v974 = vld [vmem:[#allocation2 + $0x78] sm:$0xff]
    %v975 = vld [vmem:[%s2] sm:$0x1]
    %v977 = vlaneseq
    %v978 = vshrl.u32 %v977, 7
    %v979 = vsub.s32 0, %v978
    %v980 = vrot.slane %v975, %v979
    %v982 = vmul.f32 %v959, %v980
    %v983 = vmul.f32 %v960, %v980
    %v984 = vmul.f32 %v961, %v980
    %v985 = vmul.f32 %v962, %v980
    %v986 = vmul.f32 %v963, %v980
    %v987 = vmul.f32 %v964, %v980
    %v988 = vmul.f32 %v965, %v980
    %v989 = vmul.f32 %v966, %v980
    %v990 = vmul.f32 %v967, %v980
    %v991 = vmul.f32 %v968, %v980
    %v992 = vmul.f32 %v969, %v980
    %v993 = vmul.f32 %v970, %v980
    %v994 = vmul.f32 %v971, %v980
    %v995 = vmul.f32 %v972, %v980
    %v996 = vmul.f32 %v973, %v980
    %v997 = vmul.f32 %v974, %v980
    %v998 = vld [vmem:[%s3] sm:$0x1]
    %v1000 = vlaneseq
    %v1001 = vshrl.u32 %v1000, 7
    %v1002 = vsub.s32 0, %v1001
    %v1003 = vrot.slane %v998, %v1002
    %v1005 = vadd.f32 %v982, %v1003
    %v1006 = vadd.f32 %v983, %v1003
    %v1007 = vadd.f32 %v984, %v1003
    %v1008 = vadd.f32 %v985, %v1003
    %v1009 = vadd.f32 %v986, %v1003
    %v1010 = vadd.f32 %v987, %v1003
    %v1011 = vadd.f32 %v988, %v1003
    %v1012 = vadd.f32 %v989, %v1003
    %v1013 = vadd.f32 %v990, %v1003
    %v1014 = vadd.f32 %v991, %v1003
    %v1015 = vadd.f32 %v992, %v1003
    %v1016 = vadd.f32 %v993, %v1003
    %v1017 = vadd.f32 %v994, %v1003
    %v1018 = vadd.f32 %v995, %v1003
    %v1019 = vadd.f32 %v996, %v1003
    %v1020 = vadd.f32 %v997, %v1003
    %v1021 = vld [vmem:[%s4] sm:$0xf]
    %v1022 = vld [vmem:[%s4 + $0x4] sm:$0xf]
    %v1023 = vld [vmem:[%s4 + $0x8] sm:$0xf]
    %v1024 = vld [vmem:[%s4 + $0xc] sm:$0xf]
    %v1025 = vld [vmem:[%s4 + $0x10] sm:$0xf]
    %v1026 = vld [vmem:[%s4 + $0x14] sm:$0xf]
    %v1027 = vld [vmem:[%s4 + $0x18] sm:$0xf]
    %v1028 = vld [vmem:[%s4 + $0x1c] sm:$0xf]
    %v1029 = vld [vmem:[%s4 + $0x20] sm:$0xf]
    %v1030 = vld [vmem:[%s4 + $0x24] sm:$0xf]
    %v1031 = vld [vmem:[%s4 + $0x28] sm:$0xf]
    %v1032 = vld [vmem:[%s4 + $0x2c] sm:$0xf]
    %v1033 = vld [vmem:[%s4 + $0x30] sm:$0xf]
    %v1034 = vld [vmem:[%s4 + $0x34] sm:$0xf]
    %v1035 = vld [vmem:[%s4 + $0x38] sm:$0xf]
    %v1036 = vld [vmem:[%s4 + $0x3c] sm:$0xf]
    %v1037 = vunpack.c.l.bf16 %v1021
    %v1038 = vunpack.c.l.bf16 %v1022
    %v1039 = vunpack.c.l.bf16 %v1023
    %v1040 = vunpack.c.l.bf16 %v1024
    %v1041 = vunpack.c.l.bf16 %v1025
    %v1042 = vunpack.c.l.bf16 %v1026
    %v1043 = vunpack.c.l.bf16 %v1027
    %v1044 = vunpack.c.l.bf16 %v1028
    %v1045 = vunpack.c.l.bf16 %v1029
    %v1046 = vunpack.c.l.bf16 %v1030
    %v1047 = vunpack.c.l.bf16 %v1031
    %v1048 = vunpack.c.l.bf16 %v1032
    %v1049 = vunpack.c.l.bf16 %v1033
    %v1050 = vunpack.c.l.bf16 %v1034
    %v1051 = vunpack.c.l.bf16 %v1035
    %v1052 = vunpack.c.l.bf16 %v1036
    %v1053 = vadd.f32 %v1005, %v1037
    %v1054 = vadd.f32 %v1006, %v1038
    %v1055 = vadd.f32 %v1007, %v1039
    %v1056 = vadd.f32 %v1008, %v1040
    %v1057 = vadd.f32 %v1009, %v1041
    %v1058 = vadd.f32 %v1010, %v1042
    %v1059 = vadd.f32 %v1011, %v1043
    %v1060 = vadd.f32 %v1012, %v1044
    %v1061 = vadd.f32 %v1013, %v1045
    %v1062 = vadd.f32 %v1014, %v1046
    %v1063 = vadd.f32 %v1015, %v1047
    %v1064 = vadd.f32 %v1016, %v1048
    %v1065 = vadd.f32 %v1017, %v1049
    %v1066 = vadd.f32 %v1018, %v1050
    %v1067 = vadd.f32 %v1019, %v1051
    %v1068 = vadd.f32 %v1020, %v1052
    %v1069 = vmax.f32 %v1053, 0.0
    %v1070 = vmax.f32 %v1054, 0.0
    %v1071 = vmax.f32 %v1055, 0.0
    %v1072 = vmax.f32 %v1056, 0.0
    %v1073 = vmax.f32 %v1057, 0.0
    %v1074 = vmax.f32 %v1058, 0.0
    %v1075 = vmax.f32 %v1059, 0.0
    %v1076 = vmax.f32 %v1060, 0.0
    %v1077 = vmax.f32 %v1061, 0.0
    %v1078 = vmax.f32 %v1062, 0.0
    %v1079 = vmax.f32 %v1063, 0.0
    %v1080 = vmax.f32 %v1064, 0.0
    %v1081 = vmax.f32 %v1065, 0.0
    %v1082 = vmax.f32 %v1066, 0.0
    %v1083 = vmax.f32 %v1067, 0.0
    %v1084 = vmax.f32 %v1068, 0.0
    %v1085 = vpack.c.bf16 %v1070, %v1069
    %v1086 = vpack.c.bf16 %v1072, %v1071
    %v1087 = vpack.c.bf16 %v1074, %v1073
    %v1088 = vpack.c.bf16 %v1076, %v1075
    %v1089 = vpack.c.bf16 %v1078, %v1077
    %v1090 = vpack.c.bf16 %v1080, %v1079
    %v1091 = vpack.c.bf16 %v1082, %v1081
    %v1092 = vpack.c.bf16 %v1084, %v1083
    %v1101 = vunpack.c.l.b16 %v1085
    %v1102 = vunpack.c.h.b16 %v1085
    %v1103 = vunpack.c.l.b16 %v1086
    %v1104 = vunpack.c.h.b16 %v1086
    %v1105 = vunpack.c.l.b16 %v1087
    %v1106 = vunpack.c.h.b16 %v1087
    %v1107 = vunpack.c.l.b16 %v1088
    %v1108 = vunpack.c.h.b16 %v1088
    %v1109 = vunpack.c.l.b16 %v1089
    %v1110 = vunpack.c.h.b16 %v1089
    %v1111 = vunpack.c.l.b16 %v1090
    %v1112 = vunpack.c.h.b16 %v1090
    %v1113 = vunpack.c.l.b16 %v1091
    %v1114 = vunpack.c.h.b16 %v1091
    %v1115 = vunpack.c.l.b16 %v1092
    %v1116 = vunpack.c.h.b16 %v1092
    %v1117 = vpack.c.b16 %v1101, %v1101
    %v1118 = vpack.c.b16 %v1102, %v1102
    %v1119 = vpack.c.b16 %v1103, %v1103
    %v1120 = vpack.c.b16 %v1104, %v1104
    %v1121 = vpack.c.b16 %v1105, %v1105
    %v1122 = vpack.c.b16 %v1106, %v1106
    %v1123 = vpack.c.b16 %v1107, %v1107
    %v1124 = vpack.c.b16 %v1108, %v1108
    %v1125 = vpack.c.b16 %v1109, %v1109
    %v1126 = vpack.c.b16 %v1110, %v1110
    %v1127 = vpack.c.b16 %v1111, %v1111
    %v1128 = vpack.c.b16 %v1112, %v1112
    %v1129 = vpack.c.b16 %v1113, %v1113
    %v1130 = vpack.c.b16 %v1114, %v1114
    %v1131 = vpack.c.b16 %v1115, %v1115
    %v1132 = vpack.c.b16 %v1116, %v1116
    %1149 = vst [vmem:[%s5] sm:$0xf] %v1117
    %1150 = vst [vmem:[%s5 + $0x4] sm:$0xf] %v1118
    %1151 = vst [vmem:[%s5 + $0x8] sm:$0xf] %v1119
    %1152 = vst [vmem:[%s5 + $0xc] sm:$0xf] %v1120
    %1153 = vst [vmem:[%s5 + $0x10] sm:$0xf] %v1121
    %1154 = vst [vmem:[%s5 + $0x14] sm:$0xf] %v1122
    %1155 = vst [vmem:[%s5 + $0x18] sm:$0xf] %v1123
    %1156 = vst [vmem:[%s5 + $0x1c] sm:$0xf] %v1124
    %1157 = vst [vmem:[%s5 + $0x20] sm:$0xf] %v1125
    %1158 = vst [vmem:[%s5 + $0x24] sm:$0xf] %v1126
    %1159 = vst [vmem:[%s5 + $0x28] sm:$0xf] %v1127
    %1160 = vst [vmem:[%s5 + $0x2c] sm:$0xf] %v1128
    %1161 = vst [vmem:[%s5 + $0x30] sm:$0xf] %v1129
    %1162 = vst [vmem:[%s5 + $0x34] sm:$0xf] %v1130
    %1163 = vst [vmem:[%s5 + $0x38] sm:$0xf] %v1131
    %1164 = vst [vmem:[%s5 + $0x3c] sm:$0xf] %v1132
  $region29: #{hrnet_forward.15} parent=0 // pred_fallthru
    _
  // Predicated region
  $region30: #{hrnet_forward.15} parent=0 // pred_check
    _
  $region31: #{hrnet_forward.15} parent=0 // pred_check_branch
    %1166 = sbr.rel (0) target = $region33
  $region32: #{hrnet_forward.15} parent=0 // pred_region
    _
  $region33: #{hrnet_forward.15} parent=0 // pred_fallthru
    _
  // Predicated region
  $region34: #{hrnet_forward.15} parent=0 // pred_check
    _
  $region35: #{hrnet_forward.15} parent=0 // pred_check_branch
    %1168 = sbr.rel (0) target = $region37
  $region36: #{hrnet_forward.15} parent=0 // pred_region
    _
  $region37: #{hrnet_forward.15} parent=0 // pred_fallthru
    _

// kernel: hrnet_forward.16
$region0: #{hrnet_forward.16}
  #allocation0 [shape = 'u32[]', space=smem, size = 0x4, offset = 0x4, fixed_abs, tag = 'smem constant byte address 0x4 - core index']
  #allocation1 [shape = 'u32[144,128]{1,0:T(1,128)}', space=vmem, size = 0x12000, scoped, tag = 'internal scratch']
  #allocation2 [shape = 'f32[32,128]{1,0:T(8,128)}', space=vmem, size = 0x4000, scoped, tag = 'scratch operand']
  %s0 = inlined_call_operand.vmem [shape: bf16[32,640], index: 0, kind: input, shape index: {}]
  %s1 = inlined_call_operand.vmem [shape: bf16[640,128], index: 1, kind: input, shape index: {}]
  %s2 = inlined_call_operand.vmem [shape: f32[1,128], index: 2, kind: input, shape index: {}]
  %s3 = inlined_call_operand.vmem [shape: f32[1,128], index: 3, kind: input, shape index: {}]
  %s4 = inlined_call_operand.vmem [shape: bf16[32,128], index: 4, kind: output, shape index: {}]
  %s5 = sld [smem:[#allocation0]]
  $region34: #{hrnet_forward.16} parent=0
    _
  %s7 = ssub.s32 1, %s5
  %s8 = scalar_select 0, %s7, %s5
  // Predicated region
  $region2: #{hrnet_forward.16} parent=0 // pred_check
    _
  $region3: #{hrnet_forward.16} parent=0 // pred_check_branch
    %10 = sbr.rel (0) target = $region5
  $region4: #{hrnet_forward.16} parent=0 // pred_region
    _
  $region5: #{hrnet_forward.16} parent=0 // pred_fallthru
    _
  // Predicated region
  $region6: #{hrnet_forward.16} parent=0 // pred_check
    _
  $region7: #{hrnet_forward.16} parent=0 // pred_check_branch
    %12 = sbr.rel (0) target = $region9
  $region8: #{hrnet_forward.16} parent=0 // pred_region
    _
  $region9: #{hrnet_forward.16} parent=0 // pred_fallthru
    _
  // Predicated region
  $region10: #{hrnet_forward.16} parent=0 // pred_check
    _
  $region11: #{hrnet_forward.16} parent=0 // pred_check_branch
    %14 = sbr.rel (0) target = $region13
  $region12: #{hrnet_forward.16} parent=0 // pred_region
    _
  $region13: #{hrnet_forward.16} parent=0 // pred_fallthru
    _
  // Predicated region
  $region14: #{hrnet_forward.16} parent=0 // pred_check
    _
  $region15: #{hrnet_forward.16} parent=0 // pred_check_branch
    %16 = sbr.rel (0) target = $region17
  $region16: #{hrnet_forward.16} parent=0 // pred_region
    _
  $region17: #{hrnet_forward.16} parent=0 // pred_fallthru
    _
  %p18 = scmp.eq.s32.totalorder 0, 0
  // Predicated region
  $region18: #{hrnet_forward.16} parent=0 // pred_check
    %p19 = pneg %p18
  $region19: #{hrnet_forward.16} parent=0 // pred_check_branch
    %21 = sbr.rel (%p19) target = $region21
  $region20: #{hrnet_forward.16} parent=0 // pred_region
    %22 = vst [vmem:[#allocation2] sm:$0xff] 0.0
    %23 = vst [vmem:[#allocation2 + $0x8] sm:$0xff] 0.0
    %24 = vst [vmem:[#allocation2 + $0x10] sm:$0xff] 0.0
    %25 = vst [vmem:[#allocation2 + $0x18] sm:$0xff] 0.0
  $region21: #{hrnet_forward.16} parent=0 // pred_fallthru
    _
  %v26 = vld [vmem:[#allocation2] sm:$0xff]
  %v27 = vld [vmem:[#allocation2 + $0x8] sm:$0xff]
  %v28 = vld [vmem:[#allocation2 + $0x10] sm:$0xff]
  %v29 = vld [vmem:[#allocation2 + $0x18] sm:$0xff]
  %v30 = vld [vmem:[%s0] sm:$0xff]
  %v31 = vld [vmem:[%s0 + $0x8] sm:$0xff]
  %v32 = vld [vmem:[%s0 + $0x10] sm:$0xf]
  %v33 = vld [vmem:[%s0 + $0x14] sm:$0xff]
  %v34 = vld [vmem:[%s0 + $0x1c] sm:$0xff]
  %v35 = vld [vmem:[%s0 + $0x24] sm:$0xf]
  %v36 = vld [vmem:[%s0 + $0x28] sm:$0xff]
  %v37 = vld [vmem:[%s0 + $0x30] sm:$0xff]
  %v38 = vld [vmem:[%s0 + $0x38] sm:$0xf]
  %v39 = vld [vmem:[%s0 + $0x3c] sm:$0xff]
  %v40 = vld [vmem:[%s0 + $0x44] sm:$0xff]
  %v41 = vld [vmem:[%s0 + $0x4c] sm:$0xf]
  %v42 = vld [vmem:[%s1] sm:$0xf]
  %v43 = vld [vmem:[%s1 + $0x4] sm:$0xf]
  %v44 = vld [vmem:[%s1 + $0x8] sm:$0xf]
  %v45 = vld [vmem:[%s1 + $0xc] sm:$0xf]
  %v46 = vld [vmem:[%s1 + $0x10] sm:$0xf]
  %v47 = vld [vmem:[%s1 + $0x14] sm:$0xf]
  %v48 = vld [vmem:[%s1 + $0x18] sm:$0xf]
  %v49 = vld [vmem:[%s1 + $0x1c] sm:$0xf]
  %v50 = vld [vmem:[%s1 + $0x20] sm:$0xf]
  %v51 = vld [vmem:[%s1 + $0x24] sm:$0xf]
  %v52 = vld [vmem:[%s1 + $0x28] sm:$0xf]
  %v53 = vld [vmem:[%s1 + $0x2c] sm:$0xf]
  %v54 = vld [vmem:[%s1 + $0x30] sm:$0xf]
  %v55 = vld [vmem:[%s1 + $0x34] sm:$0xf]
  %v56 = vld [vmem:[%s1 + $0x38] sm:$0xf]
  %v57 = vld [vmem:[%s1 + $0x3c] sm:$0xf]
  %v58 = vld [vmem:[%s1 + $0x40] sm:$0xf]
  %v59 = vld [vmem:[%s1 + $0x44] sm:$0xf]
  %v60 = vld [vmem:[%s1 + $0x48] sm:$0xf]
  %v61 = vld [vmem:[%s1 + $0x4c] sm:$0xf]
  %v62 = vld [vmem:[%s1 + $0x50] sm:$0xf]
  %v63 = vld [vmem:[%s1 + $0x54] sm:$0xf]
  %v64 = vld [vmem:[%s1 + $0x58] sm:$0xf]
  %v65 = vld [vmem:[%s1 + $0x5c] sm:$0xf]
  %v66 = vld [vmem:[%s1 + $0x60] sm:$0xf]
  %v67 = vld [vmem:[%s1 + $0x64] sm:$0xf]
  %v68 = vld [vmem:[%s1 + $0x68] sm:$0xf]
  %v69 = vld [vmem:[%s1 + $0x6c] sm:$0xf]
  %v70 = vld [vmem:[%s1 + $0x70] sm:$0xf]
  %v71 = vld [vmem:[%s1 + $0x74] sm:$0xf]
  %v72 = vld [vmem:[%s1 + $0x78] sm:$0xf]
  %v73 = vld [vmem:[%s1 + $0x7c] sm:$0xf]
  %v74 = vld [vmem:[%s1 + $0x80] sm:$0xf]
  %v75 = vld [vmem:[%s1 + $0x84] sm:$0xf]
  %v76 = vld [vmem:[%s1 + $0x88] sm:$0xf]
  %v77 = vld [vmem:[%s1 + $0x8c] sm:$0xf]
  %v78 = vld [vmem:[%s1 + $0x90] sm:$0xf]
  %v79 = vld [vmem:[%s1 + $0x94] sm:$0xf]
  %v80 = vld [vmem:[%s1 + $0x98] sm:$0xf]
  %v81 = vld [vmem:[%s1 + $0x9c] sm:$0xf]
  %v82 = vld [vmem:[%s1 + $0xa0] sm:$0xf]
  %v83 = vld [vmem:[%s1 + $0xa4] sm:$0xf]
  %v84 = vld [vmem:[%s1 + $0xa8] sm:$0xf]
  %v85 = vld [vmem:[%s1 + $0xac] sm:$0xf]
  %v86 = vld [vmem:[%s1 + $0xb0] sm:$0xf]
  %v87 = vld [vmem:[%s1 + $0xb4] sm:$0xf]
  %v88 = vld [vmem:[%s1 + $0xb8] sm:$0xf]
  %v89 = vld [vmem:[%s1 + $0xbc] sm:$0xf]
  %v90 = vld [vmem:[%s1 + $0xc0] sm:$0xf]
  %v91 = vld [vmem:[%s1 + $0xc4] sm:$0xf]
  %v92 = vld [vmem:[%s1 + $0xc8] sm:$0xf]
  %v93 = vld [vmem:[%s1 + $0xcc] sm:$0xf]
  %v94 = vld [vmem:[%s1 + $0xd0] sm:$0xf]
  %v95 = vld [vmem:[%s1 + $0xd4] sm:$0xf]
  %v96 = vld [vmem:[%s1 + $0xd8] sm:$0xf]
  %v97 = vld [vmem:[%s1 + $0xdc] sm:$0xf]
  %v98 = vld [vmem:[%s1 + $0xe0] sm:$0xf]
  %v99 = vld [vmem:[%s1 + $0xe4] sm:$0xf]
  %v100 = vld [vmem:[%s1 + $0xe8] sm:$0xf]
  %v101 = vld [vmem:[%s1 + $0xec] sm:$0xf]
  %v102 = vld [vmem:[%s1 + $0xf0] sm:$0xf]
  %v103 = vld [vmem:[%s1 + $0xf4] sm:$0xf]
  %v104 = vld [vmem:[%s1 + $0xf8] sm:$0xf]
  %v105 = vld [vmem:[%s1 + $0xfc] sm:$0xf]
  %v106 = vld [vmem:[%s1 + $0x100] sm:$0xf]
  %v107 = vld [vmem:[%s1 + $0x104] sm:$0xf]
  %v108 = vld [vmem:[%s1 + $0x108] sm:$0xf]
  %v109 = vld [vmem:[%s1 + $0x10c] sm:$0xf]
  %v110 = vld [vmem:[%s1 + $0x110] sm:$0xf]
  %v111 = vld [vmem:[%s1 + $0x114] sm:$0xf]
  %v112 = vld [vmem:[%s1 + $0x118] sm:$0xf]
  %v113 = vld [vmem:[%s1 + $0x11c] sm:$0xf]
  %v114 = vld [vmem:[%s1 + $0x120] sm:$0xf]
  %v115 = vld [vmem:[%s1 + $0x124] sm:$0xf]
  %v116 = vld [vmem:[%s1 + $0x128] sm:$0xf]
  %v117 = vld [vmem:[%s1 + $0x12c] sm:$0xf]
  %v118 = vld [vmem:[%s1 + $0x130] sm:$0xf]
  %v119 = vld [vmem:[%s1 + $0x134] sm:$0xf]
  %v120 = vld [vmem:[%s1 + $0x138] sm:$0xf]
  %v121 = vld [vmem:[%s1 + $0x13c] sm:$0xf]
  %v134 = vunpack.c.l.b16 %v30
  %v135 = vunpack.c.h.b16 %v30
  %v136 = vunpack.c.l.b16 %v31
  %v137 = vunpack.c.h.b16 %v31
  %v138 = vunpack.c.l.b16 %v32
  %v139 = vunpack.c.l.b16 %v33
  %v140 = vunpack.c.h.b16 %v33
  %v141 = vunpack.c.l.b16 %v34
  %v142 = vunpack.c.h.b16 %v34
  %v143 = vunpack.c.l.b16 %v35
  %v144 = vunpack.c.l.b16 %v36
  %v145 = vunpack.c.h.b16 %v36
  %v146 = vunpack.c.l.b16 %v37
  %v147 = vunpack.c.h.b16 %v37
  %v148 = vunpack.c.l.b16 %v38
  %v149 = vunpack.c.l.b16 %v39
  %v150 = vunpack.c.h.b16 %v39
  %v151 = vunpack.c.l.b16 %v40
  %v152 = vunpack.c.h.b16 %v40
  %v153 = vunpack.c.l.b16 %v41
  %v154 = vpack.c.b16 %v139, %v134
  %v155 = vpack.c.b16 %v140, %v135
  %v156 = vpack.c.b16 %v141, %v136
  %v157 = vpack.c.b16 %v142, %v137
  %v158 = vpack.c.b16 %v143, %v138
  %v159 = vpack.c.b16 %v149, %v144
  %v160 = vpack.c.b16 %v150, %v145
  %v161 = vpack.c.b16 %v151, %v146
  %v162 = vpack.c.b16 %v152, %v147
  %v163 = vpack.c.b16 %v153, %v148
  %v254 = vunpack.c.l.b16 %v42
  %v255 = vunpack.c.l.b16 %v43
  %v256 = vunpack.c.l.b16 %v44
  %v257 = vunpack.c.l.b16 %v45
  %v258 = vunpack.c.l.b16 %v46
  %v259 = vunpack.c.l.b16 %v47
  %v260 = vunpack.c.l.b16 %v48
  %v261 = vunpack.c.l.b16 %v49
  %v262 = vunpack.c.l.b16 %v50
  %v263 = vunpack.c.l.b16 %v51
  %v264 = vunpack.c.l.b16 %v52
  %v265 = vunpack.c.l.b16 %v53
  %v266 = vunpack.c.l.b16 %v54
  %v267 = vunpack.c.l.b16 %v55
  %v268 = vunpack.c.l.b16 %v56
  %v269 = vunpack.c.l.b16 %v57
  %v270 = vunpack.c.l.b16 %v58
  %v271 = vunpack.c.l.b16 %v59
  %v272 = vunpack.c.l.b16 %v60
  %v273 = vunpack.c.l.b16 %v61
  %v274 = vunpack.c.l.b16 %v62
  %v275 = vunpack.c.l.b16 %v63
  %v276 = vunpack.c.l.b16 %v64
  %v277 = vunpack.c.l.b16 %v65
  %v278 = vunpack.c.l.b16 %v66
  %v279 = vunpack.c.l.b16 %v67
  %v280 = vunpack.c.l.b16 %v68
  %v281 = vunpack.c.l.b16 %v69
  %v282 = vunpack.c.l.b16 %v70
  %v283 = vunpack.c.l.b16 %v71
  %v284 = vunpack.c.l.b16 %v72
  %v285 = vunpack.c.l.b16 %v73
  %v286 = vunpack.c.l.b16 %v74
  %v287 = vunpack.c.l.b16 %v75
  %v288 = vunpack.c.l.b16 %v76
  %v289 = vunpack.c.l.b16 %v77
  %v290 = vunpack.c.l.b16 %v78
  %v291 = vunpack.c.l.b16 %v79
  %v292 = vunpack.c.l.b16 %v80
  %v293 = vunpack.c.l.b16 %v81
  %v294 = vunpack.c.l.b16 %v82
  %v295 = vunpack.c.l.b16 %v83
  %v296 = vunpack.c.l.b16 %v84
  %v297 = vunpack.c.l.b16 %v85
  %v298 = vunpack.c.l.b16 %v86
  %v299 = vunpack.c.l.b16 %v87
  %v300 = vunpack.c.l.b16 %v88
  %v301 = vunpack.c.l.b16 %v89
  %v302 = vunpack.c.l.b16 %v90
  %v303 = vunpack.c.l.b16 %v91
  %v304 = vunpack.c.l.b16 %v92
  %v305 = vunpack.c.l.b16 %v93
  %v306 = vunpack.c.l.b16 %v94
  %v307 = vunpack.c.l.b16 %v95
  %v308 = vunpack.c.l.b16 %v96
  %v309 = vunpack.c.l.b16 %v97
  %v310 = vunpack.c.l.b16 %v98
  %v311 = vunpack.c.l.b16 %v99
  %v312 = vunpack.c.l.b16 %v100
  %v313 = vunpack.c.l.b16 %v101
  %v314 = vunpack.c.l.b16 %v102
  %v315 = vunpack.c.l.b16 %v103
  %v316 = vunpack.c.l.b16 %v104
  %v317 = vunpack.c.l.b16 %v105
  %v318 = vunpack.c.l.b16 %v106
  %v319 = vunpack.c.l.b16 %v107
  %v320 = vunpack.c.l.b16 %v108
  %v321 = vunpack.c.l.b16 %v109
  %v322 = vunpack.c.l.b16 %v110
  %v323 = vunpack.c.l.b16 %v111
  %v324 = vunpack.c.l.b16 %v112
  %v325 = vunpack.c.l.b16 %v113
  %v326 = vunpack.c.l.b16 %v114
  %v327 = vunpack.c.l.b16 %v115
  %v328 = vunpack.c.l.b16 %v116
  %v329 = vunpack.c.l.b16 %v117
  %v330 = vunpack.c.l.b16 %v118
  %v331 = vunpack.c.l.b16 %v119
  %v332 = vunpack.c.l.b16 %v120
  %v333 = vunpack.c.l.b16 %v121
  %v334 = vpack.c.b16 %v255, %v254
  %v335 = vpack.c.b16 %v257, %v256
  %v336 = vpack.c.b16 %v259, %v258
  %v337 = vpack.c.b16 %v261, %v260
  %v338 = vpack.c.b16 %v263, %v262
  %v339 = vpack.c.b16 %v265, %v264
  %v340 = vpack.c.b16 %v267, %v266
  %v341 = vpack.c.b16 %v269, %v268
  %v342 = vpack.c.b16 %v271, %v270
  %v343 = vpack.c.b16 %v273, %v272
  %v344 = vpack.c.b16 %v275, %v274
  %v345 = vpack.c.b16 %v277, %v276
  %v346 = vpack.c.b16 %v279, %v278
  %v347 = vpack.c.b16 %v281, %v280
  %v348 = vpack.c.b16 %v283, %v282
  %v349 = vpack.c.b16 %v285, %v284
  %v350 = vpack.c.b16 %v287, %v286
  %v351 = vpack.c.b16 %v289, %v288
  %v352 = vpack.c.b16 %v291, %v290
  %v353 = vpack.c.b16 %v293, %v292
  %v354 = vpack.c.b16 %v295, %v294
  %v355 = vpack.c.b16 %v297, %v296
  %v356 = vpack.c.b16 %v299, %v298
  %v357 = vpack.c.b16 %v301, %v300
  %v358 = vpack.c.b16 %v303, %v302
  %v359 = vpack.c.b16 %v305, %v304
  %v360 = vpack.c.b16 %v307, %v306
  %v361 = vpack.c.b16 %v309, %v308
  %v362 = vpack.c.b16 %v311, %v310
  %v363 = vpack.c.b16 %v313, %v312
  %v364 = vpack.c.b16 %v315, %v314
  %v365 = vpack.c.b16 %v317, %v316
  %v366 = vpack.c.b16 %v319, %v318
  %v367 = vpack.c.b16 %v321, %v320
  %v368 = vpack.c.b16 %v323, %v322
  %v369 = vpack.c.b16 %v325, %v324
  %v370 = vpack.c.b16 %v327, %v326
  %v371 = vpack.c.b16 %v329, %v328
  %v372 = vpack.c.b16 %v331, %v330
  %v373 = vpack.c.b16 %v333, %v332
  %414 = vmatprep.subr.bf16.mxu0 0
  %415 = vmatpush1.bf16.msra.mxu0 %v334
  %416 = vmatprep.subr.bf16.mxu0 0
  %417 = vmatpush1.bf16.msra.mxu0 %v335
  %418 = vmatprep.subr.bf16.mxu0 0
  %419 = vmatpush1.bf16.msra.mxu0 %v336
  %420 = vmatprep.subr.bf16.mxu0 0
  %421 = vmatpush1.bf16.msra.mxu0 %v337
  %422 = vmatprep.subr.bf16.mxu0 0
  %423 = vmatpush1.bf16.msra.mxu0 %v338
  %424 = vmatprep.subr.bf16.mxu0 0
  %425 = vmatpush1.bf16.msra.mxu0 %v339
  %426 = vmatprep.subr.bf16.mxu0 0
  %427 = vmatpush1.bf16.msra.mxu0 %v340
  %428 = vmatprep.subr.bf16.mxu0 0
  %429 = vmatpush1.bf16.msra.mxu0 %v341
  %430 = vmatprep.subr.bf16.mxu0 0
  %431 = vmatpush1.bf16.msra.mxu0 %v342
  %432 = vmatprep.subr.bf16.mxu0 0
  %433 = vmatpush1.bf16.msra.mxu0 %v343
  %434 = vmatprep.subr.bf16.mxu0 0
  %435 = vmatpush1.bf16.msra.mxu0 %v344
  %436 = vmatprep.subr.bf16.mxu0 0
  %437 = vmatpush1.bf16.msra.mxu0 %v345
  %438 = vmatprep.subr.bf16.mxu0 0
  %439 = vmatpush1.bf16.msra.mxu0 %v346
  %440 = vmatprep.subr.bf16.mxu0 0
  %441 = vmatpush1.bf16.msra.mxu0 %v347
  %442 = vmatprep.subr.bf16.mxu0 0
  %443 = vmatpush1.bf16.msra.mxu0 %v348
  %444 = vmatprep.subr.bf16.mxu0 0
  %445 = vmatpush1.bf16.msra.mxu0 %v349
  %446 = vmatprep.mubr.bf16.mxu0 %v155
  %447 = vmatmul.mubr.bf16.gmra.mrb[0].mxu0 %v154
  %v448 = vpop.f32.mrb[0].mxu0
  %v449 = vadd.f32 0.0, %v448
  %v450 = vpop.f32.mrb[0].mxu0
  %v451 = vpop.f32.mrb[0].mxu0
  %v452 = vadd.f32 0.0, %v451
  %v453 = vpop.f32.mrb[0].mxu0
  %454 = vmatprep.mubr.bf16.mxu0 %v160
  %455 = vmatmul.mubr.bf16.gmra.mrb[0].mxu0 %v159
  %v456 = vpop.f32.mrb[0].mxu0
  %v457 = vadd.f32 0.0, %v456
  %v458 = vpop.f32.mrb[0].mxu0
  %v459 = vpop.f32.mrb[0].mxu0
  %v460 = vadd.f32 0.0, %v459
  %v461 = vpop.f32.mrb[0].mxu0
  %462 = vdwg.mxu0
  %463 = vmatprep.subr.bf16.mxu0 0
  %464 = vmatpush1.bf16.msra.mxu0 %v350
  %465 = vmatprep.subr.bf16.mxu0 0
  %466 = vmatpush1.bf16.msra.mxu0 %v351
  %467 = vmatprep.subr.bf16.mxu0 0
  %468 = vmatpush1.bf16.msra.mxu0 %v352
  %469 = vmatprep.subr.bf16.mxu0 0
  %470 = vmatpush1.bf16.msra.mxu0 %v353
  %471 = vmatprep.subr.bf16.mxu0 0
  %472 = vmatpush1.bf16.msra.mxu0 %v354
  %473 = vmatprep.subr.bf16.mxu0 0
  %474 = vmatpush1.bf16.msra.mxu0 %v355
  %475 = vmatprep.subr.bf16.mxu0 0
  %476 = vmatpush1.bf16.msra.mxu0 %v356
  %477 = vmatprep.subr.bf16.mxu0 0
  %478 = vmatpush1.bf16.msra.mxu0 %v357
  %479 = vmatprep.subr.bf16.mxu0 0
  %480 = vmatpush1.bf16.msra.mxu0 %v358
  %481 = vmatprep.subr.bf16.mxu0 0
  %482 = vmatpush1.bf16.msra.mxu0 %v359
  %483 = vmatprep.subr.bf16.mxu0 0
  %484 = vmatpush1.bf16.msra.mxu0 %v360
  %485 = vmatprep.subr.bf16.mxu0 0
  %486 = vmatpush1.bf16.msra.mxu0 %v361
  %487 = vmatprep.subr.bf16.mxu0 0
  %488 = vmatpush1.bf16.msra.mxu0 %v362
  %489 = vmatprep.subr.bf16.mxu0 0
  %490 = vmatpush1.bf16.msra.mxu0 %v363
  %491 = vmatprep.subr.bf16.mxu0 0
  %492 = vmatpush1.bf16.msra.mxu0 %v364
  %493 = vmatprep.subr.bf16.mxu0 0
  %494 = vmatpush1.bf16.msra.mxu0 %v365
  %495 = vmatprep.mubr.bf16.mxu0 %v157
  %496 = vmatmul.mubr.bf16.gmra.mrb[0].mxu0 %v156
  %v497 = vpop.f32.mrb[0].mxu0
  %v498 = vadd.f32 %v449, %v497
  %v499 = vpop.f32.mrb[0].mxu0
  %v500 = vpop.f32.mrb[0].mxu0
  %v501 = vadd.f32 %v452, %v500
  %v502 = vpop.f32.mrb[0].mxu0
  %503 = vmatprep.mubr.bf16.mxu0 %v162
  %504 = vmatmul.mubr.bf16.gmra.mrb[0].mxu0 %v161
  %v505 = vpop.f32.mrb[0].mxu0
  %v506 = vadd.f32 %v457, %v505
  %v507 = vpop.f32.mrb[0].mxu0
  %v508 = vpop.f32.mrb[0].mxu0
  %v509 = vadd.f32 %v460, %v508
  %v510 = vpop.f32.mrb[0].mxu0
  %511 = vdwg.mxu0
  %512 = vmatprep.subr.bf16.mxu0 0
  %513 = vmatpush1.bf16.msra.mxu0 %v366
  %514 = vmatprep.subr.bf16.mxu0 0
  %515 = vmatpush1.bf16.msra.mxu0 %v367
  %516 = vmatprep.subr.bf16.mxu0 0
  %517 = vmatpush1.bf16.msra.mxu0 %v368
  %518 = vmatprep.subr.bf16.mxu0 0
  %519 = vmatpush1.bf16.msra.mxu0 %v369
  %520 = vmatprep.subr.bf16.mxu0 0
  %521 = vmatpush1.bf16.msra.mxu0 %v370
  %522 = vmatprep.subr.bf16.mxu0 0
  %523 = vmatpush1.bf16.msra.mxu0 %v371
  %524 = vmatprep.subr.bf16.mxu0 0
  %525 = vmatpush1.bf16.msra.mxu0 %v372
  %526 = vmatprep.subr.bf16.mxu0 0
  %527 = vmatpush1.bf16.msra.mxu0 %v373
  %528 = vmatprep.subr.bf16.mxu0 0
  %529 = vmatpush1.bf16.msra.mxu0 0
  %530 = vmatprep.subr.bf16.mxu0 0
  %531 = vmatpush1.bf16.msra.mxu0 0
  %532 = vmatprep.subr.bf16.mxu0 0
  %533 = vmatpush1.bf16.msra.mxu0 0
  %534 = vmatprep.subr.bf16.mxu0 0
  %535 = vmatpush1.bf16.msra.mxu0 0
  %536 = vmatprep.subr.bf16.mxu0 0
  %537 = vmatpush1.bf16.msra.mxu0 0
  %538 = vmatprep.subr.bf16.mxu0 0
  %539 = vmatpush1.bf16.msra.mxu0 0
  %540 = vmatprep.subr.bf16.mxu0 0
  %541 = vmatpush1.bf16.msra.mxu0 0
  %542 = vmatprep.subr.bf16.mxu0 0
  %543 = vmatpush1.bf16.msra.mxu0 0
  %544 = vmatprep.mubr.bf16.mxu0 0
  %545 = vmatmul.mubr.bf16.gmra.mrb[0].mxu0 %v158
  %v546 = vpop.f32.mrb[0].mxu0
  %v547 = vadd.f32 %v498, %v546
  %v548 = vpop.f32.mrb[0].mxu0
  %v549 = vpop.f32.mrb[0].mxu0
  %v550 = vadd.f32 %v501, %v549
  %v551 = vpop.f32.mrb[0].mxu0
  %552 = vmatprep.mubr.bf16.mxu0 0
  %553 = vmatmul.mubr.bf16.gmra.mrb[0].mxu0 %v163
  %v554 = vpop.f32.mrb[0].mxu0
  %v555 = vadd.f32 %v506, %v554
  %v556 = vpop.f32.mrb[0].mxu0
  %v557 = vpop.f32.mrb[0].mxu0
  %v558 = vadd.f32 %v509, %v557
  %v559 = vpop.f32.mrb[0].mxu0
  %560 = vdwg.mxu0
  %v561 = vadd.f32 %v26, %v547
  %v562 = vadd.f32 %v27, %v550
  %v563 = vadd.f32 %v28, %v555
  %v564 = vadd.f32 %v29, %v558
  %565 = vst [vmem:[#allocation2] sm:$0xff] %v561
  %566 = vst [vmem:[#allocation2 + $0x8] sm:$0xff] %v562
  %567 = vst [vmem:[#allocation2 + $0x10] sm:$0xff] %v563
  %568 = vst [vmem:[#allocation2 + $0x18] sm:$0xff] %v564
  // Predicated region
  $region22: #{hrnet_forward.16} parent=0 // pred_check
    %p569 = pneg %p18
  $region23: #{hrnet_forward.16} parent=0 // pred_check_branch
    %571 = sbr.rel (%p569) target = $region25
  $region24: #{hrnet_forward.16} parent=0 // pred_region
    %v572 = vld [vmem:[#allocation2] sm:$0xff]
    %v573 = vld [vmem:[#allocation2 + $0x8] sm:$0xff]
    %v574 = vld [vmem:[#allocation2 + $0x10] sm:$0xff]
    %v575 = vld [vmem:[#allocation2 + $0x18] sm:$0xff]
    %v576 = vld [vmem:[%s2] sm:$0x1]
    %v578 = vlaneseq
    %v579 = vshrl.u32 %v578, 7
    %v580 = vsub.s32 0, %v579
    %v581 = vrot.slane %v576, %v580
    %v583 = vmul.f32 %v572, %v581
    %v584 = vmul.f32 %v573, %v581
    %v585 = vmul.f32 %v574, %v581
    %v586 = vmul.f32 %v575, %v581
    %v587 = vld [vmem:[%s3] sm:$0x1]
    %v589 = vlaneseq
    %v590 = vshrl.u32 %v589, 7
    %v591 = vsub.s32 0, %v590
    %v592 = vrot.slane %v587, %v591
    %v594 = vadd.f32 %v583, %v592
    %v595 = vadd.f32 %v584, %v592
    %v596 = vadd.f32 %v585, %v592
    %v597 = vadd.f32 %v586, %v592
    %v598 = vmax.f32 %v594, 0.0
    %v599 = vmax.f32 %v595, 0.0
    %v600 = vmax.f32 %v596, 0.0
    %v601 = vmax.f32 %v597, 0.0
    %v602 = vpack.c.bf16 %v599, %v598
    %v603 = vpack.c.bf16 %v601, %v600
    %v606 = vunpack.c.l.b16 %v602
    %v607 = vunpack.c.h.b16 %v602
    %v608 = vunpack.c.l.b16 %v603
    %v609 = vunpack.c.h.b16 %v603
    %v610 = vpack.c.b16 %v606, %v606
    %v611 = vpack.c.b16 %v607, %v607
    %v612 = vpack.c.b16 %v608, %v608
    %v613 = vpack.c.b16 %v609, %v609
    %618 = vst [vmem:[%s4] sm:$0xf] %v610
    %619 = vst [vmem:[%s4 + $0x4] sm:$0xf] %v611
    %620 = vst [vmem:[%s4 + $0x8] sm:$0xf] %v612
    %621 = vst [vmem:[%s4 + $0xc] sm:$0xf] %v613
  $region25: #{hrnet_forward.16} parent=0 // pred_fallthru
    _
  // Predicated region
  $region26: #{hrnet_forward.16} parent=0 // pred_check
    _
  $region27: #{hrnet_forward.16} parent=0 // pred_check_branch
    %623 = sbr.rel (0) target = $region29
  $region28: #{hrnet_forward.16} parent=0 // pred_region
    _
  $region29: #{hrnet_forward.16} parent=0 // pred_fallthru
    _
  // Predicated region
  $region30: #{hrnet_forward.16} parent=0 // pred_check
    _
  $region31: #{hrnet_forward.16} parent=0 // pred_check_branch
    %625 = sbr.rel (0) target = $region33
  $region32: #{hrnet_forward.16} parent=0 // pred_region
    _
  $region33: #{hrnet_forward.16} parent=0 // pred_fallthru
    _

// kernel: hrnet_forward.19
$region0: #{hrnet_forward.19}
  #allocation0 [shape = 'u32[]', space=smem, size = 0x4, offset = 0x4, fixed_abs, tag = 'smem constant byte address 0x4 - core index']
  #allocation1 [shape = 'u32[144,128]{1,0:T(1,128)}', space=vmem, size = 0x12000, scoped, tag = 'internal scratch']
  #allocation2 [shape = 'f32[32,128]{1,0:T(8,128)}', space=vmem, size = 0x4000, scoped, tag = 'scratch operand']
  %s0 = inlined_call_operand.vmem [shape: bf16[32,128], index: 0, kind: input, shape index: {}]
  %s1 = inlined_call_operand.vmem [shape: bf16[128,128], index: 1, kind: input, shape index: {}]
  %s2 = inlined_call_operand.vmem [shape: f32[1,128], index: 2, kind: input, shape index: {}]
  %s3 = inlined_call_operand.vmem [shape: f32[1,128], index: 3, kind: input, shape index: {}]
  %s4 = inlined_call_operand.vmem [shape: bf16[32,128], index: 4, kind: output, shape index: {}]
  %s5 = sld [smem:[#allocation0]]
  $region34: #{hrnet_forward.19} parent=0
    _
  %s7 = ssub.s32 1, %s5
  %s8 = scalar_select 0, %s7, %s5
  // Predicated region
  $region2: #{hrnet_forward.19} parent=0 // pred_check
    _
  $region3: #{hrnet_forward.19} parent=0 // pred_check_branch
    %10 = sbr.rel (0) target = $region5
  $region4: #{hrnet_forward.19} parent=0 // pred_region
    _
  $region5: #{hrnet_forward.19} parent=0 // pred_fallthru
    _
  // Predicated region
  $region6: #{hrnet_forward.19} parent=0 // pred_check
    _
  $region7: #{hrnet_forward.19} parent=0 // pred_check_branch
    %12 = sbr.rel (0) target = $region9
  $region8: #{hrnet_forward.19} parent=0 // pred_region
    _
  $region9: #{hrnet_forward.19} parent=0 // pred_fallthru
    _
  // Predicated region
  $region10: #{hrnet_forward.19} parent=0 // pred_check
    _
  $region11: #{hrnet_forward.19} parent=0 // pred_check_branch
    %14 = sbr.rel (0) target = $region13
  $region12: #{hrnet_forward.19} parent=0 // pred_region
    _
  $region13: #{hrnet_forward.19} parent=0 // pred_fallthru
    _
  // Predicated region
  $region14: #{hrnet_forward.19} parent=0 // pred_check
    _
  $region15: #{hrnet_forward.19} parent=0 // pred_check_branch
    %16 = sbr.rel (0) target = $region17
  $region16: #{hrnet_forward.19} parent=0 // pred_region
    _
  $region17: #{hrnet_forward.19} parent=0 // pred_fallthru
    _
  %p18 = scmp.eq.s32.totalorder 0, 0
  // Predicated region
  $region18: #{hrnet_forward.19} parent=0 // pred_check
    %p19 = pneg %p18
  $region19: #{hrnet_forward.19} parent=0 // pred_check_branch
    %21 = sbr.rel (%p19) target = $region21
  $region20: #{hrnet_forward.19} parent=0 // pred_region
    %22 = vst [vmem:[#allocation2] sm:$0xff] 0.0
    %23 = vst [vmem:[#allocation2 + $0x8] sm:$0xff] 0.0
    %24 = vst [vmem:[#allocation2 + $0x10] sm:$0xff] 0.0
    %25 = vst [vmem:[#allocation2 + $0x18] sm:$0xff] 0.0
  $region21: #{hrnet_forward.19} parent=0 // pred_fallthru
    _
  %v26 = vld [vmem:[#allocation2] sm:$0xff]
  %v27 = vld [vmem:[#allocation2 + $0x8] sm:$0xff]
  %v28 = vld [vmem:[#allocation2 + $0x10] sm:$0xff]
  %v29 = vld [vmem:[#allocation2 + $0x18] sm:$0xff]
  %v30 = vld [vmem:[%s0] sm:$0xf]
  %v31 = vld [vmem:[%s0 + $0x4] sm:$0xf]
  %v32 = vld [vmem:[%s0 + $0x8] sm:$0xf]
  %v33 = vld [vmem:[%s0 + $0xc] sm:$0xf]
  %v34 = vld [vmem:[%s1] sm:$0xf]
  %v35 = vld [vmem:[%s1 + $0x4] sm:$0xf]
  %v36 = vld [vmem:[%s1 + $0x8] sm:$0xf]
  %v37 = vld [vmem:[%s1 + $0xc] sm:$0xf]
  %v38 = vld [vmem:[%s1 + $0x10] sm:$0xf]
  %v39 = vld [vmem:[%s1 + $0x14] sm:$0xf]
  %v40 = vld [vmem:[%s1 + $0x18] sm:$0xf]
  %v41 = vld [vmem:[%s1 + $0x1c] sm:$0xf]
  %v42 = vld [vmem:[%s1 + $0x20] sm:$0xf]
  %v43 = vld [vmem:[%s1 + $0x24] sm:$0xf]
  %v44 = vld [vmem:[%s1 + $0x28] sm:$0xf]
  %v45 = vld [vmem:[%s1 + $0x2c] sm:$0xf]
  %v46 = vld [vmem:[%s1 + $0x30] sm:$0xf]
  %v47 = vld [vmem:[%s1 + $0x34] sm:$0xf]
  %v48 = vld [vmem:[%s1 + $0x38] sm:$0xf]
  %v49 = vld [vmem:[%s1 + $0x3c] sm:$0xf]
  %v54 = vunpack.c.l.b16 %v30
  %v55 = vunpack.c.l.b16 %v31
  %v56 = vunpack.c.l.b16 %v32
  %v57 = vunpack.c.l.b16 %v33
  %v58 = vpack.c.b16 %v55, %v54
  %v59 = vpack.c.b16 %v57, %v56
  %v78 = vunpack.c.l.b16 %v34
  %v79 = vunpack.c.l.b16 %v35
  %v80 = vunpack.c.l.b16 %v36
  %v81 = vunpack.c.l.b16 %v37
  %v82 = vunpack.c.l.b16 %v38
  %v83 = vunpack.c.l.b16 %v39
  %v84 = vunpack.c.l.b16 %v40
  %v85 = vunpack.c.l.b16 %v41
  %v86 = vunpack.c.l.b16 %v42
  %v87 = vunpack.c.l.b16 %v43
  %v88 = vunpack.c.l.b16 %v44
  %v89 = vunpack.c.l.b16 %v45
  %v90 = vunpack.c.l.b16 %v46
  %v91 = vunpack.c.l.b16 %v47
  %v92 = vunpack.c.l.b16 %v48
  %v93 = vunpack.c.l.b16 %v49
  %v94 = vpack.c.b16 %v79, %v78
  %v95 = vpack.c.b16 %v81, %v80
  %v96 = vpack.c.b16 %v83, %v82
  %v97 = vpack.c.b16 %v85, %v84
  %v98 = vpack.c.b16 %v87, %v86
  %v99 = vpack.c.b16 %v89, %v88
  %v100 = vpack.c.b16 %v91, %v90
  %v101 = vpack.c.b16 %v93, %v92
  %110 = vmatprep.subr.bf16.mxu0 0
  %111 = vmatpush1.bf16.msra.mxu0 %v94
  %112 = vmatprep.subr.bf16.mxu0 0
  %113 = vmatpush1.bf16.msra.mxu0 %v95
  %114 = vmatprep.subr.bf16.mxu0 0
  %115 = vmatpush1.bf16.msra.mxu0 %v96
  %116 = vmatprep.subr.bf16.mxu0 0
  %117 = vmatpush1.bf16.msra.mxu0 %v97
  %118 = vmatprep.subr.bf16.mxu0 0
  %119 = vmatpush1.bf16.msra.mxu0 %v98
  %120 = vmatprep.subr.bf16.mxu0 0
  %121 = vmatpush1.bf16.msra.mxu0 %v99
  %122 = vmatprep.subr.bf16.mxu0 0
  %123 = vmatpush1.bf16.msra.mxu0 %v100
  %124 = vmatprep.subr.bf16.mxu0 0
  %125 = vmatpush1.bf16.msra.mxu0 %v101
  %126 = vmatprep.subr.bf16.mxu0 0
  %127 = vmatpush1.bf16.msra.mxu0 0
  %128 = vmatprep.subr.bf16.mxu0 0
  %129 = vmatpush1.bf16.msra.mxu0 0
  %130 = vmatprep.subr.bf16.mxu0 0
  %131 = vmatpush1.bf16.msra.mxu0 0
  %132 = vmatprep.subr.bf16.mxu0 0
  %133 = vmatpush1.bf16.msra.mxu0 0
  %134 = vmatprep.subr.bf16.mxu0 0
  %135 = vmatpush1.bf16.msra.mxu0 0
  %136 = vmatprep.subr.bf16.mxu0 0
  %137 = vmatpush1.bf16.msra.mxu0 0
  %138 = vmatprep.subr.bf16.mxu0 0
  %139 = vmatpush1.bf16.msra.mxu0 0
  %140 = vmatprep.subr.bf16.mxu0 0
  %141 = vmatpush1.bf16.msra.mxu0 0
  %142 = vmatprep.mubr.bf16.mxu0 0
  %143 = vmatmul.mubr.bf16.gmra.mrb[0].mxu0 %v58
  %v144 = vpop.f32.mrb[0].mxu0
  %v145 = vadd.f32 0.0, %v144
  %v146 = vpop.f32.mrb[0].mxu0
  %v147 = vpop.f32.mrb[0].mxu0
  %v148 = vadd.f32 0.0, %v147
  %v149 = vpop.f32.mrb[0].mxu0
  %150 = vmatprep.mubr.bf16.mxu0 0
  %151 = vmatmul.mubr.bf16.gmra.mrb[0].mxu0 %v59
  %v152 = vpop.f32.mrb[0].mxu0
  %v153 = vadd.f32 0.0, %v152
  %v154 = vpop.f32.mrb[0].mxu0
  %v155 = vpop.f32.mrb[0].mxu0
  %v156 = vadd.f32 0.0, %v155
  %v157 = vpop.f32.mrb[0].mxu0
  %158 = vdwg.mxu0
  %v159 = vadd.f32 %v26, %v145
  %v160 = vadd.f32 %v27, %v148
  %v161 = vadd.f32 %v28, %v153
  %v162 = vadd.f32 %v29, %v156
  %163 = vst [vmem:[#allocation2] sm:$0xff] %v159
  %164 = vst [vmem:[#allocation2 + $0x8] sm:$0xff] %v160
  %165 = vst [vmem:[#allocation2 + $0x10] sm:$0xff] %v161
  %166 = vst [vmem:[#allocation2 + $0x18] sm:$0xff] %v162
  // Predicated region
  $region22: #{hrnet_forward.19} parent=0 // pred_check
    %p167 = pneg %p18
  $region23: #{hrnet_forward.19} parent=0 // pred_check_branch
    %169 = sbr.rel (%p167) target = $region25
  $region24: #{hrnet_forward.19} parent=0 // pred_region
    %v170 = vld [vmem:[#allocation2] sm:$0xff]
    %v171 = vld [vmem:[#allocation2 + $0x8] sm:$0xff]
    %v172 = vld [vmem:[#allocation2 + $0x10] sm:$0xff]
    %v173 = vld [vmem:[#allocation2 + $0x18] sm:$0xff]
    %v174 = vld [vmem:[%s2] sm:$0x1]
    %v176 = vlaneseq
    %v177 = vshrl.u32 %v176, 7
    %v178 = vsub.s32 0, %v177
    %v179 = vrot.slane %v174, %v178
    %v181 = vmul.f32 %v170, %v179
    %v182 = vmul.f32 %v171, %v179
    %v183 = vmul.f32 %v172, %v179
    %v184 = vmul.f32 %v173, %v179
    %v185 = vld [vmem:[%s3] sm:$0x1]
    %v187 = vlaneseq
    %v188 = vshrl.u32 %v187, 7
    %v189 = vsub.s32 0, %v188
    %v190 = vrot.slane %v185, %v189
    %v192 = vadd.f32 %v181, %v190
    %v193 = vadd.f32 %v182, %v190
    %v194 = vadd.f32 %v183, %v190
    %v195 = vadd.f32 %v184, %v190
    %v196 = vpack.c.bf16 %v193, %v192
    %v197 = vpack.c.bf16 %v195, %v194
    %v200 = vunpack.c.l.b16 %v196
    %v201 = vunpack.c.h.b16 %v196
    %v202 = vunpack.c.l.b16 %v197
    %v203 = vunpack.c.h.b16 %v197
    %v204 = vpack.c.b16 %v200, %v200
    %v205 = vpack.c.b16 %v201, %v201
    %v206 = vpack.c.b16 %v202, %v202
    %v207 = vpack.c.b16 %v203, %v203
    %212 = vst [vmem:[%s4] sm:$0xf] %v204
    %213 = vst [vmem:[%s4 + $0x4] sm:$0xf] %v205
    %214 = vst [vmem:[%s4 + $0x8] sm:$0xf] %v206
    %215 = vst [vmem:[%s4 + $0xc] sm:$0xf] %v207
  $region25: #{hrnet_forward.19} parent=0 // pred_fallthru
    _
  // Predicated region
  $region26: #{hrnet_forward.19} parent=0 // pred_check
    _
  $region27: #{hrnet_forward.19} parent=0 // pred_check_branch
    %217 = sbr.rel (0) target = $region29
  $region28: #{hrnet_forward.19} parent=0 // pred_region
    _
  $region29: #{hrnet_forward.19} parent=0 // pred_fallthru
    _
  // Predicated region
  $region30: #{hrnet_forward.19} parent=0 // pred_check
    _
  $region31: #{hrnet_forward.19} parent=0 // pred_check_branch
    %219 = sbr.rel (0) target = $region33
  $region32: #{hrnet_forward.19} parent=0 // pred_region
    _
  $region33: #{hrnet_forward.19} parent=0 // pred_fallthru
    _

// kernel: hrnet_forward.21
$region0: #{hrnet_forward.21}
  #allocation0 [shape = 'u32[]', space=smem, size = 0x4, offset = 0x4, fixed_abs, tag = 'smem constant byte address 0x4 - core index']
  #allocation1 [shape = 'u32[144,128]{1,0:T(1,128)}', space=vmem, size = 0x12000, scoped, tag = 'internal scratch']
  #allocation2 [shape = 'f32[32,128]{1,0:T(8,128)}', space=vmem, size = 0x4000, scoped, tag = 'scratch operand']
  %s0 = inlined_call_operand.vmem [shape: bf16[32,640], index: 0, kind: input, shape index: {}]
  %s1 = inlined_call_operand.vmem [shape: bf16[640,128], index: 1, kind: input, shape index: {}]
  %s2 = inlined_call_operand.vmem [shape: f32[1,128], index: 2, kind: input, shape index: {}]
  %s3 = inlined_call_operand.vmem [shape: f32[1,128], index: 3, kind: input, shape index: {}]
  %s4 = inlined_call_operand.vmem [shape: bf16[32,128], index: 4, kind: input, shape index: {}]
  %s5 = inlined_call_operand.vmem [shape: bf16[32,128], index: 5, kind: output, shape index: {}]
  %s6 = sld [smem:[#allocation0]]
  $region38: #{hrnet_forward.21} parent=0
    _
  %s8 = ssub.s32 1, %s6
  %s9 = scalar_select 0, %s8, %s6
  // Predicated region
  $region2: #{hrnet_forward.21} parent=0 // pred_check
    _
  $region3: #{hrnet_forward.21} parent=0 // pred_check_branch
    %11 = sbr.rel (0) target = $region5
  $region4: #{hrnet_forward.21} parent=0 // pred_region
    _
  $region5: #{hrnet_forward.21} parent=0 // pred_fallthru
    _
  // Predicated region
  $region6: #{hrnet_forward.21} parent=0 // pred_check
    _
  $region7: #{hrnet_forward.21} parent=0 // pred_check_branch
    %13 = sbr.rel (0) target = $region9
  $region8: #{hrnet_forward.21} parent=0 // pred_region
    _
  $region9: #{hrnet_forward.21} parent=0 // pred_fallthru
    _
  // Predicated region
  $region10: #{hrnet_forward.21} parent=0 // pred_check
    _
  $region11: #{hrnet_forward.21} parent=0 // pred_check_branch
    %15 = sbr.rel (0) target = $region13
  $region12: #{hrnet_forward.21} parent=0 // pred_region
    _
  $region13: #{hrnet_forward.21} parent=0 // pred_fallthru
    _
  // Predicated region
  $region14: #{hrnet_forward.21} parent=0 // pred_check
    _
  $region15: #{hrnet_forward.21} parent=0 // pred_check_branch
    %17 = sbr.rel (0) target = $region17
  $region16: #{hrnet_forward.21} parent=0 // pred_region
    _
  $region17: #{hrnet_forward.21} parent=0 // pred_fallthru
    _
  // Predicated region
  $region18: #{hrnet_forward.21} parent=0 // pred_check
    _
  $region19: #{hrnet_forward.21} parent=0 // pred_check_branch
    %19 = sbr.rel (0) target = $region21
  $region20: #{hrnet_forward.21} parent=0 // pred_region
    _
  $region21: #{hrnet_forward.21} parent=0 // pred_fallthru
    _
  %p21 = scmp.eq.s32.totalorder 0, 0
  // Predicated region
  $region22: #{hrnet_forward.21} parent=0 // pred_check
    %p22 = pneg %p21
  $region23: #{hrnet_forward.21} parent=0 // pred_check_branch
    %24 = sbr.rel (%p22) target = $region25
  $region24: #{hrnet_forward.21} parent=0 // pred_region
    %25 = vst [vmem:[#allocation2] sm:$0xff] 0.0
    %26 = vst [vmem:[#allocation2 + $0x8] sm:$0xff] 0.0
    %27 = vst [vmem:[#allocation2 + $0x10] sm:$0xff] 0.0
    %28 = vst [vmem:[#allocation2 + $0x18] sm:$0xff] 0.0
  $region25: #{hrnet_forward.21} parent=0 // pred_fallthru
    _
  %v29 = vld [vmem:[#allocation2] sm:$0xff]
  %v30 = vld [vmem:[#allocation2 + $0x8] sm:$0xff]
  %v31 = vld [vmem:[#allocation2 + $0x10] sm:$0xff]
  %v32 = vld [vmem:[#allocation2 + $0x18] sm:$0xff]
  %v33 = vld [vmem:[%s0] sm:$0xff]
  %v34 = vld [vmem:[%s0 + $0x8] sm:$0xff]
  %v35 = vld [vmem:[%s0 + $0x10] sm:$0xf]
  %v36 = vld [vmem:[%s0 + $0x14] sm:$0xff]
  %v37 = vld [vmem:[%s0 + $0x1c] sm:$0xff]
  %v38 = vld [vmem:[%s0 + $0x24] sm:$0xf]
  %v39 = vld [vmem:[%s0 + $0x28] sm:$0xff]
  %v40 = vld [vmem:[%s0 + $0x30] sm:$0xff]
  %v41 = vld [vmem:[%s0 + $0x38] sm:$0xf]
  %v42 = vld [vmem:[%s0 + $0x3c] sm:$0xff]
  %v43 = vld [vmem:[%s0 + $0x44] sm:$0xff]
  %v44 = vld [vmem:[%s0 + $0x4c] sm:$0xf]
  %v45 = vld [vmem:[%s1] sm:$0xf]
  %v46 = vld [vmem:[%s1 + $0x4] sm:$0xf]
  %v47 = vld [vmem:[%s1 + $0x8] sm:$0xf]
  %v48 = vld [vmem:[%s1 + $0xc] sm:$0xf]
  %v49 = vld [vmem:[%s1 + $0x10] sm:$0xf]
  %v50 = vld [vmem:[%s1 + $0x14] sm:$0xf]
  %v51 = vld [vmem:[%s1 + $0x18] sm:$0xf]
  %v52 = vld [vmem:[%s1 + $0x1c] sm:$0xf]
  %v53 = vld [vmem:[%s1 + $0x20] sm:$0xf]
  %v54 = vld [vmem:[%s1 + $0x24] sm:$0xf]
  %v55 = vld [vmem:[%s1 + $0x28] sm:$0xf]
  %v56 = vld [vmem:[%s1 + $0x2c] sm:$0xf]
  %v57 = vld [vmem:[%s1 + $0x30] sm:$0xf]
  %v58 = vld [vmem:[%s1 + $0x34] sm:$0xf]
  %v59 = vld [vmem:[%s1 + $0x38] sm:$0xf]
  %v60 = vld [vmem:[%s1 + $0x3c] sm:$0xf]
  %v61 = vld [vmem:[%s1 + $0x40] sm:$0xf]
  %v62 = vld [vmem:[%s1 + $0x44] sm:$0xf]
  %v63 = vld [vmem:[%s1 + $0x48] sm:$0xf]
  %v64 = vld [vmem:[%s1 + $0x4c] sm:$0xf]
  %v65 = vld [vmem:[%s1 + $0x50] sm:$0xf]
  %v66 = vld [vmem:[%s1 + $0x54] sm:$0xf]
  %v67 = vld [vmem:[%s1 + $0x58] sm:$0xf]
  %v68 = vld [vmem:[%s1 + $0x5c] sm:$0xf]
  %v69 = vld [vmem:[%s1 + $0x60] sm:$0xf]
  %v70 = vld [vmem:[%s1 + $0x64] sm:$0xf]
  %v71 = vld [vmem:[%s1 + $0x68] sm:$0xf]
  %v72 = vld [vmem:[%s1 + $0x6c] sm:$0xf]
  %v73 = vld [vmem:[%s1 + $0x70] sm:$0xf]
  %v74 = vld [vmem:[%s1 + $0x74] sm:$0xf]
  %v75 = vld [vmem:[%s1 + $0x78] sm:$0xf]
  %v76 = vld [vmem:[%s1 + $0x7c] sm:$0xf]
  %v77 = vld [vmem:[%s1 + $0x80] sm:$0xf]
  %v78 = vld [vmem:[%s1 + $0x84] sm:$0xf]
  %v79 = vld [vmem:[%s1 + $0x88] sm:$0xf]
  %v80 = vld [vmem:[%s1 + $0x8c] sm:$0xf]
  %v81 = vld [vmem:[%s1 + $0x90] sm:$0xf]
  %v82 = vld [vmem:[%s1 + $0x94] sm:$0xf]
  %v83 = vld [vmem:[%s1 + $0x98] sm:$0xf]
  %v84 = vld [vmem:[%s1 + $0x9c] sm:$0xf]
  %v85 = vld [vmem:[%s1 + $0xa0] sm:$0xf]
  %v86 = vld [vmem:[%s1 + $0xa4] sm:$0xf]
  %v87 = vld [vmem:[%s1 + $0xa8] sm:$0xf]
  %v88 = vld [vmem:[%s1 + $0xac] sm:$0xf]
  %v89 = vld [vmem:[%s1 + $0xb0] sm:$0xf]
  %v90 = vld [vmem:[%s1 + $0xb4] sm:$0xf]
  %v91 = vld [vmem:[%s1 + $0xb8] sm:$0xf]
  %v92 = vld [vmem:[%s1 + $0xbc] sm:$0xf]
  %v93 = vld [vmem:[%s1 + $0xc0] sm:$0xf]
  %v94 = vld [vmem:[%s1 + $0xc4] sm:$0xf]
  %v95 = vld [vmem:[%s1 + $0xc8] sm:$0xf]
  %v96 = vld [vmem:[%s1 + $0xcc] sm:$0xf]
  %v97 = vld [vmem:[%s1 + $0xd0] sm:$0xf]
  %v98 = vld [vmem:[%s1 + $0xd4] sm:$0xf]
  %v99 = vld [vmem:[%s1 + $0xd8] sm:$0xf]
  %v100 = vld [vmem:[%s1 + $0xdc] sm:$0xf]
  %v101 = vld [vmem:[%s1 + $0xe0] sm:$0xf]
  %v102 = vld [vmem:[%s1 + $0xe4] sm:$0xf]
  %v103 = vld [vmem:[%s1 + $0xe8] sm:$0xf]
  %v104 = vld [vmem:[%s1 + $0xec] sm:$0xf]
  %v105 = vld [vmem:[%s1 + $0xf0] sm:$0xf]
  %v106 = vld [vmem:[%s1 + $0xf4] sm:$0xf]
  %v107 = vld [vmem:[%s1 + $0xf8] sm:$0xf]
  %v108 = vld [vmem:[%s1 + $0xfc] sm:$0xf]
  %v109 = vld [vmem:[%s1 + $0x100] sm:$0xf]
  %v110 = vld [vmem:[%s1 + $0x104] sm:$0xf]
  %v111 = vld [vmem:[%s1 + $0x108] sm:$0xf]
  %v112 = vld [vmem:[%s1 + $0x10c] sm:$0xf]
  %v113 = vld [vmem:[%s1 + $0x110] sm:$0xf]
  %v114 = vld [vmem:[%s1 + $0x114] sm:$0xf]
  %v115 = vld [vmem:[%s1 + $0x118] sm:$0xf]
  %v116 = vld [vmem:[%s1 + $0x11c] sm:$0xf]
  %v117 = vld [vmem:[%s1 + $0x120] sm:$0xf]
  %v118 = vld [vmem:[%s1 + $0x124] sm:$0xf]
  %v119 = vld [vmem:[%s1 + $0x128] sm:$0xf]
  %v120 = vld [vmem:[%s1 + $0x12c] sm:$0xf]
  %v121 = vld [vmem:[%s1 + $0x130] sm:$0xf]
  %v122 = vld [vmem:[%s1 + $0x134] sm:$0xf]
  %v123 = vld [vmem:[%s1 + $0x138] sm:$0xf]
  %v124 = vld [vmem:[%s1 + $0x13c] sm:$0xf]
  %v137 = vunpack.c.l.b16 %v33
  %v138 = vunpack.c.h.b16 %v33
  %v139 = vunpack.c.l.b16 %v34
  %v140 = vunpack.c.h.b16 %v34
  %v141 = vunpack.c.l.b16 %v35
  %v142 = vunpack.c.l.b16 %v36
  %v143 = vunpack.c.h.b16 %v36
  %v144 = vunpack.c.l.b16 %v37
  %v145 = vunpack.c.h.b16 %v37
  %v146 = vunpack.c.l.b16 %v38
  %v147 = vunpack.c.l.b16 %v39
  %v148 = vunpack.c.h.b16 %v39
  %v149 = vunpack.c.l.b16 %v40
  %v150 = vunpack.c.h.b16 %v40
  %v151 = vunpack.c.l.b16 %v41
  %v152 = vunpack.c.l.b16 %v42
  %v153 = vunpack.c.h.b16 %v42
  %v154 = vunpack.c.l.b16 %v43
  %v155 = vunpack.c.h.b16 %v43
  %v156 = vunpack.c.l.b16 %v44
  %v157 = vpack.c.b16 %v142, %v137
  %v158 = vpack.c.b16 %v143, %v138
  %v159 = vpack.c.b16 %v144, %v139
  %v160 = vpack.c.b16 %v145, %v140
  %v161 = vpack.c.b16 %v146, %v141
  %v162 = vpack.c.b16 %v152, %v147
  %v163 = vpack.c.b16 %v153, %v148
  %v164 = vpack.c.b16 %v154, %v149
  %v165 = vpack.c.b16 %v155, %v150
  %v166 = vpack.c.b16 %v156, %v151
  %v257 = vunpack.c.l.b16 %v45
  %v258 = vunpack.c.l.b16 %v46
  %v259 = vunpack.c.l.b16 %v47
  %v260 = vunpack.c.l.b16 %v48
  %v261 = vunpack.c.l.b16 %v49
  %v262 = vunpack.c.l.b16 %v50
  %v263 = vunpack.c.l.b16 %v51
  %v264 = vunpack.c.l.b16 %v52
  %v265 = vunpack.c.l.b16 %v53
  %v266 = vunpack.c.l.b16 %v54
  %v267 = vunpack.c.l.b16 %v55
  %v268 = vunpack.c.l.b16 %v56
  %v269 = vunpack.c.l.b16 %v57
  %v270 = vunpack.c.l.b16 %v58
  %v271 = vunpack.c.l.b16 %v59
  %v272 = vunpack.c.l.b16 %v60
  %v273 = vunpack.c.l.b16 %v61
  %v274 = vunpack.c.l.b16 %v62
  %v275 = vunpack.c.l.b16 %v63
  %v276 = vunpack.c.l.b16 %v64
  %v277 = vunpack.c.l.b16 %v65
  %v278 = vunpack.c.l.b16 %v66
  %v279 = vunpack.c.l.b16 %v67
  %v280 = vunpack.c.l.b16 %v68
  %v281 = vunpack.c.l.b16 %v69
  %v282 = vunpack.c.l.b16 %v70
  %v283 = vunpack.c.l.b16 %v71
  %v284 = vunpack.c.l.b16 %v72
  %v285 = vunpack.c.l.b16 %v73
  %v286 = vunpack.c.l.b16 %v74
  %v287 = vunpack.c.l.b16 %v75
  %v288 = vunpack.c.l.b16 %v76
  %v289 = vunpack.c.l.b16 %v77
  %v290 = vunpack.c.l.b16 %v78
  %v291 = vunpack.c.l.b16 %v79
  %v292 = vunpack.c.l.b16 %v80
  %v293 = vunpack.c.l.b16 %v81
  %v294 = vunpack.c.l.b16 %v82
  %v295 = vunpack.c.l.b16 %v83
  %v296 = vunpack.c.l.b16 %v84
  %v297 = vunpack.c.l.b16 %v85
  %v298 = vunpack.c.l.b16 %v86
  %v299 = vunpack.c.l.b16 %v87
  %v300 = vunpack.c.l.b16 %v88
  %v301 = vunpack.c.l.b16 %v89
  %v302 = vunpack.c.l.b16 %v90
  %v303 = vunpack.c.l.b16 %v91
  %v304 = vunpack.c.l.b16 %v92
  %v305 = vunpack.c.l.b16 %v93
  %v306 = vunpack.c.l.b16 %v94
  %v307 = vunpack.c.l.b16 %v95
  %v308 = vunpack.c.l.b16 %v96
  %v309 = vunpack.c.l.b16 %v97
  %v310 = vunpack.c.l.b16 %v98
  %v311 = vunpack.c.l.b16 %v99
  %v312 = vunpack.c.l.b16 %v100
  %v313 = vunpack.c.l.b16 %v101
  %v314 = vunpack.c.l.b16 %v102
  %v315 = vunpack.c.l.b16 %v103
  %v316 = vunpack.c.l.b16 %v104
  %v317 = vunpack.c.l.b16 %v105
  %v318 = vunpack.c.l.b16 %v106
  %v319 = vunpack.c.l.b16 %v107
  %v320 = vunpack.c.l.b16 %v108
  %v321 = vunpack.c.l.b16 %v109
  %v322 = vunpack.c.l.b16 %v110
  %v323 = vunpack.c.l.b16 %v111
  %v324 = vunpack.c.l.b16 %v112
  %v325 = vunpack.c.l.b16 %v113
  %v326 = vunpack.c.l.b16 %v114
  %v327 = vunpack.c.l.b16 %v115
  %v328 = vunpack.c.l.b16 %v116
  %v329 = vunpack.c.l.b16 %v117
  %v330 = vunpack.c.l.b16 %v118
  %v331 = vunpack.c.l.b16 %v119
  %v332 = vunpack.c.l.b16 %v120
  %v333 = vunpack.c.l.b16 %v121
  %v334 = vunpack.c.l.b16 %v122
  %v335 = vunpack.c.l.b16 %v123
  %v336 = vunpack.c.l.b16 %v124
  %v337 = vpack.c.b16 %v258, %v257
  %v338 = vpack.c.b16 %v260, %v259
  %v339 = vpack.c.b16 %v262, %v261
  %v340 = vpack.c.b16 %v264, %v263
  %v341 = vpack.c.b16 %v266, %v265
  %v342 = vpack.c.b16 %v268, %v267
  %v343 = vpack.c.b16 %v270, %v269
  %v344 = vpack.c.b16 %v272, %v271
  %v345 = vpack.c.b16 %v274, %v273
  %v346 = vpack.c.b16 %v276, %v275
  %v347 = vpack.c.b16 %v278, %v277
  %v348 = vpack.c.b16 %v280, %v279
  %v349 = vpack.c.b16 %v282, %v281
  %v350 = vpack.c.b16 %v284, %v283
  %v351 = vpack.c.b16 %v286, %v285
  %v352 = vpack.c.b16 %v288, %v287
  %v353 = vpack.c.b16 %v290, %v289
  %v354 = vpack.c.b16 %v292, %v291
  %v355 = vpack.c.b16 %v294, %v293
  %v356 = vpack.c.b16 %v296, %v295
  %v357 = vpack.c.b16 %v298, %v297
  %v358 = vpack.c.b16 %v300, %v299
  %v359 = vpack.c.b16 %v302, %v301
  %v360 = vpack.c.b16 %v304, %v303
  %v361 = vpack.c.b16 %v306, %v305
  %v362 = vpack.c.b16 %v308, %v307
  %v363 = vpack.c.b16 %v310, %v309
  %v364 = vpack.c.b16 %v312, %v311
  %v365 = vpack.c.b16 %v314, %v313
  %v366 = vpack.c.b16 %v316, %v315
  %v367 = vpack.c.b16 %v318, %v317
  %v368 = vpack.c.b16 %v320, %v319
  %v369 = vpack.c.b16 %v322, %v321
  %v370 = vpack.c.b16 %v324, %v323
  %v371 = vpack.c.b16 %v326, %v325
  %v372 = vpack.c.b16 %v328, %v327
  %v373 = vpack.c.b16 %v330, %v329
  %v374 = vpack.c.b16 %v332, %v331
  %v375 = vpack.c.b16 %v334, %v333
  %v376 = vpack.c.b16 %v336, %v335
  %417 = vmatprep.subr.bf16.mxu0 0
  %418 = vmatpush1.bf16.msra.mxu0 %v337
  %419 = vmatprep.subr.bf16.mxu0 0
  %420 = vmatpush1.bf16.msra.mxu0 %v338
  %421 = vmatprep.subr.bf16.mxu0 0
  %422 = vmatpush1.bf16.msra.mxu0 %v339
  %423 = vmatprep.subr.bf16.mxu0 0
  %424 = vmatpush1.bf16.msra.mxu0 %v340
  %425 = vmatprep.subr.bf16.mxu0 0
  %426 = vmatpush1.bf16.msra.mxu0 %v341
  %427 = vmatprep.subr.bf16.mxu0 0
  %428 = vmatpush1.bf16.msra.mxu0 %v342
  %429 = vmatprep.subr.bf16.mxu0 0
  %430 = vmatpush1.bf16.msra.mxu0 %v343
  %431 = vmatprep.subr.bf16.mxu0 0
  %432 = vmatpush1.bf16.msra.mxu0 %v344
  %433 = vmatprep.subr.bf16.mxu0 0
  %434 = vmatpush1.bf16.msra.mxu0 %v345
  %435 = vmatprep.subr.bf16.mxu0 0
  %436 = vmatpush1.bf16.msra.mxu0 %v346
  %437 = vmatprep.subr.bf16.mxu0 0
  %438 = vmatpush1.bf16.msra.mxu0 %v347
  %439 = vmatprep.subr.bf16.mxu0 0
  %440 = vmatpush1.bf16.msra.mxu0 %v348
  %441 = vmatprep.subr.bf16.mxu0 0
  %442 = vmatpush1.bf16.msra.mxu0 %v349
  %443 = vmatprep.subr.bf16.mxu0 0
  %444 = vmatpush1.bf16.msra.mxu0 %v350
  %445 = vmatprep.subr.bf16.mxu0 0
  %446 = vmatpush1.bf16.msra.mxu0 %v351
  %447 = vmatprep.subr.bf16.mxu0 0
  %448 = vmatpush1.bf16.msra.mxu0 %v352
  %449 = vmatprep.mubr.bf16.mxu0 %v158
  %450 = vmatmul.mubr.bf16.gmra.mrb[0].mxu0 %v157
  %v451 = vpop.f32.mrb[0].mxu0
  %v452 = vadd.f32 0.0, %v451
  %v453 = vpop.f32.mrb[0].mxu0
  %v454 = vpop.f32.mrb[0].mxu0
  %v455 = vadd.f32 0.0, %v454
  %v456 = vpop.f32.mrb[0].mxu0
  %457 = vmatprep.mubr.bf16.mxu0 %v163
  %458 = vmatmul.mubr.bf16.gmra.mrb[0].mxu0 %v162
  %v459 = vpop.f32.mrb[0].mxu0
  %v460 = vadd.f32 0.0, %v459
  %v461 = vpop.f32.mrb[0].mxu0
  %v462 = vpop.f32.mrb[0].mxu0
  %v463 = vadd.f32 0.0, %v462
  %v464 = vpop.f32.mrb[0].mxu0
  %465 = vdwg.mxu0
  %466 = vmatprep.subr.bf16.mxu0 0
  %467 = vmatpush1.bf16.msra.mxu0 %v353
  %468 = vmatprep.subr.bf16.mxu0 0
  %469 = vmatpush1.bf16.msra.mxu0 %v354
  %470 = vmatprep.subr.bf16.mxu0 0
  %471 = vmatpush1.bf16.msra.mxu0 %v355
  %472 = vmatprep.subr.bf16.mxu0 0
  %473 = vmatpush1.bf16.msra.mxu0 %v356
  %474 = vmatprep.subr.bf16.mxu0 0
  %475 = vmatpush1.bf16.msra.mxu0 %v357
  %476 = vmatprep.subr.bf16.mxu0 0
  %477 = vmatpush1.bf16.msra.mxu0 %v358
  %478 = vmatprep.subr.bf16.mxu0 0
  %479 = vmatpush1.bf16.msra.mxu0 %v359
  %480 = vmatprep.subr.bf16.mxu0 0
  %481 = vmatpush1.bf16.msra.mxu0 %v360
  %482 = vmatprep.subr.bf16.mxu0 0
  %483 = vmatpush1.bf16.msra.mxu0 %v361
  %484 = vmatprep.subr.bf16.mxu0 0
  %485 = vmatpush1.bf16.msra.mxu0 %v362
  %486 = vmatprep.subr.bf16.mxu0 0
  %487 = vmatpush1.bf16.msra.mxu0 %v363
  %488 = vmatprep.subr.bf16.mxu0 0
  %489 = vmatpush1.bf16.msra.mxu0 %v364
  %490 = vmatprep.subr.bf16.mxu0 0
  %491 = vmatpush1.bf16.msra.mxu0 %v365
  %492 = vmatprep.subr.bf16.mxu0 0
  %493 = vmatpush1.bf16.msra.mxu0 %v366
  %494 = vmatprep.subr.bf16.mxu0 0
  %495 = vmatpush1.bf16.msra.mxu0 %v367
  %496 = vmatprep.subr.bf16.mxu0 0
  %497 = vmatpush1.bf16.msra.mxu0 %v368
  %498 = vmatprep.mubr.bf16.mxu0 %v160
  %499 = vmatmul.mubr.bf16.gmra.mrb[0].mxu0 %v159
  %v500 = vpop.f32.mrb[0].mxu0
  %v501 = vadd.f32 %v452, %v500
  %v502 = vpop.f32.mrb[0].mxu0
  %v503 = vpop.f32.mrb[0].mxu0
  %v504 = vadd.f32 %v455, %v503
  %v505 = vpop.f32.mrb[0].mxu0
  %506 = vmatprep.mubr.bf16.mxu0 %v165
  %507 = vmatmul.mubr.bf16.gmra.mrb[0].mxu0 %v164
  %v508 = vpop.f32.mrb[0].mxu0
  %v509 = vadd.f32 %v460, %v508
  %v510 = vpop.f32.mrb[0].mxu0
  %v511 = vpop.f32.mrb[0].mxu0
  %v512 = vadd.f32 %v463, %v511
  %v513 = vpop.f32.mrb[0].mxu0
  %514 = vdwg.mxu0
  %515 = vmatprep.subr.bf16.mxu0 0
  %516 = vmatpush1.bf16.msra.mxu0 %v369
  %517 = vmatprep.subr.bf16.mxu0 0
  %518 = vmatpush1.bf16.msra.mxu0 %v370
  %519 = vmatprep.subr.bf16.mxu0 0
  %520 = vmatpush1.bf16.msra.mxu0 %v371
  %521 = vmatprep.subr.bf16.mxu0 0
  %522 = vmatpush1.bf16.msra.mxu0 %v372
  %523 = vmatprep.subr.bf16.mxu0 0
  %524 = vmatpush1.bf16.msra.mxu0 %v373
  %525 = vmatprep.subr.bf16.mxu0 0
  %526 = vmatpush1.bf16.msra.mxu0 %v374
  %527 = vmatprep.subr.bf16.mxu0 0
  %528 = vmatpush1.bf16.msra.mxu0 %v375
  %529 = vmatprep.subr.bf16.mxu0 0
  %530 = vmatpush1.bf16.msra.mxu0 %v376
  %531 = vmatprep.subr.bf16.mxu0 0
  %532 = vmatpush1.bf16.msra.mxu0 0
  %533 = vmatprep.subr.bf16.mxu0 0
  %534 = vmatpush1.bf16.msra.mxu0 0
  %535 = vmatprep.subr.bf16.mxu0 0
  %536 = vmatpush1.bf16.msra.mxu0 0
  %537 = vmatprep.subr.bf16.mxu0 0
  %538 = vmatpush1.bf16.msra.mxu0 0
  %539 = vmatprep.subr.bf16.mxu0 0
  %540 = vmatpush1.bf16.msra.mxu0 0
  %541 = vmatprep.subr.bf16.mxu0 0
  %542 = vmatpush1.bf16.msra.mxu0 0
  %543 = vmatprep.subr.bf16.mxu0 0
  %544 = vmatpush1.bf16.msra.mxu0 0
  %545 = vmatprep.subr.bf16.mxu0 0
  %546 = vmatpush1.bf16.msra.mxu0 0
  %547 = vmatprep.mubr.bf16.mxu0 0
  %548 = vmatmul.mubr.bf16.gmra.mrb[0].mxu0 %v161
  %v549 = vpop.f32.mrb[0].mxu0
  %v550 = vadd.f32 %v501, %v549
  %v551 = vpop.f32.mrb[0].mxu0
  %v552 = vpop.f32.mrb[0].mxu0
  %v553 = vadd.f32 %v504, %v552
  %v554 = vpop.f32.mrb[0].mxu0
  %555 = vmatprep.mubr.bf16.mxu0 0
  %556 = vmatmul.mubr.bf16.gmra.mrb[0].mxu0 %v166
  %v557 = vpop.f32.mrb[0].mxu0
  %v558 = vadd.f32 %v509, %v557
  %v559 = vpop.f32.mrb[0].mxu0
  %v560 = vpop.f32.mrb[0].mxu0
  %v561 = vadd.f32 %v512, %v560
  %v562 = vpop.f32.mrb[0].mxu0
  %563 = vdwg.mxu0
  %v564 = vadd.f32 %v29, %v550
  %v565 = vadd.f32 %v30, %v553
  %v566 = vadd.f32 %v31, %v558
  %v567 = vadd.f32 %v32, %v561
  %568 = vst [vmem:[#allocation2] sm:$0xff] %v564
  %569 = vst [vmem:[#allocation2 + $0x8] sm:$0xff] %v565
  %570 = vst [vmem:[#allocation2 + $0x10] sm:$0xff] %v566
  %571 = vst [vmem:[#allocation2 + $0x18] sm:$0xff] %v567
  // Predicated region
  $region26: #{hrnet_forward.21} parent=0 // pred_check
    %p572 = pneg %p21
  $region27: #{hrnet_forward.21} parent=0 // pred_check_branch
    %574 = sbr.rel (%p572) target = $region29
  $region28: #{hrnet_forward.21} parent=0 // pred_region
    %v575 = vld [vmem:[#allocation2] sm:$0xff]
    %v576 = vld [vmem:[#allocation2 + $0x8] sm:$0xff]
    %v577 = vld [vmem:[#allocation2 + $0x10] sm:$0xff]
    %v578 = vld [vmem:[#allocation2 + $0x18] sm:$0xff]
    %v579 = vld [vmem:[%s2] sm:$0x1]
    %v581 = vlaneseq
    %v582 = vshrl.u32 %v581, 7
    %v583 = vsub.s32 0, %v582
    %v584 = vrot.slane %v579, %v583
    %v586 = vmul.f32 %v575, %v584
    %v587 = vmul.f32 %v576, %v584
    %v588 = vmul.f32 %v577, %v584
    %v589 = vmul.f32 %v578, %v584
    %v590 = vld [vmem:[%s3] sm:$0x1]
    %v592 = vlaneseq
    %v593 = vshrl.u32 %v592, 7
    %v594 = vsub.s32 0, %v593
    %v595 = vrot.slane %v590, %v594
    %v597 = vadd.f32 %v586, %v595
    %v598 = vadd.f32 %v587, %v595
    %v599 = vadd.f32 %v588, %v595
    %v600 = vadd.f32 %v589, %v595
    %v601 = vld [vmem:[%s4] sm:$0xf]
    %v602 = vld [vmem:[%s4 + $0x4] sm:$0xf]
    %v603 = vld [vmem:[%s4 + $0x8] sm:$0xf]
    %v604 = vld [vmem:[%s4 + $0xc] sm:$0xf]
    %v605 = vunpack.c.l.bf16 %v601
    %v606 = vunpack.c.l.bf16 %v602
    %v607 = vunpack.c.l.bf16 %v603
    %v608 = vunpack.c.l.bf16 %v604
    %v609 = vadd.f32 %v597, %v605
    %v610 = vadd.f32 %v598, %v606
    %v611 = vadd.f32 %v599, %v607
    %v612 = vadd.f32 %v600, %v608
    %v613 = vmax.f32 %v609, 0.0
    %v614 = vmax.f32 %v610, 0.0
    %v615 = vmax.f32 %v611, 0.0
    %v616 = vmax.f32 %v612, 0.0
    %v617 = vpack.c.bf16 %v614, %v613
    %v618 = vpack.c.bf16 %v616, %v615
    %v621 = vunpack.c.l.b16 %v617
    %v622 = vunpack.c.h.b16 %v617
    %v623 = vunpack.c.l.b16 %v618
    %v624 = vunpack.c.h.b16 %v618
    %v625 = vpack.c.b16 %v621, %v621
    %v626 = vpack.c.b16 %v622, %v622
    %v627 = vpack.c.b16 %v623, %v623
    %v628 = vpack.c.b16 %v624, %v624
    %633 = vst [vmem:[%s5] sm:$0xf] %v625
    %634 = vst [vmem:[%s5 + $0x4] sm:$0xf] %v626
    %635 = vst [vmem:[%s5 + $0x8] sm:$0xf] %v627
    %636 = vst [vmem:[%s5 + $0xc] sm:$0xf] %v628
  $region29: #{hrnet_forward.21} parent=0 // pred_fallthru
    _
  // Predicated region
  $region30: #{hrnet_forward.21} parent=0 // pred_check
    _
  $region31: #{hrnet_forward.21} parent=0 // pred_check_branch
    %638 = sbr.rel (0) target = $region33
  $region32: #{hrnet_forward.21} parent=0 // pred_region
    _
  $region33: #{hrnet_forward.21} parent=0 // pred_fallthru
    _
  // Predicated region
  $region34: #{hrnet_forward.21} parent=0 // pred_check
    _
  $region35: #{hrnet_forward.21} parent=0 // pred_check_branch
    %640 = sbr.rel (0) target = $region37
  $region36: #{hrnet_forward.21} parent=0 // pred_region
    _
  $region37: #{hrnet_forward.21} parent=0 // pred_fallthru
    _

// kernel: hrnet_forward.17
$region0: #{hrnet_forward.17}
  #allocation0 [shape = 'u32[]', space=smem, size = 0x4, offset = 0x4, fixed_abs, tag = 'smem constant byte address 0x4 - core index']
  #allocation1 [shape = 'u32[144,128]{1,0:T(1,128)}', space=vmem, size = 0x12000, scoped, tag = 'internal scratch']
  #allocation2 [shape = 'f32[32,128]{1,0:T(8,128)}', space=vmem, size = 0x4000, scoped, tag = 'scratch operand']
  %s0 = inlined_call_operand.vmem [shape: bf16[32,1152], index: 0, kind: input, shape index: {}]
  %s1 = inlined_call_operand.vmem [shape: bf16[1152,128], index: 1, kind: input, shape index: {}]
  %s2 = inlined_call_operand.vmem [shape: f32[1,128], index: 2, kind: input, shape index: {}]
  %s3 = inlined_call_operand.vmem [shape: f32[1,128], index: 3, kind: input, shape index: {}]
  %s4 = inlined_call_operand.vmem [shape: bf16[32,128], index: 4, kind: output, shape index: {}]
  %s5 = sld [smem:[#allocation0]]
  $region34: #{hrnet_forward.17} parent=0
    _
  %s7 = ssub.s32 1, %s5
  %s8 = scalar_select 0, %s7, %s5
  // Predicated region
  $region2: #{hrnet_forward.17} parent=0 // pred_check
    _
  $region3: #{hrnet_forward.17} parent=0 // pred_check_branch
    %10 = sbr.rel (0) target = $region5
  $region4: #{hrnet_forward.17} parent=0 // pred_region
    _
  $region5: #{hrnet_forward.17} parent=0 // pred_fallthru
    _
  // Predicated region
  $region6: #{hrnet_forward.17} parent=0 // pred_check
    _
  $region7: #{hrnet_forward.17} parent=0 // pred_check_branch
    %12 = sbr.rel (0) target = $region9
  $region8: #{hrnet_forward.17} parent=0 // pred_region
    _
  $region9: #{hrnet_forward.17} parent=0 // pred_fallthru
    _
  // Predicated region
  $region10: #{hrnet_forward.17} parent=0 // pred_check
    _
  $region11: #{hrnet_forward.17} parent=0 // pred_check_branch
    %14 = sbr.rel (0) target = $region13
  $region12: #{hrnet_forward.17} parent=0 // pred_region
    _
  $region13: #{hrnet_forward.17} parent=0 // pred_fallthru
    _
  // Predicated region
  $region14: #{hrnet_forward.17} parent=0 // pred_check
    _
  $region15: #{hrnet_forward.17} parent=0 // pred_check_branch
    %16 = sbr.rel (0) target = $region17
  $region16: #{hrnet_forward.17} parent=0 // pred_region
    _
  $region17: #{hrnet_forward.17} parent=0 // pred_fallthru
    _
  %p18 = scmp.eq.s32.totalorder 0, 0
  // Predicated region
  $region18: #{hrnet_forward.17} parent=0 // pred_check
    %p19 = pneg %p18
  $region19: #{hrnet_forward.17} parent=0 // pred_check_branch
    %21 = sbr.rel (%p19) target = $region21
  $region20: #{hrnet_forward.17} parent=0 // pred_region
    %22 = vst [vmem:[#allocation2] sm:$0xff] 0.0
    %23 = vst [vmem:[#allocation2 + $0x8] sm:$0xff] 0.0
    %24 = vst [vmem:[#allocation2 + $0x10] sm:$0xff] 0.0
    %25 = vst [vmem:[#allocation2 + $0x18] sm:$0xff] 0.0
  $region21: #{hrnet_forward.17} parent=0 // pred_fallthru
    _
  %v26 = vld [vmem:[#allocation2] sm:$0xff]
  %v27 = vld [vmem:[#allocation2 + $0x8] sm:$0xff]
  %v28 = vld [vmem:[#allocation2 + $0x10] sm:$0xff]
  %v29 = vld [vmem:[#allocation2 + $0x18] sm:$0xff]
  %v30 = vld [vmem:[%s0] sm:$0xff]
  %v31 = vld [vmem:[%s0 + $0x8] sm:$0xff]
  %v32 = vld [vmem:[%s0 + $0x10] sm:$0xff]
  %v33 = vld [vmem:[%s0 + $0x18] sm:$0xff]
  %v34 = vld [vmem:[%s0 + $0x20] sm:$0xf]
  %v35 = vld [vmem:[%s0 + $0x24] sm:$0xff]
  %v36 = vld [vmem:[%s0 + $0x2c] sm:$0xff]
  %v37 = vld [vmem:[%s0 + $0x34] sm:$0xff]
  %v38 = vld [vmem:[%s0 + $0x3c] sm:$0xff]
  %v39 = vld [vmem:[%s0 + $0x44] sm:$0xf]
  %v40 = vld [vmem:[%s0 + $0x48] sm:$0xff]
  %v41 = vld [vmem:[%s0 + $0x50] sm:$0xff]
  %v42 = vld [vmem:[%s0 + $0x58] sm:$0xff]
  %v43 = vld [vmem:[%s0 + $0x60] sm:$0xff]
  %v44 = vld [vmem:[%s0 + $0x68] sm:$0xf]
  %v45 = vld [vmem:[%s0 + $0x6c] sm:$0xff]
  %v46 = vld [vmem:[%s0 + $0x74] sm:$0xff]
  %v47 = vld [vmem:[%s0 + $0x7c] sm:$0xff]
  %v48 = vld [vmem:[%s0 + $0x84] sm:$0xff]
  %v49 = vld [vmem:[%s0 + $0x8c] sm:$0xf]
  %v50 = vld [vmem:[%s1] sm:$0xf]
  %v51 = vld [vmem:[%s1 + $0x4] sm:$0xf]
  %v52 = vld [vmem:[%s1 + $0x8] sm:$0xf]
  %v53 = vld [vmem:[%s1 + $0xc] sm:$0xf]
  %v54 = vld [vmem:[%s1 + $0x10] sm:$0xf]
  %v55 = vld [vmem:[%s1 + $0x14] sm:$0xf]
  %v56 = vld [vmem:[%s1 + $0x18] sm:$0xf]
  %v57 = vld [vmem:[%s1 + $0x1c] sm:$0xf]
  %v58 = vld [vmem:[%s1 + $0x20] sm:$0xf]
  %v59 = vld [vmem:[%s1 + $0x24] sm:$0xf]
  %v60 = vld [vmem:[%s1 + $0x28] sm:$0xf]
  %v61 = vld [vmem:[%s1 + $0x2c] sm:$0xf]
  %v62 = vld [vmem:[%s1 + $0x30] sm:$0xf]
  %v63 = vld [vmem:[%s1 + $0x34] sm:$0xf]
  %v64 = vld [vmem:[%s1 + $0x38] sm:$0xf]
  %v65 = vld [vmem:[%s1 + $0x3c] sm:$0xf]
  %v66 = vld [vmem:[%s1 + $0x40] sm:$0xf]
  %v67 = vld [vmem:[%s1 + $0x44] sm:$0xf]
  %v68 = vld [vmem:[%s1 + $0x48] sm:$0xf]
  %v69 = vld [vmem:[%s1 + $0x4c] sm:$0xf]
  %v70 = vld [vmem:[%s1 + $0x50] sm:$0xf]
  %v71 = vld [vmem:[%s1 + $0x54] sm:$0xf]
  %v72 = vld [vmem:[%s1 + $0x58] sm:$0xf]
  %v73 = vld [vmem:[%s1 + $0x5c] sm:$0xf]
  %v74 = vld [vmem:[%s1 + $0x60] sm:$0xf]
  %v75 = vld [vmem:[%s1 + $0x64] sm:$0xf]
  %v76 = vld [vmem:[%s1 + $0x68] sm:$0xf]
  %v77 = vld [vmem:[%s1 + $0x6c] sm:$0xf]
  %v78 = vld [vmem:[%s1 + $0x70] sm:$0xf]
  %v79 = vld [vmem:[%s1 + $0x74] sm:$0xf]
  %v80 = vld [vmem:[%s1 + $0x78] sm:$0xf]
  %v81 = vld [vmem:[%s1 + $0x7c] sm:$0xf]
  %v82 = vld [vmem:[%s1 + $0x80] sm:$0xf]
  %v83 = vld [vmem:[%s1 + $0x84] sm:$0xf]
  %v84 = vld [vmem:[%s1 + $0x88] sm:$0xf]
  %v85 = vld [vmem:[%s1 + $0x8c] sm:$0xf]
  %v86 = vld [vmem:[%s1 + $0x90] sm:$0xf]
  %v87 = vld [vmem:[%s1 + $0x94] sm:$0xf]
  %v88 = vld [vmem:[%s1 + $0x98] sm:$0xf]
  %v89 = vld [vmem:[%s1 + $0x9c] sm:$0xf]
  %v90 = vld [vmem:[%s1 + $0xa0] sm:$0xf]
  %v91 = vld [vmem:[%s1 + $0xa4] sm:$0xf]
  %v92 = vld [vmem:[%s1 + $0xa8] sm:$0xf]
  %v93 = vld [vmem:[%s1 + $0xac] sm:$0xf]
  %v94 = vld [vmem:[%s1 + $0xb0] sm:$0xf]
  %v95 = vld [vmem:[%s1 + $0xb4] sm:$0xf]
  %v96 = vld [vmem:[%s1 + $0xb8] sm:$0xf]
  %v97 = vld [vmem:[%s1 + $0xbc] sm:$0xf]
  %v98 = vld [vmem:[%s1 + $0xc0] sm:$0xf]
  %v99 = vld [vmem:[%s1 + $0xc4] sm:$0xf]
  %v100 = vld [vmem:[%s1 + $0xc8] sm:$0xf]
  %v101 = vld [vmem:[%s1 + $0xcc] sm:$0xf]
  %v102 = vld [vmem:[%s1 + $0xd0] sm:$0xf]
  %v103 = vld [vmem:[%s1 + $0xd4] sm:$0xf]
  %v104 = vld [vmem:[%s1 + $0xd8] sm:$0xf]
  %v105 = vld [vmem:[%s1 + $0xdc] sm:$0xf]
  %v106 = vld [vmem:[%s1 + $0xe0] sm:$0xf]
  %v107 = vld [vmem:[%s1 + $0xe4] sm:$0xf]
  %v108 = vld [vmem:[%s1 + $0xe8] sm:$0xf]
  %v109 = vld [vmem:[%s1 + $0xec] sm:$0xf]
  %v110 = vld [vmem:[%s1 + $0xf0] sm:$0xf]
  %v111 = vld [vmem:[%s1 + $0xf4] sm:$0xf]
  %v112 = vld [vmem:[%s1 + $0xf8] sm:$0xf]
  %v113 = vld [vmem:[%s1 + $0xfc] sm:$0xf]
  %v114 = vld [vmem:[%s1 + $0x100] sm:$0xf]
  %v115 = vld [vmem:[%s1 + $0x104] sm:$0xf]
  %v116 = vld [vmem:[%s1 + $0x108] sm:$0xf]
  %v117 = vld [vmem:[%s1 + $0x10c] sm:$0xf]
  %v118 = vld [vmem:[%s1 + $0x110] sm:$0xf]
  %v119 = vld [vmem:[%s1 + $0x114] sm:$0xf]
  %v120 = vld [vmem:[%s1 + $0x118] sm:$0xf]
  %v121 = vld [vmem:[%s1 + $0x11c] sm:$0xf]
  %v122 = vld [vmem:[%s1 + $0x120] sm:$0xf]
  %v123 = vld [vmem:[%s1 + $0x124] sm:$0xf]
  %v124 = vld [vmem:[%s1 + $0x128] sm:$0xf]
  %v125 = vld [vmem:[%s1 + $0x12c] sm:$0xf]
  %v126 = vld [vmem:[%s1 + $0x130] sm:$0xf]
  %v127 = vld [vmem:[%s1 + $0x134] sm:$0xf]
  %v128 = vld [vmem:[%s1 + $0x138] sm:$0xf]
  %v129 = vld [vmem:[%s1 + $0x13c] sm:$0xf]
  %v130 = vld [vmem:[%s1 + $0x140] sm:$0xf]
  %v131 = vld [vmem:[%s1 + $0x144] sm:$0xf]
  %v132 = vld [vmem:[%s1 + $0x148] sm:$0xf]
  %v133 = vld [vmem:[%s1 + $0x14c] sm:$0xf]
  %v134 = vld [vmem:[%s1 + $0x150] sm:$0xf]
  %v135 = vld [vmem:[%s1 + $0x154] sm:$0xf]
  %v136 = vld [vmem:[%s1 + $0x158] sm:$0xf]
  %v137 = vld [vmem:[%s1 + $0x15c] sm:$0xf]
  %v138 = vld [vmem:[%s1 + $0x160] sm:$0xf]
  %v139 = vld [vmem:[%s1 + $0x164] sm:$0xf]
  %v140 = vld [vmem:[%s1 + $0x168] sm:$0xf]
  %v141 = vld [vmem:[%s1 + $0x16c] sm:$0xf]
  %v142 = vld [vmem:[%s1 + $0x170] sm:$0xf]
  %v143 = vld [vmem:[%s1 + $0x174] sm:$0xf]
  %v144 = vld [vmem:[%s1 + $0x178] sm:$0xf]
  %v145 = vld [vmem:[%s1 + $0x17c] sm:$0xf]
  %v146 = vld [vmem:[%s1 + $0x180] sm:$0xf]
  %v147 = vld [vmem:[%s1 + $0x184] sm:$0xf]
  %v148 = vld [vmem:[%s1 + $0x188] sm:$0xf]
  %v149 = vld [vmem:[%s1 + $0x18c] sm:$0xf]
  %v150 = vld [vmem:[%s1 + $0x190] sm:$0xf]
  %v151 = vld [vmem:[%s1 + $0x194] sm:$0xf]
  %v152 = vld [vmem:[%s1 + $0x198] sm:$0xf]
  %v153 = vld [vmem:[%s1 + $0x19c] sm:$0xf]
  %v154 = vld [vmem:[%s1 + $0x1a0] sm:$0xf]
  %v155 = vld [vmem:[%s1 + $0x1a4] sm:$0xf]
  %v156 = vld [vmem:[%s1 + $0x1a8] sm:$0xf]
  %v157 = vld [vmem:[%s1 + $0x1ac] sm:$0xf]
  %v158 = vld [vmem:[%s1 + $0x1b0] sm:$0xf]
  %v159 = vld [vmem:[%s1 + $0x1b4] sm:$0xf]
  %v160 = vld [vmem:[%s1 + $0x1b8] sm:$0xf]
  %v161 = vld [vmem:[%s1 + $0x1bc] sm:$0xf]
  %v162 = vld [vmem:[%s1 + $0x1c0] sm:$0xf]
  %v163 = vld [vmem:[%s1 + $0x1c4] sm:$0xf]
  %v164 = vld [vmem:[%s1 + $0x1c8] sm:$0xf]
  %v165 = vld [vmem:[%s1 + $0x1cc] sm:$0xf]
  %v166 = vld [vmem:[%s1 + $0x1d0] sm:$0xf]
  %v167 = vld [vmem:[%s1 + $0x1d4] sm:$0xf]
  %v168 = vld [vmem:[%s1 + $0x1d8] sm:$0xf]
  %v169 = vld [vmem:[%s1 + $0x1dc] sm:$0xf]
  %v170 = vld [vmem:[%s1 + $0x1e0] sm:$0xf]
  %v171 = vld [vmem:[%s1 + $0x1e4] sm:$0xf]
  %v172 = vld [vmem:[%s1 + $0x1e8] sm:$0xf]
  %v173 = vld [vmem:[%s1 + $0x1ec] sm:$0xf]
  %v174 = vld [vmem:[%s1 + $0x1f0] sm:$0xf]
  %v175 = vld [vmem:[%s1 + $0x1f4] sm:$0xf]
  %v176 = vld [vmem:[%s1 + $0x1f8] sm:$0xf]
  %v177 = vld [vmem:[%s1 + $0x1fc] sm:$0xf]
  %v178 = vld [vmem:[%s1 + $0x200] sm:$0xf]
  %v179 = vld [vmem:[%s1 + $0x204] sm:$0xf]
  %v180 = vld [vmem:[%s1 + $0x208] sm:$0xf]
  %v181 = vld [vmem:[%s1 + $0x20c] sm:$0xf]
  %v182 = vld [vmem:[%s1 + $0x210] sm:$0xf]
  %v183 = vld [vmem:[%s1 + $0x214] sm:$0xf]
  %v184 = vld [vmem:[%s1 + $0x218] sm:$0xf]
  %v185 = vld [vmem:[%s1 + $0x21c] sm:$0xf]
  %v186 = vld [vmem:[%s1 + $0x220] sm:$0xf]
  %v187 = vld [vmem:[%s1 + $0x224] sm:$0xf]
  %v188 = vld [vmem:[%s1 + $0x228] sm:$0xf]
  %v189 = vld [vmem:[%s1 + $0x22c] sm:$0xf]
  %v190 = vld [vmem:[%s1 + $0x230] sm:$0xf]
  %v191 = vld [vmem:[%s1 + $0x234] sm:$0xf]
  %v192 = vld [vmem:[%s1 + $0x238] sm:$0xf]
  %v193 = vld [vmem:[%s1 + $0x23c] sm:$0xf]
  %v214 = vunpack.c.l.b16 %v30
  %v215 = vunpack.c.h.b16 %v30
  %v216 = vunpack.c.l.b16 %v31
  %v217 = vunpack.c.h.b16 %v31
  %v218 = vunpack.c.l.b16 %v32
  %v219 = vunpack.c.h.b16 %v32
  %v220 = vunpack.c.l.b16 %v33
  %v221 = vunpack.c.h.b16 %v33
  %v222 = vunpack.c.l.b16 %v34
  %v223 = vunpack.c.l.b16 %v35
  %v224 = vunpack.c.h.b16 %v35
  %v225 = vunpack.c.l.b16 %v36
  %v226 = vunpack.c.h.b16 %v36
  %v227 = vunpack.c.l.b16 %v37
  %v228 = vunpack.c.h.b16 %v37
  %v229 = vunpack.c.l.b16 %v38
  %v230 = vunpack.c.h.b16 %v38
  %v231 = vunpack.c.l.b16 %v39
  %v232 = vunpack.c.l.b16 %v40
  %v233 = vunpack.c.h.b16 %v40
  %v234 = vunpack.c.l.b16 %v41
  %v235 = vunpack.c.h.b16 %v41
  %v236 = vunpack.c.l.b16 %v42
  %v237 = vunpack.c.h.b16 %v42
  %v238 = vunpack.c.l.b16 %v43
  %v239 = vunpack.c.h.b16 %v43
  %v240 = vunpack.c.l.b16 %v44
  %v241 = vunpack.c.l.b16 %v45
  %v242 = vunpack.c.h.b16 %v45
  %v243 = vunpack.c.l.b16 %v46
  %v244 = vunpack.c.h.b16 %v46
  %v245 = vunpack.c.l.b16 %v47
  %v246 = vunpack.c.h.b16 %v47
  %v247 = vunpack.c.l.b16 %v48
  %v248 = vunpack.c.h.b16 %v48
  %v249 = vunpack.c.l.b16 %v49
  %v250 = vpack.c.b16 %v223, %v214
  %v251 = vpack.c.b16 %v224, %v215
  %v252 = vpack.c.b16 %v225, %v216
  %v253 = vpack.c.b16 %v226, %v217
  %v254 = vpack.c.b16 %v227, %v218
  %v255 = vpack.c.b16 %v228, %v219
  %v256 = vpack.c.b16 %v229, %v220
  %v257 = vpack.c.b16 %v230, %v221
  %v258 = vpack.c.b16 %v231, %v222
  %v259 = vpack.c.b16 %v241, %v232
  %v260 = vpack.c.b16 %v242, %v233
  %v261 = vpack.c.b16 %v243, %v234
  %v262 = vpack.c.b16 %v244, %v235
  %v263 = vpack.c.b16 %v245, %v236
  %v264 = vpack.c.b16 %v246, %v237
  %v265 = vpack.c.b16 %v247, %v238
  %v266 = vpack.c.b16 %v248, %v239
  %v267 = vpack.c.b16 %v249, %v240
  %v430 = vunpack.c.l.b16 %v50
  %v431 = vunpack.c.l.b16 %v51
  %v432 = vunpack.c.l.b16 %v52
  %v433 = vunpack.c.l.b16 %v53
  %v434 = vunpack.c.l.b16 %v54
  %v435 = vunpack.c.l.b16 %v55
  %v436 = vunpack.c.l.b16 %v56
  %v437 = vunpack.c.l.b16 %v57
  %v438 = vunpack.c.l.b16 %v58
  %v439 = vunpack.c.l.b16 %v59
  %v440 = vunpack.c.l.b16 %v60
  %v441 = vunpack.c.l.b16 %v61
  %v442 = vunpack.c.l.b16 %v62
  %v443 = vunpack.c.l.b16 %v63
  %v444 = vunpack.c.l.b16 %v64
  %v445 = vunpack.c.l.b16 %v65
  %v446 = vunpack.c.l.b16 %v66
  %v447 = vunpack.c.l.b16 %v67
  %v448 = vunpack.c.l.b16 %v68
  %v449 = vunpack.c.l.b16 %v69
  %v450 = vunpack.c.l.b16 %v70
  %v451 = vunpack.c.l.b16 %v71
  %v452 = vunpack.c.l.b16 %v72
  %v453 = vunpack.c.l.b16 %v73
  %v454 = vunpack.c.l.b16 %v74
  %v455 = vunpack.c.l.b16 %v75
  %v456 = vunpack.c.l.b16 %v76
  %v457 = vunpack.c.l.b16 %v77
  %v458 = vunpack.c.l.b16 %v78
  %v459 = vunpack.c.l.b16 %v79
  %v460 = vunpack.c.l.b16 %v80
  %v461 = vunpack.c.l.b16 %v81
  %v462 = vunpack.c.l.b16 %v82
  %v463 = vunpack.c.l.b16 %v83
  %v464 = vunpack.c.l.b16 %v84
  %v465 = vunpack.c.l.b16 %v85
  %v466 = vunpack.c.l.b16 %v86
  %v467 = vunpack.c.l.b16 %v87
  %v468 = vunpack.c.l.b16 %v88
  %v469 = vunpack.c.l.b16 %v89
  %v470 = vunpack.c.l.b16 %v90
  %v471 = vunpack.c.l.b16 %v91
  %v472 = vunpack.c.l.b16 %v92
  %v473 = vunpack.c.l.b16 %v93
  %v474 = vunpack.c.l.b16 %v94
  %v475 = vunpack.c.l.b16 %v95
  %v476 = vunpack.c.l.b16 %v96
  %v477 = vunpack.c.l.b16 %v97
  %v478 = vunpack.c.l.b16 %v98
  %v479 = vunpack.c.l.b16 %v99
  %v480 = vunpack.c.l.b16 %v100
  %v481 = vunpack.c.l.b16 %v101
  %v482 = vunpack.c.l.b16 %v102
  %v483 = vunpack.c.l.b16 %v103
  %v484 = vunpack.c.l.b16 %v104
  %v485 = vunpack.c.l.b16 %v105
  %v486 = vunpack.c.l.b16 %v106
  %v487 = vunpack.c.l.b16 %v107
  %v488 = vunpack.c.l.b16 %v108
  %v489 = vunpack.c.l.b16 %v109
  %v490 = vunpack.c.l.b16 %v110
  %v491 = vunpack.c.l.b16 %v111
  %v492 = vunpack.c.l.b16 %v112
  %v493 = vunpack.c.l.b16 %v113
  %v494 = vunpack.c.l.b16 %v114
  %v495 = vunpack.c.l.b16 %v115
  %v496 = vunpack.c.l.b16 %v116
  %v497 = vunpack.c.l.b16 %v117
  %v498 = vunpack.c.l.b16 %v118
  %v499 = vunpack.c.l.b16 %v119
  %v500 = vunpack.c.l.b16 %v120
  %v501 = vunpack.c.l.b16 %v121
  %v502 = vunpack.c.l.b16 %v122
  %v503 = vunpack.c.l.b16 %v123
  %v504 = vunpack.c.l.b16 %v124
  %v505 = vunpack.c.l.b16 %v125
  %v506 = vunpack.c.l.b16 %v126
  %v507 = vunpack.c.l.b16 %v127
  %v508 = vunpack.c.l.b16 %v128
  %v509 = vunpack.c.l.b16 %v129
  %v510 = vunpack.c.l.b16 %v130
  %v511 = vunpack.c.l.b16 %v131
  %v512 = vunpack.c.l.b16 %v132
  %v513 = vunpack.c.l.b16 %v133
  %v514 = vunpack.c.l.b16 %v134
  %v515 = vunpack.c.l.b16 %v135
  %v516 = vunpack.c.l.b16 %v136
  %v517 = vunpack.c.l.b16 %v137
  %v518 = vunpack.c.l.b16 %v138
  %v519 = vunpack.c.l.b16 %v139
  %v520 = vunpack.c.l.b16 %v140
  %v521 = vunpack.c.l.b16 %v141
  %v522 = vunpack.c.l.b16 %v142
  %v523 = vunpack.c.l.b16 %v143
  %v524 = vunpack.c.l.b16 %v144
  %v525 = vunpack.c.l.b16 %v145
  %v526 = vunpack.c.l.b16 %v146
  %v527 = vunpack.c.l.b16 %v147
  %v528 = vunpack.c.l.b16 %v148
  %v529 = vunpack.c.l.b16 %v149
  %v530 = vunpack.c.l.b16 %v150
  %v531 = vunpack.c.l.b16 %v151
  %v532 = vunpack.c.l.b16 %v152
  %v533 = vunpack.c.l.b16 %v153
  %v534 = vunpack.c.l.b16 %v154
  %v535 = vunpack.c.l.b16 %v155
  %v536 = vunpack.c.l.b16 %v156
  %v537 = vunpack.c.l.b16 %v157
  %v538 = vunpack.c.l.b16 %v158
  %v539 = vunpack.c.l.b16 %v159
  %v540 = vunpack.c.l.b16 %v160
  %v541 = vunpack.c.l.b16 %v161
  %v542 = vunpack.c.l.b16 %v162
  %v543 = vunpack.c.l.b16 %v163
  %v544 = vunpack.c.l.b16 %v164
  %v545 = vunpack.c.l.b16 %v165
  %v546 = vunpack.c.l.b16 %v166
  %v547 = vunpack.c.l.b16 %v167
  %v548 = vunpack.c.l.b16 %v168
  %v549 = vunpack.c.l.b16 %v169
  %v550 = vunpack.c.l.b16 %v170
  %v551 = vunpack.c.l.b16 %v171
  %v552 = vunpack.c.l.b16 %v172
  %v553 = vunpack.c.l.b16 %v173
  %v554 = vunpack.c.l.b16 %v174
  %v555 = vunpack.c.l.b16 %v175
  %v556 = vunpack.c.l.b16 %v176
  %v557 = vunpack.c.l.b16 %v177
  %v558 = vunpack.c.l.b16 %v178
  %v559 = vunpack.c.l.b16 %v179
  %v560 = vunpack.c.l.b16 %v180
  %v561 = vunpack.c.l.b16 %v181
  %v562 = vunpack.c.l.b16 %v182
  %v563 = vunpack.c.l.b16 %v183
  %v564 = vunpack.c.l.b16 %v184
  %v565 = vunpack.c.l.b16 %v185
  %v566 = vunpack.c.l.b16 %v186
  %v567 = vunpack.c.l.b16 %v187
  %v568 = vunpack.c.l.b16 %v188
  %v569 = vunpack.c.l.b16 %v189
  %v570 = vunpack.c.l.b16 %v190
  %v571 = vunpack.c.l.b16 %v191
  %v572 = vunpack.c.l.b16 %v192
  %v573 = vunpack.c.l.b16 %v193
  %v574 = vpack.c.b16 %v431, %v430
  %v575 = vpack.c.b16 %v433, %v432
  %v576 = vpack.c.b16 %v435, %v434
  %v577 = vpack.c.b16 %v437, %v436
  %v578 = vpack.c.b16 %v439, %v438
  %v579 = vpack.c.b16 %v441, %v440
  %v580 = vpack.c.b16 %v443, %v442
  %v581 = vpack.c.b16 %v445, %v444
  %v582 = vpack.c.b16 %v447, %v446
  %v583 = vpack.c.b16 %v449, %v448
  %v584 = vpack.c.b16 %v451, %v450
  %v585 = vpack.c.b16 %v453, %v452
  %v586 = vpack.c.b16 %v455, %v454
  %v587 = vpack.c.b16 %v457, %v456
  %v588 = vpack.c.b16 %v459, %v458
  %v589 = vpack.c.b16 %v461, %v460
  %v590 = vpack.c.b16 %v463, %v462
  %v591 = vpack.c.b16 %v465, %v464
  %v592 = vpack.c.b16 %v467, %v466
  %v593 = vpack.c.b16 %v469, %v468
  %v594 = vpack.c.b16 %v471, %v470
  %v595 = vpack.c.b16 %v473, %v472
  %v596 = vpack.c.b16 %v475, %v474
  %v597 = vpack.c.b16 %v477, %v476
  %v598 = vpack.c.b16 %v479, %v478
  %v599 = vpack.c.b16 %v481, %v480
  %v600 = vpack.c.b16 %v483, %v482
  %v601 = vpack.c.b16 %v485, %v484
  %v602 = vpack.c.b16 %v487, %v486
  %v603 = vpack.c.b16 %v489, %v488
  %v604 = vpack.c.b16 %v491, %v490
  %v605 = vpack.c.b16 %v493, %v492
  %v606 = vpack.c.b16 %v495, %v494
  %v607 = vpack.c.b16 %v497, %v496
  %v608 = vpack.c.b16 %v499, %v498
  %v609 = vpack.c.b16 %v501, %v500
  %v610 = vpack.c.b16 %v503, %v502
  %v611 = vpack.c.b16 %v505, %v504
  %v612 = vpack.c.b16 %v507, %v506
  %v613 = vpack.c.b16 %v509, %v508
  %v614 = vpack.c.b16 %v511, %v510
  %v615 = vpack.c.b16 %v513, %v512
  %v616 = vpack.c.b16 %v515, %v514
  %v617 = vpack.c.b16 %v517, %v516
  %v618 = vpack.c.b16 %v519, %v518
  %v619 = vpack.c.b16 %v521, %v520
  %v620 = vpack.c.b16 %v523, %v522
  %v621 = vpack.c.b16 %v525, %v524
  %v622 = vpack.c.b16 %v527, %v526
  %v623 = vpack.c.b16 %v529, %v528
  %v624 = vpack.c.b16 %v531, %v530
  %v625 = vpack.c.b16 %v533, %v532
  %v626 = vpack.c.b16 %v535, %v534
  %v627 = vpack.c.b16 %v537, %v536
  %v628 = vpack.c.b16 %v539, %v538
  %v629 = vpack.c.b16 %v541, %v540
  %v630 = vpack.c.b16 %v543, %v542
  %v631 = vpack.c.b16 %v545, %v544
  %v632 = vpack.c.b16 %v547, %v546
  %v633 = vpack.c.b16 %v549, %v548
  %v634 = vpack.c.b16 %v551, %v550
  %v635 = vpack.c.b16 %v553, %v552
  %v636 = vpack.c.b16 %v555, %v554
  %v637 = vpack.c.b16 %v557, %v556
  %v638 = vpack.c.b16 %v559, %v558
  %v639 = vpack.c.b16 %v561, %v560
  %v640 = vpack.c.b16 %v563, %v562
  %v641 = vpack.c.b16 %v565, %v564
  %v642 = vpack.c.b16 %v567, %v566
  %v643 = vpack.c.b16 %v569, %v568
  %v644 = vpack.c.b16 %v571, %v570
  %v645 = vpack.c.b16 %v573, %v572
  %718 = vmatprep.subr.bf16.mxu0 0
  %719 = vmatpush1.bf16.msra.mxu0 %v574
  %720 = vmatprep.subr.bf16.mxu0 0
  %721 = vmatpush1.bf16.msra.mxu0 %v575
  %722 = vmatprep.subr.bf16.mxu0 0
  %723 = vmatpush1.bf16.msra.mxu0 %v576
  %724 = vmatprep.subr.bf16.mxu0 0
  %725 = vmatpush1.bf16.msra.mxu0 %v577
  %726 = vmatprep.subr.bf16.mxu0 0
  %727 = vmatpush1.bf16.msra.mxu0 %v578
  %728 = vmatprep.subr.bf16.mxu0 0
  %729 = vmatpush1.bf16.msra.mxu0 %v579
  %730 = vmatprep.subr.bf16.mxu0 0
  %731 = vmatpush1.bf16.msra.mxu0 %v580
  %732 = vmatprep.subr.bf16.mxu0 0
  %733 = vmatpush1.bf16.msra.mxu0 %v581
  %734 = vmatprep.subr.bf16.mxu0 0
  %735 = vmatpush1.bf16.msra.mxu0 %v582
  %736 = vmatprep.subr.bf16.mxu0 0
  %737 = vmatpush1.bf16.msra.mxu0 %v583
  %738 = vmatprep.subr.bf16.mxu0 0
  %739 = vmatpush1.bf16.msra.mxu0 %v584
  %740 = vmatprep.subr.bf16.mxu0 0
  %741 = vmatpush1.bf16.msra.mxu0 %v585
  %742 = vmatprep.subr.bf16.mxu0 0
  %743 = vmatpush1.bf16.msra.mxu0 %v586
  %744 = vmatprep.subr.bf16.mxu0 0
  %745 = vmatpush1.bf16.msra.mxu0 %v587
  %746 = vmatprep.subr.bf16.mxu0 0
  %747 = vmatpush1.bf16.msra.mxu0 %v588
  %748 = vmatprep.subr.bf16.mxu0 0
  %749 = vmatpush1.bf16.msra.mxu0 %v589
  %750 = vmatprep.mubr.bf16.mxu0 %v251
  %751 = vmatmul.mubr.bf16.gmra.mrb[0].mxu0 %v250
  %v752 = vpop.f32.mrb[0].mxu0
  %v753 = vadd.f32 0.0, %v752
  %v754 = vpop.f32.mrb[0].mxu0
  %v755 = vpop.f32.mrb[0].mxu0
  %v756 = vadd.f32 0.0, %v755
  %v757 = vpop.f32.mrb[0].mxu0
  %758 = vmatprep.mubr.bf16.mxu0 %v260
  %759 = vmatmul.mubr.bf16.gmra.mrb[0].mxu0 %v259
  %v760 = vpop.f32.mrb[0].mxu0
  %v761 = vadd.f32 0.0, %v760
  %v762 = vpop.f32.mrb[0].mxu0
  %v763 = vpop.f32.mrb[0].mxu0
  %v764 = vadd.f32 0.0, %v763
  %v765 = vpop.f32.mrb[0].mxu0
  %766 = vdwg.mxu0
  %767 = vmatprep.subr.bf16.mxu0 0
  %768 = vmatpush1.bf16.msra.mxu0 %v590
  %769 = vmatprep.subr.bf16.mxu0 0
  %770 = vmatpush1.bf16.msra.mxu0 %v591
  %771 = vmatprep.subr.bf16.mxu0 0
  %772 = vmatpush1.bf16.msra.mxu0 %v592
  %773 = vmatprep.subr.bf16.mxu0 0
  %774 = vmatpush1.bf16.msra.mxu0 %v593
  %775 = vmatprep.subr.bf16.mxu0 0
  %776 = vmatpush1.bf16.msra.mxu0 %v594
  %777 = vmatprep.subr.bf16.mxu0 0
  %778 = vmatpush1.bf16.msra.mxu0 %v595
  %779 = vmatprep.subr.bf16.mxu0 0
  %780 = vmatpush1.bf16.msra.mxu0 %v596
  %781 = vmatprep.subr.bf16.mxu0 0
  %782 = vmatpush1.bf16.msra.mxu0 %v597
  %783 = vmatprep.subr.bf16.mxu0 0
  %784 = vmatpush1.bf16.msra.mxu0 %v598
  %785 = vmatprep.subr.bf16.mxu0 0
  %786 = vmatpush1.bf16.msra.mxu0 %v599
  %787 = vmatprep.subr.bf16.mxu0 0
  %788 = vmatpush1.bf16.msra.mxu0 %v600
  %789 = vmatprep.subr.bf16.mxu0 0
  %790 = vmatpush1.bf16.msra.mxu0 %v601
  %791 = vmatprep.subr.bf16.mxu0 0
  %792 = vmatpush1.bf16.msra.mxu0 %v602
  %793 = vmatprep.subr.bf16.mxu0 0
  %794 = vmatpush1.bf16.msra.mxu0 %v603
  %795 = vmatprep.subr.bf16.mxu0 0
  %796 = vmatpush1.bf16.msra.mxu0 %v604
  %797 = vmatprep.subr.bf16.mxu0 0
  %798 = vmatpush1.bf16.msra.mxu0 %v605
  %799 = vmatprep.mubr.bf16.mxu0 %v253
  %800 = vmatmul.mubr.bf16.gmra.mrb[0].mxu0 %v252
  %v801 = vpop.f32.mrb[0].mxu0
  %v802 = vadd.f32 %v753, %v801
  %v803 = vpop.f32.mrb[0].mxu0
  %v804 = vpop.f32.mrb[0].mxu0
  %v805 = vadd.f32 %v756, %v804
  %v806 = vpop.f32.mrb[0].mxu0
  %807 = vmatprep.mubr.bf16.mxu0 %v262
  %808 = vmatmul.mubr.bf16.gmra.mrb[0].mxu0 %v261
  %v809 = vpop.f32.mrb[0].mxu0
  %v810 = vadd.f32 %v761, %v809
  %v811 = vpop.f32.mrb[0].mxu0
  %v812 = vpop.f32.mrb[0].mxu0
  %v813 = vadd.f32 %v764, %v812
  %v814 = vpop.f32.mrb[0].mxu0
  %815 = vdwg.mxu0
  %816 = vmatprep.subr.bf16.mxu0 0
  %817 = vmatpush1.bf16.msra.mxu0 %v606
  %818 = vmatprep.subr.bf16.mxu0 0
  %819 = vmatpush1.bf16.msra.mxu0 %v607
  %820 = vmatprep.subr.bf16.mxu0 0
  %821 = vmatpush1.bf16.msra.mxu0 %v608
  %822 = vmatprep.subr.bf16.mxu0 0
  %823 = vmatpush1.bf16.msra.mxu0 %v609
  %824 = vmatprep.subr.bf16.mxu0 0
  %825 = vmatpush1.bf16.msra.mxu0 %v610
  %826 = vmatprep.subr.bf16.mxu0 0
  %827 = vmatpush1.bf16.msra.mxu0 %v611
  %828 = vmatprep.subr.bf16.mxu0 0
  %829 = vmatpush1.bf16.msra.mxu0 %v612
  %830 = vmatprep.subr.bf16.mxu0 0
  %831 = vmatpush1.bf16.msra.mxu0 %v613
  %832 = vmatprep.subr.bf16.mxu0 0
  %833 = vmatpush1.bf16.msra.mxu0 %v614
  %834 = vmatprep.subr.bf16.mxu0 0
  %835 = vmatpush1.bf16.msra.mxu0 %v615
  %836 = vmatprep.subr.bf16.mxu0 0
  %837 = vmatpush1.bf16.msra.mxu0 %v616
  %838 = vmatprep.subr.bf16.mxu0 0
  %839 = vmatpush1.bf16.msra.mxu0 %v617
  %840 = vmatprep.subr.bf16.mxu0 0
  %841 = vmatpush1.bf16.msra.mxu0 %v618
  %842 = vmatprep.subr.bf16.mxu0 0
  %843 = vmatpush1.bf16.msra.mxu0 %v619
  %844 = vmatprep.subr.bf16.mxu0 0
  %845 = vmatpush1.bf16.msra.mxu0 %v620
  %846 = vmatprep.subr.bf16.mxu0 0
  %847 = vmatpush1.bf16.msra.mxu0 %v621
  %848 = vmatprep.mubr.bf16.mxu0 %v255
  %849 = vmatmul.mubr.bf16.gmra.mrb[0].mxu0 %v254
  %v850 = vpop.f32.mrb[0].mxu0
  %v851 = vadd.f32 %v802, %v850
  %v852 = vpop.f32.mrb[0].mxu0
  %v853 = vpop.f32.mrb[0].mxu0
  %v854 = vadd.f32 %v805, %v853
  %v855 = vpop.f32.mrb[0].mxu0
  %856 = vmatprep.mubr.bf16.mxu0 %v264
  %857 = vmatmul.mubr.bf16.gmra.mrb[0].mxu0 %v263
  %v858 = vpop.f32.mrb[0].mxu0
  %v859 = vadd.f32 %v810, %v858
  %v860 = vpop.f32.mrb[0].mxu0
  %v861 = vpop.f32.mrb[0].mxu0
  %v862 = vadd.f32 %v813, %v861
  %v863 = vpop.f32.mrb[0].mxu0
  %864 = vdwg.mxu0
  %865 = vmatprep.subr.bf16.mxu0 0
  %866 = vmatpush1.bf16.msra.mxu0 %v622
  %867 = vmatprep.subr.bf16.mxu0 0
  %868 = vmatpush1.bf16.msra.mxu0 %v623
  %869 = vmatprep.subr.bf16.mxu0 0
  %870 = vmatpush1.bf16.msra.mxu0 %v624
  %871 = vmatprep.subr.bf16.mxu0 0
  %872 = vmatpush1.bf16.msra.mxu0 %v625
  %873 = vmatprep.subr.bf16.mxu0 0
  %874 = vmatpush1.bf16.msra.mxu0 %v626
  %875 = vmatprep.subr.bf16.mxu0 0
  %876 = vmatpush1.bf16.msra.mxu0 %v627
  %877 = vmatprep.subr.bf16.mxu0 0
  %878 = vmatpush1.bf16.msra.mxu0 %v628
  %879 = vmatprep.subr.bf16.mxu0 0
  %880 = vmatpush1.bf16.msra.mxu0 %v629
  %881 = vmatprep.subr.bf16.mxu0 0
  %882 = vmatpush1.bf16.msra.mxu0 %v630
  %883 = vmatprep.subr.bf16.mxu0 0
  %884 = vmatpush1.bf16.msra.mxu0 %v631
  %885 = vmatprep.subr.bf16.mxu0 0
  %886 = vmatpush1.bf16.msra.mxu0 %v632
  %887 = vmatprep.subr.bf16.mxu0 0
  %888 = vmatpush1.bf16.msra.mxu0 %v633
  %889 = vmatprep.subr.bf16.mxu0 0
  %890 = vmatpush1.bf16.msra.mxu0 %v634
  %891 = vmatprep.subr.bf16.mxu0 0
  %892 = vmatpush1.bf16.msra.mxu0 %v635
  %893 = vmatprep.subr.bf16.mxu0 0
  %894 = vmatpush1.bf16.msra.mxu0 %v636
  %895 = vmatprep.subr.bf16.mxu0 0
  %896 = vmatpush1.bf16.msra.mxu0 %v637
  %897 = vmatprep.mubr.bf16.mxu0 %v257
  %898 = vmatmul.mubr.bf16.gmra.mrb[0].mxu0 %v256
  %v899 = vpop.f32.mrb[0].mxu0
  %v900 = vadd.f32 %v851, %v899
  %v901 = vpop.f32.mrb[0].mxu0
  %v902 = vpop.f32.mrb[0].mxu0
  %v903 = vadd.f32 %v854, %v902
  %v904 = vpop.f32.mrb[0].mxu0
  %905 = vmatprep.mubr.bf16.mxu0 %v266
  %906 = vmatmul.mubr.bf16.gmra.mrb[0].mxu0 %v265
  %v907 = vpop.f32.mrb[0].mxu0
  %v908 = vadd.f32 %v859, %v907
  %v909 = vpop.f32.mrb[0].mxu0
  %v910 = vpop.f32.mrb[0].mxu0
  %v911 = vadd.f32 %v862, %v910
  %v912 = vpop.f32.mrb[0].mxu0
  %913 = vdwg.mxu0
  %914 = vmatprep.subr.bf16.mxu0 0
  %915 = vmatpush1.bf16.msra.mxu0 %v638
  %916 = vmatprep.subr.bf16.mxu0 0
  %917 = vmatpush1.bf16.msra.mxu0 %v639
  %918 = vmatprep.subr.bf16.mxu0 0
  %919 = vmatpush1.bf16.msra.mxu0 %v640
  %920 = vmatprep.subr.bf16.mxu0 0
  %921 = vmatpush1.bf16.msra.mxu0 %v641
  %922 = vmatprep.subr.bf16.mxu0 0
  %923 = vmatpush1.bf16.msra.mxu0 %v642
  %924 = vmatprep.subr.bf16.mxu0 0
  %925 = vmatpush1.bf16.msra.mxu0 %v643
  %926 = vmatprep.subr.bf16.mxu0 0
  %927 = vmatpush1.bf16.msra.mxu0 %v644
  %928 = vmatprep.subr.bf16.mxu0 0
  %929 = vmatpush1.bf16.msra.mxu0 %v645
  %930 = vmatprep.subr.bf16.mxu0 0
  %931 = vmatpush1.bf16.msra.mxu0 0
  %932 = vmatprep.subr.bf16.mxu0 0
  %933 = vmatpush1.bf16.msra.mxu0 0
  %934 = vmatprep.subr.bf16.mxu0 0
  %935 = vmatpush1.bf16.msra.mxu0 0
  %936 = vmatprep.subr.bf16.mxu0 0
  %937 = vmatpush1.bf16.msra.mxu0 0
  %938 = vmatprep.subr.bf16.mxu0 0
  %939 = vmatpush1.bf16.msra.mxu0 0
  %940 = vmatprep.subr.bf16.mxu0 0
  %941 = vmatpush1.bf16.msra.mxu0 0
  %942 = vmatprep.subr.bf16.mxu0 0
  %943 = vmatpush1.bf16.msra.mxu0 0
  %944 = vmatprep.subr.bf16.mxu0 0
  %945 = vmatpush1.bf16.msra.mxu0 0
  %946 = vmatprep.mubr.bf16.mxu0 0
  %947 = vmatmul.mubr.bf16.gmra.mrb[0].mxu0 %v258
  %v948 = vpop.f32.mrb[0].mxu0
  %v949 = vadd.f32 %v900, %v948
  %v950 = vpop.f32.mrb[0].mxu0
  %v951 = vpop.f32.mrb[0].mxu0
  %v952 = vadd.f32 %v903, %v951
  %v953 = vpop.f32.mrb[0].mxu0
  %954 = vmatprep.mubr.bf16.mxu0 0
  %955 = vmatmul.mubr.bf16.gmra.mrb[0].mxu0 %v267
  %v956 = vpop.f32.mrb[0].mxu0
  %v957 = vadd.f32 %v908, %v956
  %v958 = vpop.f32.mrb[0].mxu0
  %v959 = vpop.f32.mrb[0].mxu0
  %v960 = vadd.f32 %v911, %v959
  %v961 = vpop.f32.mrb[0].mxu0
  %962 = vdwg.mxu0
  %v963 = vadd.f32 %v26, %v949
  %v964 = vadd.f32 %v27, %v952
  %v965 = vadd.f32 %v28, %v957
  %v966 = vadd.f32 %v29, %v960
  %967 = vst [vmem:[#allocation2] sm:$0xff] %v963
  %968 = vst [vmem:[#allocation2 + $0x8] sm:$0xff] %v964
  %969 = vst [vmem:[#allocation2 + $0x10] sm:$0xff] %v965
  %970 = vst [vmem:[#allocation2 + $0x18] sm:$0xff] %v966
  // Predicated region
  $region22: #{hrnet_forward.17} parent=0 // pred_check
    %p971 = pneg %p18
  $region23: #{hrnet_forward.17} parent=0 // pred_check_branch
    %973 = sbr.rel (%p971) target = $region25
  $region24: #{hrnet_forward.17} parent=0 // pred_region
    %v974 = vld [vmem:[#allocation2] sm:$0xff]
    %v975 = vld [vmem:[#allocation2 + $0x8] sm:$0xff]
    %v976 = vld [vmem:[#allocation2 + $0x10] sm:$0xff]
    %v977 = vld [vmem:[#allocation2 + $0x18] sm:$0xff]
    %v978 = vld [vmem:[%s2] sm:$0x1]
    %v980 = vlaneseq
    %v981 = vshrl.u32 %v980, 7
    %v982 = vsub.s32 0, %v981
    %v983 = vrot.slane %v978, %v982
    %v985 = vmul.f32 %v974, %v983
    %v986 = vmul.f32 %v975, %v983
    %v987 = vmul.f32 %v976, %v983
    %v988 = vmul.f32 %v977, %v983
    %v989 = vld [vmem:[%s3] sm:$0x1]
    %v991 = vlaneseq
    %v992 = vshrl.u32 %v991, 7
    %v993 = vsub.s32 0, %v992
    %v994 = vrot.slane %v989, %v993
    %v996 = vadd.f32 %v985, %v994
    %v997 = vadd.f32 %v986, %v994
    %v998 = vadd.f32 %v987, %v994
    %v999 = vadd.f32 %v988, %v994
    %v1000 = vmax.f32 %v996, 0.0
    %v1001 = vmax.f32 %v997, 0.0
    %v1002 = vmax.f32 %v998, 0.0
    %v1003 = vmax.f32 %v999, 0.0
    %v1004 = vpack.c.bf16 %v1001, %v1000
    %v1005 = vpack.c.bf16 %v1003, %v1002
    %v1008 = vunpack.c.l.b16 %v1004
    %v1009 = vunpack.c.h.b16 %v1004
    %v1010 = vunpack.c.l.b16 %v1005
    %v1011 = vunpack.c.h.b16 %v1005
    %v1012 = vpack.c.b16 %v1008, %v1008
    %v1013 = vpack.c.b16 %v1009, %v1009
    %v1014 = vpack.c.b16 %v1010, %v1010
    %v1015 = vpack.c.b16 %v1011, %v1011
    %1020 = vst [vmem:[%s4] sm:$0xf] %v1012
    %1021 = vst [vmem:[%s4 + $0x4] sm:$0xf] %v1013
    %1022 = vst [vmem:[%s4 + $0x8] sm:$0xf] %v1014
    %1023 = vst [vmem:[%s4 + $0xc] sm:$0xf] %v1015
  $region25: #{hrnet_forward.17} parent=0 // pred_fallthru
    _
  // Predicated region
  $region26: #{hrnet_forward.17} parent=0 // pred_check
    _
  $region27: #{hrnet_forward.17} parent=0 // pred_check_branch
    %1025 = sbr.rel (0) target = $region29
  $region28: #{hrnet_forward.17} parent=0 // pred_region
    _
  $region29: #{hrnet_forward.17} parent=0 // pred_fallthru
    _
  // Predicated region
  $region30: #{hrnet_forward.17} parent=0 // pred_check
    _
  $region31: #{hrnet_forward.17} parent=0 // pred_check_branch
    %1027 = sbr.rel (0) target = $region33
  $region32: #{hrnet_forward.17} parent=0 // pred_region
    _
  $region33: #{hrnet_forward.17} parent=0 // pred_fallthru
    _

// kernel: hrnet_forward.18
$region0: #{hrnet_forward.18}
  #allocation0 [shape = 'u32[]', space=smem, size = 0x4, offset = 0x4, fixed_abs, tag = 'smem constant byte address 0x4 - core index']
  #allocation1 [shape = 'u32[144,128]{1,0:T(1,128)}', space=vmem, size = 0x12000, scoped, tag = 'internal scratch']
  #allocation2 [shape = 'f32[32,128]{1,0:T(8,128)}', space=vmem, size = 0x4000, scoped, tag = 'scratch operand']
  %s0 = inlined_call_operand.vmem [shape: bf16[32,1152], index: 0, kind: input, shape index: {}]
  %s1 = inlined_call_operand.vmem [shape: bf16[1152,128], index: 1, kind: input, shape index: {}]
  %s2 = inlined_call_operand.vmem [shape: f32[1,128], index: 2, kind: input, shape index: {}]
  %s3 = inlined_call_operand.vmem [shape: f32[1,128], index: 3, kind: input, shape index: {}]
  %s4 = inlined_call_operand.vmem [shape: bf16[32,128], index: 4, kind: input, shape index: {}]
  %s5 = inlined_call_operand.vmem [shape: bf16[32,128], index: 5, kind: output, shape index: {}]
  %s6 = sld [smem:[#allocation0]]
  $region38: #{hrnet_forward.18} parent=0
    _
  %s8 = ssub.s32 1, %s6
  %s9 = scalar_select 0, %s8, %s6
  // Predicated region
  $region2: #{hrnet_forward.18} parent=0 // pred_check
    _
  $region3: #{hrnet_forward.18} parent=0 // pred_check_branch
    %11 = sbr.rel (0) target = $region5
  $region4: #{hrnet_forward.18} parent=0 // pred_region
    _
  $region5: #{hrnet_forward.18} parent=0 // pred_fallthru
    _
  // Predicated region
  $region6: #{hrnet_forward.18} parent=0 // pred_check
    _
  $region7: #{hrnet_forward.18} parent=0 // pred_check_branch
    %13 = sbr.rel (0) target = $region9
  $region8: #{hrnet_forward.18} parent=0 // pred_region
    _
  $region9: #{hrnet_forward.18} parent=0 // pred_fallthru
    _
  // Predicated region
  $region10: #{hrnet_forward.18} parent=0 // pred_check
    _
  $region11: #{hrnet_forward.18} parent=0 // pred_check_branch
    %15 = sbr.rel (0) target = $region13
  $region12: #{hrnet_forward.18} parent=0 // pred_region
    _
  $region13: #{hrnet_forward.18} parent=0 // pred_fallthru
    _
  // Predicated region
  $region14: #{hrnet_forward.18} parent=0 // pred_check
    _
  $region15: #{hrnet_forward.18} parent=0 // pred_check_branch
    %17 = sbr.rel (0) target = $region17
  $region16: #{hrnet_forward.18} parent=0 // pred_region
    _
  $region17: #{hrnet_forward.18} parent=0 // pred_fallthru
    _
  // Predicated region
  $region18: #{hrnet_forward.18} parent=0 // pred_check
    _
  $region19: #{hrnet_forward.18} parent=0 // pred_check_branch
    %19 = sbr.rel (0) target = $region21
  $region20: #{hrnet_forward.18} parent=0 // pred_region
    _
  $region21: #{hrnet_forward.18} parent=0 // pred_fallthru
    _
  %p21 = scmp.eq.s32.totalorder 0, 0
  // Predicated region
  $region22: #{hrnet_forward.18} parent=0 // pred_check
    %p22 = pneg %p21
  $region23: #{hrnet_forward.18} parent=0 // pred_check_branch
    %24 = sbr.rel (%p22) target = $region25
  $region24: #{hrnet_forward.18} parent=0 // pred_region
    %25 = vst [vmem:[#allocation2] sm:$0xff] 0.0
    %26 = vst [vmem:[#allocation2 + $0x8] sm:$0xff] 0.0
    %27 = vst [vmem:[#allocation2 + $0x10] sm:$0xff] 0.0
    %28 = vst [vmem:[#allocation2 + $0x18] sm:$0xff] 0.0
  $region25: #{hrnet_forward.18} parent=0 // pred_fallthru
    _
  %v29 = vld [vmem:[#allocation2] sm:$0xff]
  %v30 = vld [vmem:[#allocation2 + $0x8] sm:$0xff]
  %v31 = vld [vmem:[#allocation2 + $0x10] sm:$0xff]
  %v32 = vld [vmem:[#allocation2 + $0x18] sm:$0xff]
  %v33 = vld [vmem:[%s0] sm:$0xff]
  %v34 = vld [vmem:[%s0 + $0x8] sm:$0xff]
  %v35 = vld [vmem:[%s0 + $0x10] sm:$0xff]
  %v36 = vld [vmem:[%s0 + $0x18] sm:$0xff]
  %v37 = vld [vmem:[%s0 + $0x20] sm:$0xf]
  %v38 = vld [vmem:[%s0 + $0x24] sm:$0xff]
  %v39 = vld [vmem:[%s0 + $0x2c] sm:$0xff]
  %v40 = vld [vmem:[%s0 + $0x34] sm:$0xff]
  %v41 = vld [vmem:[%s0 + $0x3c] sm:$0xff]
  %v42 = vld [vmem:[%s0 + $0x44] sm:$0xf]
  %v43 = vld [vmem:[%s0 + $0x48] sm:$0xff]
  %v44 = vld [vmem:[%s0 + $0x50] sm:$0xff]
  %v45 = vld [vmem:[%s0 + $0x58] sm:$0xff]
  %v46 = vld [vmem:[%s0 + $0x60] sm:$0xff]
  %v47 = vld [vmem:[%s0 + $0x68] sm:$0xf]
  %v48 = vld [vmem:[%s0 + $0x6c] sm:$0xff]
  %v49 = vld [vmem:[%s0 + $0x74] sm:$0xff]
  %v50 = vld [vmem:[%s0 + $0x7c] sm:$0xff]
  %v51 = vld [vmem:[%s0 + $0x84] sm:$0xff]
  %v52 = vld [vmem:[%s0 + $0x8c] sm:$0xf]
  %v53 = vld [vmem:[%s1] sm:$0xf]
  %v54 = vld [vmem:[%s1 + $0x4] sm:$0xf]
  %v55 = vld [vmem:[%s1 + $0x8] sm:$0xf]
  %v56 = vld [vmem:[%s1 + $0xc] sm:$0xf]
  %v57 = vld [vmem:[%s1 + $0x10] sm:$0xf]
  %v58 = vld [vmem:[%s1 + $0x14] sm:$0xf]
  %v59 = vld [vmem:[%s1 + $0x18] sm:$0xf]
  %v60 = vld [vmem:[%s1 + $0x1c] sm:$0xf]
  %v61 = vld [vmem:[%s1 + $0x20] sm:$0xf]
  %v62 = vld [vmem:[%s1 + $0x24] sm:$0xf]
  %v63 = vld [vmem:[%s1 + $0x28] sm:$0xf]
  %v64 = vld [vmem:[%s1 + $0x2c] sm:$0xf]
  %v65 = vld [vmem:[%s1 + $0x30] sm:$0xf]
  %v66 = vld [vmem:[%s1 + $0x34] sm:$0xf]
  %v67 = vld [vmem:[%s1 + $0x38] sm:$0xf]
  %v68 = vld [vmem:[%s1 + $0x3c] sm:$0xf]
  %v69 = vld [vmem:[%s1 + $0x40] sm:$0xf]
  %v70 = vld [vmem:[%s1 + $0x44] sm:$0xf]
  %v71 = vld [vmem:[%s1 + $0x48] sm:$0xf]
  %v72 = vld [vmem:[%s1 + $0x4c] sm:$0xf]
  %v73 = vld [vmem:[%s1 + $0x50] sm:$0xf]
  %v74 = vld [vmem:[%s1 + $0x54] sm:$0xf]
  %v75 = vld [vmem:[%s1 + $0x58] sm:$0xf]
  %v76 = vld [vmem:[%s1 + $0x5c] sm:$0xf]
  %v77 = vld [vmem:[%s1 + $0x60] sm:$0xf]
  %v78 = vld [vmem:[%s1 + $0x64] sm:$0xf]
  %v79 = vld [vmem:[%s1 + $0x68] sm:$0xf]
  %v80 = vld [vmem:[%s1 + $0x6c] sm:$0xf]
  %v81 = vld [vmem:[%s1 + $0x70] sm:$0xf]
  %v82 = vld [vmem:[%s1 + $0x74] sm:$0xf]
  %v83 = vld [vmem:[%s1 + $0x78] sm:$0xf]
  %v84 = vld [vmem:[%s1 + $0x7c] sm:$0xf]
  %v85 = vld [vmem:[%s1 + $0x80] sm:$0xf]
  %v86 = vld [vmem:[%s1 + $0x84] sm:$0xf]
  %v87 = vld [vmem:[%s1 + $0x88] sm:$0xf]
  %v88 = vld [vmem:[%s1 + $0x8c] sm:$0xf]
  %v89 = vld [vmem:[%s1 + $0x90] sm:$0xf]
  %v90 = vld [vmem:[%s1 + $0x94] sm:$0xf]
  %v91 = vld [vmem:[%s1 + $0x98] sm:$0xf]
  %v92 = vld [vmem:[%s1 + $0x9c] sm:$0xf]
  %v93 = vld [vmem:[%s1 + $0xa0] sm:$0xf]
  %v94 = vld [vmem:[%s1 + $0xa4] sm:$0xf]
  %v95 = vld [vmem:[%s1 + $0xa8] sm:$0xf]
  %v96 = vld [vmem:[%s1 + $0xac] sm:$0xf]
  %v97 = vld [vmem:[%s1 + $0xb0] sm:$0xf]
  %v98 = vld [vmem:[%s1 + $0xb4] sm:$0xf]
  %v99 = vld [vmem:[%s1 + $0xb8] sm:$0xf]
  %v100 = vld [vmem:[%s1 + $0xbc] sm:$0xf]
  %v101 = vld [vmem:[%s1 + $0xc0] sm:$0xf]
  %v102 = vld [vmem:[%s1 + $0xc4] sm:$0xf]
  %v103 = vld [vmem:[%s1 + $0xc8] sm:$0xf]
  %v104 = vld [vmem:[%s1 + $0xcc] sm:$0xf]
  %v105 = vld [vmem:[%s1 + $0xd0] sm:$0xf]
  %v106 = vld [vmem:[%s1 + $0xd4] sm:$0xf]
  %v107 = vld [vmem:[%s1 + $0xd8] sm:$0xf]
  %v108 = vld [vmem:[%s1 + $0xdc] sm:$0xf]
  %v109 = vld [vmem:[%s1 + $0xe0] sm:$0xf]
  %v110 = vld [vmem:[%s1 + $0xe4] sm:$0xf]
  %v111 = vld [vmem:[%s1 + $0xe8] sm:$0xf]
  %v112 = vld [vmem:[%s1 + $0xec] sm:$0xf]
  %v113 = vld [vmem:[%s1 + $0xf0] sm:$0xf]
  %v114 = vld [vmem:[%s1 + $0xf4] sm:$0xf]
  %v115 = vld [vmem:[%s1 + $0xf8] sm:$0xf]
  %v116 = vld [vmem:[%s1 + $0xfc] sm:$0xf]
  %v117 = vld [vmem:[%s1 + $0x100] sm:$0xf]
  %v118 = vld [vmem:[%s1 + $0x104] sm:$0xf]
  %v119 = vld [vmem:[%s1 + $0x108] sm:$0xf]
  %v120 = vld [vmem:[%s1 + $0x10c] sm:$0xf]
  %v121 = vld [vmem:[%s1 + $0x110] sm:$0xf]
  %v122 = vld [vmem:[%s1 + $0x114] sm:$0xf]
  %v123 = vld [vmem:[%s1 + $0x118] sm:$0xf]
  %v124 = vld [vmem:[%s1 + $0x11c] sm:$0xf]
  %v125 = vld [vmem:[%s1 + $0x120] sm:$0xf]
  %v126 = vld [vmem:[%s1 + $0x124] sm:$0xf]
  %v127 = vld [vmem:[%s1 + $0x128] sm:$0xf]
  %v128 = vld [vmem:[%s1 + $0x12c] sm:$0xf]
  %v129 = vld [vmem:[%s1 + $0x130] sm:$0xf]
  %v130 = vld [vmem:[%s1 + $0x134] sm:$0xf]
  %v131 = vld [vmem:[%s1 + $0x138] sm:$0xf]
  %v132 = vld [vmem:[%s1 + $0x13c] sm:$0xf]
  %v133 = vld [vmem:[%s1 + $0x140] sm:$0xf]
  %v134 = vld [vmem:[%s1 + $0x144] sm:$0xf]
  %v135 = vld [vmem:[%s1 + $0x148] sm:$0xf]
  %v136 = vld [vmem:[%s1 + $0x14c] sm:$0xf]
  %v137 = vld [vmem:[%s1 + $0x150] sm:$0xf]
  %v138 = vld [vmem:[%s1 + $0x154] sm:$0xf]
  %v139 = vld [vmem:[%s1 + $0x158] sm:$0xf]
  %v140 = vld [vmem:[%s1 + $0x15c] sm:$0xf]
  %v141 = vld [vmem:[%s1 + $0x160] sm:$0xf]
  %v142 = vld [vmem:[%s1 + $0x164] sm:$0xf]
  %v143 = vld [vmem:[%s1 + $0x168] sm:$0xf]
  %v144 = vld [vmem:[%s1 + $0x16c] sm:$0xf]
  %v145 = vld [vmem:[%s1 + $0x170] sm:$0xf]
  %v146 = vld [vmem:[%s1 + $0x174] sm:$0xf]
  %v147 = vld [vmem:[%s1 + $0x178] sm:$0xf]
  %v148 = vld [vmem:[%s1 + $0x17c] sm:$0xf]
  %v149 = vld [vmem:[%s1 + $0x180] sm:$0xf]
  %v150 = vld [vmem:[%s1 + $0x184] sm:$0xf]
  %v151 = vld [vmem:[%s1 + $0x188] sm:$0xf]
  %v152 = vld [vmem:[%s1 + $0x18c] sm:$0xf]
  %v153 = vld [vmem:[%s1 + $0x190] sm:$0xf]
  %v154 = vld [vmem:[%s1 + $0x194] sm:$0xf]
  %v155 = vld [vmem:[%s1 + $0x198] sm:$0xf]
  %v156 = vld [vmem:[%s1 + $0x19c] sm:$0xf]
  %v157 = vld [vmem:[%s1 + $0x1a0] sm:$0xf]
  %v158 = vld [vmem:[%s1 + $0x1a4] sm:$0xf]
  %v159 = vld [vmem:[%s1 + $0x1a8] sm:$0xf]
  %v160 = vld [vmem:[%s1 + $0x1ac] sm:$0xf]
  %v161 = vld [vmem:[%s1 + $0x1b0] sm:$0xf]
  %v162 = vld [vmem:[%s1 + $0x1b4] sm:$0xf]
  %v163 = vld [vmem:[%s1 + $0x1b8] sm:$0xf]
  %v164 = vld [vmem:[%s1 + $0x1bc] sm:$0xf]
  %v165 = vld [vmem:[%s1 + $0x1c0] sm:$0xf]
  %v166 = vld [vmem:[%s1 + $0x1c4] sm:$0xf]
  %v167 = vld [vmem:[%s1 + $0x1c8] sm:$0xf]
  %v168 = vld [vmem:[%s1 + $0x1cc] sm:$0xf]
  %v169 = vld [vmem:[%s1 + $0x1d0] sm:$0xf]
  %v170 = vld [vmem:[%s1 + $0x1d4] sm:$0xf]
  %v171 = vld [vmem:[%s1 + $0x1d8] sm:$0xf]
  %v172 = vld [vmem:[%s1 + $0x1dc] sm:$0xf]
  %v173 = vld [vmem:[%s1 + $0x1e0] sm:$0xf]
  %v174 = vld [vmem:[%s1 + $0x1e4] sm:$0xf]
  %v175 = vld [vmem:[%s1 + $0x1e8] sm:$0xf]
  %v176 = vld [vmem:[%s1 + $0x1ec] sm:$0xf]
  %v177 = vld [vmem:[%s1 + $0x1f0] sm:$0xf]
  %v178 = vld [vmem:[%s1 + $0x1f4] sm:$0xf]
  %v179 = vld [vmem:[%s1 + $0x1f8] sm:$0xf]
  %v180 = vld [vmem:[%s1 + $0x1fc] sm:$0xf]
  %v181 = vld [vmem:[%s1 + $0x200] sm:$0xf]
  %v182 = vld [vmem:[%s1 + $0x204] sm:$0xf]
  %v183 = vld [vmem:[%s1 + $0x208] sm:$0xf]
  %v184 = vld [vmem:[%s1 + $0x20c] sm:$0xf]
  %v185 = vld [vmem:[%s1 + $0x210] sm:$0xf]
  %v186 = vld [vmem:[%s1 + $0x214] sm:$0xf]
  %v187 = vld [vmem:[%s1 + $0x218] sm:$0xf]
  %v188 = vld [vmem:[%s1 + $0x21c] sm:$0xf]
  %v189 = vld [vmem:[%s1 + $0x220] sm:$0xf]
  %v190 = vld [vmem:[%s1 + $0x224] sm:$0xf]
  %v191 = vld [vmem:[%s1 + $0x228] sm:$0xf]
  %v192 = vld [vmem:[%s1 + $0x22c] sm:$0xf]
  %v193 = vld [vmem:[%s1 + $0x230] sm:$0xf]
  %v194 = vld [vmem:[%s1 + $0x234] sm:$0xf]
  %v195 = vld [vmem:[%s1 + $0x238] sm:$0xf]
  %v196 = vld [vmem:[%s1 + $0x23c] sm:$0xf]
  %v217 = vunpack.c.l.b16 %v33
  %v218 = vunpack.c.h.b16 %v33
  %v219 = vunpack.c.l.b16 %v34
  %v220 = vunpack.c.h.b16 %v34
  %v221 = vunpack.c.l.b16 %v35
  %v222 = vunpack.c.h.b16 %v35
  %v223 = vunpack.c.l.b16 %v36
  %v224 = vunpack.c.h.b16 %v36
  %v225 = vunpack.c.l.b16 %v37
  %v226 = vunpack.c.l.b16 %v38
  %v227 = vunpack.c.h.b16 %v38
  %v228 = vunpack.c.l.b16 %v39
  %v229 = vunpack.c.h.b16 %v39
  %v230 = vunpack.c.l.b16 %v40
  %v231 = vunpack.c.h.b16 %v40
  %v232 = vunpack.c.l.b16 %v41
  %v233 = vunpack.c.h.b16 %v41
  %v234 = vunpack.c.l.b16 %v42
  %v235 = vunpack.c.l.b16 %v43
  %v236 = vunpack.c.h.b16 %v43
  %v237 = vunpack.c.l.b16 %v44
  %v238 = vunpack.c.h.b16 %v44
  %v239 = vunpack.c.l.b16 %v45
  %v240 = vunpack.c.h.b16 %v45
  %v241 = vunpack.c.l.b16 %v46
  %v242 = vunpack.c.h.b16 %v46
  %v243 = vunpack.c.l.b16 %v47
  %v244 = vunpack.c.l.b16 %v48
  %v245 = vunpack.c.h.b16 %v48
  %v246 = vunpack.c.l.b16 %v49
  %v247 = vunpack.c.h.b16 %v49
  %v248 = vunpack.c.l.b16 %v50
  %v249 = vunpack.c.h.b16 %v50
  %v250 = vunpack.c.l.b16 %v51
  %v251 = vunpack.c.h.b16 %v51
  %v252 = vunpack.c.l.b16 %v52
  %v253 = vpack.c.b16 %v226, %v217
  %v254 = vpack.c.b16 %v227, %v218
  %v255 = vpack.c.b16 %v228, %v219
  %v256 = vpack.c.b16 %v229, %v220
  %v257 = vpack.c.b16 %v230, %v221
  %v258 = vpack.c.b16 %v231, %v222
  %v259 = vpack.c.b16 %v232, %v223
  %v260 = vpack.c.b16 %v233, %v224
  %v261 = vpack.c.b16 %v234, %v225
  %v262 = vpack.c.b16 %v244, %v235
  %v263 = vpack.c.b16 %v245, %v236
  %v264 = vpack.c.b16 %v246, %v237
  %v265 = vpack.c.b16 %v247, %v238
  %v266 = vpack.c.b16 %v248, %v239
  %v267 = vpack.c.b16 %v249, %v240
  %v268 = vpack.c.b16 %v250, %v241
  %v269 = vpack.c.b16 %v251, %v242
  %v270 = vpack.c.b16 %v252, %v243
  %v433 = vunpack.c.l.b16 %v53
  %v434 = vunpack.c.l.b16 %v54
  %v435 = vunpack.c.l.b16 %v55
  %v436 = vunpack.c.l.b16 %v56
  %v437 = vunpack.c.l.b16 %v57
  %v438 = vunpack.c.l.b16 %v58
  %v439 = vunpack.c.l.b16 %v59
  %v440 = vunpack.c.l.b16 %v60
  %v441 = vunpack.c.l.b16 %v61
  %v442 = vunpack.c.l.b16 %v62
  %v443 = vunpack.c.l.b16 %v63
  %v444 = vunpack.c.l.b16 %v64
  %v445 = vunpack.c.l.b16 %v65
  %v446 = vunpack.c.l.b16 %v66
  %v447 = vunpack.c.l.b16 %v67
  %v448 = vunpack.c.l.b16 %v68
  %v449 = vunpack.c.l.b16 %v69
  %v450 = vunpack.c.l.b16 %v70
  %v451 = vunpack.c.l.b16 %v71
  %v452 = vunpack.c.l.b16 %v72
  %v453 = vunpack.c.l.b16 %v73
  %v454 = vunpack.c.l.b16 %v74
  %v455 = vunpack.c.l.b16 %v75
  %v456 = vunpack.c.l.b16 %v76
  %v457 = vunpack.c.l.b16 %v77
  %v458 = vunpack.c.l.b16 %v78
  %v459 = vunpack.c.l.b16 %v79
  %v460 = vunpack.c.l.b16 %v80
  %v461 = vunpack.c.l.b16 %v81
  %v462 = vunpack.c.l.b16 %v82
  %v463 = vunpack.c.l.b16 %v83
  %v464 = vunpack.c.l.b16 %v84
  %v465 = vunpack.c.l.b16 %v85
  %v466 = vunpack.c.l.b16 %v86
  %v467 = vunpack.c.l.b16 %v87
  %v468 = vunpack.c.l.b16 %v88
  %v469 = vunpack.c.l.b16 %v89
  %v470 = vunpack.c.l.b16 %v90
  %v471 = vunpack.c.l.b16 %v91
  %v472 = vunpack.c.l.b16 %v92
  %v473 = vunpack.c.l.b16 %v93
  %v474 = vunpack.c.l.b16 %v94
  %v475 = vunpack.c.l.b16 %v95
  %v476 = vunpack.c.l.b16 %v96
  %v477 = vunpack.c.l.b16 %v97
  %v478 = vunpack.c.l.b16 %v98
  %v479 = vunpack.c.l.b16 %v99
  %v480 = vunpack.c.l.b16 %v100
  %v481 = vunpack.c.l.b16 %v101
  %v482 = vunpack.c.l.b16 %v102
  %v483 = vunpack.c.l.b16 %v103
  %v484 = vunpack.c.l.b16 %v104
  %v485 = vunpack.c.l.b16 %v105
  %v486 = vunpack.c.l.b16 %v106
  %v487 = vunpack.c.l.b16 %v107
  %v488 = vunpack.c.l.b16 %v108
  %v489 = vunpack.c.l.b16 %v109
  %v490 = vunpack.c.l.b16 %v110
  %v491 = vunpack.c.l.b16 %v111
  %v492 = vunpack.c.l.b16 %v112
  %v493 = vunpack.c.l.b16 %v113
  %v494 = vunpack.c.l.b16 %v114
  %v495 = vunpack.c.l.b16 %v115
  %v496 = vunpack.c.l.b16 %v116
  %v497 = vunpack.c.l.b16 %v117
  %v498 = vunpack.c.l.b16 %v118
  %v499 = vunpack.c.l.b16 %v119
  %v500 = vunpack.c.l.b16 %v120
  %v501 = vunpack.c.l.b16 %v121
  %v502 = vunpack.c.l.b16 %v122
  %v503 = vunpack.c.l.b16 %v123
  %v504 = vunpack.c.l.b16 %v124
  %v505 = vunpack.c.l.b16 %v125
  %v506 = vunpack.c.l.b16 %v126
  %v507 = vunpack.c.l.b16 %v127
  %v508 = vunpack.c.l.b16 %v128
  %v509 = vunpack.c.l.b16 %v129
  %v510 = vunpack.c.l.b16 %v130
  %v511 = vunpack.c.l.b16 %v131
  %v512 = vunpack.c.l.b16 %v132
  %v513 = vunpack.c.l.b16 %v133
  %v514 = vunpack.c.l.b16 %v134
  %v515 = vunpack.c.l.b16 %v135
  %v516 = vunpack.c.l.b16 %v136
  %v517 = vunpack.c.l.b16 %v137
  %v518 = vunpack.c.l.b16 %v138
  %v519 = vunpack.c.l.b16 %v139
  %v520 = vunpack.c.l.b16 %v140
  %v521 = vunpack.c.l.b16 %v141
  %v522 = vunpack.c.l.b16 %v142
  %v523 = vunpack.c.l.b16 %v143
  %v524 = vunpack.c.l.b16 %v144
  %v525 = vunpack.c.l.b16 %v145
  %v526 = vunpack.c.l.b16 %v146
  %v527 = vunpack.c.l.b16 %v147
  %v528 = vunpack.c.l.b16 %v148
  %v529 = vunpack.c.l.b16 %v149
  %v530 = vunpack.c.l.b16 %v150
  %v531 = vunpack.c.l.b16 %v151
  %v532 = vunpack.c.l.b16 %v152
  %v533 = vunpack.c.l.b16 %v153
  %v534 = vunpack.c.l.b16 %v154
  %v535 = vunpack.c.l.b16 %v155
  %v536 = vunpack.c.l.b16 %v156
  %v537 = vunpack.c.l.b16 %v157
  %v538 = vunpack.c.l.b16 %v158
  %v539 = vunpack.c.l.b16 %v159
  %v540 = vunpack.c.l.b16 %v160
  %v541 = vunpack.c.l.b16 %v161
  %v542 = vunpack.c.l.b16 %v162
  %v543 = vunpack.c.l.b16 %v163
  %v544 = vunpack.c.l.b16 %v164
  %v545 = vunpack.c.l.b16 %v165
  %v546 = vunpack.c.l.b16 %v166
  %v547 = vunpack.c.l.b16 %v167
  %v548 = vunpack.c.l.b16 %v168
  %v549 = vunpack.c.l.b16 %v169
  %v550 = vunpack.c.l.b16 %v170
  %v551 = vunpack.c.l.b16 %v171
  %v552 = vunpack.c.l.b16 %v172
  %v553 = vunpack.c.l.b16 %v173
  %v554 = vunpack.c.l.b16 %v174
  %v555 = vunpack.c.l.b16 %v175
  %v556 = vunpack.c.l.b16 %v176
  %v557 = vunpack.c.l.b16 %v177
  %v558 = vunpack.c.l.b16 %v178
  %v559 = vunpack.c.l.b16 %v179
  %v560 = vunpack.c.l.b16 %v180
  %v561 = vunpack.c.l.b16 %v181
  %v562 = vunpack.c.l.b16 %v182
  %v563 = vunpack.c.l.b16 %v183
  %v564 = vunpack.c.l.b16 %v184
  %v565 = vunpack.c.l.b16 %v185
  %v566 = vunpack.c.l.b16 %v186
  %v567 = vunpack.c.l.b16 %v187
  %v568 = vunpack.c.l.b16 %v188
  %v569 = vunpack.c.l.b16 %v189
  %v570 = vunpack.c.l.b16 %v190
  %v571 = vunpack.c.l.b16 %v191
  %v572 = vunpack.c.l.b16 %v192
  %v573 = vunpack.c.l.b16 %v193
  %v574 = vunpack.c.l.b16 %v194
  %v575 = vunpack.c.l.b16 %v195
  %v576 = vunpack.c.l.b16 %v196
  %v577 = vpack.c.b16 %v434, %v433
  %v578 = vpack.c.b16 %v436, %v435
  %v579 = vpack.c.b16 %v438, %v437
  %v580 = vpack.c.b16 %v440, %v439
  %v581 = vpack.c.b16 %v442, %v441
  %v582 = vpack.c.b16 %v444, %v443
  %v583 = vpack.c.b16 %v446, %v445
  %v584 = vpack.c.b16 %v448, %v447
  %v585 = vpack.c.b16 %v450, %v449
  %v586 = vpack.c.b16 %v452, %v451
  %v587 = vpack.c.b16 %v454, %v453
  %v588 = vpack.c.b16 %v456, %v455
  %v589 = vpack.c.b16 %v458, %v457
  %v590 = vpack.c.b16 %v460, %v459
  %v591 = vpack.c.b16 %v462, %v461
  %v592 = vpack.c.b16 %v464, %v463
  %v593 = vpack.c.b16 %v466, %v465
  %v594 = vpack.c.b16 %v468, %v467
  %v595 = vpack.c.b16 %v470, %v469
  %v596 = vpack.c.b16 %v472, %v471
  %v597 = vpack.c.b16 %v474, %v473
  %v598 = vpack.c.b16 %v476, %v475
  %v599 = vpack.c.b16 %v478, %v477
  %v600 = vpack.c.b16 %v480, %v479
  %v601 = vpack.c.b16 %v482, %v481
  %v602 = vpack.c.b16 %v484, %v483
  %v603 = vpack.c.b16 %v486, %v485
  %v604 = vpack.c.b16 %v488, %v487
  %v605 = vpack.c.b16 %v490, %v489
  %v606 = vpack.c.b16 %v492, %v491
  %v607 = vpack.c.b16 %v494, %v493
  %v608 = vpack.c.b16 %v496, %v495
  %v609 = vpack.c.b16 %v498, %v497
  %v610 = vpack.c.b16 %v500, %v499
  %v611 = vpack.c.b16 %v502, %v501
  %v612 = vpack.c.b16 %v504, %v503
  %v613 = vpack.c.b16 %v506, %v505
  %v614 = vpack.c.b16 %v508, %v507
  %v615 = vpack.c.b16 %v510, %v509
  %v616 = vpack.c.b16 %v512, %v511
  %v617 = vpack.c.b16 %v514, %v513
  %v618 = vpack.c.b16 %v516, %v515
  %v619 = vpack.c.b16 %v518, %v517
  %v620 = vpack.c.b16 %v520, %v519
  %v621 = vpack.c.b16 %v522, %v521
  %v622 = vpack.c.b16 %v524, %v523
  %v623 = vpack.c.b16 %v526, %v525
  %v624 = vpack.c.b16 %v528, %v527
  %v625 = vpack.c.b16 %v530, %v529
  %v626 = vpack.c.b16 %v532, %v531
  %v627 = vpack.c.b16 %v534, %v533
  %v628 = vpack.c.b16 %v536, %v535
  %v629 = vpack.c.b16 %v538, %v537
  %v630 = vpack.c.b16 %v540, %v539
  %v631 = vpack.c.b16 %v542, %v541
  %v632 = vpack.c.b16 %v544, %v543
  %v633 = vpack.c.b16 %v546, %v545
  %v634 = vpack.c.b16 %v548, %v547
  %v635 = vpack.c.b16 %v550, %v549
  %v636 = vpack.c.b16 %v552, %v551
  %v637 = vpack.c.b16 %v554, %v553
  %v638 = vpack.c.b16 %v556, %v555
  %v639 = vpack.c.b16 %v558, %v557
  %v640 = vpack.c.b16 %v560, %v559
  %v641 = vpack.c.b16 %v562, %v561
  %v642 = vpack.c.b16 %v564, %v563
  %v643 = vpack.c.b16 %v566, %v565
  %v644 = vpack.c.b16 %v568, %v567
  %v645 = vpack.c.b16 %v570, %v569
  %v646 = vpack.c.b16 %v572, %v571
  %v647 = vpack.c.b16 %v574, %v573
  %v648 = vpack.c.b16 %v576, %v575
  %721 = vmatprep.subr.bf16.mxu0 0
  %722 = vmatpush1.bf16.msra.mxu0 %v577
  %723 = vmatprep.subr.bf16.mxu0 0
  %724 = vmatpush1.bf16.msra.mxu0 %v578
  %725 = vmatprep.subr.bf16.mxu0 0
  %726 = vmatpush1.bf16.msra.mxu0 %v579
  %727 = vmatprep.subr.bf16.mxu0 0
  %728 = vmatpush1.bf16.msra.mxu0 %v580
  %729 = vmatprep.subr.bf16.mxu0 0
  %730 = vmatpush1.bf16.msra.mxu0 %v581
  %731 = vmatprep.subr.bf16.mxu0 0
  %732 = vmatpush1.bf16.msra.mxu0 %v582
  %733 = vmatprep.subr.bf16.mxu0 0
  %734 = vmatpush1.bf16.msra.mxu0 %v583
  %735 = vmatprep.subr.bf16.mxu0 0
  %736 = vmatpush1.bf16.msra.mxu0 %v584
  %737 = vmatprep.subr.bf16.mxu0 0
  %738 = vmatpush1.bf16.msra.mxu0 %v585
  %739 = vmatprep.subr.bf16.mxu0 0
  %740 = vmatpush1.bf16.msra.mxu0 %v586
  %741 = vmatprep.subr.bf16.mxu0 0
  %742 = vmatpush1.bf16.msra.mxu0 %v587
  %743 = vmatprep.subr.bf16.mxu0 0
  %744 = vmatpush1.bf16.msra.mxu0 %v588
  %745 = vmatprep.subr.bf16.mxu0 0
  %746 = vmatpush1.bf16.msra.mxu0 %v589
  %747 = vmatprep.subr.bf16.mxu0 0
  %748 = vmatpush1.bf16.msra.mxu0 %v590
  %749 = vmatprep.subr.bf16.mxu0 0
  %750 = vmatpush1.bf16.msra.mxu0 %v591
  %751 = vmatprep.subr.bf16.mxu0 0
  %752 = vmatpush1.bf16.msra.mxu0 %v592
  %753 = vmatprep.mubr.bf16.mxu0 %v254
  %754 = vmatmul.mubr.bf16.gmra.mrb[0].mxu0 %v253
  %v755 = vpop.f32.mrb[0].mxu0
  %v756 = vadd.f32 0.0, %v755
  %v757 = vpop.f32.mrb[0].mxu0
  %v758 = vpop.f32.mrb[0].mxu0
  %v759 = vadd.f32 0.0, %v758
  %v760 = vpop.f32.mrb[0].mxu0
  %761 = vmatprep.mubr.bf16.mxu0 %v263
  %762 = vmatmul.mubr.bf16.gmra.mrb[0].mxu0 %v262
  %v763 = vpop.f32.mrb[0].mxu0
  %v764 = vadd.f32 0.0, %v763
  %v765 = vpop.f32.mrb[0].mxu0
  %v766 = vpop.f32.mrb[0].mxu0
  %v767 = vadd.f32 0.0, %v766
  %v768 = vpop.f32.mrb[0].mxu0
  %769 = vdwg.mxu0
  %770 = vmatprep.subr.bf16.mxu0 0
  %771 = vmatpush1.bf16.msra.mxu0 %v593
  %772 = vmatprep.subr.bf16.mxu0 0
  %773 = vmatpush1.bf16.msra.mxu0 %v594
  %774 = vmatprep.subr.bf16.mxu0 0
  %775 = vmatpush1.bf16.msra.mxu0 %v595
  %776 = vmatprep.subr.bf16.mxu0 0
  %777 = vmatpush1.bf16.msra.mxu0 %v596
  %778 = vmatprep.subr.bf16.mxu0 0
  %779 = vmatpush1.bf16.msra.mxu0 %v597
  %780 = vmatprep.subr.bf16.mxu0 0
  %781 = vmatpush1.bf16.msra.mxu0 %v598
  %782 = vmatprep.subr.bf16.mxu0 0
  %783 = vmatpush1.bf16.msra.mxu0 %v599
  %784 = vmatprep.subr.bf16.mxu0 0
  %785 = vmatpush1.bf16.msra.mxu0 %v600
  %786 = vmatprep.subr.bf16.mxu0 0
  %787 = vmatpush1.bf16.msra.mxu0 %v601
  %788 = vmatprep.subr.bf16.mxu0 0
  %789 = vmatpush1.bf16.msra.mxu0 %v602
  %790 = vmatprep.subr.bf16.mxu0 0
  %791 = vmatpush1.bf16.msra.mxu0 %v603
  %792 = vmatprep.subr.bf16.mxu0 0
  %793 = vmatpush1.bf16.msra.mxu0 %v604
  %794 = vmatprep.subr.bf16.mxu0 0
  %795 = vmatpush1.bf16.msra.mxu0 %v605
  %796 = vmatprep.subr.bf16.mxu0 0
  %797 = vmatpush1.bf16.msra.mxu0 %v606
  %798 = vmatprep.subr.bf16.mxu0 0
  %799 = vmatpush1.bf16.msra.mxu0 %v607
  %800 = vmatprep.subr.bf16.mxu0 0
  %801 = vmatpush1.bf16.msra.mxu0 %v608
  %802 = vmatprep.mubr.bf16.mxu0 %v256
  %803 = vmatmul.mubr.bf16.gmra.mrb[0].mxu0 %v255
  %v804 = vpop.f32.mrb[0].mxu0
  %v805 = vadd.f32 %v756, %v804
  %v806 = vpop.f32.mrb[0].mxu0
  %v807 = vpop.f32.mrb[0].mxu0
  %v808 = vadd.f32 %v759, %v807
  %v809 = vpop.f32.mrb[0].mxu0
  %810 = vmatprep.mubr.bf16.mxu0 %v265
  %811 = vmatmul.mubr.bf16.gmra.mrb[0].mxu0 %v264
  %v812 = vpop.f32.mrb[0].mxu0
  %v813 = vadd.f32 %v764, %v812
  %v814 = vpop.f32.mrb[0].mxu0
  %v815 = vpop.f32.mrb[0].mxu0
  %v816 = vadd.f32 %v767, %v815
  %v817 = vpop.f32.mrb[0].mxu0
  %818 = vdwg.mxu0
  %819 = vmatprep.subr.bf16.mxu0 0
  %820 = vmatpush1.bf16.msra.mxu0 %v609
  %821 = vmatprep.subr.bf16.mxu0 0
  %822 = vmatpush1.bf16.msra.mxu0 %v610
  %823 = vmatprep.subr.bf16.mxu0 0
  %824 = vmatpush1.bf16.msra.mxu0 %v611
  %825 = vmatprep.subr.bf16.mxu0 0
  %826 = vmatpush1.bf16.msra.mxu0 %v612
  %827 = vmatprep.subr.bf16.mxu0 0
  %828 = vmatpush1.bf16.msra.mxu0 %v613
  %829 = vmatprep.subr.bf16.mxu0 0
  %830 = vmatpush1.bf16.msra.mxu0 %v614
  %831 = vmatprep.subr.bf16.mxu0 0
  %832 = vmatpush1.bf16.msra.mxu0 %v615
  %833 = vmatprep.subr.bf16.mxu0 0
  %834 = vmatpush1.bf16.msra.mxu0 %v616
  %835 = vmatprep.subr.bf16.mxu0 0
  %836 = vmatpush1.bf16.msra.mxu0 %v617
  %837 = vmatprep.subr.bf16.mxu0 0
  %838 = vmatpush1.bf16.msra.mxu0 %v618
  %839 = vmatprep.subr.bf16.mxu0 0
  %840 = vmatpush1.bf16.msra.mxu0 %v619
  %841 = vmatprep.subr.bf16.mxu0 0
  %842 = vmatpush1.bf16.msra.mxu0 %v620
  %843 = vmatprep.subr.bf16.mxu0 0
  %844 = vmatpush1.bf16.msra.mxu0 %v621
  %845 = vmatprep.subr.bf16.mxu0 0
  %846 = vmatpush1.bf16.msra.mxu0 %v622
  %847 = vmatprep.subr.bf16.mxu0 0
  %848 = vmatpush1.bf16.msra.mxu0 %v623
  %849 = vmatprep.subr.bf16.mxu0 0
  %850 = vmatpush1.bf16.msra.mxu0 %v624
  %851 = vmatprep.mubr.bf16.mxu0 %v258
  %852 = vmatmul.mubr.bf16.gmra.mrb[0].mxu0 %v257
  %v853 = vpop.f32.mrb[0].mxu0
  %v854 = vadd.f32 %v805, %v853
  %v855 = vpop.f32.mrb[0].mxu0
  %v856 = vpop.f32.mrb[0].mxu0
  %v857 = vadd.f32 %v808, %v856
  %v858 = vpop.f32.mrb[0].mxu0
  %859 = vmatprep.mubr.bf16.mxu0 %v267
  %860 = vmatmul.mubr.bf16.gmra.mrb[0].mxu0 %v266
  %v861 = vpop.f32.mrb[0].mxu0
  %v862 = vadd.f32 %v813, %v861
  %v863 = vpop.f32.mrb[0].mxu0
  %v864 = vpop.f32.mrb[0].mxu0
  %v865 = vadd.f32 %v816, %v864
  %v866 = vpop.f32.mrb[0].mxu0
  %867 = vdwg.mxu0
  %868 = vmatprep.subr.bf16.mxu0 0
  %869 = vmatpush1.bf16.msra.mxu0 %v625
  %870 = vmatprep.subr.bf16.mxu0 0
  %871 = vmatpush1.bf16.msra.mxu0 %v626
  %872 = vmatprep.subr.bf16.mxu0 0
  %873 = vmatpush1.bf16.msra.mxu0 %v627
  %874 = vmatprep.subr.bf16.mxu0 0
  %875 = vmatpush1.bf16.msra.mxu0 %v628
  %876 = vmatprep.subr.bf16.mxu0 0
  %877 = vmatpush1.bf16.msra.mxu0 %v629
  %878 = vmatprep.subr.bf16.mxu0 0
  %879 = vmatpush1.bf16.msra.mxu0 %v630
  %880 = vmatprep.subr.bf16.mxu0 0
  %881 = vmatpush1.bf16.msra.mxu0 %v631
  %882 = vmatprep.subr.bf16.mxu0 0
  %883 = vmatpush1.bf16.msra.mxu0 %v632
  %884 = vmatprep.subr.bf16.mxu0 0
  %885 = vmatpush1.bf16.msra.mxu0 %v633
  %886 = vmatprep.subr.bf16.mxu0 0
  %887 = vmatpush1.bf16.msra.mxu0 %v634
  %888 = vmatprep.subr.bf16.mxu0 0
  %889 = vmatpush1.bf16.msra.mxu0 %v635
  %890 = vmatprep.subr.bf16.mxu0 0
  %891 = vmatpush1.bf16.msra.mxu0 %v636
  %892 = vmatprep.subr.bf16.mxu0 0
  %893 = vmatpush1.bf16.msra.mxu0 %v637
  %894 = vmatprep.subr.bf16.mxu0 0
  %895 = vmatpush1.bf16.msra.mxu0 %v638
  %896 = vmatprep.subr.bf16.mxu0 0
  %897 = vmatpush1.bf16.msra.mxu0 %v639
  %898 = vmatprep.subr.bf16.mxu0 0
  %899 = vmatpush1.bf16.msra.mxu0 %v640
  %900 = vmatprep.mubr.bf16.mxu0 %v260
  %901 = vmatmul.mubr.bf16.gmra.mrb[0].mxu0 %v259
  %v902 = vpop.f32.mrb[0].mxu0
  %v903 = vadd.f32 %v854, %v902
  %v904 = vpop.f32.mrb[0].mxu0
  %v905 = vpop.f32.mrb[0].mxu0
  %v906 = vadd.f32 %v857, %v905
  %v907 = vpop.f32.mrb[0].mxu0
  %908 = vmatprep.mubr.bf16.mxu0 %v269
  %909 = vmatmul.mubr.bf16.gmra.mrb[0].mxu0 %v268
  %v910 = vpop.f32.mrb[0].mxu0
  %v911 = vadd.f32 %v862, %v910
  %v912 = vpop.f32.mrb[0].mxu0
  %v913 = vpop.f32.mrb[0].mxu0
  %v914 = vadd.f32 %v865, %v913
  %v915 = vpop.f32.mrb[0].mxu0
  %916 = vdwg.mxu0
  %917 = vmatprep.subr.bf16.mxu0 0
  %918 = vmatpush1.bf16.msra.mxu0 %v641
  %919 = vmatprep.subr.bf16.mxu0 0
  %920 = vmatpush1.bf16.msra.mxu0 %v642
  %921 = vmatprep.subr.bf16.mxu0 0
  %922 = vmatpush1.bf16.msra.mxu0 %v643
  %923 = vmatprep.subr.bf16.mxu0 0
  %924 = vmatpush1.bf16.msra.mxu0 %v644
  %925 = vmatprep.subr.bf16.mxu0 0
  %926 = vmatpush1.bf16.msra.mxu0 %v645
  %927 = vmatprep.subr.bf16.mxu0 0
  %928 = vmatpush1.bf16.msra.mxu0 %v646
  %929 = vmatprep.subr.bf16.mxu0 0
  %930 = vmatpush1.bf16.msra.mxu0 %v647
  %931 = vmatprep.subr.bf16.mxu0 0
  %932 = vmatpush1.bf16.msra.mxu0 %v648
  %933 = vmatprep.subr.bf16.mxu0 0
  %934 = vmatpush1.bf16.msra.mxu0 0
  %935 = vmatprep.subr.bf16.mxu0 0
  %936 = vmatpush1.bf16.msra.mxu0 0
  %937 = vmatprep.subr.bf16.mxu0 0
  %938 = vmatpush1.bf16.msra.mxu0 0
  %939 = vmatprep.subr.bf16.mxu0 0
  %940 = vmatpush1.bf16.msra.mxu0 0
  %941 = vmatprep.subr.bf16.mxu0 0
  %942 = vmatpush1.bf16.msra.mxu0 0
  %943 = vmatprep.subr.bf16.mxu0 0
  %944 = vmatpush1.bf16.msra.mxu0 0
  %945 = vmatprep.subr.bf16.mxu0 0
  %946 = vmatpush1.bf16.msra.mxu0 0
  %947 = vmatprep.subr.bf16.mxu0 0
  %948 = vmatpush1.bf16.msra.mxu0 0
  %949 = vmatprep.mubr.bf16.mxu0 0
  %950 = vmatmul.mubr.bf16.gmra.mrb[0].mxu0 %v261
  %v951 = vpop.f32.mrb[0].mxu0
  %v952 = vadd.f32 %v903, %v951
  %v953 = vpop.f32.mrb[0].mxu0
  %v954 = vpop.f32.mrb[0].mxu0
  %v955 = vadd.f32 %v906, %v954
  %v956 = vpop.f32.mrb[0].mxu0
  %957 = vmatprep.mubr.bf16.mxu0 0
  %958 = vmatmul.mubr.bf16.gmra.mrb[0].mxu0 %v270
  %v959 = vpop.f32.mrb[0].mxu0
  %v960 = vadd.f32 %v911, %v959
  %v961 = vpop.f32.mrb[0].mxu0
  %v962 = vpop.f32.mrb[0].mxu0
  %v963 = vadd.f32 %v914, %v962
  %v964 = vpop.f32.mrb[0].mxu0
  %965 = vdwg.mxu0
  %v966 = vadd.f32 %v29, %v952
  %v967 = vadd.f32 %v30, %v955
  %v968 = vadd.f32 %v31, %v960
  %v969 = vadd.f32 %v32, %v963
  %970 = vst [vmem:[#allocation2] sm:$0xff] %v966
  %971 = vst [vmem:[#allocation2 + $0x8] sm:$0xff] %v967
  %972 = vst [vmem:[#allocation2 + $0x10] sm:$0xff] %v968
  %973 = vst [vmem:[#allocation2 + $0x18] sm:$0xff] %v969
  // Predicated region
  $region26: #{hrnet_forward.18} parent=0 // pred_check
    %p974 = pneg %p21
  $region27: #{hrnet_forward.18} parent=0 // pred_check_branch
    %976 = sbr.rel (%p974) target = $region29
  $region28: #{hrnet_forward.18} parent=0 // pred_region
    %v977 = vld [vmem:[#allocation2] sm:$0xff]
    %v978 = vld [vmem:[#allocation2 + $0x8] sm:$0xff]
    %v979 = vld [vmem:[#allocation2 + $0x10] sm:$0xff]
    %v980 = vld [vmem:[#allocation2 + $0x18] sm:$0xff]
    %v981 = vld [vmem:[%s2] sm:$0x1]
    %v983 = vlaneseq
    %v984 = vshrl.u32 %v983, 7
    %v985 = vsub.s32 0, %v984
    %v986 = vrot.slane %v981, %v985
    %v988 = vmul.f32 %v977, %v986
    %v989 = vmul.f32 %v978, %v986
    %v990 = vmul.f32 %v979, %v986
    %v991 = vmul.f32 %v980, %v986
    %v992 = vld [vmem:[%s3] sm:$0x1]
    %v994 = vlaneseq
    %v995 = vshrl.u32 %v994, 7
    %v996 = vsub.s32 0, %v995
    %v997 = vrot.slane %v992, %v996
    %v999 = vadd.f32 %v988, %v997
    %v1000 = vadd.f32 %v989, %v997
    %v1001 = vadd.f32 %v990, %v997
    %v1002 = vadd.f32 %v991, %v997
    %v1003 = vld [vmem:[%s4] sm:$0xf]
    %v1004 = vld [vmem:[%s4 + $0x4] sm:$0xf]
    %v1005 = vld [vmem:[%s4 + $0x8] sm:$0xf]
    %v1006 = vld [vmem:[%s4 + $0xc] sm:$0xf]
    %v1007 = vunpack.c.l.bf16 %v1003
    %v1008 = vunpack.c.l.bf16 %v1004
    %v1009 = vunpack.c.l.bf16 %v1005
    %v1010 = vunpack.c.l.bf16 %v1006
    %v1011 = vadd.f32 %v999, %v1007
    %v1012 = vadd.f32 %v1000, %v1008
    %v1013 = vadd.f32 %v1001, %v1009
    %v1014 = vadd.f32 %v1002, %v1010
    %v1015 = vmax.f32 %v1011, 0.0
    %v1016 = vmax.f32 %v1012, 0.0
    %v1017 = vmax.f32 %v1013, 0.0
    %v1018 = vmax.f32 %v1014, 0.0
    %v1019 = vpack.c.bf16 %v1016, %v1015
    %v1020 = vpack.c.bf16 %v1018, %v1017
    %v1023 = vunpack.c.l.b16 %v1019
    %v1024 = vunpack.c.h.b16 %v1019
    %v1025 = vunpack.c.l.b16 %v1020
    %v1026 = vunpack.c.h.b16 %v1020
    %v1027 = vpack.c.b16 %v1023, %v1023
    %v1028 = vpack.c.b16 %v1024, %v1024
    %v1029 = vpack.c.b16 %v1025, %v1025
    %v1030 = vpack.c.b16 %v1026, %v1026
    %1035 = vst [vmem:[%s5] sm:$0xf] %v1027
    %1036 = vst [vmem:[%s5 + $0x4] sm:$0xf] %v1028
    %1037 = vst [vmem:[%s5 + $0x8] sm:$0xf] %v1029
    %1038 = vst [vmem:[%s5 + $0xc] sm:$0xf] %v1030
  $region29: #{hrnet_forward.18} parent=0 // pred_fallthru
    _
  // Predicated region
  $region30: #{hrnet_forward.18} parent=0 // pred_check
    _
  $region31: #{hrnet_forward.18} parent=0 // pred_check_branch
    %1040 = sbr.rel (0) target = $region33
  $region32: #{hrnet_forward.18} parent=0 // pred_region
    _
  $region33: #{hrnet_forward.18} parent=0 // pred_fallthru
    _
  // Predicated region
  $region34: #{hrnet_forward.18} parent=0 // pred_check
    _
  $region35: #{hrnet_forward.18} parent=0 // pred_check_branch
    %1042 = sbr.rel (0) target = $region37
  $region36: #{hrnet_forward.18} parent=0 // pred_region
    _
  $region37: #{hrnet_forward.18} parent=0 // pred_fallthru
    _

// kernel: hrnet_forward.20
$region0: #{hrnet_forward.20}
  #allocation0 [shape = 'u32[]', space=smem, size = 0x4, offset = 0x4, fixed_abs, tag = 'smem constant byte address 0x4 - core index']
  #allocation1 [shape = 'u32[144,128]{1,0:T(1,128)}', space=vmem, size = 0x12000, scoped, tag = 'internal scratch']
  %s0 = inlined_call_operand.vmem [shape: bf16[8,1024], index: 0, kind: input, shape index: {}]
  %s1 = inlined_call_operand.vmem [shape: bf16[8,512], index: 1, kind: input, shape index: {}]
  %s2 = inlined_call_operand.vmem [shape: bf16[8,1024], index: 2, kind: output, shape index: {}]
  %s3 = sld [smem:[#allocation0]]
  $region18: #{hrnet_forward.20} parent=0
    _
  %s5 = ssub.s32 1, %s3
  %s6 = scalar_select 0, %s5, %s3
  // Predicated region
  $region2: #{hrnet_forward.20} parent=0 // pred_check
    _
  $region3: #{hrnet_forward.20} parent=0 // pred_check_branch
    %8 = sbr.rel (0) target = $region5
  $region4: #{hrnet_forward.20} parent=0 // pred_region
    _
  $region5: #{hrnet_forward.20} parent=0 // pred_fallthru
    _
  // Predicated region
  $region6: #{hrnet_forward.20} parent=0 // pred_check
    _
  $region7: #{hrnet_forward.20} parent=0 // pred_check_branch
    %10 = sbr.rel (0) target = $region9
  $region8: #{hrnet_forward.20} parent=0 // pred_region
    _
  $region9: #{hrnet_forward.20} parent=0 // pred_fallthru
    _
  %v11 = vld [vmem:[%s1] sm:$0xff]
  %v12 = vld [vmem:[%s1 + $0x8] sm:$0xff]
  %v13 = vunpack.c.l.bf16 %v11
  %v14 = vunpack.c.h.bf16 %v11
  %v15 = vunpack.c.l.bf16 %v12
  %v16 = vunpack.c.h.bf16 %v12
  %v17 = vld [vmem:[%s0] sm:$0xff]
  %v18 = vld [vmem:[%s0 + $0x8] sm:$0xff]
  %v19 = vld [vmem:[%s0 + $0x10] sm:$0xff]
  %v20 = vld [vmem:[%s0 + $0x18] sm:$0xff]
  %v21 = vunpack.c.l.bf16 %v17
  %v22 = vunpack.c.h.bf16 %v17
  %v23 = vunpack.c.l.bf16 %v18
  %v24 = vunpack.c.h.bf16 %v18
  %v25 = vunpack.c.l.bf16 %v19
  %v26 = vunpack.c.h.bf16 %v19
  %v27 = vunpack.c.l.bf16 %v20
  %v28 = vunpack.c.h.bf16 %v20
  %v29 = vadd.f32 %v21, %v13
  %v30 = vadd.f32 %v22, %v14
  %v31 = vadd.f32 %v23, %v15
  %v32 = vadd.f32 %v24, %v16
  %v33 = vmax.f32 %v29, 0.0
  %v34 = vmax.f32 %v30, 0.0
  %v35 = vmax.f32 %v31, 0.0
  %v36 = vmax.f32 %v32, 0.0
  %v37 = vpack.c.bf16 %v33, %v33
  %v38 = vpack.c.bf16 %v34, %v34
  %v39 = vpack.c.bf16 %v35, %v35
  %v40 = vpack.c.bf16 %v36, %v36
  %v45 = vunpack.c.l.b16 %v37
  %v46 = vunpack.c.l.b16 %v38
  %v47 = vunpack.c.l.b16 %v39
  %v48 = vunpack.c.l.b16 %v40
  %v49 = vpack.c.b16 %v46, %v45
  %v50 = vpack.c.b16 %v48, %v47
  %53 = vst [vmem:[%s2] sm:$0xff] %v49
  %54 = vst [vmem:[%s2 + $0x8] sm:$0xff] %v50
  %v55 = vadd.f32 %v25, %v13
  %v56 = vadd.f32 %v26, %v14
  %v57 = vadd.f32 %v27, %v15
  %v58 = vadd.f32 %v28, %v16
  %v59 = vmax.f32 %v55, 0.0
  %v60 = vmax.f32 %v56, 0.0
  %v61 = vmax.f32 %v57, 0.0
  %v62 = vmax.f32 %v58, 0.0
  %v63 = vpack.c.bf16 %v59, %v59
  %v64 = vpack.c.bf16 %v60, %v60
  %v65 = vpack.c.bf16 %v61, %v61
  %v66 = vpack.c.bf16 %v62, %v62
  %v71 = vunpack.c.l.b16 %v63
  %v72 = vunpack.c.l.b16 %v64
  %v73 = vunpack.c.l.b16 %v65
  %v74 = vunpack.c.l.b16 %v66
  %v75 = vpack.c.b16 %v72, %v71
  %v76 = vpack.c.b16 %v74, %v73
  %79 = vst [vmem:[%s2 + $0x10] sm:$0xff] %v75
  %80 = vst [vmem:[%s2 + $0x18] sm:$0xff] %v76
  // Predicated region
  $region10: #{hrnet_forward.20} parent=0 // pred_check
    _
  $region11: #{hrnet_forward.20} parent=0 // pred_check_branch
    %82 = sbr.rel (0) target = $region13
  $region12: #{hrnet_forward.20} parent=0 // pred_region
    _
  $region13: #{hrnet_forward.20} parent=0 // pred_fallthru
    _
  // Predicated region
  $region14: #{hrnet_forward.20} parent=0 // pred_check
    _
  $region15: #{hrnet_forward.20} parent=0 // pred_check_branch
    %84 = sbr.rel (0) target = $region17
  $region16: #{hrnet_forward.20} parent=0 // pred_region
    _
  $region17: #{hrnet_forward.20} parent=0 // pred_fallthru
    _

// kernel: hrnet_forward.23
$region0: #{hrnet_forward.23}
  #allocation0 [shape = 'u32[]', space=smem, size = 0x4, offset = 0x4, fixed_abs, tag = 'smem constant byte address 0x4 - core index']
  #allocation1 [shape = 'u32[144,128]{1,0:T(1,128)}', space=vmem, size = 0x12000, scoped, tag = 'internal scratch']
  #allocation2 [shape = 'f32[1,2048]{1,0:T(1,128)}', space=vmem, size = 0x2000, scoped, tag = 'scratch operand']
  #allocation3 [shape = 'f32[8,2048]{1,0:T(8,128)}', space=vmem, size = 0x10000, scoped, tag = 'scratch operand']
  %s0 = inlined_call_operand.vmem [shape: bf16[32,128], index: 0, kind: input, shape index: {}]
  %s1 = inlined_call_operand.vmem [shape: bf16[128,2048], index: 1, kind: input, shape index: {}]
  %s2 = inlined_call_operand.vmem [shape: f32[1,2048], index: 2, kind: input, shape index: {}]
  %s3 = inlined_call_operand.vmem [shape: f32[1,2048], index: 3, kind: input, shape index: {}]
  %s4 = inlined_call_operand.vmem [shape: f32[2048,128], index: 4, kind: input, shape index: {}]
  %s5 = inlined_call_operand.vmem [shape: f32[1,128], index: 5, kind: input, shape index: {}]
  %s6 = inlined_call_operand.vmem [shape: f32[8,128], index: 6, kind: output, shape index: {}]
  %s7 = sld [smem:[#allocation0]]
  $region73: #{hrnet_forward.23} parent=0
    _
  %s9 = ssub.s32 1, %s7
  %s10 = scalar_select 0, %s9, %s7
  loop: start=0, step=1, limit=4
  $region2: #{hrnet_forward.23} parent=0 // loop_pre_header
    _
  $region3: #{hrnet_forward.23} parent=0 // loop_header
    %s12 = sphi 0, %s16
    %p13 = scmp.ge.s32.totalorder %s12, 4
    %s19 = sphi 0, %s31
    %s20 = sphi 0, %s27
    %s21 = sphi 0, %s19
    %s22 = sphi 0, %s20
    %s23 = sphi 0, %s21
    %s24 = sphi 0, %s22
    %s36 = sphi 0, %s38
    %s39 = sphi 0, %s36
    %s40 = sphi 0, %s39
    %s56 = sphi 0, %s40
    %s60 = sphi 0, %s60
    %s62 = sphi 0, %s60
    %s63 = sphi 0, %s62
    %s77 = sphi 0, %s63
    %s81 = sphi 0, %s81
    %s83 = sphi 0, %s81
    %s84 = sphi 0, %s83
    %s98 = sphi 0, %s84
    %s102 = sphi 0, %s102
    %s104 = sphi 0, %s102
    %s105 = sphi 0, %s104
    %s119 = sphi 0, %s105
    %s123 = sphi 0, %s123
    %s125 = sphi 0, %s123
    %s126 = sphi 0, %s125
    %s140 = sphi 0, %s126
    %s144 = sphi 0, %s144
    %s146 = sphi 0, %s144
    %s147 = sphi 0, %s146
    %s161 = sphi 0, %s147
    %s165 = sphi 0, %s165
    %s167 = sphi 0, %s165
    %s168 = sphi 0, %s167
    %s182 = sphi 0, %s168
  $region4: #{hrnet_forward.23} parent=0 // loop_header_branch
    %15 = sbr.rel (%p13) target = $region8
  $region5: #{hrnet_forward.23} parent=0 // loop_body
    %s17 = ssub.s32 %s12, 1
    %s18 = ssub.s32 %s12, 2
    %s25 = sadd.s32 1, %s20
    %p26 = scmp.ge.s32.totalorder %s25, 1
    %s27 = scalar_select %p26, 0, %s25
    %s28 = sadd.s32 1, %s19
    %s29 = scalar_select %p26, %s28, %s19
    %p30 = scmp.ge.s32.totalorder %s29, 2
    %s31 = scalar_select %p30, 0, %s29
    %s32 = sadd.s32 %s19, %s20
    %s33 = sadd.s32 %s31, %s27
    %s34 = ssub.s32 %s32, %s33
    %p35 = scmp.eq.s32.totalorder %s34, 0
    %s37 = sadd.s32 %s36, 1
    %s38 = scalar_select %p35, %s36, %s37
    %p41 = pneg %p35
    %p42 = scmp.eq.s32.totalorder %s12, 1
    %p43 = por %p41, %p42
    %p44 = scmp.ne.s32.totalorder %s36, %s39
    %p45 = scmp.eq.s32.totalorder %s12, 0
    %p46 = por %p44, %p45
    %p47 = scmp.ne.s32.totalorder %s36, %s39
    %p48 = scmp.eq.s32.totalorder %s17, 1
    %p49 = por %p47, %p48
    %p50 = scmp.ne.s32.totalorder %s39, %s40
    %p51 = scmp.eq.s32.totalorder %s17, 0
    %p52 = por %p50, %p51
    %p53 = scmp.ne.s32.totalorder %s39, %s40
    %p54 = scmp.eq.s32.totalorder %s18, 1
    %p55 = por %p53, %p54
    %p57 = scmp.ne.s32.totalorder %s40, %s56
    %p58 = scmp.eq.s32.totalorder %s18, 0
    %p59 = por %p57, %p58
    %s61 = sadd.s32 %s60, 1
    %p64 = scmp.eq.s32.totalorder %s12, 1
    %p65 = scmp.ne.s32.totalorder %s60, %s62
    %p66 = scmp.eq.s32.totalorder %s12, 0
    %p67 = por %p65, %p66
    %p68 = scmp.ne.s32.totalorder %s60, %s62
    %p69 = scmp.eq.s32.totalorder %s17, 1
    %p70 = por %p68, %p69
    %p71 = scmp.ne.s32.totalorder %s62, %s63
    %p72 = scmp.eq.s32.totalorder %s17, 0
    %p73 = por %p71, %p72
    %p74 = scmp.ne.s32.totalorder %s62, %s63
    %p75 = scmp.eq.s32.totalorder %s18, 1
    %p76 = por %p74, %p75
    %p78 = scmp.ne.s32.totalorder %s63, %s77
    %p79 = scmp.eq.s32.totalorder %s18, 0
    %p80 = por %p78, %p79
    %s82 = sadd.s32 %s81, 1
    %p85 = scmp.eq.s32.totalorder %s12, 1
    %p86 = scmp.ne.s32.totalorder %s81, %s83
    %p87 = scmp.eq.s32.totalorder %s12, 0
    %p88 = por %p86, %p87
    %p89 = scmp.ne.s32.totalorder %s81, %s83
    %p90 = scmp.eq.s32.totalorder %s17, 1
    %p91 = por %p89, %p90
    %p92 = scmp.ne.s32.totalorder %s83, %s84
    %p93 = scmp.eq.s32.totalorder %s17, 0
    %p94 = por %p92, %p93
    %p95 = scmp.ne.s32.totalorder %s83, %s84
    %p96 = scmp.eq.s32.totalorder %s18, 1
    %p97 = por %p95, %p96
    %p99 = scmp.ne.s32.totalorder %s84, %s98
    %p100 = scmp.eq.s32.totalorder %s18, 0
    %p101 = por %p99, %p100
    %s103 = sadd.s32 %s102, 1
    %p106 = scmp.eq.s32.totalorder %s12, 1
    %p107 = scmp.ne.s32.totalorder %s102, %s104
    %p108 = scmp.eq.s32.totalorder %s12, 0
    %p109 = por %p107, %p108
    %p110 = scmp.ne.s32.totalorder %s102, %s104
    %p111 = scmp.eq.s32.totalorder %s17, 1
    %p112 = por %p110, %p111
    %p113 = scmp.ne.s32.totalorder %s104, %s105
    %p114 = scmp.eq.s32.totalorder %s17, 0
    %p115 = por %p113, %p114
    %p116 = scmp.ne.s32.totalorder %s104, %s105
    %p117 = scmp.eq.s32.totalorder %s18, 1
    %p118 = por %p116, %p117
    %p120 = scmp.ne.s32.totalorder %s105, %s119
    %p121 = scmp.eq.s32.totalorder %s18, 0
    %p122 = por %p120, %p121
    %s124 = sadd.s32 %s123, 1
    %p127 = scmp.eq.s32.totalorder %s12, 1
    %p128 = scmp.ne.s32.totalorder %s123, %s125
    %p129 = scmp.eq.s32.totalorder %s12, 0
    %p130 = por %p128, %p129
    %p131 = scmp.ne.s32.totalorder %s123, %s125
    %p132 = scmp.eq.s32.totalorder %s17, 1
    %p133 = por %p131, %p132
    %p134 = scmp.ne.s32.totalorder %s125, %s126
    %p135 = scmp.eq.s32.totalorder %s17, 0
    %p136 = por %p134, %p135
    %p137 = scmp.ne.s32.totalorder %s125, %s126
    %p138 = scmp.eq.s32.totalorder %s18, 1
    %p139 = por %p137, %p138
    %p141 = scmp.ne.s32.totalorder %s126, %s140
    %p142 = scmp.eq.s32.totalorder %s18, 0
    %p143 = por %p141, %p142
    %s145 = sadd.s32 %s144, 1
    %p148 = scmp.eq.s32.totalorder %s12, 1
    %p149 = scmp.ne.s32.totalorder %s144, %s146
    %p150 = scmp.eq.s32.totalorder %s12, 0
    %p151 = por %p149, %p150
    %p152 = scmp.ne.s32.totalorder %s144, %s146
    %p153 = scmp.eq.s32.totalorder %s17, 1
    %p154 = por %p152, %p153
    %p155 = scmp.ne.s32.totalorder %s146, %s147
    %p156 = scmp.eq.s32.totalorder %s17, 0
    %p157 = por %p155, %p156
    %p158 = scmp.ne.s32.totalorder %s146, %s147
    %p159 = scmp.eq.s32.totalorder %s18, 1
    %p160 = por %p158, %p159
    %p162 = scmp.ne.s32.totalorder %s147, %s161
    %p163 = scmp.eq.s32.totalorder %s18, 0
    %p164 = por %p162, %p163
    %s166 = sadd.s32 %s165, 1
    %p169 = scmp.eq.s32.totalorder %s12, 1
    %p170 = scmp.ne.s32.totalorder %s165, %s167
    %p171 = scmp.eq.s32.totalorder %s12, 0
    %p172 = por %p170, %p171
    %p173 = scmp.ne.s32.totalorder %s165, %s167
    %p174 = scmp.eq.s32.totalorder %s17, 1
    %p175 = por %p173, %p174
    %p176 = scmp.ne.s32.totalorder %s167, %s168
    %p177 = scmp.eq.s32.totalorder %s17, 0
    %p178 = por %p176, %p177
    %p179 = scmp.ne.s32.totalorder %s167, %s168
    %p180 = scmp.eq.s32.totalorder %s18, 1
    %p181 = por %p179, %p180
    %p183 = scmp.ne.s32.totalorder %s168, %s182
    %p184 = scmp.eq.s32.totalorder %s18, 0
    %p185 = por %p183, %p184
    %p186 = scmp.le.s32.totalorder 1, %s12
    %p187 = scmp.lt.s32.totalorder %s12, 3
    %p188 = pnand %p186, %p187
    %p189 = pneg %p188
    // Predicated region
    $region9: #{hrnet_forward.23} parent=5 // pred_check
      _
    $region10: #{hrnet_forward.23} parent=5 // pred_check_branch
      %191 = sbr.rel (%p188) target = $region12
    $region11: #{hrnet_forward.23} parent=5 // pred_region
      %s192 = ssub.s32 %s12, 1
      // Predicated region
      $region13: #{hrnet_forward.23} parent=11 // pred_check
        %p193 = pneg %p73
      $region14: #{hrnet_forward.23} parent=11 // pred_check_branch
        %195 = sbr.rel (%p193) target = $region16
      $region15: #{hrnet_forward.23} parent=11 // pred_region
        _
      $region16: #{hrnet_forward.23} parent=11 // pred_fallthru
        _
      // Predicated region
      $region17: #{hrnet_forward.23} parent=11 // pred_check
        %p196 = pneg %p94
      $region18: #{hrnet_forward.23} parent=11 // pred_check_branch
        %198 = sbr.rel (%p196) target = $region20
      $region19: #{hrnet_forward.23} parent=11 // pred_region
        _
      $region20: #{hrnet_forward.23} parent=11 // pred_fallthru
        _
      // Predicated region
      $region21: #{hrnet_forward.23} parent=11 // pred_check
        %p199 = pneg %p115
      $region22: #{hrnet_forward.23} parent=11 // pred_check_branch
        %201 = sbr.rel (%p199) target = $region24
      $region23: #{hrnet_forward.23} parent=11 // pred_region
        _
      $region24: #{hrnet_forward.23} parent=11 // pred_fallthru
        _
      // Predicated region
      $region25: #{hrnet_forward.23} parent=11 // pred_check
        %p202 = pneg %p136
      $region26: #{hrnet_forward.23} parent=11 // pred_check_branch
        %204 = sbr.rel (%p202) target = $region28
      $region27: #{hrnet_forward.23} parent=11 // pred_region
        _
      $region28: #{hrnet_forward.23} parent=11 // pred_fallthru
        _
      // Predicated region
      $region29: #{hrnet_forward.23} parent=11 // pred_check
        %p205 = pneg %p157
      $region30: #{hrnet_forward.23} parent=11 // pred_check_branch
        %207 = sbr.rel (%p205) target = $region32
      $region31: #{hrnet_forward.23} parent=11 // pred_region
        _
      $region32: #{hrnet_forward.23} parent=11 // pred_fallthru
        _
    $region12: #{hrnet_forward.23} parent=5 // pred_fallthru
      _
    %p208 = scmp.lt.s32.totalorder %s12, 2
    // Predicated region
    $region33: #{hrnet_forward.23} parent=5 // pred_check
      %p209 = pneg %p208
    $region34: #{hrnet_forward.23} parent=5 // pred_check_branch
      %211 = sbr.rel (%p209) target = $region36
    $region35: #{hrnet_forward.23} parent=5 // pred_region
      // Predicated region
      $region37: #{hrnet_forward.23} parent=35 // pred_check
        %p212 = pneg %p46
      $region38: #{hrnet_forward.23} parent=35 // pred_check_branch
        %214 = sbr.rel (%p212) target = $region40
      $region39: #{hrnet_forward.23} parent=35 // pred_region
        %s215 = sadd.s32 %s19, %s20
        %s216 = smul.u32 2, %s215
        %p217 = scmp.lt.s32.totalorder %s216, 3
        %s218 = scalar_select %p217, %s216, 3
        %s219 = smul.addr %s218, 4
        %s220 = scalar_lea.vmem %s0, %s219
        %s221 = sadd.s32 %s19, %s20
        %s222 = smul.u32 2, %s221
      $region40: #{hrnet_forward.23} parent=35 // pred_fallthru
        _
    $region36: #{hrnet_forward.23} parent=5 // pred_fallthru
      _
    %p223 = scmp.le.s32.totalorder 1, %s12
    %p224 = scmp.lt.s32.totalorder %s12, 3
    %p225 = pnand %p223, %p224
    %p226 = pneg %p225
    // Predicated region
    $region41: #{hrnet_forward.23} parent=5 // pred_check
      _
    $region42: #{hrnet_forward.23} parent=5 // pred_check_branch
      %228 = sbr.rel (%p225) target = $region44
    $region43: #{hrnet_forward.23} parent=5 // pred_region
      %s229 = ssub.s32 %s12, 1
      %s230 = sadd.s32 %s21, %s22
      %s231 = smul.u32 2, %s230
      %p232 = scmp.lt.s32.totalorder %s231, 3
      %s233 = scalar_select %p232, %s231, 3
      %s234 = smul.addr %s233, 4
      %s235 = scalar_lea.vmem %s0, %s234
      %p236 = pneg %p52
      %p237 = pneg %p49
      %p238 = pneg %p73
      %p239 = pneg %p70
      %p240 = pneg %p94
      %p241 = pneg %p91
      %p242 = pneg %p115
      %p243 = pneg %p112
      %p244 = pneg %p136
      %p245 = pneg %p133
      %p246 = pneg %p157
      %p247 = pneg %p154
      %p248 = pneg %p178
      %p249 = pneg %p175
      %s250 = sadd.s32 %s21, %s22
      %s251 = smul.u32 2, %s250
      %p252 = scmp.lt.s32.totalorder %s251, 3
      %s253 = scalar_select %p252, %s251, 3
      %s254 = smul.addr %s253, 4
      %s255 = scalar_lea.vmem %s0, %s254
      %s256 = sadd.s32 %s21, %s22
      %s257 = smul.u32 2, %s256
      %p259 = scmp.eq.s32.totalorder %s21, 0
      %p260 = scmp.eq.s32.totalorder %s22, 0
      %p261 = pnand %p259, %p260
      %p262 = pneg %p261
      // Predicated region
      $region45: #{hrnet_forward.23} parent=43 // pred_check
        _
      $region46: #{hrnet_forward.23} parent=43 // pred_check_branch
        %264 = sbr.rel (%p261) target = $region48
      $region47: #{hrnet_forward.23} parent=43 // pred_region
        %265 = vst [vmem:[#allocation3] sm:$0xff] 0.0
        %266 = vst [vmem:[#allocation3 + $0x8] sm:$0xff] 0.0
        %267 = vst [vmem:[#allocation3 + $0x10] sm:$0xff] 0.0
        %268 = vst [vmem:[#allocation3 + $0x18] sm:$0xff] 0.0
        %269 = vst [vmem:[#allocation3 + $0x20] sm:$0xff] 0.0
        %270 = vst [vmem:[#allocation3 + $0x28] sm:$0xff] 0.0
        %271 = vst [vmem:[#allocation3 + $0x30] sm:$0xff] 0.0
        %272 = vst [vmem:[#allocation3 + $0x38] sm:$0xff] 0.0
        %273 = vst [vmem:[#allocation3 + $0x40] sm:$0xff] 0.0
        %274 = vst [vmem:[#allocation3 + $0x48] sm:$0xff] 0.0
        %275 = vst [vmem:[#allocation3 + $0x50] sm:$0xff] 0.0
        %276 = vst [vmem:[#allocation3 + $0x58] sm:$0xff] 0.0
        %277 = vst [vmem:[#allocation3 + $0x60] sm:$0xff] 0.0
        %278 = vst [vmem:[#allocation3 + $0x68] sm:$0xff] 0.0
        %279 = vst [vmem:[#allocation3 + $0x70] sm:$0xff] 0.0
        %280 = vst [vmem:[#allocation3 + $0x78] sm:$0xff] 0.0
      $region48: #{hrnet_forward.23} parent=43 // pred_fallthru
        _
      // Predicated region
      $region49: #{hrnet_forward.23} parent=43 // pred_check
        %p281 = pneg %p260
      $region50: #{hrnet_forward.23} parent=43 // pred_check_branch
        %283 = sbr.rel (%p281) target = $region52
      $region51: #{hrnet_forward.23} parent=43 // pred_region
        %284 = vst [vmem:[#allocation2] sm:$0xff] 0.0
        %285 = vst [vmem:[#allocation2 + $0x8] sm:$0xff] 0.0
      $region52: #{hrnet_forward.23} parent=43 // pred_fallthru
        _
      %v286 = vld [vmem:[%s255] sm:$0xf]
      %v287 = vld [vmem:[%s255 + $0x4] sm:$0xf]
      %v288 = vld [vmem:[%s1] sm:$0xff]
      %v289 = vld [vmem:[%s1 + $0x8] sm:$0xff]
      %v290 = vld [vmem:[%s1 + $0x10] sm:$0xff]
      %v291 = vld [vmem:[%s1 + $0x18] sm:$0xff]
      %v292 = vld [vmem:[%s1 + $0x20] sm:$0xff]
      %v293 = vld [vmem:[%s1 + $0x28] sm:$0xff]
      %v294 = vld [vmem:[%s1 + $0x30] sm:$0xff]
      %v295 = vld [vmem:[%s1 + $0x38] sm:$0xff]
      %v296 = vld [vmem:[%s1 + $0x40] sm:$0xff]
      %v297 = vld [vmem:[%s1 + $0x48] sm:$0xff]
      %v298 = vld [vmem:[%s1 + $0x50] sm:$0xff]
      %v299 = vld [vmem:[%s1 + $0x58] sm:$0xff]
      %v300 = vld [vmem:[%s1 + $0x60] sm:$0xff]
      %v301 = vld [vmem:[%s1 + $0x68] sm:$0xff]
      %v302 = vld [vmem:[%s1 + $0x70] sm:$0xff]
      %v303 = vld [vmem:[%s1 + $0x78] sm:$0xff]
      %v304 = vld [vmem:[%s1 + $0x80] sm:$0xff]
      %v305 = vld [vmem:[%s1 + $0x88] sm:$0xff]
      %v306 = vld [vmem:[%s1 + $0x90] sm:$0xff]
      %v307 = vld [vmem:[%s1 + $0x98] sm:$0xff]
      %v308 = vld [vmem:[%s1 + $0xa0] sm:$0xff]
      %v309 = vld [vmem:[%s1 + $0xa8] sm:$0xff]
      %v310 = vld [vmem:[%s1 + $0xb0] sm:$0xff]
      %v311 = vld [vmem:[%s1 + $0xb8] sm:$0xff]
      %v312 = vld [vmem:[%s1 + $0xc0] sm:$0xff]
      %v313 = vld [vmem:[%s1 + $0xc8] sm:$0xff]
      %v314 = vld [vmem:[%s1 + $0xd0] sm:$0xff]
      %v315 = vld [vmem:[%s1 + $0xd8] sm:$0xff]
      %v316 = vld [vmem:[%s1 + $0xe0] sm:$0xff]
      %v317 = vld [vmem:[%s1 + $0xe8] sm:$0xff]
      %v318 = vld [vmem:[%s1 + $0xf0] sm:$0xff]
      %v319 = vld [vmem:[%s1 + $0xf8] sm:$0xff]
      %v320 = vld [vmem:[%s1 + $0x100] sm:$0xff]
      %v321 = vld [vmem:[%s1 + $0x108] sm:$0xff]
      %v322 = vld [vmem:[%s1 + $0x110] sm:$0xff]
      %v323 = vld [vmem:[%s1 + $0x118] sm:$0xff]
      %v324 = vld [vmem:[%s1 + $0x120] sm:$0xff]
      %v325 = vld [vmem:[%s1 + $0x128] sm:$0xff]
      %v326 = vld [vmem:[%s1 + $0x130] sm:$0xff]
      %v327 = vld [vmem:[%s1 + $0x138] sm:$0xff]
      %v328 = vld [vmem:[%s1 + $0x140] sm:$0xff]
      %v329 = vld [vmem:[%s1 + $0x148] sm:$0xff]
      %v330 = vld [vmem:[%s1 + $0x150] sm:$0xff]
      %v331 = vld [vmem:[%s1 + $0x158] sm:$0xff]
      %v332 = vld [vmem:[%s1 + $0x160] sm:$0xff]
      %v333 = vld [vmem:[%s1 + $0x168] sm:$0xff]
      %v334 = vld [vmem:[%s1 + $0x170] sm:$0xff]
      %v335 = vld [vmem:[%s1 + $0x178] sm:$0xff]
      %v336 = vld [vmem:[%s1 + $0x180] sm:$0xff]
      %v337 = vld [vmem:[%s1 + $0x188] sm:$0xff]
      %v338 = vld [vmem:[%s1 + $0x190] sm:$0xff]
      %v339 = vld [vmem:[%s1 + $0x198] sm:$0xff]
      %v340 = vld [vmem:[%s1 + $0x1a0] sm:$0xff]
      %v341 = vld [vmem:[%s1 + $0x1a8] sm:$0xff]
      %v342 = vld [vmem:[%s1 + $0x1b0] sm:$0xff]
      %v343 = vld [vmem:[%s1 + $0x1b8] sm:$0xff]
      %v344 = vld [vmem:[%s1 + $0x1c0] sm:$0xff]
      %v345 = vld [vmem:[%s1 + $0x1c8] sm:$0xff]
      %v346 = vld [vmem:[%s1 + $0x1d0] sm:$0xff]
      %v347 = vld [vmem:[%s1 + $0x1d8] sm:$0xff]
      %v348 = vld [vmem:[%s1 + $0x1e0] sm:$0xff]
      %v349 = vld [vmem:[%s1 + $0x1e8] sm:$0xff]
      %v350 = vld [vmem:[%s1 + $0x1f0] sm:$0xff]
      %v351 = vld [vmem:[%s1 + $0x1f8] sm:$0xff]
      %v352 = vld [vmem:[%s1 + $0x200] sm:$0xff]
      %v353 = vld [vmem:[%s1 + $0x208] sm:$0xff]
      %v354 = vld [vmem:[%s1 + $0x210] sm:$0xff]
      %v355 = vld [vmem:[%s1 + $0x218] sm:$0xff]
      %v356 = vld [vmem:[%s1 + $0x220] sm:$0xff]
      %v357 = vld [vmem:[%s1 + $0x228] sm:$0xff]
      %v358 = vld [vmem:[%s1 + $0x230] sm:$0xff]
      %v359 = vld [vmem:[%s1 + $0x238] sm:$0xff]
      %v360 = vld [vmem:[%s1 + $0x240] sm:$0xff]
      %v361 = vld [vmem:[%s1 + $0x248] sm:$0xff]
      %v362 = vld [vmem:[%s1 + $0x250] sm:$0xff]
      %v363 = vld [vmem:[%s1 + $0x258] sm:$0xff]
      %v364 = vld [vmem:[%s1 + $0x260] sm:$0xff]
      %v365 = vld [vmem:[%s1 + $0x268] sm:$0xff]
      %v366 = vld [vmem:[%s1 + $0x270] sm:$0xff]
      %v367 = vld [vmem:[%s1 + $0x278] sm:$0xff]
      %v368 = vld [vmem:[%s1 + $0x280] sm:$0xff]
      %v369 = vld [vmem:[%s1 + $0x288] sm:$0xff]
      %v370 = vld [vmem:[%s1 + $0x290] sm:$0xff]
      %v371 = vld [vmem:[%s1 + $0x298] sm:$0xff]
      %v372 = vld [vmem:[%s1 + $0x2a0] sm:$0xff]
      %v373 = vld [vmem:[%s1 + $0x2a8] sm:$0xff]
      %v374 = vld [vmem:[%s1 + $0x2b0] sm:$0xff]
      %v375 = vld [vmem:[%s1 + $0x2b8] sm:$0xff]
      %v376 = vld [vmem:[%s1 + $0x2c0] sm:$0xff]
      %v377 = vld [vmem:[%s1 + $0x2c8] sm:$0xff]
      %v378 = vld [vmem:[%s1 + $0x2d0] sm:$0xff]
      %v379 = vld [vmem:[%s1 + $0x2d8] sm:$0xff]
      %v380 = vld [vmem:[%s1 + $0x2e0] sm:$0xff]
      %v381 = vld [vmem:[%s1 + $0x2e8] sm:$0xff]
      %v382 = vld [vmem:[%s1 + $0x2f0] sm:$0xff]
      %v383 = vld [vmem:[%s1 + $0x2f8] sm:$0xff]
      %v384 = vld [vmem:[%s1 + $0x300] sm:$0xff]
      %v385 = vld [vmem:[%s1 + $0x308] sm:$0xff]
      %v386 = vld [vmem:[%s1 + $0x310] sm:$0xff]
      %v387 = vld [vmem:[%s1 + $0x318] sm:$0xff]
      %v388 = vld [vmem:[%s1 + $0x320] sm:$0xff]
      %v389 = vld [vmem:[%s1 + $0x328] sm:$0xff]
      %v390 = vld [vmem:[%s1 + $0x330] sm:$0xff]
      %v391 = vld [vmem:[%s1 + $0x338] sm:$0xff]
      %v392 = vld [vmem:[%s1 + $0x340] sm:$0xff]
      %v393 = vld [vmem:[%s1 + $0x348] sm:$0xff]
      %v394 = vld [vmem:[%s1 + $0x350] sm:$0xff]
      %v395 = vld [vmem:[%s1 + $0x358] sm:$0xff]
      %v396 = vld [vmem:[%s1 + $0x360] sm:$0xff]
      %v397 = vld [vmem:[%s1 + $0x368] sm:$0xff]
      %v398 = vld [vmem:[%s1 + $0x370] sm:$0xff]
      %v399 = vld [vmem:[%s1 + $0x378] sm:$0xff]
      %v400 = vld [vmem:[%s1 + $0x380] sm:$0xff]
      %v401 = vld [vmem:[%s1 + $0x388] sm:$0xff]
      %v402 = vld [vmem:[%s1 + $0x390] sm:$0xff]
      %v403 = vld [vmem:[%s1 + $0x398] sm:$0xff]
      %v404 = vld [vmem:[%s1 + $0x3a0] sm:$0xff]
      %v405 = vld [vmem:[%s1 + $0x3a8] sm:$0xff]
      %v406 = vld [vmem:[%s1 + $0x3b0] sm:$0xff]
      %v407 = vld [vmem:[%s1 + $0x3b8] sm:$0xff]
      %v408 = vld [vmem:[%s1 + $0x3c0] sm:$0xff]
      %v409 = vld [vmem:[%s1 + $0x3c8] sm:$0xff]
      %v410 = vld [vmem:[%s1 + $0x3d0] sm:$0xff]
      %v411 = vld [vmem:[%s1 + $0x3d8] sm:$0xff]
      %v412 = vld [vmem:[%s1 + $0x3e0] sm:$0xff]
      %v413 = vld [vmem:[%s1 + $0x3e8] sm:$0xff]
      %v414 = vld [vmem:[%s1 + $0x3f0] sm:$0xff]
      %v415 = vld [vmem:[%s1 + $0x3f8] sm:$0xff]
      %v418 = vunpack.c.l.b16 %v286
      %v419 = vunpack.c.l.b16 %v287
      %v420 = vpack.c.b16 %v419, %v418
      %v550 = vunpack.c.l.b16 %v288
      %v551 = vunpack.c.h.b16 %v288
      %v552 = vunpack.c.l.b16 %v289
      %v553 = vunpack.c.h.b16 %v289
      %v554 = vunpack.c.l.b16 %v290
      %v555 = vunpack.c.h.b16 %v290
      %v556 = vunpack.c.l.b16 %v291
      %v557 = vunpack.c.h.b16 %v291
      %v558 = vunpack.c.l.b16 %v292
      %v559 = vunpack.c.h.b16 %v292
      %v560 = vunpack.c.l.b16 %v293
      %v561 = vunpack.c.h.b16 %v293
      %v562 = vunpack.c.l.b16 %v294
      %v563 = vunpack.c.h.b16 %v294
      %v564 = vunpack.c.l.b16 %v295
      %v565 = vunpack.c.h.b16 %v295
      %v566 = vunpack.c.l.b16 %v296
      %v567 = vunpack.c.h.b16 %v296
      %v568 = vunpack.c.l.b16 %v297
      %v569 = vunpack.c.h.b16 %v297
      %v570 = vunpack.c.l.b16 %v298
      %v571 = vunpack.c.h.b16 %v298
      %v572 = vunpack.c.l.b16 %v299
      %v573 = vunpack.c.h.b16 %v299
      %v574 = vunpack.c.l.b16 %v300
      %v575 = vunpack.c.h.b16 %v300
      %v576 = vunpack.c.l.b16 %v301
      %v577 = vunpack.c.h.b16 %v301
      %v578 = vunpack.c.l.b16 %v302
      %v579 = vunpack.c.h.b16 %v302
      %v580 = vunpack.c.l.b16 %v303
      %v581 = vunpack.c.h.b16 %v303
      %v582 = vunpack.c.l.b16 %v304
      %v583 = vunpack.c.h.b16 %v304
      %v584 = vunpack.c.l.b16 %v305
      %v585 = vunpack.c.h.b16 %v305
      %v586 = vunpack.c.l.b16 %v306
      %v587 = vunpack.c.h.b16 %v306
      %v588 = vunpack.c.l.b16 %v307
      %v589 = vunpack.c.h.b16 %v307
      %v590 = vunpack.c.l.b16 %v308
      %v591 = vunpack.c.h.b16 %v308
      %v592 = vunpack.c.l.b16 %v309
      %v593 = vunpack.c.h.b16 %v309
      %v594 = vunpack.c.l.b16 %v310
      %v595 = vunpack.c.h.b16 %v310
      %v596 = vunpack.c.l.b16 %v311
      %v597 = vunpack.c.h.b16 %v311
      %v598 = vunpack.c.l.b16 %v312
      %v599 = vunpack.c.h.b16 %v312
      %v600 = vunpack.c.l.b16 %v313
      %v601 = vunpack.c.h.b16 %v313
      %v602 = vunpack.c.l.b16 %v314
      %v603 = vunpack.c.h.b16 %v314
      %v604 = vunpack.c.l.b16 %v315
      %v605 = vunpack.c.h.b16 %v315
      %v606 = vunpack.c.l.b16 %v316
      %v607 = vunpack.c.h.b16 %v316
      %v608 = vunpack.c.l.b16 %v317
      %v609 = vunpack.c.h.b16 %v317
      %v610 = vunpack.c.l.b16 %v318
      %v611 = vunpack.c.h.b16 %v318
      %v612 = vunpack.c.l.b16 %v319
      %v613 = vunpack.c.h.b16 %v319
      %v614 = vunpack.c.l.b16 %v320
      %v615 = vunpack.c.h.b16 %v320
      %v616 = vunpack.c.l.b16 %v321
      %v617 = vunpack.c.h.b16 %v321
      %v618 = vunpack.c.l.b16 %v322
      %v619 = vunpack.c.h.b16 %v322
      %v620 = vunpack.c.l.b16 %v323
      %v621 = vunpack.c.h.b16 %v323
      %v622 = vunpack.c.l.b16 %v324
      %v623 = vunpack.c.h.b16 %v324
      %v624 = vunpack.c.l.b16 %v325
      %v625 = vunpack.c.h.b16 %v325
      %v626 = vunpack.c.l.b16 %v326
      %v627 = vunpack.c.h.b16 %v326
      %v628 = vunpack.c.l.b16 %v327
      %v629 = vunpack.c.h.b16 %v327
      %v630 = vunpack.c.l.b16 %v328
      %v631 = vunpack.c.h.b16 %v328
      %v632 = vunpack.c.l.b16 %v329
      %v633 = vunpack.c.h.b16 %v329
      %v634 = vunpack.c.l.b16 %v330
      %v635 = vunpack.c.h.b16 %v330
      %v636 = vunpack.c.l.b16 %v331
      %v637 = vunpack.c.h.b16 %v331
      %v638 = vunpack.c.l.b16 %v332
      %v639 = vunpack.c.h.b16 %v332
      %v640 = vunpack.c.l.b16 %v333
      %v641 = vunpack.c.h.b16 %v333
      %v642 = vunpack.c.l.b16 %v334
      %v643 = vunpack.c.h.b16 %v334
      %v644 = vunpack.c.l.b16 %v335
      %v645 = vunpack.c.h.b16 %v335
      %v646 = vunpack.c.l.b16 %v336
      %v647 = vunpack.c.h.b16 %v336
      %v648 = vunpack.c.l.b16 %v337
      %v649 = vunpack.c.h.b16 %v337
      %v650 = vunpack.c.l.b16 %v338
      %v651 = vunpack.c.h.b16 %v338
      %v652 = vunpack.c.l.b16 %v339
      %v653 = vunpack.c.h.b16 %v339
      %v654 = vunpack.c.l.b16 %v340
      %v655 = vunpack.c.h.b16 %v340
      %v656 = vunpack.c.l.b16 %v341
      %v657 = vunpack.c.h.b16 %v341
      %v658 = vunpack.c.l.b16 %v342
      %v659 = vunpack.c.h.b16 %v342
      %v660 = vunpack.c.l.b16 %v343
      %v661 = vunpack.c.h.b16 %v343
      %v662 = vunpack.c.l.b16 %v344
      %v663 = vunpack.c.h.b16 %v344
      %v664 = vunpack.c.l.b16 %v345
      %v665 = vunpack.c.h.b16 %v345
      %v666 = vunpack.c.l.b16 %v346
      %v667 = vunpack.c.h.b16 %v346
      %v668 = vunpack.c.l.b16 %v347
      %v669 = vunpack.c.h.b16 %v347
      %v670 = vunpack.c.l.b16 %v348
      %v671 = vunpack.c.h.b16 %v348
      %v672 = vunpack.c.l.b16 %v349
      %v673 = vunpack.c.h.b16 %v349
      %v674 = vunpack.c.l.b16 %v350
      %v675 = vunpack.c.h.b16 %v350
      %v676 = vunpack.c.l.b16 %v351
      %v677 = vunpack.c.h.b16 %v351
      %v678 = vunpack.c.l.b16 %v352
      %v679 = vunpack.c.h.b16 %v352
      %v680 = vunpack.c.l.b16 %v353
      %v681 = vunpack.c.h.b16 %v353
      %v682 = vunpack.c.l.b16 %v354
      %v683 = vunpack.c.h.b16 %v354
      %v684 = vunpack.c.l.b16 %v355
      %v685 = vunpack.c.h.b16 %v355
      %v686 = vunpack.c.l.b16 %v356
      %v687 = vunpack.c.h.b16 %v356
      %v688 = vunpack.c.l.b16 %v357
      %v689 = vunpack.c.h.b16 %v357
      %v690 = vunpack.c.l.b16 %v358
      %v691 = vunpack.c.h.b16 %v358
      %v692 = vunpack.c.l.b16 %v359
      %v693 = vunpack.c.h.b16 %v359
      %v694 = vunpack.c.l.b16 %v360
      %v695 = vunpack.c.h.b16 %v360
      %v696 = vunpack.c.l.b16 %v361
      %v697 = vunpack.c.h.b16 %v361
      %v698 = vunpack.c.l.b16 %v362
      %v699 = vunpack.c.h.b16 %v362
      %v700 = vunpack.c.l.b16 %v363
      %v701 = vunpack.c.h.b16 %v363
      %v702 = vunpack.c.l.b16 %v364
      %v703 = vunpack.c.h.b16 %v364
      %v704 = vunpack.c.l.b16 %v365
      %v705 = vunpack.c.h.b16 %v365
      %v706 = vunpack.c.l.b16 %v366
      %v707 = vunpack.c.h.b16 %v366
      %v708 = vunpack.c.l.b16 %v367
      %v709 = vunpack.c.h.b16 %v367
      %v710 = vunpack.c.l.b16 %v368
      %v711 = vunpack.c.h.b16 %v368
      %v712 = vunpack.c.l.b16 %v369
      %v713 = vunpack.c.h.b16 %v369
      %v714 = vunpack.c.l.b16 %v370
      %v715 = vunpack.c.h.b16 %v370
      %v716 = vunpack.c.l.b16 %v371
      %v717 = vunpack.c.h.b16 %v371
      %v718 = vunpack.c.l.b16 %v372
      %v719 = vunpack.c.h.b16 %v372
      %v720 = vunpack.c.l.b16 %v373
      %v721 = vunpack.c.h.b16 %v373
      %v722 = vunpack.c.l.b16 %v374
      %v723 = vunpack.c.h.b16 %v374
      %v724 = vunpack.c.l.b16 %v375
      %v725 = vunpack.c.h.b16 %v375
      %v726 = vunpack.c.l.b16 %v376
      %v727 = vunpack.c.h.b16 %v376
      %v728 = vunpack.c.l.b16 %v377
      %v729 = vunpack.c.h.b16 %v377
      %v730 = vunpack.c.l.b16 %v378
      %v731 = vunpack.c.h.b16 %v378
      %v732 = vunpack.c.l.b16 %v379
      %v733 = vunpack.c.h.b16 %v379
      %v734 = vunpack.c.l.b16 %v380
      %v735 = vunpack.c.h.b16 %v380
      %v736 = vunpack.c.l.b16 %v381
      %v737 = vunpack.c.h.b16 %v381
      %v738 = vunpack.c.l.b16 %v382
      %v739 = vunpack.c.h.b16 %v382
      %v740 = vunpack.c.l.b16 %v383
      %v741 = vunpack.c.h.b16 %v383
      %v742 = vunpack.c.l.b16 %v384
      %v743 = vunpack.c.h.b16 %v384
      %v744 = vunpack.c.l.b16 %v385
      %v745 = vunpack.c.h.b16 %v385
      %v746 = vunpack.c.l.b16 %v386
      %v747 = vunpack.c.h.b16 %v386
      %v748 = vunpack.c.l.b16 %v387
      %v749 = vunpack.c.h.b16 %v387
      %v750 = vunpack.c.l.b16 %v388
      %v751 = vunpack.c.h.b16 %v388
      %v752 = vunpack.c.l.b16 %v389
      %v753 = vunpack.c.h.b16 %v389
      %v754 = vunpack.c.l.b16 %v390
      %v755 = vunpack.c.h.b16 %v390
      %v756 = vunpack.c.l.b16 %v391
      %v757 = vunpack.c.h.b16 %v391
      %v758 = vunpack.c.l.b16 %v392
      %v759 = vunpack.c.h.b16 %v392
      %v760 = vunpack.c.l.b16 %v393
      %v761 = vunpack.c.h.b16 %v393
      %v762 = vunpack.c.l.b16 %v394
      %v763 = vunpack.c.h.b16 %v394
      %v764 = vunpack.c.l.b16 %v395
      %v765 = vunpack.c.h.b16 %v395
      %v766 = vunpack.c.l.b16 %v396
      %v767 = vunpack.c.h.b16 %v396
      %v768 = vunpack.c.l.b16 %v397
      %v769 = vunpack.c.h.b16 %v397
      %v770 = vunpack.c.l.b16 %v398
      %v771 = vunpack.c.h.b16 %v398
      %v772 = vunpack.c.l.b16 %v399
      %v773 = vunpack.c.h.b16 %v399
      %v774 = vunpack.c.l.b16 %v400
      %v775 = vunpack.c.h.b16 %v400
      %v776 = vunpack.c.l.b16 %v401
      %v777 = vunpack.c.h.b16 %v401
      %v778 = vunpack.c.l.b16 %v402
      %v779 = vunpack.c.h.b16 %v402
      %v780 = vunpack.c.l.b16 %v403
      %v781 = vunpack.c.h.b16 %v403
      %v782 = vunpack.c.l.b16 %v404
      %v783 = vunpack.c.h.b16 %v404
      %v784 = vunpack.c.l.b16 %v405
      %v785 = vunpack.c.h.b16 %v405
      %v786 = vunpack.c.l.b16 %v406
      %v787 = vunpack.c.h.b16 %v406
      %v788 = vunpack.c.l.b16 %v407
      %v789 = vunpack.c.h.b16 %v407
      %v790 = vunpack.c.l.b16 %v408
      %v791 = vunpack.c.h.b16 %v408
      %v792 = vunpack.c.l.b16 %v409
      %v793 = vunpack.c.h.b16 %v409
      %v794 = vunpack.c.l.b16 %v410
      %v795 = vunpack.c.h.b16 %v410
      %v796 = vunpack.c.l.b16 %v411
      %v797 = vunpack.c.h.b16 %v411
      %v798 = vunpack.c.l.b16 %v412
      %v799 = vunpack.c.h.b16 %v412
      %v800 = vunpack.c.l.b16 %v413
      %v801 = vunpack.c.h.b16 %v413
      %v802 = vunpack.c.l.b16 %v414
      %v803 = vunpack.c.h.b16 %v414
      %v804 = vunpack.c.l.b16 %v415
      %v805 = vunpack.c.h.b16 %v415
      %v806 = vpack.c.b16 %v566, %v550
      %v807 = vpack.c.b16 %v567, %v551
      %v808 = vpack.c.b16 %v568, %v552
      %v809 = vpack.c.b16 %v569, %v553
      %v810 = vpack.c.b16 %v570, %v554
      %v811 = vpack.c.b16 %v571, %v555
      %v812 = vpack.c.b16 %v572, %v556
      %v813 = vpack.c.b16 %v573, %v557
      %v814 = vpack.c.b16 %v574, %v558
      %v815 = vpack.c.b16 %v575, %v559
      %v816 = vpack.c.b16 %v576, %v560
      %v817 = vpack.c.b16 %v577, %v561
      %v818 = vpack.c.b16 %v578, %v562
      %v819 = vpack.c.b16 %v579, %v563
      %v820 = vpack.c.b16 %v580, %v564
      %v821 = vpack.c.b16 %v581, %v565
      %v822 = vpack.c.b16 %v598, %v582
      %v823 = vpack.c.b16 %v599, %v583
      %v824 = vpack.c.b16 %v600, %v584
      %v825 = vpack.c.b16 %v601, %v585
      %v826 = vpack.c.b16 %v602, %v586
      %v827 = vpack.c.b16 %v603, %v587
      %v828 = vpack.c.b16 %v604, %v588
      %v829 = vpack.c.b16 %v605, %v589
      %v830 = vpack.c.b16 %v606, %v590
      %v831 = vpack.c.b16 %v607, %v591
      %v832 = vpack.c.b16 %v608, %v592
      %v833 = vpack.c.b16 %v609, %v593
      %v834 = vpack.c.b16 %v610, %v594
      %v835 = vpack.c.b16 %v611, %v595
      %v836 = vpack.c.b16 %v612, %v596
      %v837 = vpack.c.b16 %v613, %v597
      %v838 = vpack.c.b16 %v630, %v614
      %v839 = vpack.c.b16 %v631, %v615
      %v840 = vpack.c.b16 %v632, %v616
      %v841 = vpack.c.b16 %v633, %v617
      %v842 = vpack.c.b16 %v634, %v618
      %v843 = vpack.c.b16 %v635, %v619
      %v844 = vpack.c.b16 %v636, %v620
      %v845 = vpack.c.b16 %v637, %v621
      %v846 = vpack.c.b16 %v638, %v622
      %v847 = vpack.c.b16 %v639, %v623
      %v848 = vpack.c.b16 %v640, %v624
      %v849 = vpack.c.b16 %v641, %v625
      %v850 = vpack.c.b16 %v642, %v626
      %v851 = vpack.c.b16 %v643, %v627
      %v852 = vpack.c.b16 %v644, %v628
      %v853 = vpack.c.b16 %v645, %v629
      %v854 = vpack.c.b16 %v662, %v646
      %v855 = vpack.c.b16 %v663, %v647
      %v856 = vpack.c.b16 %v664, %v648
      %v857 = vpack.c.b16 %v665, %v649
      %v858 = vpack.c.b16 %v666, %v650
      %v859 = vpack.c.b16 %v667, %v651
      %v860 = vpack.c.b16 %v668, %v652
      %v861 = vpack.c.b16 %v669, %v653
      %v862 = vpack.c.b16 %v670, %v654
      %v863 = vpack.c.b16 %v671, %v655
      %v864 = vpack.c.b16 %v672, %v656
      %v865 = vpack.c.b16 %v673, %v657
      %v866 = vpack.c.b16 %v674, %v658
      %v867 = vpack.c.b16 %v675, %v659
      %v868 = vpack.c.b16 %v676, %v660
      %v869 = vpack.c.b16 %v677, %v661
      %v870 = vpack.c.b16 %v694, %v678
      %v871 = vpack.c.b16 %v695, %v679
      %v872 = vpack.c.b16 %v696, %v680
      %v873 = vpack.c.b16 %v697, %v681
      %v874 = vpack.c.b16 %v698, %v682
      %v875 = vpack.c.b16 %v699, %v683
      %v876 = vpack.c.b16 %v700, %v684
      %v877 = vpack.c.b16 %v701, %v685
      %v878 = vpack.c.b16 %v702, %v686
      %v879 = vpack.c.b16 %v703, %v687
      %v880 = vpack.c.b16 %v704, %v688
      %v881 = vpack.c.b16 %v705, %v689
      %v882 = vpack.c.b16 %v706, %v690
      %v883 = vpack.c.b16 %v707, %v691
      %v884 = vpack.c.b16 %v708, %v692
      %v885 = vpack.c.b16 %v709, %v693
      %v886 = vpack.c.b16 %v726, %v710
      %v887 = vpack.c.b16 %v727, %v711
      %v888 = vpack.c.b16 %v728, %v712
      %v889 = vpack.c.b16 %v729, %v713
      %v890 = vpack.c.b16 %v730, %v714
      %v891 = vpack.c.b16 %v731, %v715
      %v892 = vpack.c.b16 %v732, %v716
      %v893 = vpack.c.b16 %v733, %v717
      %v894 = vpack.c.b16 %v734, %v718
      %v895 = vpack.c.b16 %v735, %v719
      %v896 = vpack.c.b16 %v736, %v720
      %v897 = vpack.c.b16 %v737, %v721
      %v898 = vpack.c.b16 %v738, %v722
      %v899 = vpack.c.b16 %v739, %v723
      %v900 = vpack.c.b16 %v740, %v724
      %v901 = vpack.c.b16 %v741, %v725
      %v902 = vpack.c.b16 %v758, %v742
      %v903 = vpack.c.b16 %v759, %v743
      %v904 = vpack.c.b16 %v760, %v744
      %v905 = vpack.c.b16 %v761, %v745
      %v906 = vpack.c.b16 %v762, %v746
      %v907 = vpack.c.b16 %v763, %v747
      %v908 = vpack.c.b16 %v764, %v748
      %v909 = vpack.c.b16 %v765, %v749
      %v910 = vpack.c.b16 %v766, %v750
      %v911 = vpack.c.b16 %v767, %v751
      %v912 = vpack.c.b16 %v768, %v752
      %v913 = vpack.c.b16 %v769, %v753
      %v914 = vpack.c.b16 %v770, %v754
      %v915 = vpack.c.b16 %v771, %v755
      %v916 = vpack.c.b16 %v772, %v756
      %v917 = vpack.c.b16 %v773, %v757
      %v918 = vpack.c.b16 %v790, %v774
      %v919 = vpack.c.b16 %v791, %v775
      %v920 = vpack.c.b16 %v792, %v776
      %v921 = vpack.c.b16 %v793, %v777
      %v922 = vpack.c.b16 %v794, %v778
      %v923 = vpack.c.b16 %v795, %v779
      %v924 = vpack.c.b16 %v796, %v780
      %v925 = vpack.c.b16 %v797, %v781
      %v926 = vpack.c.b16 %v798, %v782
      %v927 = vpack.c.b16 %v799, %v783
      %v928 = vpack.c.b16 %v800, %v784
      %v929 = vpack.c.b16 %v801, %v785
      %v930 = vpack.c.b16 %v802, %v786
      %v931 = vpack.c.b16 %v803, %v787
      %v932 = vpack.c.b16 %v804, %v788
      %v933 = vpack.c.b16 %v805, %v789
      %1062 = vmatprep.subr.bf16.mxu0 %v807
      %1063 = vmatpush1.bf16.msra.mxu0 %v806
      %1064 = vmatprep.subr.bf16.mxu0 %v823
      %1065 = vmatpush1.bf16.msra.mxu0 %v822
      %1066 = vmatprep.subr.bf16.mxu0 %v839
      %1067 = vmatpush1.bf16.msra.mxu0 %v838
      %1068 = vmatprep.subr.bf16.mxu0 %v855
      %1069 = vmatpush1.bf16.msra.mxu0 %v854
      %1070 = vmatprep.subr.bf16.mxu0 %v871
      %1071 = vmatpush1.bf16.msra.mxu0 %v870
      %1072 = vmatprep.subr.bf16.mxu0 %v887
      %1073 = vmatpush1.bf16.msra.mxu0 %v886
      %1074 = vmatprep.subr.bf16.mxu0 %v903
      %1075 = vmatpush1.bf16.msra.mxu0 %v902
      %1076 = vmatprep.subr.bf16.mxu0 %v919
      %1077 = vmatpush1.bf16.msra.mxu0 %v918
      %1078 = vmatprep.subr.bf16.mxu0 0
      %1079 = vmatpush1.bf16.msra.mxu0 0
      %1080 = vmatprep.subr.bf16.mxu0 0
      %1081 = vmatpush1.bf16.msra.mxu0 0
      %1082 = vmatprep.subr.bf16.mxu0 0
      %1083 = vmatpush1.bf16.msra.mxu0 0
      %1084 = vmatprep.subr.bf16.mxu0 0
      %1085 = vmatpush1.bf16.msra.mxu0 0
      %1086 = vmatprep.subr.bf16.mxu0 0
      %1087 = vmatpush1.bf16.msra.mxu0 0
      %1088 = vmatprep.subr.bf16.mxu0 0
      %1089 = vmatpush1.bf16.msra.mxu0 0
      %1090 = vmatprep.subr.bf16.mxu0 0
      %1091 = vmatpush1.bf16.msra.mxu0 0
      %1092 = vmatprep.subr.bf16.mxu0 0
      %1093 = vmatpush1.bf16.msra.mxu0 0
      %1094 = vmatprep.mubr.bf16.mxu0 0
      %1095 = vmatmul.mubr.bf16.gmra.mrb[0].mxu0 %v420
      %v1096 = vpop.f32.mrb[0].mxu0
      %v1097 = vadd.f32 0.0, %v1096
      %v1098 = vpop.f32.mrb[0].mxu0
      %v1099 = vadd.f32 0.0, %v1098
      %v1100 = vpop.f32.mrb[0].mxu0
      %v1101 = vadd.f32 0.0, %v1100
      %v1102 = vpop.f32.mrb[0].mxu0
      %v1103 = vadd.f32 0.0, %v1102
      %1104 = vdwg.mxu0
      %1105 = vmatprep.subr.bf16.mxu0 %v809
      %1106 = vmatpush1.bf16.msra.mxu0 %v808
      %1107 = vmatprep.subr.bf16.mxu0 %v825
      %1108 = vmatpush1.bf16.msra.mxu0 %v824
      %1109 = vmatprep.subr.bf16.mxu0 %v841
      %1110 = vmatpush1.bf16.msra.mxu0 %v840
      %1111 = vmatprep.subr.bf16.mxu0 %v857
      %1112 = vmatpush1.bf16.msra.mxu0 %v856
      %1113 = vmatprep.subr.bf16.mxu0 %v873
      %1114 = vmatpush1.bf16.msra.mxu0 %v872
      %1115 = vmatprep.subr.bf16.mxu0 %v889
      %1116 = vmatpush1.bf16.msra.mxu0 %v888
      %1117 = vmatprep.subr.bf16.mxu0 %v905
      %1118 = vmatpush1.bf16.msra.mxu0 %v904
      %1119 = vmatprep.subr.bf16.mxu0 %v921
      %1120 = vmatpush1.bf16.msra.mxu0 %v920
      %1121 = vmatprep.subr.bf16.mxu0 0
      %1122 = vmatpush1.bf16.msra.mxu0 0
      %1123 = vmatprep.subr.bf16.mxu0 0
      %1124 = vmatpush1.bf16.msra.mxu0 0
      %1125 = vmatprep.subr.bf16.mxu0 0
      %1126 = vmatpush1.bf16.msra.mxu0 0
      %1127 = vmatprep.subr.bf16.mxu0 0
      %1128 = vmatpush1.bf16.msra.mxu0 0
      %1129 = vmatprep.subr.bf16.mxu0 0
      %1130 = vmatpush1.bf16.msra.mxu0 0
      %1131 = vmatprep.subr.bf16.mxu0 0
      %1132 = vmatpush1.bf16.msra.mxu0 0
      %1133 = vmatprep.subr.bf16.mxu0 0
      %1134 = vmatpush1.bf16.msra.mxu0 0
      %1135 = vmatprep.subr.bf16.mxu0 0
      %1136 = vmatpush1.bf16.msra.mxu0 0
      %1137 = vmatprep.mubr.bf16.mxu0 0
      %1138 = vmatmul.mubr.bf16.gmra.mrb[0].mxu0 %v420
      %v1139 = vpop.f32.mrb[0].mxu0
      %v1140 = vadd.f32 0.0, %v1139
      %v1141 = vpop.f32.mrb[0].mxu0
      %v1142 = vadd.f32 0.0, %v1141
      %v1143 = vpop.f32.mrb[0].mxu0
      %v1144 = vadd.f32 0.0, %v1143
      %v1145 = vpop.f32.mrb[0].mxu0
      %v1146 = vadd.f32 0.0, %v1145
      %1147 = vdwg.mxu0
      %1148 = vmatprep.subr.bf16.mxu0 %v811
      %1149 = vmatpush1.bf16.msra.mxu0 %v810
      %1150 = vmatprep.subr.bf16.mxu0 %v827
      %1151 = vmatpush1.bf16.msra.mxu0 %v826
      %1152 = vmatprep.subr.bf16.mxu0 %v843
      %1153 = vmatpush1.bf16.msra.mxu0 %v842
      %1154 = vmatprep.subr.bf16.mxu0 %v859
      %1155 = vmatpush1.bf16.msra.mxu0 %v858
      %1156 = vmatprep.subr.bf16.mxu0 %v875
      %1157 = vmatpush1.bf16.msra.mxu0 %v874
      %1158 = vmatprep.subr.bf16.mxu0 %v891
      %1159 = vmatpush1.bf16.msra.mxu0 %v890
      %1160 = vmatprep.subr.bf16.mxu0 %v907
      %1161 = vmatpush1.bf16.msra.mxu0 %v906
      %1162 = vmatprep.subr.bf16.mxu0 %v923
      %1163 = vmatpush1.bf16.msra.mxu0 %v922
      %1164 = vmatprep.subr.bf16.mxu0 0
      %1165 = vmatpush1.bf16.msra.mxu0 0
      %1166 = vmatprep.subr.bf16.mxu0 0
      %1167 = vmatpush1.bf16.msra.mxu0 0
      %1168 = vmatprep.subr.bf16.mxu0 0
      %1169 = vmatpush1.bf16.msra.mxu0 0
      %1170 = vmatprep.subr.bf16.mxu0 0
      %1171 = vmatpush1.bf16.msra.mxu0 0
      %1172 = vmatprep.subr.bf16.mxu0 0
      %1173 = vmatpush1.bf16.msra.mxu0 0
      %1174 = vmatprep.subr.bf16.mxu0 0
      %1175 = vmatpush1.bf16.msra.mxu0 0
      %1176 = vmatprep.subr.bf16.mxu0 0
      %1177 = vmatpush1.bf16.msra.mxu0 0
      %1178 = vmatprep.subr.bf16.mxu0 0
      %1179 = vmatpush1.bf16.msra.mxu0 0
      %1180 = vmatprep.mubr.bf16.mxu0 0
      %1181 = vmatmul.mubr.bf16.gmra.mrb[0].mxu0 %v420
      %v1182 = vpop.f32.mrb[0].mxu0
      %v1183 = vadd.f32 0.0, %v1182
      %v1184 = vpop.f32.mrb[0].mxu0
      %v1185 = vadd.f32 0.0, %v1184
      %v1186 = vpop.f32.mrb[0].mxu0
      %v1187 = vadd.f32 0.0, %v1186
      %v1188 = vpop.f32.mrb[0].mxu0
      %v1189 = vadd.f32 0.0, %v1188
      %1190 = vdwg.mxu0
      %1191 = vmatprep.subr.bf16.mxu0 %v813
      %1192 = vmatpush1.bf16.msra.mxu0 %v812
      %1193 = vmatprep.subr.bf16.mxu0 %v829
      %1194 = vmatpush1.bf16.msra.mxu0 %v828
      %1195 = vmatprep.subr.bf16.mxu0 %v845
      %1196 = vmatpush1.bf16.msra.mxu0 %v844
      %1197 = vmatprep.subr.bf16.mxu0 %v861
      %1198 = vmatpush1.bf16.msra.mxu0 %v860
      %1199 = vmatprep.subr.bf16.mxu0 %v877
      %1200 = vmatpush1.bf16.msra.mxu0 %v876
      %1201 = vmatprep.subr.bf16.mxu0 %v893
      %1202 = vmatpush1.bf16.msra.mxu0 %v892
      %1203 = vmatprep.subr.bf16.mxu0 %v909
      %1204 = vmatpush1.bf16.msra.mxu0 %v908
      %1205 = vmatprep.subr.bf16.mxu0 %v925
      %1206 = vmatpush1.bf16.msra.mxu0 %v924
      %1207 = vmatprep.subr.bf16.mxu0 0
      %1208 = vmatpush1.bf16.msra.mxu0 0
      %1209 = vmatprep.subr.bf16.mxu0 0
      %1210 = vmatpush1.bf16.msra.mxu0 0
      %1211 = vmatprep.subr.bf16.mxu0 0
      %1212 = vmatpush1.bf16.msra.mxu0 0
      %1213 = vmatprep.subr.bf16.mxu0 0
      %1214 = vmatpush1.bf16.msra.mxu0 0
      %1215 = vmatprep.subr.bf16.mxu0 0
      %1216 = vmatpush1.bf16.msra.mxu0 0
      %1217 = vmatprep.subr.bf16.mxu0 0
      %1218 = vmatpush1.bf16.msra.mxu0 0
      %1219 = vmatprep.subr.bf16.mxu0 0
      %1220 = vmatpush1.bf16.msra.mxu0 0
      %1221 = vmatprep.subr.bf16.mxu0 0
      %1222 = vmatpush1.bf16.msra.mxu0 0
      %1223 = vmatprep.mubr.bf16.mxu0 0
      %1224 = vmatmul.mubr.bf16.gmra.mrb[0].mxu0 %v420
      %v1225 = vpop.f32.mrb[0].mxu0
      %v1226 = vadd.f32 0.0, %v1225
      %v1227 = vpop.f32.mrb[0].mxu0
      %v1228 = vadd.f32 0.0, %v1227
      %v1229 = vpop.f32.mrb[0].mxu0
      %v1230 = vadd.f32 0.0, %v1229
      %v1231 = vpop.f32.mrb[0].mxu0
      %v1232 = vadd.f32 0.0, %v1231
      %1233 = vdwg.mxu0
      %1234 = vmatprep.subr.bf16.mxu0 %v815
      %1235 = vmatpush1.bf16.msra.mxu0 %v814
      %1236 = vmatprep.subr.bf16.mxu0 %v831
      %1237 = vmatpush1.bf16.msra.mxu0 %v830
      %1238 = vmatprep.subr.bf16.mxu0 %v847
      %1239 = vmatpush1.bf16.msra.mxu0 %v846
      %1240 = vmatprep.subr.bf16.mxu0 %v863
      %1241 = vmatpush1.bf16.msra.mxu0 %v862
      %1242 = vmatprep.subr.bf16.mxu0 %v879
      %1243 = vmatpush1.bf16.msra.mxu0 %v878
      %1244 = vmatprep.subr.bf16.mxu0 %v895
      %1245 = vmatpush1.bf16.msra.mxu0 %v894
      %1246 = vmatprep.subr.bf16.mxu0 %v911
      %1247 = vmatpush1.bf16.msra.mxu0 %v910
      %1248 = vmatprep.subr.bf16.mxu0 %v927
      %1249 = vmatpush1.bf16.msra.mxu0 %v926
      %1250 = vmatprep.subr.bf16.mxu0 0
      %1251 = vmatpush1.bf16.msra.mxu0 0
      %1252 = vmatprep.subr.bf16.mxu0 0
      %1253 = vmatpush1.bf16.msra.mxu0 0
      %1254 = vmatprep.subr.bf16.mxu0 0
      %1255 = vmatpush1.bf16.msra.mxu0 0
      %1256 = vmatprep.subr.bf16.mxu0 0
      %1257 = vmatpush1.bf16.msra.mxu0 0
      %1258 = vmatprep.subr.bf16.mxu0 0
      %1259 = vmatpush1.bf16.msra.mxu0 0
      %1260 = vmatprep.subr.bf16.mxu0 0
      %1261 = vmatpush1.bf16.msra.mxu0 0
      %1262 = vmatprep.subr.bf16.mxu0 0
      %1263 = vmatpush1.bf16.msra.mxu0 0
      %1264 = vmatprep.subr.bf16.mxu0 0
      %1265 = vmatpush1.bf16.msra.mxu0 0
      %1266 = vmatprep.mubr.bf16.mxu0 0
      %1267 = vmatmul.mubr.bf16.gmra.mrb[0].mxu0 %v420
      %v1268 = vpop.f32.mrb[0].mxu0
      %v1269 = vadd.f32 0.0, %v1268
      %v1270 = vpop.f32.mrb[0].mxu0
      %v1271 = vadd.f32 0.0, %v1270
      %v1272 = vpop.f32.mrb[0].mxu0
      %v1273 = vadd.f32 0.0, %v1272
      %v1274 = vpop.f32.mrb[0].mxu0
      %v1275 = vadd.f32 0.0, %v1274
      %1276 = vdwg.mxu0
      %1277 = vmatprep.subr.bf16.mxu0 %v817
      %1278 = vmatpush1.bf16.msra.mxu0 %v816
      %1279 = vmatprep.subr.bf16.mxu0 %v833
      %1280 = vmatpush1.bf16.msra.mxu0 %v832
      %1281 = vmatprep.subr.bf16.mxu0 %v849
      %1282 = vmatpush1.bf16.msra.mxu0 %v848
      %1283 = vmatprep.subr.bf16.mxu0 %v865
      %1284 = vmatpush1.bf16.msra.mxu0 %v864
      %1285 = vmatprep.subr.bf16.mxu0 %v881
      %1286 = vmatpush1.bf16.msra.mxu0 %v880
      %1287 = vmatprep.subr.bf16.mxu0 %v897
      %1288 = vmatpush1.bf16.msra.mxu0 %v896
      %1289 = vmatprep.subr.bf16.mxu0 %v913
      %1290 = vmatpush1.bf16.msra.mxu0 %v912
      %1291 = vmatprep.subr.bf16.mxu0 %v929
      %1292 = vmatpush1.bf16.msra.mxu0 %v928
      %1293 = vmatprep.subr.bf16.mxu0 0
      %1294 = vmatpush1.bf16.msra.mxu0 0
      %1295 = vmatprep.subr.bf16.mxu0 0
      %1296 = vmatpush1.bf16.msra.mxu0 0
      %1297 = vmatprep.subr.bf16.mxu0 0
      %1298 = vmatpush1.bf16.msra.mxu0 0
      %1299 = vmatprep.subr.bf16.mxu0 0
      %1300 = vmatpush1.bf16.msra.mxu0 0
      %1301 = vmatprep.subr.bf16.mxu0 0
      %1302 = vmatpush1.bf16.msra.mxu0 0
      %1303 = vmatprep.subr.bf16.mxu0 0
      %1304 = vmatpush1.bf16.msra.mxu0 0
      %1305 = vmatprep.subr.bf16.mxu0 0
      %1306 = vmatpush1.bf16.msra.mxu0 0
      %1307 = vmatprep.subr.bf16.mxu0 0
      %1308 = vmatpush1.bf16.msra.mxu0 0
      %1309 = vmatprep.mubr.bf16.mxu0 0
      %1310 = vmatmul.mubr.bf16.gmra.mrb[0].mxu0 %v420
      %v1311 = vpop.f32.mrb[0].mxu0
      %v1312 = vadd.f32 0.0, %v1311
      %v1313 = vpop.f32.mrb[0].mxu0
      %v1314 = vadd.f32 0.0, %v1313
      %v1315 = vpop.f32.mrb[0].mxu0
      %v1316 = vadd.f32 0.0, %v1315
      %v1317 = vpop.f32.mrb[0].mxu0
      %v1318 = vadd.f32 0.0, %v1317
      %1319 = vdwg.mxu0
      %1320 = vmatprep.subr.bf16.mxu0 %v819
      %1321 = vmatpush1.bf16.msra.mxu0 %v818
      %1322 = vmatprep.subr.bf16.mxu0 %v835
      %1323 = vmatpush1.bf16.msra.mxu0 %v834
      %1324 = vmatprep.subr.bf16.mxu0 %v851
      %1325 = vmatpush1.bf16.msra.mxu0 %v850
      %1326 = vmatprep.subr.bf16.mxu0 %v867
      %1327 = vmatpush1.bf16.msra.mxu0 %v866
      %1328 = vmatprep.subr.bf16.mxu0 %v883
      %1329 = vmatpush1.bf16.msra.mxu0 %v882
      %1330 = vmatprep.subr.bf16.mxu0 %v899
      %1331 = vmatpush1.bf16.msra.mxu0 %v898
      %1332 = vmatprep.subr.bf16.mxu0 %v915
      %1333 = vmatpush1.bf16.msra.mxu0 %v914
      %1334 = vmatprep.subr.bf16.mxu0 %v931
      %1335 = vmatpush1.bf16.msra.mxu0 %v930
      %1336 = vmatprep.subr.bf16.mxu0 0
      %1337 = vmatpush1.bf16.msra.mxu0 0
      %1338 = vmatprep.subr.bf16.mxu0 0
      %1339 = vmatpush1.bf16.msra.mxu0 0
      %1340 = vmatprep.subr.bf16.mxu0 0
      %1341 = vmatpush1.bf16.msra.mxu0 0
      %1342 = vmatprep.subr.bf16.mxu0 0
      %1343 = vmatpush1.bf16.msra.mxu0 0
      %1344 = vmatprep.subr.bf16.mxu0 0
      %1345 = vmatpush1.bf16.msra.mxu0 0
      %1346 = vmatprep.subr.bf16.mxu0 0
      %1347 = vmatpush1.bf16.msra.mxu0 0
      %1348 = vmatprep.subr.bf16.mxu0 0
      %1349 = vmatpush1.bf16.msra.mxu0 0
      %1350 = vmatprep.subr.bf16.mxu0 0
      %1351 = vmatpush1.bf16.msra.mxu0 0
      %1352 = vmatprep.mubr.bf16.mxu0 0
      %1353 = vmatmul.mubr.bf16.gmra.mrb[0].mxu0 %v420
      %v1354 = vpop.f32.mrb[0].mxu0
      %v1355 = vadd.f32 0.0, %v1354
      %v1356 = vpop.f32.mrb[0].mxu0
      %v1357 = vadd.f32 0.0, %v1356
      %v1358 = vpop.f32.mrb[0].mxu0
      %v1359 = vadd.f32 0.0, %v1358
      %v1360 = vpop.f32.mrb[0].mxu0
      %v1361 = vadd.f32 0.0, %v1360
      %1362 = vdwg.mxu0
      %1363 = vmatprep.subr.bf16.mxu0 %v821
      %1364 = vmatpush1.bf16.msra.mxu0 %v820
      %1365 = vmatprep.subr.bf16.mxu0 %v837
      %1366 = vmatpush1.bf16.msra.mxu0 %v836
      %1367 = vmatprep.subr.bf16.mxu0 %v853
      %1368 = vmatpush1.bf16.msra.mxu0 %v852
      %1369 = vmatprep.subr.bf16.mxu0 %v869
      %1370 = vmatpush1.bf16.msra.mxu0 %v868
      %1371 = vmatprep.subr.bf16.mxu0 %v885
      %1372 = vmatpush1.bf16.msra.mxu0 %v884
      %1373 = vmatprep.subr.bf16.mxu0 %v901
      %1374 = vmatpush1.bf16.msra.mxu0 %v900
      %1375 = vmatprep.subr.bf16.mxu0 %v917
      %1376 = vmatpush1.bf16.msra.mxu0 %v916
      %1377 = vmatprep.subr.bf16.mxu0 %v933
      %1378 = vmatpush1.bf16.msra.mxu0 %v932
      %1379 = vmatprep.subr.bf16.mxu0 0
      %1380 = vmatpush1.bf16.msra.mxu0 0
      %1381 = vmatprep.subr.bf16.mxu0 0
      %1382 = vmatpush1.bf16.msra.mxu0 0
      %1383 = vmatprep.subr.bf16.mxu0 0
      %1384 = vmatpush1.bf16.msra.mxu0 0
      %1385 = vmatprep.subr.bf16.mxu0 0
      %1386 = vmatpush1.bf16.msra.mxu0 0
      %1387 = vmatprep.subr.bf16.mxu0 0
      %1388 = vmatpush1.bf16.msra.mxu0 0
      %1389 = vmatprep.subr.bf16.mxu0 0
      %1390 = vmatpush1.bf16.msra.mxu0 0
      %1391 = vmatprep.subr.bf16.mxu0 0
      %1392 = vmatpush1.bf16.msra.mxu0 0
      %1393 = vmatprep.subr.bf16.mxu0 0
      %1394 = vmatpush1.bf16.msra.mxu0 0
      %1395 = vmatprep.mubr.bf16.mxu0 0
      %1396 = vmatmul.mubr.bf16.gmra.mrb[0].mxu0 %v420
      %v1397 = vpop.f32.mrb[0].mxu0
      %v1398 = vadd.f32 0.0, %v1397
      %v1399 = vpop.f32.mrb[0].mxu0
      %v1400 = vadd.f32 0.0, %v1399
      %v1401 = vpop.f32.mrb[0].mxu0
      %v1402 = vadd.f32 0.0, %v1401
      %v1403 = vpop.f32.mrb[0].mxu0
      %v1404 = vadd.f32 0.0, %v1403
      %1405 = vdwg.mxu0
      %v1406 = vld [vmem:[%s2] sm:$0xff]
      %v1407 = vld [vmem:[%s2 + $0x8] sm:$0xff]
      %v1410 = vlaneseq
      %v1411 = vshrl.u32 %v1410, 7
      %v1412 = vsub.s32 0, %v1411
      %v1413 = vrot.slane %v1406, %v1412
      %v1414 = vlaneseq
      %v1415 = vshrl.u32 %v1414, 7
      %v1416 = vsub.s32 1, %v1415
      %v1417 = vrot.slane %v1406, %v1416
      %v1418 = vlaneseq
      %v1419 = vshrl.u32 %v1418, 7
      %v1420 = vsub.s32 2, %v1419
      %v1421 = vrot.slane %v1406, %v1420
      %v1422 = vlaneseq
      %v1423 = vshrl.u32 %v1422, 7
      %v1424 = vsub.s32 3, %v1423
      %v1425 = vrot.slane %v1406, %v1424
      %v1426 = vlaneseq
      %v1427 = vshrl.u32 %v1426, 7
      %v1428 = vsub.s32 4, %v1427
      %v1429 = vrot.slane %v1406, %v1428
      %v1430 = vlaneseq
      %v1431 = vshrl.u32 %v1430, 7
      %v1432 = vsub.s32 5, %v1431
      %v1433 = vrot.slane %v1406, %v1432
      %v1434 = vlaneseq
      %v1435 = vshrl.u32 %v1434, 7
      %v1436 = vsub.s32 6, %v1435
      %v1437 = vrot.slane %v1406, %v1436
      %v1438 = vlaneseq
      %v1439 = vshrl.u32 %v1438, 7
      %v1440 = vsub.s32 7, %v1439
      %v1441 = vrot.slane %v1406, %v1440
      %v1442 = vlaneseq
      %v1443 = vshrl.u32 %v1442, 7
      %v1444 = vsub.s32 0, %v1443
      %v1445 = vrot.slane %v1407, %v1444
      %v1446 = vlaneseq
      %v1447 = vshrl.u32 %v1446, 7
      %v1448 = vsub.s32 1, %v1447
      %v1449 = vrot.slane %v1407, %v1448
      %v1450 = vlaneseq
      %v1451 = vshrl.u32 %v1450, 7
      %v1452 = vsub.s32 2, %v1451
      %v1453 = vrot.slane %v1407, %v1452
      %v1454 = vlaneseq
      %v1455 = vshrl.u32 %v1454, 7
      %v1456 = vsub.s32 3, %v1455
      %v1457 = vrot.slane %v1407, %v1456
      %v1458 = vlaneseq
      %v1459 = vshrl.u32 %v1458, 7
      %v1460 = vsub.s32 4, %v1459
      %v1461 = vrot.slane %v1407, %v1460
      %v1462 = vlaneseq
      %v1463 = vshrl.u32 %v1462, 7
      %v1464 = vsub.s32 5, %v1463
      %v1465 = vrot.slane %v1407, %v1464
      %v1466 = vlaneseq
      %v1467 = vshrl.u32 %v1466, 7
      %v1468 = vsub.s32 6, %v1467
      %v1469 = vrot.slane %v1407, %v1468
      %v1470 = vlaneseq
      %v1471 = vshrl.u32 %v1470, 7
      %v1472 = vsub.s32 7, %v1471
      %v1473 = vrot.slane %v1407, %v1472
      %v1490 = vmul.f32 %v1097, %v1413
      %v1491 = vmul.f32 %v1099, %v1417
      %v1492 = vmul.f32 %v1140, %v1421
      %v1493 = vmul.f32 %v1142, %v1425
      %v1494 = vmul.f32 %v1183, %v1429
      %v1495 = vmul.f32 %v1185, %v1433
      %v1496 = vmul.f32 %v1226, %v1437
      %v1497 = vmul.f32 %v1228, %v1441
      %v1498 = vmul.f32 %v1269, %v1445
      %v1499 = vmul.f32 %v1271, %v1449
      %v1500 = vmul.f32 %v1312, %v1453
      %v1501 = vmul.f32 %v1314, %v1457
      %v1502 = vmul.f32 %v1355, %v1461
      %v1503 = vmul.f32 %v1357, %v1465
      %v1504 = vmul.f32 %v1398, %v1469
      %v1505 = vmul.f32 %v1400, %v1473
      %v1506 = vmul.f32 %v1101, %v1413
      %v1507 = vmul.f32 %v1103, %v1417
      %v1508 = vmul.f32 %v1144, %v1421
      %v1509 = vmul.f32 %v1146, %v1425
      %v1510 = vmul.f32 %v1187, %v1429
      %v1511 = vmul.f32 %v1189, %v1433
      %v1512 = vmul.f32 %v1230, %v1437
      %v1513 = vmul.f32 %v1232, %v1441
      %v1514 = vmul.f32 %v1273, %v1445
      %v1515 = vmul.f32 %v1275, %v1449
      %v1516 = vmul.f32 %v1316, %v1453
      %v1517 = vmul.f32 %v1318, %v1457
      %v1518 = vmul.f32 %v1359, %v1461
      %v1519 = vmul.f32 %v1361, %v1465
      %v1520 = vmul.f32 %v1402, %v1469
      %v1521 = vmul.f32 %v1404, %v1473
      %v1522 = vld [vmem:[%s3] sm:$0xff]
      %v1523 = vld [vmem:[%s3 + $0x8] sm:$0xff]
      %v1526 = vlaneseq
      %v1527 = vshrl.u32 %v1526, 7
      %v1528 = vsub.s32 0, %v1527
      %v1529 = vrot.slane %v1522, %v1528
      %v1530 = vlaneseq
      %v1531 = vshrl.u32 %v1530, 7
      %v1532 = vsub.s32 1, %v1531
      %v1533 = vrot.slane %v1522, %v1532
      %v1534 = vlaneseq
      %v1535 = vshrl.u32 %v1534, 7
      %v1536 = vsub.s32 2, %v1535
      %v1537 = vrot.slane %v1522, %v1536
      %v1538 = vlaneseq
      %v1539 = vshrl.u32 %v1538, 7
      %v1540 = vsub.s32 3, %v1539
      %v1541 = vrot.slane %v1522, %v1540
      %v1542 = vlaneseq
      %v1543 = vshrl.u32 %v1542, 7
      %v1544 = vsub.s32 4, %v1543
      %v1545 = vrot.slane %v1522, %v1544
      %v1546 = vlaneseq
      %v1547 = vshrl.u32 %v1546, 7
      %v1548 = vsub.s32 5, %v1547
      %v1549 = vrot.slane %v1522, %v1548
      %v1550 = vlaneseq
      %v1551 = vshrl.u32 %v1550, 7
      %v1552 = vsub.s32 6, %v1551
      %v1553 = vrot.slane %v1522, %v1552
      %v1554 = vlaneseq
      %v1555 = vshrl.u32 %v1554, 7
      %v1556 = vsub.s32 7, %v1555
      %v1557 = vrot.slane %v1522, %v1556
      %v1558 = vlaneseq
      %v1559 = vshrl.u32 %v1558, 7
      %v1560 = vsub.s32 0, %v1559
      %v1561 = vrot.slane %v1523, %v1560
      %v1562 = vlaneseq
      %v1563 = vshrl.u32 %v1562, 7
      %v1564 = vsub.s32 1, %v1563
      %v1565 = vrot.slane %v1523, %v1564
      %v1566 = vlaneseq
      %v1567 = vshrl.u32 %v1566, 7
      %v1568 = vsub.s32 2, %v1567
      %v1569 = vrot.slane %v1523, %v1568
      %v1570 = vlaneseq
      %v1571 = vshrl.u32 %v1570, 7
      %v1572 = vsub.s32 3, %v1571
      %v1573 = vrot.slane %v1523, %v1572
      %v1574 = vlaneseq
      %v1575 = vshrl.u32 %v1574, 7
      %v1576 = vsub.s32 4, %v1575
      %v1577 = vrot.slane %v1523, %v1576
      %v1578 = vlaneseq
      %v1579 = vshrl.u32 %v1578, 7
      %v1580 = vsub.s32 5, %v1579
      %v1581 = vrot.slane %v1523, %v1580
      %v1582 = vlaneseq
      %v1583 = vshrl.u32 %v1582, 7
      %v1584 = vsub.s32 6, %v1583
      %v1585 = vrot.slane %v1523, %v1584
      %v1586 = vlaneseq
      %v1587 = vshrl.u32 %v1586, 7
      %v1588 = vsub.s32 7, %v1587
      %v1589 = vrot.slane %v1523, %v1588
      %v1606 = vadd.f32 %v1490, %v1529
      %v1607 = vadd.f32 %v1491, %v1533
      %v1608 = vadd.f32 %v1492, %v1537
      %v1609 = vadd.f32 %v1493, %v1541
      %v1610 = vadd.f32 %v1494, %v1545
      %v1611 = vadd.f32 %v1495, %v1549
      %v1612 = vadd.f32 %v1496, %v1553
      %v1613 = vadd.f32 %v1497, %v1557
      %v1614 = vadd.f32 %v1498, %v1561
      %v1615 = vadd.f32 %v1499, %v1565
      %v1616 = vadd.f32 %v1500, %v1569
      %v1617 = vadd.f32 %v1501, %v1573
      %v1618 = vadd.f32 %v1502, %v1577
      %v1619 = vadd.f32 %v1503, %v1581
      %v1620 = vadd.f32 %v1504, %v1585
      %v1621 = vadd.f32 %v1505, %v1589
      %v1622 = vadd.f32 %v1506, %v1529
      %v1623 = vadd.f32 %v1507, %v1533
      %v1624 = vadd.f32 %v1508, %v1537
      %v1625 = vadd.f32 %v1509, %v1541
      %v1626 = vadd.f32 %v1510, %v1545
      %v1627 = vadd.f32 %v1511, %v1549
      %v1628 = vadd.f32 %v1512, %v1553
      %v1629 = vadd.f32 %v1513, %v1557
      %v1630 = vadd.f32 %v1514, %v1561
      %v1631 = vadd.f32 %v1515, %v1565
      %v1632 = vadd.f32 %v1516, %v1569
      %v1633 = vadd.f32 %v1517, %v1573
      %v1634 = vadd.f32 %v1518, %v1577
      %v1635 = vadd.f32 %v1519, %v1581
      %v1636 = vadd.f32 %v1520, %v1585
      %v1637 = vadd.f32 %v1521, %v1589
      %v1638 = vmax.f32 %v1606, 0.0
      %v1639 = vmax.f32 %v1607, 0.0
      %v1640 = vmax.f32 %v1608, 0.0
      %v1641 = vmax.f32 %v1609, 0.0
      %v1642 = vmax.f32 %v1610, 0.0
      %v1643 = vmax.f32 %v1611, 0.0
      %v1644 = vmax.f32 %v1612, 0.0
      %v1645 = vmax.f32 %v1613, 0.0
      %v1646 = vmax.f32 %v1614, 0.0
      %v1647 = vmax.f32 %v1615, 0.0
      %v1648 = vmax.f32 %v1616, 0.0
      %v1649 = vmax.f32 %v1617, 0.0
      %v1650 = vmax.f32 %v1618, 0.0
      %v1651 = vmax.f32 %v1619, 0.0
      %v1652 = vmax.f32 %v1620, 0.0
      %v1653 = vmax.f32 %v1621, 0.0
      %v1654 = vmax.f32 %v1622, 0.0
      %v1655 = vmax.f32 %v1623, 0.0
      %v1656 = vmax.f32 %v1624, 0.0
      %v1657 = vmax.f32 %v1625, 0.0
      %v1658 = vmax.f32 %v1626, 0.0
      %v1659 = vmax.f32 %v1627, 0.0
      %v1660 = vmax.f32 %v1628, 0.0
      %v1661 = vmax.f32 %v1629, 0.0
      %v1662 = vmax.f32 %v1630, 0.0
      %v1663 = vmax.f32 %v1631, 0.0
      %v1664 = vmax.f32 %v1632, 0.0
      %v1665 = vmax.f32 %v1633, 0.0
      %v1666 = vmax.f32 %v1634, 0.0
      %v1667 = vmax.f32 %v1635, 0.0
      %v1668 = vmax.f32 %v1636, 0.0
      %v1669 = vmax.f32 %v1637, 0.0
      %s1670 = smul.u32 %s22, 16
      %v1671 = vlaneseq
      %v1672 = vshrl.u32 %v1671, 7
      %v1673 = vadd.s32 %v1672, 8
      %v1674 = vstv %s1670
      %v1675 = vadd.s32 %v1674, %v1672
      %v1676 = vadd.s32 %v1674, %v1673
      %vm1677 = vcmp.lt.s32.totalorder %v1675, 16
      %vm1678 = vcmp.lt.s32.totalorder %v1676, 16
      %v1679 = vsel %vm1677, 1, 0
      %v1680 = vsel %vm1678, 1, 0
      %vm1681 = vcmp.eq.s32.totalorder %v1679, 1
      %vm1682 = vcmp.eq.s32.totalorder %v1680, 1
      %v1683 = vsel %vm1681, %v1638, 0.0
      %v1684 = vsel %vm1681, %v1639, 0.0
      %v1685 = vsel %vm1681, %v1640, 0.0
      %v1686 = vsel %vm1681, %v1641, 0.0
      %v1687 = vsel %vm1681, %v1642, 0.0
      %v1688 = vsel %vm1681, %v1643, 0.0
      %v1689 = vsel %vm1681, %v1644, 0.0
      %v1690 = vsel %vm1681, %v1645, 0.0
      %v1691 = vsel %vm1681, %v1646, 0.0
      %v1692 = vsel %vm1681, %v1647, 0.0
      %v1693 = vsel %vm1681, %v1648, 0.0
      %v1694 = vsel %vm1681, %v1649, 0.0
      %v1695 = vsel %vm1681, %v1650, 0.0
      %v1696 = vsel %vm1681, %v1651, 0.0
      %v1697 = vsel %vm1681, %v1652, 0.0
      %v1698 = vsel %vm1681, %v1653, 0.0
      %v1699 = vsel %vm1682, %v1654, 0.0
      %v1700 = vsel %vm1682, %v1655, 0.0
      %v1701 = vsel %vm1682, %v1656, 0.0
      %v1702 = vsel %vm1682, %v1657, 0.0
      %v1703 = vsel %vm1682, %v1658, 0.0
      %v1704 = vsel %vm1682, %v1659, 0.0
      %v1705 = vsel %vm1682, %v1660, 0.0
      %v1706 = vsel %vm1682, %v1661, 0.0
      %v1707 = vsel %vm1682, %v1662, 0.0
      %v1708 = vsel %vm1682, %v1663, 0.0
      %v1709 = vsel %vm1682, %v1664, 0.0
      %v1710 = vsel %vm1682, %v1665, 0.0
      %v1711 = vsel %vm1682, %v1666, 0.0
      %v1712 = vsel %vm1682, %v1667, 0.0
      %v1713 = vsel %vm1682, %v1668, 0.0
      %v1714 = vsel %vm1682, %v1669, 0.0
      %v1715 = vld [vmem:[#allocation2] sm:$0xff]
      %v1716 = vld [vmem:[#allocation2 + $0x8] sm:$0xff]
      %v1717 = vadd.f32 %v1683, %v1699
      %v1718 = vrot.slane %v1717, 4
      %v1719 = vadd.f32 %v1717, %v1718
      %v1720 = vrot.slane %v1719, 2
      %v1721 = vadd.f32 %v1719, %v1720
      %v1722 = vrot.slane %v1721, 1
      %v1723 = vadd.f32 %v1721, %v1722
      %v1724 = vadd.f32 %v1684, %v1700
      %v1725 = vrot.slane %v1724, 4
      %v1726 = vadd.f32 %v1724, %v1725
      %v1727 = vrot.slane %v1726, 2
      %v1728 = vadd.f32 %v1726, %v1727
      %v1729 = vrot.slane %v1728, 1
      %v1730 = vadd.f32 %v1728, %v1729
      %v1731 = vadd.f32 %v1685, %v1701
      %v1732 = vrot.slane %v1731, 4
      %v1733 = vadd.f32 %v1731, %v1732
      %v1734 = vrot.slane %v1733, 2
      %v1735 = vadd.f32 %v1733, %v1734
      %v1736 = vrot.slane %v1735, 1
      %v1737 = vadd.f32 %v1735, %v1736
      %v1738 = vadd.f32 %v1686, %v1702
      %v1739 = vrot.slane %v1738, 4
      %v1740 = vadd.f32 %v1738, %v1739
      %v1741 = vrot.slane %v1740, 2
      %v1742 = vadd.f32 %v1740, %v1741
      %v1743 = vrot.slane %v1742, 1
      %v1744 = vadd.f32 %v1742, %v1743
      %v1745 = vadd.f32 %v1687, %v1703
      %v1746 = vrot.slane %v1745, 4
      %v1747 = vadd.f32 %v1745, %v1746
      %v1748 = vrot.slane %v1747, 2
      %v1749 = vadd.f32 %v1747, %v1748
      %v1750 = vrot.slane %v1749, 1
      %v1751 = vadd.f32 %v1749, %v1750
      %v1752 = vadd.f32 %v1688, %v1704
      %v1753 = vrot.slane %v1752, 4
      %v1754 = vadd.f32 %v1752, %v1753
      %v1755 = vrot.slane %v1754, 2
      %v1756 = vadd.f32 %v1754, %v1755
      %v1757 = vrot.slane %v1756, 1
      %v1758 = vadd.f32 %v1756, %v1757
      %v1759 = vadd.f32 %v1689, %v1705
      %v1760 = vrot.slane %v1759, 4
      %v1761 = vadd.f32 %v1759, %v1760
      %v1762 = vrot.slane %v1761, 2
      %v1763 = vadd.f32 %v1761, %v1762
      %v1764 = vrot.slane %v1763, 1
      %v1765 = vadd.f32 %v1763, %v1764
      %v1766 = vadd.f32 %v1690, %v1706
      %v1767 = vrot.slane %v1766, 4
      %v1768 = vadd.f32 %v1766, %v1767
      %v1769 = vrot.slane %v1768, 2
      %v1770 = vadd.f32 %v1768, %v1769
      %v1771 = vrot.slane %v1770, 1
      %v1772 = vadd.f32 %v1770, %v1771
      %v1773 = vadd.f32 %v1691, %v1707
      %v1774 = vrot.slane %v1773, 4
      %v1775 = vadd.f32 %v1773, %v1774
      %v1776 = vrot.slane %v1775, 2
      %v1777 = vadd.f32 %v1775, %v1776
      %v1778 = vrot.slane %v1777, 1
      %v1779 = vadd.f32 %v1777, %v1778
      %v1780 = vadd.f32 %v1692, %v1708
      %v1781 = vrot.slane %v1780, 4
      %v1782 = vadd.f32 %v1780, %v1781
      %v1783 = vrot.slane %v1782, 2
      %v1784 = vadd.f32 %v1782, %v1783
      %v1785 = vrot.slane %v1784, 1
      %v1786 = vadd.f32 %v1784, %v1785
      %v1787 = vadd.f32 %v1693, %v1709
      %v1788 = vrot.slane %v1787, 4
      %v1789 = vadd.f32 %v1787, %v1788
      %v1790 = vrot.slane %v1789, 2
      %v1791 = vadd.f32 %v1789, %v1790
      %v1792 = vrot.slane %v1791, 1
      %v1793 = vadd.f32 %v1791, %v1792
      %v1794 = vadd.f32 %v1694, %v1710
      %v1795 = vrot.slane %v1794, 4
      %v1796 = vadd.f32 %v1794, %v1795
      %v1797 = vrot.slane %v1796, 2
      %v1798 = vadd.f32 %v1796, %v1797
      %v1799 = vrot.slane %v1798, 1
      %v1800 = vadd.f32 %v1798, %v1799
      %v1801 = vadd.f32 %v1695, %v1711
      %v1802 = vrot.slane %v1801, 4
      %v1803 = vadd.f32 %v1801, %v1802
      %v1804 = vrot.slane %v1803, 2
      %v1805 = vadd.f32 %v1803, %v1804
      %v1806 = vrot.slane %v1805, 1
      %v1807 = vadd.f32 %v1805, %v1806
      %v1808 = vadd.f32 %v1696, %v1712
      %v1809 = vrot.slane %v1808, 4
      %v1810 = vadd.f32 %v1808, %v1809
      %v1811 = vrot.slane %v1810, 2
      %v1812 = vadd.f32 %v1810, %v1811
      %v1813 = vrot.slane %v1812, 1
      %v1814 = vadd.f32 %v1812, %v1813
      %v1815 = vadd.f32 %v1697, %v1713
      %v1816 = vrot.slane %v1815, 4
      %v1817 = vadd.f32 %v1815, %v1816
      %v1818 = vrot.slane %v1817, 2
      %v1819 = vadd.f32 %v1817, %v1818
      %v1820 = vrot.slane %v1819, 1
      %v1821 = vadd.f32 %v1819, %v1820
      %v1822 = vadd.f32 %v1698, %v1714
      %v1823 = vrot.slane %v1822, 4
      %v1824 = vadd.f32 %v1822, %v1823
      %v1825 = vrot.slane %v1824, 2
      %v1826 = vadd.f32 %v1824, %v1825
      %v1827 = vrot.slane %v1826, 1
      %v1828 = vadd.f32 %v1826, %v1827
      %v1845 = vcombine.low %v1723, %v1730
      %v1846 = vcombine.low %v1737, %v1744
      %v1847 = vcombine.low %v1751, %v1758
      %v1848 = vcombine.low %v1765, %v1772
      %v1850 = vunpack.c.l.s4 1966171168
      %v1851 = vunpack.c.0.s8 %v1850
      %v1852 = vlaneseq
      %v1853 = vshrl.u32 %v1852, 7
      %v1854 = vsub.s32 %v1851, %v1853
      %v1855 = vrot.slane %v1845, %v1854
      %v1857 = vunpack.c.l.s4 1966171168
      %v1858 = vunpack.c.0.s8 %v1857
      %v1859 = vlaneseq
      %v1860 = vshrl.u32 %v1859, 7
      %v1861 = vsub.s32 %v1858, %v1860
      %v1862 = vrot.slane %v1846, %v1861
      %v1864 = vunpack.c.l.s4 1966171168
      %v1865 = vunpack.c.0.s8 %v1864
      %v1866 = vlaneseq
      %v1867 = vshrl.u32 %v1866, 7
      %v1868 = vsub.s32 %v1865, %v1867
      %v1869 = vrot.slane %v1847, %v1868
      %v1871 = vunpack.c.l.s4 1966171168
      %v1872 = vunpack.c.0.s8 %v1871
      %v1873 = vlaneseq
      %v1874 = vshrl.u32 %v1873, 7
      %v1875 = vsub.s32 %v1872, %v1874
      %v1876 = vrot.slane %v1848, %v1875
      %v1877 = vcombine.low %v1855, %v1862
      %v1878 = vcombine.low %v1869, %v1876
      %v1880 = vunpack.c.l.s4 1966171168
      %v1881 = vunpack.c.0.s8 %v1880
      %v1882 = vlaneseq
      %v1883 = vshrl.u32 %v1882, 7
      %v1884 = vsub.s32 %v1881, %v1883
      %v1885 = vrot.slane %v1877, %v1884
      %v1887 = vunpack.c.l.s4 1966171168
      %v1888 = vunpack.c.0.s8 %v1887
      %v1889 = vlaneseq
      %v1890 = vshrl.u32 %v1889, 7
      %v1891 = vsub.s32 %v1888, %v1890
      %v1892 = vrot.slane %v1878, %v1891
      %v1893 = vcombine.low %v1885, %v1892
      %v1894 = vcombine.low %v1779, %v1786
      %v1895 = vcombine.low %v1793, %v1800
      %v1896 = vcombine.low %v1807, %v1814
      %v1897 = vcombine.low %v1821, %v1828
      %v1899 = vunpack.c.l.s4 1966171168
      %v1900 = vunpack.c.0.s8 %v1899
      %v1901 = vlaneseq
      %v1902 = vshrl.u32 %v1901, 7
      %v1903 = vsub.s32 %v1900, %v1902
      %v1904 = vrot.slane %v1894, %v1903
      %v1906 = vunpack.c.l.s4 1966171168
      %v1907 = vunpack.c.0.s8 %v1906
      %v1908 = vlaneseq
      %v1909 = vshrl.u32 %v1908, 7
      %v1910 = vsub.s32 %v1907, %v1909
      %v1911 = vrot.slane %v1895, %v1910
      %v1913 = vunpack.c.l.s4 1966171168
      %v1914 = vunpack.c.0.s8 %v1913
      %v1915 = vlaneseq
      %v1916 = vshrl.u32 %v1915, 7
      %v1917 = vsub.s32 %v1914, %v1916
      %v1918 = vrot.slane %v1896, %v1917
      %v1920 = vunpack.c.l.s4 1966171168
      %v1921 = vunpack.c.0.s8 %v1920
      %v1922 = vlaneseq
      %v1923 = vshrl.u32 %v1922, 7
      %v1924 = vsub.s32 %v1921, %v1923
      %v1925 = vrot.slane %v1897, %v1924
      %v1926 = vcombine.low %v1904, %v1911
      %v1927 = vcombine.low %v1918, %v1925
      %v1929 = vunpack.c.l.s4 1966171168
      %v1930 = vunpack.c.0.s8 %v1929
      %v1931 = vlaneseq
      %v1932 = vshrl.u32 %v1931, 7
      %v1933 = vsub.s32 %v1930, %v1932
      %v1934 = vrot.slane %v1926, %v1933
      %v1936 = vunpack.c.l.s4 1966171168
      %v1937 = vunpack.c.0.s8 %v1936
      %v1938 = vlaneseq
      %v1939 = vshrl.u32 %v1938, 7
      %v1940 = vsub.s32 %v1937, %v1939
      %v1941 = vrot.slane %v1927, %v1940
      %v1942 = vcombine.low %v1934, %v1941
      %v1945 = vadd.f32 %v1715, %v1893
      %v1946 = vadd.f32 %v1716, %v1942
      %1947 = vst [vmem:[#allocation2] sm:$0xff] %v1945
      %1948 = vst [vmem:[#allocation2 + $0x8] sm:$0xff] %v1946
      // Predicated region
      $region53: #{hrnet_forward.23} parent=43 // pred_check
        %p1949 = pneg %p260
      $region54: #{hrnet_forward.23} parent=43 // pred_check_branch
        %1951 = sbr.rel (%p1949) target = $region56
      $region55: #{hrnet_forward.23} parent=43 // pred_region
        %v1952 = vstv %s21
        %vm1953 = vcmp.eq.s32.totalorder %v1672, %v1952
        %v1954 = vld [vmem:[#allocation3] sm:$0xff]
        %v1955 = vld [vmem:[#allocation3 + $0x8] sm:$0xff]
        %v1956 = vld [vmem:[#allocation3 + $0x10] sm:$0xff]
        %v1957 = vld [vmem:[#allocation3 + $0x18] sm:$0xff]
        %v1958 = vld [vmem:[#allocation3 + $0x20] sm:$0xff]
        %v1959 = vld [vmem:[#allocation3 + $0x28] sm:$0xff]
        %v1960 = vld [vmem:[#allocation3 + $0x30] sm:$0xff]
        %v1961 = vld [vmem:[#allocation3 + $0x38] sm:$0xff]
        %v1962 = vld [vmem:[#allocation3 + $0x40] sm:$0xff]
        %v1963 = vld [vmem:[#allocation3 + $0x48] sm:$0xff]
        %v1964 = vld [vmem:[#allocation3 + $0x50] sm:$0xff]
        %v1965 = vld [vmem:[#allocation3 + $0x58] sm:$0xff]
        %v1966 = vld [vmem:[#allocation3 + $0x60] sm:$0xff]
        %v1967 = vld [vmem:[#allocation3 + $0x68] sm:$0xff]
        %v1968 = vld [vmem:[#allocation3 + $0x70] sm:$0xff]
        %v1969 = vld [vmem:[#allocation3 + $0x78] sm:$0xff]
        %v1970 = vld [vmem:[#allocation2] sm:$0xff]
        %v1971 = vld [vmem:[#allocation2 + $0x8] sm:$0xff]
        %v1972 = vmul.f32 %v1970, 0.0625
        %v1973 = vmul.f32 %v1971, 0.0625
        %v1974 = vsel %vm1953, 1, 0
        %vm1975 = vcmp.eq.s32.totalorder %v1974, 1
        %v1978 = vlaneseq
        %v1979 = vshrl.u32 %v1978, 7
        %v1980 = vsub.s32 0, %v1979
        %v1981 = vrot.slane %v1972, %v1980
        %v1982 = vlaneseq
        %v1983 = vshrl.u32 %v1982, 7
        %v1984 = vsub.s32 1, %v1983
        %v1985 = vrot.slane %v1972, %v1984
        %v1986 = vlaneseq
        %v1987 = vshrl.u32 %v1986, 7
        %v1988 = vsub.s32 2, %v1987
        %v1989 = vrot.slane %v1972, %v1988
        %v1990 = vlaneseq
        %v1991 = vshrl.u32 %v1990, 7
        %v1992 = vsub.s32 3, %v1991
        %v1993 = vrot.slane %v1972, %v1992
        %v1994 = vlaneseq
        %v1995 = vshrl.u32 %v1994, 7
        %v1996 = vsub.s32 4, %v1995
        %v1997 = vrot.slane %v1972, %v1996
        %v1998 = vlaneseq
        %v1999 = vshrl.u32 %v1998, 7
        %v2000 = vsub.s32 5, %v1999
        %v2001 = vrot.slane %v1972, %v2000
        %v2002 = vlaneseq
        %v2003 = vshrl.u32 %v2002, 7
        %v2004 = vsub.s32 6, %v2003
        %v2005 = vrot.slane %v1972, %v2004
        %v2006 = vlaneseq
        %v2007 = vshrl.u32 %v2006, 7
        %v2008 = vsub.s32 7, %v2007
        %v2009 = vrot.slane %v1972, %v2008
        %v2010 = vlaneseq
        %v2011 = vshrl.u32 %v2010, 7
        %v2012 = vsub.s32 0, %v2011
        %v2013 = vrot.slane %v1973, %v2012
        %v2014 = vlaneseq
        %v2015 = vshrl.u32 %v2014, 7
        %v2016 = vsub.s32 1, %v2015
        %v2017 = vrot.slane %v1973, %v2016
        %v2018 = vlaneseq
        %v2019 = vshrl.u32 %v2018, 7
        %v2020 = vsub.s32 2, %v2019
        %v2021 = vrot.slane %v1973, %v2020
        %v2022 = vlaneseq
        %v2023 = vshrl.u32 %v2022, 7
        %v2024 = vsub.s32 3, %v2023
        %v2025 = vrot.slane %v1973, %v2024
        %v2026 = vlaneseq
        %v2027 = vshrl.u32 %v2026, 7
        %v2028 = vsub.s32 4, %v2027
        %v2029 = vrot.slane %v1973, %v2028
        %v2030 = vlaneseq
        %v2031 = vshrl.u32 %v2030, 7
        %v2032 = vsub.s32 5, %v2031
        %v2033 = vrot.slane %v1973, %v2032
        %v2034 = vlaneseq
        %v2035 = vshrl.u32 %v2034, 7
        %v2036 = vsub.s32 6, %v2035
        %v2037 = vrot.slane %v1973, %v2036
        %v2038 = vlaneseq
        %v2039 = vshrl.u32 %v2038, 7
        %v2040 = vsub.s32 7, %v2039
        %v2041 = vrot.slane %v1973, %v2040
        %v2058 = vsel %vm1975, %v1981, 0.0
        %v2059 = vsel %vm1975, %v1985, 0.0
        %v2060 = vsel %vm1975, %v1989, 0.0
        %v2061 = vsel %vm1975, %v1993, 0.0
        %v2062 = vsel %vm1975, %v1997, 0.0
        %v2063 = vsel %vm1975, %v2001, 0.0
        %v2064 = vsel %vm1975, %v2005, 0.0
        %v2065 = vsel %vm1975, %v2009, 0.0
        %v2066 = vsel %vm1975, %v2013, 0.0
        %v2067 = vsel %vm1975, %v2017, 0.0
        %v2068 = vsel %vm1975, %v2021, 0.0
        %v2069 = vsel %vm1975, %v2025, 0.0
        %v2070 = vsel %vm1975, %v2029, 0.0
        %v2071 = vsel %vm1975, %v2033, 0.0
        %v2072 = vsel %vm1975, %v2037, 0.0
        %v2073 = vsel %vm1975, %v2041, 0.0
        %v2074 = vadd.f32 %v1954, %v2058
        %v2075 = vadd.f32 %v1955, %v2059
        %v2076 = vadd.f32 %v1956, %v2060
        %v2077 = vadd.f32 %v1957, %v2061
        %v2078 = vadd.f32 %v1958, %v2062
        %v2079 = vadd.f32 %v1959, %v2063
        %v2080 = vadd.f32 %v1960, %v2064
        %v2081 = vadd.f32 %v1961, %v2065
        %v2082 = vadd.f32 %v1962, %v2066
        %v2083 = vadd.f32 %v1963, %v2067
        %v2084 = vadd.f32 %v1964, %v2068
        %v2085 = vadd.f32 %v1965, %v2069
        %v2086 = vadd.f32 %v1966, %v2070
        %v2087 = vadd.f32 %v1967, %v2071
        %v2088 = vadd.f32 %v1968, %v2072
        %v2089 = vadd.f32 %v1969, %v2073
        %2090 = vst [vmem:[#allocation3] sm:$0xff] %v2074
        %2091 = vst [vmem:[#allocation3 + $0x8] sm:$0xff] %v2075
        %2092 = vst [vmem:[#allocation3 + $0x10] sm:$0xff] %v2076
        %2093 = vst [vmem:[#allocation3 + $0x18] sm:$0xff] %v2077
        %2094 = vst [vmem:[#allocation3 + $0x20] sm:$0xff] %v2078
        %2095 = vst [vmem:[#allocation3 + $0x28] sm:$0xff] %v2079
        %2096 = vst [vmem:[#allocation3 + $0x30] sm:$0xff] %v2080
        %2097 = vst [vmem:[#allocation3 + $0x38] sm:$0xff] %v2081
        %2098 = vst [vmem:[#allocation3 + $0x40] sm:$0xff] %v2082
        %2099 = vst [vmem:[#allocation3 + $0x48] sm:$0xff] %v2083
        %2100 = vst [vmem:[#allocation3 + $0x50] sm:$0xff] %v2084
        %2101 = vst [vmem:[#allocation3 + $0x58] sm:$0xff] %v2085
        %2102 = vst [vmem:[#allocation3 + $0x60] sm:$0xff] %v2086
        %2103 = vst [vmem:[#allocation3 + $0x68] sm:$0xff] %v2087
        %2104 = vst [vmem:[#allocation3 + $0x70] sm:$0xff] %v2088
        %2105 = vst [vmem:[#allocation3 + $0x78] sm:$0xff] %v2089
      $region56: #{hrnet_forward.23} parent=43 // pred_fallthru
        _
      %p2106 = scmp.eq.s32.totalorder %s21, 1
      %p2107 = pnand %p2106, %p260
      %p2108 = pneg %p2107
      // Predicated region
      $region57: #{hrnet_forward.23} parent=43 // pred_check
        _
      $region58: #{hrnet_forward.23} parent=43 // pred_check_branch
        %2110 = sbr.rel (%p2107) target = $region60
      $region59: #{hrnet_forward.23} parent=43 // pred_region
        %v2111 = vld [vmem:[#allocation3] sm:$0xff]
        %v2112 = vld [vmem:[#allocation3 + $0x8] sm:$0xff]
        %v2113 = vld [vmem:[#allocation3 + $0x10] sm:$0xff]
        %v2114 = vld [vmem:[#allocation3 + $0x18] sm:$0xff]
        %v2115 = vld [vmem:[#allocation3 + $0x20] sm:$0xff]
        %v2116 = vld [vmem:[#allocation3 + $0x28] sm:$0xff]
        %v2117 = vld [vmem:[#allocation3 + $0x30] sm:$0xff]
        %v2118 = vld [vmem:[#allocation3 + $0x38] sm:$0xff]
        %v2119 = vld [vmem:[#allocation3 + $0x40] sm:$0xff]
        %v2120 = vld [vmem:[#allocation3 + $0x48] sm:$0xff]
        %v2121 = vld [vmem:[#allocation3 + $0x50] sm:$0xff]
        %v2122 = vld [vmem:[#allocation3 + $0x58] sm:$0xff]
        %v2123 = vld [vmem:[#allocation3 + $0x60] sm:$0xff]
        %v2124 = vld [vmem:[#allocation3 + $0x68] sm:$0xff]
        %v2125 = vld [vmem:[#allocation3 + $0x70] sm:$0xff]
        %v2126 = vld [vmem:[#allocation3 + $0x78] sm:$0xff]
        %v2127 = vld [vmem:[%s4] sm:$0xff]
        %v2128 = vld [vmem:[%s4 + $0x8] sm:$0xff]
        %v2129 = vld [vmem:[%s4 + $0x10] sm:$0xff]
        %v2130 = vld [vmem:[%s4 + $0x18] sm:$0xff]
        %v2131 = vld [vmem:[%s4 + $0x20] sm:$0xff]
        %v2132 = vld [vmem:[%s4 + $0x28] sm:$0xff]
        %v2133 = vld [vmem:[%s4 + $0x30] sm:$0xff]
        %v2134 = vld [vmem:[%s4 + $0x38] sm:$0xff]
        %v2135 = vld [vmem:[%s4 + $0x40] sm:$0xff]
        %v2136 = vld [vmem:[%s4 + $0x48] sm:$0xff]
        %v2137 = vld [vmem:[%s4 + $0x50] sm:$0xff]
        %v2138 = vld [vmem:[%s4 + $0x58] sm:$0xff]
        %v2139 = vld [vmem:[%s4 + $0x60] sm:$0xff]
        %v2140 = vld [vmem:[%s4 + $0x68] sm:$0xff]
        %v2141 = vld [vmem:[%s4 + $0x70] sm:$0xff]
        %v2142 = vld [vmem:[%s4 + $0x78] sm:$0xff]
        %v2143 = vld [vmem:[%s4 + $0x80] sm:$0xff]
        %v2144 = vld [vmem:[%s4 + $0x88] sm:$0xff]
        %v2145 = vld [vmem:[%s4 + $0x90] sm:$0xff]
        %v2146 = vld [vmem:[%s4 + $0x98] sm:$0xff]
        %v2147 = vld [vmem:[%s4 + $0xa0] sm:$0xff]
        %v2148 = vld [vmem:[%s4 + $0xa8] sm:$0xff]
        %v2149 = vld [vmem:[%s4 + $0xb0] sm:$0xff]
        %v2150 = vld [vmem:[%s4 + $0xb8] sm:$0xff]
        %v2151 = vld [vmem:[%s4 + $0xc0] sm:$0xff]
        %v2152 = vld [vmem:[%s4 + $0xc8] sm:$0xff]
        %v2153 = vld [vmem:[%s4 + $0xd0] sm:$0xff]
        %v2154 = vld [vmem:[%s4 + $0xd8] sm:$0xff]
        %v2155 = vld [vmem:[%s4 + $0xe0] sm:$0xff]
        %v2156 = vld [vmem:[%s4 + $0xe8] sm:$0xff]
        %v2157 = vld [vmem:[%s4 + $0xf0] sm:$0xff]
        %v2158 = vld [vmem:[%s4 + $0xf8] sm:$0xff]
        %v2159 = vld [vmem:[%s4 + $0x100] sm:$0xff]
        %v2160 = vld [vmem:[%s4 + $0x108] sm:$0xff]
        %v2161 = vld [vmem:[%s4 + $0x110] sm:$0xff]
        %v2162 = vld [vmem:[%s4 + $0x118] sm:$0xff]
        %v2163 = vld [vmem:[%s4 + $0x120] sm:$0xff]
        %v2164 = vld [vmem:[%s4 + $0x128] sm:$0xff]
        %v2165 = vld [vmem:[%s4 + $0x130] sm:$0xff]
        %v2166 = vld [vmem:[%s4 + $0x138] sm:$0xff]
        %v2167 = vld [vmem:[%s4 + $0x140] sm:$0xff]
        %v2168 = vld [vmem:[%s4 + $0x148] sm:$0xff]
        %v2169 = vld [vmem:[%s4 + $0x150] sm:$0xff]
        %v2170 = vld [vmem:[%s4 + $0x158] sm:$0xff]
        %v2171 = vld [vmem:[%s4 + $0x160] sm:$0xff]
        %v2172 = vld [vmem:[%s4 + $0x168] sm:$0xff]
        %v2173 = vld [vmem:[%s4 + $0x170] sm:$0xff]
        %v2174 = vld [vmem:[%s4 + $0x178] sm:$0xff]
        %v2175 = vld [vmem:[%s4 + $0x180] sm:$0xff]
        %v2176 = vld [vmem:[%s4 + $0x188] sm:$0xff]
        %v2177 = vld [vmem:[%s4 + $0x190] sm:$0xff]
        %v2178 = vld [vmem:[%s4 + $0x198] sm:$0xff]
        %v2179 = vld [vmem:[%s4 + $0x1a0] sm:$0xff]
        %v2180 = vld [vmem:[%s4 + $0x1a8] sm:$0xff]
        %v2181 = vld [vmem:[%s4 + $0x1b0] sm:$0xff]
        %v2182 = vld [vmem:[%s4 + $0x1b8] sm:$0xff]
        %v2183 = vld [vmem:[%s4 + $0x1c0] sm:$0xff]
        %v2184 = vld [vmem:[%s4 + $0x1c8] sm:$0xff]
        %v2185 = vld [vmem:[%s4 + $0x1d0] sm:$0xff]
        %v2186 = vld [vmem:[%s4 + $0x1d8] sm:$0xff]
        %v2187 = vld [vmem:[%s4 + $0x1e0] sm:$0xff]
        %v2188 = vld [vmem:[%s4 + $0x1e8] sm:$0xff]
        %v2189 = vld [vmem:[%s4 + $0x1f0] sm:$0xff]
        %v2190 = vld [vmem:[%s4 + $0x1f8] sm:$0xff]
        %v2191 = vld [vmem:[%s4 + $0x200] sm:$0xff]
        %v2192 = vld [vmem:[%s4 + $0x208] sm:$0xff]
        %v2193 = vld [vmem:[%s4 + $0x210] sm:$0xff]
        %v2194 = vld [vmem:[%s4 + $0x218] sm:$0xff]
        %v2195 = vld [vmem:[%s4 + $0x220] sm:$0xff]
        %v2196 = vld [vmem:[%s4 + $0x228] sm:$0xff]
        %v2197 = vld [vmem:[%s4 + $0x230] sm:$0xff]
        %v2198 = vld [vmem:[%s4 + $0x238] sm:$0xff]
        %v2199 = vld [vmem:[%s4 + $0x240] sm:$0xff]
        %v2200 = vld [vmem:[%s4 + $0x248] sm:$0xff]
        %v2201 = vld [vmem:[%s4 + $0x250] sm:$0xff]
        %v2202 = vld [vmem:[%s4 + $0x258] sm:$0xff]
        %v2203 = vld [vmem:[%s4 + $0x260] sm:$0xff]
        %v2204 = vld [vmem:[%s4 + $0x268] sm:$0xff]
        %v2205 = vld [vmem:[%s4 + $0x270] sm:$0xff]
        %v2206 = vld [vmem:[%s4 + $0x278] sm:$0xff]
        %v2207 = vld [vmem:[%s4 + $0x280] sm:$0xff]
        %v2208 = vld [vmem:[%s4 + $0x288] sm:$0xff]
        %v2209 = vld [vmem:[%s4 + $0x290] sm:$0xff]
        %v2210 = vld [vmem:[%s4 + $0x298] sm:$0xff]
        %v2211 = vld [vmem:[%s4 + $0x2a0] sm:$0xff]
        %v2212 = vld [vmem:[%s4 + $0x2a8] sm:$0xff]
        %v2213 = vld [vmem:[%s4 + $0x2b0] sm:$0xff]
        %v2214 = vld [vmem:[%s4 + $0x2b8] sm:$0xff]
        %v2215 = vld [vmem:[%s4 + $0x2c0] sm:$0xff]
        %v2216 = vld [vmem:[%s4 + $0x2c8] sm:$0xff]
        %v2217 = vld [vmem:[%s4 + $0x2d0] sm:$0xff]
        %v2218 = vld [vmem:[%s4 + $0x2d8] sm:$0xff]
        %v2219 = vld [vmem:[%s4 + $0x2e0] sm:$0xff]
        %v2220 = vld [vmem:[%s4 + $0x2e8] sm:$0xff]
        %v2221 = vld [vmem:[%s4 + $0x2f0] sm:$0xff]
        %v2222 = vld [vmem:[%s4 + $0x2f8] sm:$0xff]
        %v2223 = vld [vmem:[%s4 + $0x300] sm:$0xff]
        %v2224 = vld [vmem:[%s4 + $0x308] sm:$0xff]
        %v2225 = vld [vmem:[%s4 + $0x310] sm:$0xff]
        %v2226 = vld [vmem:[%s4 + $0x318] sm:$0xff]
        %v2227 = vld [vmem:[%s4 + $0x320] sm:$0xff]
        %v2228 = vld [vmem:[%s4 + $0x328] sm:$0xff]
        %v2229 = vld [vmem:[%s4 + $0x330] sm:$0xff]
        %v2230 = vld [vmem:[%s4 + $0x338] sm:$0xff]
        %v2231 = vld [vmem:[%s4 + $0x340] sm:$0xff]
        %v2232 = vld [vmem:[%s4 + $0x348] sm:$0xff]
        %v2233 = vld [vmem:[%s4 + $0x350] sm:$0xff]
        %v2234 = vld [vmem:[%s4 + $0x358] sm:$0xff]
        %v2235 = vld [vmem:[%s4 + $0x360] sm:$0xff]
        %v2236 = vld [vmem:[%s4 + $0x368] sm:$0xff]
        %v2237 = vld [vmem:[%s4 + $0x370] sm:$0xff]
        %v2238 = vld [vmem:[%s4 + $0x378] sm:$0xff]
        %v2239 = vld [vmem:[%s4 + $0x380] sm:$0xff]
        %v2240 = vld [vmem:[%s4 + $0x388] sm:$0xff]
        %v2241 = vld [vmem:[%s4 + $0x390] sm:$0xff]
        %v2242 = vld [vmem:[%s4 + $0x398] sm:$0xff]
        %v2243 = vld [vmem:[%s4 + $0x3a0] sm:$0xff]
        %v2244 = vld [vmem:[%s4 + $0x3a8] sm:$0xff]
        %v2245 = vld [vmem:[%s4 + $0x3b0] sm:$0xff]
        %v2246 = vld [vmem:[%s4 + $0x3b8] sm:$0xff]
        %v2247 = vld [vmem:[%s4 + $0x3c0] sm:$0xff]
        %v2248 = vld [vmem:[%s4 + $0x3c8] sm:$0xff]
        %v2249 = vld [vmem:[%s4 + $0x3d0] sm:$0xff]
        %v2250 = vld [vmem:[%s4 + $0x3d8] sm:$0xff]
        %v2251 = vld [vmem:[%s4 + $0x3e0] sm:$0xff]
        %v2252 = vld [vmem:[%s4 + $0x3e8] sm:$0xff]
        %v2253 = vld [vmem:[%s4 + $0x3f0] sm:$0xff]
        %v2254 = vld [vmem:[%s4 + $0x3f8] sm:$0xff]
        %v2255 = vld [vmem:[%s4 + $0x400] sm:$0xff]
        %v2256 = vld [vmem:[%s4 + $0x408] sm:$0xff]
        %v2257 = vld [vmem:[%s4 + $0x410] sm:$0xff]
        %v2258 = vld [vmem:[%s4 + $0x418] sm:$0xff]
        %v2259 = vld [vmem:[%s4 + $0x420] sm:$0xff]
        %v2260 = vld [vmem:[%s4 + $0x428] sm:$0xff]
        %v2261 = vld [vmem:[%s4 + $0x430] sm:$0xff]
        %v2262 = vld [vmem:[%s4 + $0x438] sm:$0xff]
        %v2263 = vld [vmem:[%s4 + $0x440] sm:$0xff]
        %v2264 = vld [vmem:[%s4 + $0x448] sm:$0xff]
        %v2265 = vld [vmem:[%s4 + $0x450] sm:$0xff]
        %v2266 = vld [vmem:[%s4 + $0x458] sm:$0xff]
        %v2267 = vld [vmem:[%s4 + $0x460] sm:$0xff]
        %v2268 = vld [vmem:[%s4 + $0x468] sm:$0xff]
        %v2269 = vld [vmem:[%s4 + $0x470] sm:$0xff]
        %v2270 = vld [vmem:[%s4 + $0x478] sm:$0xff]
        %v2271 = vld [vmem:[%s4 + $0x480] sm:$0xff]
        %v2272 = vld [vmem:[%s4 + $0x488] sm:$0xff]
        %v2273 = vld [vmem:[%s4 + $0x490] sm:$0xff]
        %v2274 = vld [vmem:[%s4 + $0x498] sm:$0xff]
        %v2275 = vld [vmem:[%s4 + $0x4a0] sm:$0xff]
        %v2276 = vld [vmem:[%s4 + $0x4a8] sm:$0xff]
        %v2277 = vld [vmem:[%s4 + $0x4b0] sm:$0xff]
        %v2278 = vld [vmem:[%s4 + $0x4b8] sm:$0xff]
        %v2279 = vld [vmem:[%s4 + $0x4c0] sm:$0xff]
        %v2280 = vld [vmem:[%s4 + $0x4c8] sm:$0xff]
        %v2281 = vld [vmem:[%s4 + $0x4d0] sm:$0xff]
        %v2282 = vld [vmem:[%s4 + $0x4d8] sm:$0xff]
        %v2283 = vld [vmem:[%s4 + $0x4e0] sm:$0xff]
        %v2284 = vld [vmem:[%s4 + $0x4e8] sm:$0xff]
        %v2285 = vld [vmem:[%s4 + $0x4f0] sm:$0xff]
        %v2286 = vld [vmem:[%s4 + $0x4f8] sm:$0xff]
        %v2287 = vld [vmem:[%s4 + $0x500] sm:$0xff]
        %v2288 = vld [vmem:[%s4 + $0x508] sm:$0xff]
        %v2289 = vld [vmem:[%s4 + $0x510] sm:$0xff]
        %v2290 = vld [vmem:[%s4 + $0x518] sm:$0xff]
        %v2291 = vld [vmem:[%s4 + $0x520] sm:$0xff]
        %v2292 = vld [vmem:[%s4 + $0x528] sm:$0xff]
        %v2293 = vld [vmem:[%s4 + $0x530] sm:$0xff]
        %v2294 = vld [vmem:[%s4 + $0x538] sm:$0xff]
        %v2295 = vld [vmem:[%s4 + $0x540] sm:$0xff]
        %v2296 = vld [vmem:[%s4 + $0x548] sm:$0xff]
        %v2297 = vld [vmem:[%s4 + $0x550] sm:$0xff]
        %v2298 = vld [vmem:[%s4 + $0x558] sm:$0xff]
        %v2299 = vld [vmem:[%s4 + $0x560] sm:$0xff]
        %v2300 = vld [vmem:[%s4 + $0x568] sm:$0xff]
        %v2301 = vld [vmem:[%s4 + $0x570] sm:$0xff]
        %v2302 = vld [vmem:[%s4 + $0x578] sm:$0xff]
        %v2303 = vld [vmem:[%s4 + $0x580] sm:$0xff]
        %v2304 = vld [vmem:[%s4 + $0x588] sm:$0xff]
        %v2305 = vld [vmem:[%s4 + $0x590] sm:$0xff]
        %v2306 = vld [vmem:[%s4 + $0x598] sm:$0xff]
        %v2307 = vld [vmem:[%s4 + $0x5a0] sm:$0xff]
        %v2308 = vld [vmem:[%s4 + $0x5a8] sm:$0xff]
        %v2309 = vld [vmem:[%s4 + $0x5b0] sm:$0xff]
        %v2310 = vld [vmem:[%s4 + $0x5b8] sm:$0xff]
        %v2311 = vld [vmem:[%s4 + $0x5c0] sm:$0xff]
        %v2312 = vld [vmem:[%s4 + $0x5c8] sm:$0xff]
        %v2313 = vld [vmem:[%s4 + $0x5d0] sm:$0xff]
        %v2314 = vld [vmem:[%s4 + $0x5d8] sm:$0xff]
        %v2315 = vld [vmem:[%s4 + $0x5e0] sm:$0xff]
        %v2316 = vld [vmem:[%s4 + $0x5e8] sm:$0xff]
        %v2317 = vld [vmem:[%s4 + $0x5f0] sm:$0xff]
        %v2318 = vld [vmem:[%s4 + $0x5f8] sm:$0xff]
        %v2319 = vld [vmem:[%s4 + $0x600] sm:$0xff]
        %v2320 = vld [vmem:[%s4 + $0x608] sm:$0xff]
        %v2321 = vld [vmem:[%s4 + $0x610] sm:$0xff]
        %v2322 = vld [vmem:[%s4 + $0x618] sm:$0xff]
        %v2323 = vld [vmem:[%s4 + $0x620] sm:$0xff]
        %v2324 = vld [vmem:[%s4 + $0x628] sm:$0xff]
        %v2325 = vld [vmem:[%s4 + $0x630] sm:$0xff]
        %v2326 = vld [vmem:[%s4 + $0x638] sm:$0xff]
        %v2327 = vld [vmem:[%s4 + $0x640] sm:$0xff]
        %v2328 = vld [vmem:[%s4 + $0x648] sm:$0xff]
        %v2329 = vld [vmem:[%s4 + $0x650] sm:$0xff]
        %v2330 = vld [vmem:[%s4 + $0x658] sm:$0xff]
        %v2331 = vld [vmem:[%s4 + $0x660] sm:$0xff]
        %v2332 = vld [vmem:[%s4 + $0x668] sm:$0xff]
        %v2333 = vld [vmem:[%s4 + $0x670] sm:$0xff]
        %v2334 = vld [vmem:[%s4 + $0x678] sm:$0xff]
        %v2335 = vld [vmem:[%s4 + $0x680] sm:$0xff]
        %v2336 = vld [vmem:[%s4 + $0x688] sm:$0xff]
        %v2337 = vld [vmem:[%s4 + $0x690] sm:$0xff]
        %v2338 = vld [vmem:[%s4 + $0x698] sm:$0xff]
        %v2339 = vld [vmem:[%s4 + $0x6a0] sm:$0xff]
        %v2340 = vld [vmem:[%s4 + $0x6a8] sm:$0xff]
        %v2341 = vld [vmem:[%s4 + $0x6b0] sm:$0xff]
        %v2342 = vld [vmem:[%s4 + $0x6b8] sm:$0xff]
        %v2343 = vld [vmem:[%s4 + $0x6c0] sm:$0xff]
        %v2344 = vld [vmem:[%s4 + $0x6c8] sm:$0xff]
        %v2345 = vld [vmem:[%s4 + $0x6d0] sm:$0xff]
        %v2346 = vld [vmem:[%s4 + $0x6d8] sm:$0xff]
        %v2347 = vld [vmem:[%s4 + $0x6e0] sm:$0xff]
        %v2348 = vld [vmem:[%s4 + $0x6e8] sm:$0xff]
        %v2349 = vld [vmem:[%s4 + $0x6f0] sm:$0xff]
        %v2350 = vld [vmem:[%s4 + $0x6f8] sm:$0xff]
        %v2351 = vld [vmem:[%s4 + $0x700] sm:$0xff]
        %v2352 = vld [vmem:[%s4 + $0x708] sm:$0xff]
        %v2353 = vld [vmem:[%s4 + $0x710] sm:$0xff]
        %v2354 = vld [vmem:[%s4 + $0x718] sm:$0xff]
        %v2355 = vld [vmem:[%s4 + $0x720] sm:$0xff]
        %v2356 = vld [vmem:[%s4 + $0x728] sm:$0xff]
        %v2357 = vld [vmem:[%s4 + $0x730] sm:$0xff]
        %v2358 = vld [vmem:[%s4 + $0x738] sm:$0xff]
        %v2359 = vld [vmem:[%s4 + $0x740] sm:$0xff]
        %v2360 = vld [vmem:[%s4 + $0x748] sm:$0xff]
        %v2361 = vld [vmem:[%s4 + $0x750] sm:$0xff]
        %v2362 = vld [vmem:[%s4 + $0x758] sm:$0xff]
        %v2363 = vld [vmem:[%s4 + $0x760] sm:$0xff]
        %v2364 = vld [vmem:[%s4 + $0x768] sm:$0xff]
        %v2365 = vld [vmem:[%s4 + $0x770] sm:$0xff]
        %v2366 = vld [vmem:[%s4 + $0x778] sm:$0xff]
        %v2367 = vld [vmem:[%s4 + $0x780] sm:$0xff]
        %v2368 = vld [vmem:[%s4 + $0x788] sm:$0xff]
        %v2369 = vld [vmem:[%s4 + $0x790] sm:$0xff]
        %v2370 = vld [vmem:[%s4 + $0x798] sm:$0xff]
        %v2371 = vld [vmem:[%s4 + $0x7a0] sm:$0xff]
        %v2372 = vld [vmem:[%s4 + $0x7a8] sm:$0xff]
        %v2373 = vld [vmem:[%s4 + $0x7b0] sm:$0xff]
        %v2374 = vld [vmem:[%s4 + $0x7b8] sm:$0xff]
        %v2375 = vld [vmem:[%s4 + $0x7c0] sm:$0xff]
        %v2376 = vld [vmem:[%s4 + $0x7c8] sm:$0xff]
        %v2377 = vld [vmem:[%s4 + $0x7d0] sm:$0xff]
        %v2378 = vld [vmem:[%s4 + $0x7d8] sm:$0xff]
        %v2379 = vld [vmem:[%s4 + $0x7e0] sm:$0xff]
        %v2380 = vld [vmem:[%s4 + $0x7e8] sm:$0xff]
        %v2381 = vld [vmem:[%s4 + $0x7f0] sm:$0xff]
        %v2382 = vld [vmem:[%s4 + $0x7f8] sm:$0xff]
        %v2383 = vld [vmem:[%s5] sm:$0x1]
        %v2385 = vlaneseq
        %v2386 = vshrl.u32 %v2385, 7
        %v2387 = vsub.s32 0, %v2386
        %v2388 = vrot.slane %v2383, %v2387
        %2390 = vmatprep.subr.mxu0 0.0
        %2391 = vmatpush1.msra.mxu0 %v2127
        %2392 = vmatprep.subr.mxu0 0.0
        %2393 = vmatpush1.msra.mxu0 %v2128
        %2394 = vmatprep.subr.mxu0 0.0
        %2395 = vmatpush1.msra.mxu0 %v2129
        %2396 = vmatprep.subr.mxu0 0.0
        %2397 = vmatpush1.msra.mxu0 %v2130
        %2398 = vmatprep.subr.mxu0 0.0
        %2399 = vmatpush1.msra.mxu0 %v2131
        %2400 = vmatprep.subr.mxu0 0.0
        %2401 = vmatpush1.msra.mxu0 %v2132
        %2402 = vmatprep.subr.mxu0 0.0
        %2403 = vmatpush1.msra.mxu0 %v2133
        %2404 = vmatprep.subr.mxu0 0.0
        %2405 = vmatpush1.msra.mxu0 %v2134
        %2406 = vmatprep.subr.mxu0 0.0
        %2407 = vmatpush1.msra.mxu0 %v2135
        %2408 = vmatprep.subr.mxu0 0.0
        %2409 = vmatpush1.msra.mxu0 %v2136
        %2410 = vmatprep.subr.mxu0 0.0
        %2411 = vmatpush1.msra.mxu0 %v2137
        %2412 = vmatprep.subr.mxu0 0.0
        %2413 = vmatpush1.msra.mxu0 %v2138
        %2414 = vmatprep.subr.mxu0 0.0
        %2415 = vmatpush1.msra.mxu0 %v2139
        %2416 = vmatprep.subr.mxu0 0.0
        %2417 = vmatpush1.msra.mxu0 %v2140
        %2418 = vmatprep.subr.mxu0 0.0
        %2419 = vmatpush1.msra.mxu0 %v2141
        %2420 = vmatprep.subr.mxu0 0.0
        %2421 = vmatpush1.msra.mxu0 %v2142
        %2422 = vmatprep.subr.mxu0 0.0
        %2423 = vmatpush1.msra.mxu0 %v2143
        %2424 = vmatprep.subr.mxu0 0.0
        %2425 = vmatpush1.msra.mxu0 %v2144
        %2426 = vmatprep.subr.mxu0 0.0
        %2427 = vmatpush1.msra.mxu0 %v2145
        %2428 = vmatprep.subr.mxu0 0.0
        %2429 = vmatpush1.msra.mxu0 %v2146
        %2430 = vmatprep.subr.mxu0 0.0
        %2431 = vmatpush1.msra.mxu0 %v2147
        %2432 = vmatprep.subr.mxu0 0.0
        %2433 = vmatpush1.msra.mxu0 %v2148
        %2434 = vmatprep.subr.mxu0 0.0
        %2435 = vmatpush1.msra.mxu0 %v2149
        %2436 = vmatprep.subr.mxu0 0.0
        %2437 = vmatpush1.msra.mxu0 %v2150
        %2438 = vmatprep.subr.mxu0 0.0
        %2439 = vmatpush1.msra.mxu0 %v2151
        %2440 = vmatprep.subr.mxu0 0.0
        %2441 = vmatpush1.msra.mxu0 %v2152
        %2442 = vmatprep.subr.mxu0 0.0
        %2443 = vmatpush1.msra.mxu0 %v2153
        %2444 = vmatprep.subr.mxu0 0.0
        %2445 = vmatpush1.msra.mxu0 %v2154
        %2446 = vmatprep.subr.mxu0 0.0
        %2447 = vmatpush1.msra.mxu0 %v2155
        %2448 = vmatprep.subr.mxu0 0.0
        %2449 = vmatpush1.msra.mxu0 %v2156
        %2450 = vmatprep.subr.mxu0 0.0
        %2451 = vmatpush1.msra.mxu0 %v2157
        %2452 = vmatprep.subr.mxu0 0.0
        %2453 = vmatpush1.msra.mxu0 %v2158
        %2454 = vmatprep.mubr.f32.mxu0 %v2112
        %2455 = vmatmul.mubr.f32.gmra.mrb[0].mxu0 %v2111
        %v2456 = vpop.f32.mrb[0].mxu0
        %v2457 = vadd.f32 %v2388, %v2456
        %v2458 = vpop.f32.mrb[0].mxu0
        %2459 = vdwg.mxu0
        %2460 = vmatprep.subr.mxu0 0.0
        %2461 = vmatpush1.msra.mxu0 %v2159
        %2462 = vmatprep.subr.mxu0 0.0
        %2463 = vmatpush1.msra.mxu0 %v2160
        %2464 = vmatprep.subr.mxu0 0.0
        %2465 = vmatpush1.msra.mxu0 %v2161
        %2466 = vmatprep.subr.mxu0 0.0
        %2467 = vmatpush1.msra.mxu0 %v2162
        %2468 = vmatprep.subr.mxu0 0.0
        %2469 = vmatpush1.msra.mxu0 %v2163
        %2470 = vmatprep.subr.mxu0 0.0
        %2471 = vmatpush1.msra.mxu0 %v2164
        %2472 = vmatprep.subr.mxu0 0.0
        %2473 = vmatpush1.msra.mxu0 %v2165
        %2474 = vmatprep.subr.mxu0 0.0
        %2475 = vmatpush1.msra.mxu0 %v2166
        %2476 = vmatprep.subr.mxu0 0.0
        %2477 = vmatpush1.msra.mxu0 %v2167
        %2478 = vmatprep.subr.mxu0 0.0
        %2479 = vmatpush1.msra.mxu0 %v2168
        %2480 = vmatprep.subr.mxu0 0.0
        %2481 = vmatpush1.msra.mxu0 %v2169
        %2482 = vmatprep.subr.mxu0 0.0
        %2483 = vmatpush1.msra.mxu0 %v2170
        %2484 = vmatprep.subr.mxu0 0.0
        %2485 = vmatpush1.msra.mxu0 %v2171
        %2486 = vmatprep.subr.mxu0 0.0
        %2487 = vmatpush1.msra.mxu0 %v2172
        %2488 = vmatprep.subr.mxu0 0.0
        %2489 = vmatpush1.msra.mxu0 %v2173
        %2490 = vmatprep.subr.mxu0 0.0
        %2491 = vmatpush1.msra.mxu0 %v2174
        %2492 = vmatprep.subr.mxu0 0.0
        %2493 = vmatpush1.msra.mxu0 %v2175
        %2494 = vmatprep.subr.mxu0 0.0
        %2495 = vmatpush1.msra.mxu0 %v2176
        %2496 = vmatprep.subr.mxu0 0.0
        %2497 = vmatpush1.msra.mxu0 %v2177
        %2498 = vmatprep.subr.mxu0 0.0
        %2499 = vmatpush1.msra.mxu0 %v2178
        %2500 = vmatprep.subr.mxu0 0.0
        %2501 = vmatpush1.msra.mxu0 %v2179
        %2502 = vmatprep.subr.mxu0 0.0
        %2503 = vmatpush1.msra.mxu0 %v2180
        %2504 = vmatprep.subr.mxu0 0.0
        %2505 = vmatpush1.msra.mxu0 %v2181
        %2506 = vmatprep.subr.mxu0 0.0
        %2507 = vmatpush1.msra.mxu0 %v2182
        %2508 = vmatprep.subr.mxu0 0.0
        %2509 = vmatpush1.msra.mxu0 %v2183
        %2510 = vmatprep.subr.mxu0 0.0
        %2511 = vmatpush1.msra.mxu0 %v2184
        %2512 = vmatprep.subr.mxu0 0.0
        %2513 = vmatpush1.msra.mxu0 %v2185
        %2514 = vmatprep.subr.mxu0 0.0
        %2515 = vmatpush1.msra.mxu0 %v2186
        %2516 = vmatprep.subr.mxu0 0.0
        %2517 = vmatpush1.msra.mxu0 %v2187
        %2518 = vmatprep.subr.mxu0 0.0
        %2519 = vmatpush1.msra.mxu0 %v2188
        %2520 = vmatprep.subr.mxu0 0.0
        %2521 = vmatpush1.msra.mxu0 %v2189
        %2522 = vmatprep.subr.mxu0 0.0
        %2523 = vmatpush1.msra.mxu0 %v2190
        %2524 = vmatprep.mubr.f32.mxu0 %v2114
        %2525 = vmatmul.mubr.f32.gmra.mrb[0].mxu0 %v2113
        %v2526 = vpop.f32.mrb[0].mxu0
        %v2527 = vadd.f32 %v2457, %v2526
        %v2528 = vpop.f32.mrb[0].mxu0
        %2529 = vdwg.mxu0
        %2530 = vmatprep.subr.mxu0 0.0
        %2531 = vmatpush1.msra.mxu0 %v2191
        %2532 = vmatprep.subr.mxu0 0.0
        %2533 = vmatpush1.msra.mxu0 %v2192
        %2534 = vmatprep.subr.mxu0 0.0
        %2535 = vmatpush1.msra.mxu0 %v2193
        %2536 = vmatprep.subr.mxu0 0.0
        %2537 = vmatpush1.msra.mxu0 %v2194
        %2538 = vmatprep.subr.mxu0 0.0
        %2539 = vmatpush1.msra.mxu0 %v2195
        %2540 = vmatprep.subr.mxu0 0.0
        %2541 = vmatpush1.msra.mxu0 %v2196
        %2542 = vmatprep.subr.mxu0 0.0
        %2543 = vmatpush1.msra.mxu0 %v2197
        %2544 = vmatprep.subr.mxu0 0.0
        %2545 = vmatpush1.msra.mxu0 %v2198
        %2546 = vmatprep.subr.mxu0 0.0
        %2547 = vmatpush1.msra.mxu0 %v2199
        %2548 = vmatprep.subr.mxu0 0.0
        %2549 = vmatpush1.msra.mxu0 %v2200
        %2550 = vmatprep.subr.mxu0 0.0
        %2551 = vmatpush1.msra.mxu0 %v2201
        %2552 = vmatprep.subr.mxu0 0.0
        %2553 = vmatpush1.msra.mxu0 %v2202
        %2554 = vmatprep.subr.mxu0 0.0
        %2555 = vmatpush1.msra.mxu0 %v2203
        %2556 = vmatprep.subr.mxu0 0.0
        %2557 = vmatpush1.msra.mxu0 %v2204
        %2558 = vmatprep.subr.mxu0 0.0
        %2559 = vmatpush1.msra.mxu0 %v2205
        %2560 = vmatprep.subr.mxu0 0.0
        %2561 = vmatpush1.msra.mxu0 %v2206
        %2562 = vmatprep.subr.mxu0 0.0
        %2563 = vmatpush1.msra.mxu0 %v2207
        %2564 = vmatprep.subr.mxu0 0.0
        %2565 = vmatpush1.msra.mxu0 %v2208
        %2566 = vmatprep.subr.mxu0 0.0
        %2567 = vmatpush1.msra.mxu0 %v2209
        %2568 = vmatprep.subr.mxu0 0.0
        %2569 = vmatpush1.msra.mxu0 %v2210
        %2570 = vmatprep.subr.mxu0 0.0
        %2571 = vmatpush1.msra.mxu0 %v2211
        %2572 = vmatprep.subr.mxu0 0.0
        %2573 = vmatpush1.msra.mxu0 %v2212
        %2574 = vmatprep.subr.mxu0 0.0
        %2575 = vmatpush1.msra.mxu0 %v2213
        %2576 = vmatprep.subr.mxu0 0.0
        %2577 = vmatpush1.msra.mxu0 %v2214
        %2578 = vmatprep.subr.mxu0 0.0
        %2579 = vmatpush1.msra.mxu0 %v2215
        %2580 = vmatprep.subr.mxu0 0.0
        %2581 = vmatpush1.msra.mxu0 %v2216
        %2582 = vmatprep.subr.mxu0 0.0
        %2583 = vmatpush1.msra.mxu0 %v2217
        %2584 = vmatprep.subr.mxu0 0.0
        %2585 = vmatpush1.msra.mxu0 %v2218
        %2586 = vmatprep.subr.mxu0 0.0
        %2587 = vmatpush1.msra.mxu0 %v2219
        %2588 = vmatprep.subr.mxu0 0.0
        %2589 = vmatpush1.msra.mxu0 %v2220
        %2590 = vmatprep.subr.mxu0 0.0
        %2591 = vmatpush1.msra.mxu0 %v2221
        %2592 = vmatprep.subr.mxu0 0.0
        %2593 = vmatpush1.msra.mxu0 %v2222
        %2594 = vmatprep.mubr.f32.mxu0 %v2116
        %2595 = vmatmul.mubr.f32.gmra.mrb[0].mxu0 %v2115
        %v2596 = vpop.f32.mrb[0].mxu0
        %v2597 = vadd.f32 %v2527, %v2596
        %v2598 = vpop.f32.mrb[0].mxu0
        %2599 = vdwg.mxu0
        %2600 = vmatprep.subr.mxu0 0.0
        %2601 = vmatpush1.msra.mxu0 %v2223
        %2602 = vmatprep.subr.mxu0 0.0
        %2603 = vmatpush1.msra.mxu0 %v2224
        %2604 = vmatprep.subr.mxu0 0.0
        %2605 = vmatpush1.msra.mxu0 %v2225
        %2606 = vmatprep.subr.mxu0 0.0
        %2607 = vmatpush1.msra.mxu0 %v2226
        %2608 = vmatprep.subr.mxu0 0.0
        %2609 = vmatpush1.msra.mxu0 %v2227
        %2610 = vmatprep.subr.mxu0 0.0
        %2611 = vmatpush1.msra.mxu0 %v2228
        %2612 = vmatprep.subr.mxu0 0.0
        %2613 = vmatpush1.msra.mxu0 %v2229
        %2614 = vmatprep.subr.mxu0 0.0
        %2615 = vmatpush1.msra.mxu0 %v2230
        %2616 = vmatprep.subr.mxu0 0.0
        %2617 = vmatpush1.msra.mxu0 %v2231
        %2618 = vmatprep.subr.mxu0 0.0
        %2619 = vmatpush1.msra.mxu0 %v2232
        %2620 = vmatprep.subr.mxu0 0.0
        %2621 = vmatpush1.msra.mxu0 %v2233
        %2622 = vmatprep.subr.mxu0 0.0
        %2623 = vmatpush1.msra.mxu0 %v2234
        %2624 = vmatprep.subr.mxu0 0.0
        %2625 = vmatpush1.msra.mxu0 %v2235
        %2626 = vmatprep.subr.mxu0 0.0
        %2627 = vmatpush1.msra.mxu0 %v2236
        %2628 = vmatprep.subr.mxu0 0.0
        %2629 = vmatpush1.msra.mxu0 %v2237
        %2630 = vmatprep.subr.mxu0 0.0
        %2631 = vmatpush1.msra.mxu0 %v2238
        %2632 = vmatprep.subr.mxu0 0.0
        %2633 = vmatpush1.msra.mxu0 %v2239
        %2634 = vmatprep.subr.mxu0 0.0
        %2635 = vmatpush1.msra.mxu0 %v2240
        %2636 = vmatprep.subr.mxu0 0.0
        %2637 = vmatpush1.msra.mxu0 %v2241
        %2638 = vmatprep.subr.mxu0 0.0
        %2639 = vmatpush1.msra.mxu0 %v2242
        %2640 = vmatprep.subr.mxu0 0.0
        %2641 = vmatpush1.msra.mxu0 %v2243
        %2642 = vmatprep.subr.mxu0 0.0
        %2643 = vmatpush1.msra.mxu0 %v2244
        %2644 = vmatprep.subr.mxu0 0.0
        %2645 = vmatpush1.msra.mxu0 %v2245
        %2646 = vmatprep.subr.mxu0 0.0
        %2647 = vmatpush1.msra.mxu0 %v2246
        %2648 = vmatprep.subr.mxu0 0.0
        %2649 = vmatpush1.msra.mxu0 %v2247
        %2650 = vmatprep.subr.mxu0 0.0
        %2651 = vmatpush1.msra.mxu0 %v2248
        %2652 = vmatprep.subr.mxu0 0.0
        %2653 = vmatpush1.msra.mxu0 %v2249
        %2654 = vmatprep.subr.mxu0 0.0
        %2655 = vmatpush1.msra.mxu0 %v2250
        %2656 = vmatprep.subr.mxu0 0.0
        %2657 = vmatpush1.msra.mxu0 %v2251
        %2658 = vmatprep.subr.mxu0 0.0
        %2659 = vmatpush1.msra.mxu0 %v2252
        %2660 = vmatprep.subr.mxu0 0.0
        %2661 = vmatpush1.msra.mxu0 %v2253
        %2662 = vmatprep.subr.mxu0 0.0
        %2663 = vmatpush1.msra.mxu0 %v2254
        %2664 = vmatprep.mubr.f32.mxu0 %v2118
        %2665 = vmatmul.mubr.f32.gmra.mrb[0].mxu0 %v2117
        %v2666 = vpop.f32.mrb[0].mxu0
        %v2667 = vadd.f32 %v2597, %v2666
        %v2668 = vpop.f32.mrb[0].mxu0
        %2669 = vdwg.mxu0
        %2670 = vmatprep.subr.mxu0 0.0
        %2671 = vmatpush1.msra.mxu0 %v2255
        %2672 = vmatprep.subr.mxu0 0.0
        %2673 = vmatpush1.msra.mxu0 %v2256
        %2674 = vmatprep.subr.mxu0 0.0
        %2675 = vmatpush1.msra.mxu0 %v2257
        %2676 = vmatprep.subr.mxu0 0.0
        %2677 = vmatpush1.msra.mxu0 %v2258
        %2678 = vmatprep.subr.mxu0 0.0
        %2679 = vmatpush1.msra.mxu0 %v2259
        %2680 = vmatprep.subr.mxu0 0.0
        %2681 = vmatpush1.msra.mxu0 %v2260
        %2682 = vmatprep.subr.mxu0 0.0
        %2683 = vmatpush1.msra.mxu0 %v2261
        %2684 = vmatprep.subr.mxu0 0.0
        %2685 = vmatpush1.msra.mxu0 %v2262
        %2686 = vmatprep.subr.mxu0 0.0
        %2687 = vmatpush1.msra.mxu0 %v2263
        %2688 = vmatprep.subr.mxu0 0.0
        %2689 = vmatpush1.msra.mxu0 %v2264
        %2690 = vmatprep.subr.mxu0 0.0
        %2691 = vmatpush1.msra.mxu0 %v2265
        %2692 = vmatprep.subr.mxu0 0.0
        %2693 = vmatpush1.msra.mxu0 %v2266
        %2694 = vmatprep.subr.mxu0 0.0
        %2695 = vmatpush1.msra.mxu0 %v2267
        %2696 = vmatprep.subr.mxu0 0.0
        %2697 = vmatpush1.msra.mxu0 %v2268
        %2698 = vmatprep.subr.mxu0 0.0
        %2699 = vmatpush1.msra.mxu0 %v2269
        %2700 = vmatprep.subr.mxu0 0.0
        %2701 = vmatpush1.msra.mxu0 %v2270
        %2702 = vmatprep.subr.mxu0 0.0
        %2703 = vmatpush1.msra.mxu0 %v2271
        %2704 = vmatprep.subr.mxu0 0.0
        %2705 = vmatpush1.msra.mxu0 %v2272
        %2706 = vmatprep.subr.mxu0 0.0
        %2707 = vmatpush1.msra.mxu0 %v2273
        %2708 = vmatprep.subr.mxu0 0.0
        %2709 = vmatpush1.msra.mxu0 %v2274
        %2710 = vmatprep.subr.mxu0 0.0
        %2711 = vmatpush1.msra.mxu0 %v2275
        %2712 = vmatprep.subr.mxu0 0.0
        %2713 = vmatpush1.msra.mxu0 %v2276
        %2714 = vmatprep.subr.mxu0 0.0
        %2715 = vmatpush1.msra.mxu0 %v2277
        %2716 = vmatprep.subr.mxu0 0.0
        %2717 = vmatpush1.msra.mxu0 %v2278
        %2718 = vmatprep.subr.mxu0 0.0
        %2719 = vmatpush1.msra.mxu0 %v2279
        %2720 = vmatprep.subr.mxu0 0.0
        %2721 = vmatpush1.msra.mxu0 %v2280
        %2722 = vmatprep.subr.mxu0 0.0
        %2723 = vmatpush1.msra.mxu0 %v2281
        %2724 = vmatprep.subr.mxu0 0.0
        %2725 = vmatpush1.msra.mxu0 %v2282
        %2726 = vmatprep.subr.mxu0 0.0
        %2727 = vmatpush1.msra.mxu0 %v2283
        %2728 = vmatprep.subr.mxu0 0.0
        %2729 = vmatpush1.msra.mxu0 %v2284
        %2730 = vmatprep.subr.mxu0 0.0
        %2731 = vmatpush1.msra.mxu0 %v2285
        %2732 = vmatprep.subr.mxu0 0.0
        %2733 = vmatpush1.msra.mxu0 %v2286
        %2734 = vmatprep.mubr.f32.mxu0 %v2120
        %2735 = vmatmul.mubr.f32.gmra.mrb[0].mxu0 %v2119
        %v2736 = vpop.f32.mrb[0].mxu0
        %v2737 = vadd.f32 %v2667, %v2736
        %v2738 = vpop.f32.mrb[0].mxu0
        %2739 = vdwg.mxu0
        %2740 = vmatprep.subr.mxu0 0.0
        %2741 = vmatpush1.msra.mxu0 %v2287
        %2742 = vmatprep.subr.mxu0 0.0
        %2743 = vmatpush1.msra.mxu0 %v2288
        %2744 = vmatprep.subr.mxu0 0.0
        %2745 = vmatpush1.msra.mxu0 %v2289
        %2746 = vmatprep.subr.mxu0 0.0
        %2747 = vmatpush1.msra.mxu0 %v2290
        %2748 = vmatprep.subr.mxu0 0.0
        %2749 = vmatpush1.msra.mxu0 %v2291
        %2750 = vmatprep.subr.mxu0 0.0
        %2751 = vmatpush1.msra.mxu0 %v2292
        %2752 = vmatprep.subr.mxu0 0.0
        %2753 = vmatpush1.msra.mxu0 %v2293
        %2754 = vmatprep.subr.mxu0 0.0
        %2755 = vmatpush1.msra.mxu0 %v2294
        %2756 = vmatprep.subr.mxu0 0.0
        %2757 = vmatpush1.msra.mxu0 %v2295
        %2758 = vmatprep.subr.mxu0 0.0
        %2759 = vmatpush1.msra.mxu0 %v2296
        %2760 = vmatprep.subr.mxu0 0.0
        %2761 = vmatpush1.msra.mxu0 %v2297
        %2762 = vmatprep.subr.mxu0 0.0
        %2763 = vmatpush1.msra.mxu0 %v2298
        %2764 = vmatprep.subr.mxu0 0.0
        %2765 = vmatpush1.msra.mxu0 %v2299
        %2766 = vmatprep.subr.mxu0 0.0
        %2767 = vmatpush1.msra.mxu0 %v2300
        %2768 = vmatprep.subr.mxu0 0.0
        %2769 = vmatpush1.msra.mxu0 %v2301
        %2770 = vmatprep.subr.mxu0 0.0
        %2771 = vmatpush1.msra.mxu0 %v2302
        %2772 = vmatprep.subr.mxu0 0.0
        %2773 = vmatpush1.msra.mxu0 %v2303
        %2774 = vmatprep.subr.mxu0 0.0
        %2775 = vmatpush1.msra.mxu0 %v2304
        %2776 = vmatprep.subr.mxu0 0.0
        %2777 = vmatpush1.msra.mxu0 %v2305
        %2778 = vmatprep.subr.mxu0 0.0
        %2779 = vmatpush1.msra.mxu0 %v2306
        %2780 = vmatprep.subr.mxu0 0.0
        %2781 = vmatpush1.msra.mxu0 %v2307
        %2782 = vmatprep.subr.mxu0 0.0
        %2783 = vmatpush1.msra.mxu0 %v2308
        %2784 = vmatprep.subr.mxu0 0.0
        %2785 = vmatpush1.msra.mxu0 %v2309
        %2786 = vmatprep.subr.mxu0 0.0
        %2787 = vmatpush1.msra.mxu0 %v2310
        %2788 = vmatprep.subr.mxu0 0.0
        %2789 = vmatpush1.msra.mxu0 %v2311
        %2790 = vmatprep.subr.mxu0 0.0
        %2791 = vmatpush1.msra.mxu0 %v2312
        %2792 = vmatprep.subr.mxu0 0.0
        %2793 = vmatpush1.msra.mxu0 %v2313
        %2794 = vmatprep.subr.mxu0 0.0
        %2795 = vmatpush1.msra.mxu0 %v2314
        %2796 = vmatprep.subr.mxu0 0.0
        %2797 = vmatpush1.msra.mxu0 %v2315
        %2798 = vmatprep.subr.mxu0 0.0
        %2799 = vmatpush1.msra.mxu0 %v2316
        %2800 = vmatprep.subr.mxu0 0.0
        %2801 = vmatpush1.msra.mxu0 %v2317
        %2802 = vmatprep.subr.mxu0 0.0
        %2803 = vmatpush1.msra.mxu0 %v2318
        %2804 = vmatprep.mubr.f32.mxu0 %v2122
        %2805 = vmatmul.mubr.f32.gmra.mrb[0].mxu0 %v2121
        %v2806 = vpop.f32.mrb[0].mxu0
        %v2807 = vadd.f32 %v2737, %v2806
        %v2808 = vpop.f32.mrb[0].mxu0
        %2809 = vdwg.mxu0
        %2810 = vmatprep.subr.mxu0 0.0
        %2811 = vmatpush1.msra.mxu0 %v2319
        %2812 = vmatprep.subr.mxu0 0.0
        %2813 = vmatpush1.msra.mxu0 %v2320
        %2814 = vmatprep.subr.mxu0 0.0
        %2815 = vmatpush1.msra.mxu0 %v2321
        %2816 = vmatprep.subr.mxu0 0.0
        %2817 = vmatpush1.msra.mxu0 %v2322
        %2818 = vmatprep.subr.mxu0 0.0
        %2819 = vmatpush1.msra.mxu0 %v2323
        %2820 = vmatprep.subr.mxu0 0.0
        %2821 = vmatpush1.msra.mxu0 %v2324
        %2822 = vmatprep.subr.mxu0 0.0
        %2823 = vmatpush1.msra.mxu0 %v2325
        %2824 = vmatprep.subr.mxu0 0.0
        %2825 = vmatpush1.msra.mxu0 %v2326
        %2826 = vmatprep.subr.mxu0 0.0
        %2827 = vmatpush1.msra.mxu0 %v2327
        %2828 = vmatprep.subr.mxu0 0.0
        %2829 = vmatpush1.msra.mxu0 %v2328
        %2830 = vmatprep.subr.mxu0 0.0
        %2831 = vmatpush1.msra.mxu0 %v2329
        %2832 = vmatprep.subr.mxu0 0.0
        %2833 = vmatpush1.msra.mxu0 %v2330
        %2834 = vmatprep.subr.mxu0 0.0
        %2835 = vmatpush1.msra.mxu0 %v2331
        %2836 = vmatprep.subr.mxu0 0.0
        %2837 = vmatpush1.msra.mxu0 %v2332
        %2838 = vmatprep.subr.mxu0 0.0
        %2839 = vmatpush1.msra.mxu0 %v2333
        %2840 = vmatprep.subr.mxu0 0.0
        %2841 = vmatpush1.msra.mxu0 %v2334
        %2842 = vmatprep.subr.mxu0 0.0
        %2843 = vmatpush1.msra.mxu0 %v2335
        %2844 = vmatprep.subr.mxu0 0.0
        %2845 = vmatpush1.msra.mxu0 %v2336
        %2846 = vmatprep.subr.mxu0 0.0
        %2847 = vmatpush1.msra.mxu0 %v2337
        %2848 = vmatprep.subr.mxu0 0.0
        %2849 = vmatpush1.msra.mxu0 %v2338
        %2850 = vmatprep.subr.mxu0 0.0
        %2851 = vmatpush1.msra.mxu0 %v2339
        %2852 = vmatprep.subr.mxu0 0.0
        %2853 = vmatpush1.msra.mxu0 %v2340
        %2854 = vmatprep.subr.mxu0 0.0
        %2855 = vmatpush1.msra.mxu0 %v2341
        %2856 = vmatprep.subr.mxu0 0.0
        %2857 = vmatpush1.msra.mxu0 %v2342
        %2858 = vmatprep.subr.mxu0 0.0
        %2859 = vmatpush1.msra.mxu0 %v2343
        %2860 = vmatprep.subr.mxu0 0.0
        %2861 = vmatpush1.msra.mxu0 %v2344
        %2862 = vmatprep.subr.mxu0 0.0
        %2863 = vmatpush1.msra.mxu0 %v2345
        %2864 = vmatprep.subr.mxu0 0.0
        %2865 = vmatpush1.msra.mxu0 %v2346
        %2866 = vmatprep.subr.mxu0 0.0
        %2867 = vmatpush1.msra.mxu0 %v2347
        %2868 = vmatprep.subr.mxu0 0.0
        %2869 = vmatpush1.msra.mxu0 %v2348
        %2870 = vmatprep.subr.mxu0 0.0
        %2871 = vmatpush1.msra.mxu0 %v2349
        %2872 = vmatprep.subr.mxu0 0.0
        %2873 = vmatpush1.msra.mxu0 %v2350
        %2874 = vmatprep.mubr.f32.mxu0 %v2124
        %2875 = vmatmul.mubr.f32.gmra.mrb[0].mxu0 %v2123
        %v2876 = vpop.f32.mrb[0].mxu0
        %v2877 = vadd.f32 %v2807, %v2876
        %v2878 = vpop.f32.mrb[0].mxu0
        %2879 = vdwg.mxu0
        %2880 = vmatprep.subr.mxu0 0.0
        %2881 = vmatpush1.msra.mxu0 %v2351
        %2882 = vmatprep.subr.mxu0 0.0
        %2883 = vmatpush1.msra.mxu0 %v2352
        %2884 = vmatprep.subr.mxu0 0.0
        %2885 = vmatpush1.msra.mxu0 %v2353
        %2886 = vmatprep.subr.mxu0 0.0
        %2887 = vmatpush1.msra.mxu0 %v2354
        %2888 = vmatprep.subr.mxu0 0.0
        %2889 = vmatpush1.msra.mxu0 %v2355
        %2890 = vmatprep.subr.mxu0 0.0
        %2891 = vmatpush1.msra.mxu0 %v2356
        %2892 = vmatprep.subr.mxu0 0.0
        %2893 = vmatpush1.msra.mxu0 %v2357
        %2894 = vmatprep.subr.mxu0 0.0
        %2895 = vmatpush1.msra.mxu0 %v2358
        %2896 = vmatprep.subr.mxu0 0.0
        %2897 = vmatpush1.msra.mxu0 %v2359
        %2898 = vmatprep.subr.mxu0 0.0
        %2899 = vmatpush1.msra.mxu0 %v2360
        %2900 = vmatprep.subr.mxu0 0.0
        %2901 = vmatpush1.msra.mxu0 %v2361
        %2902 = vmatprep.subr.mxu0 0.0
        %2903 = vmatpush1.msra.mxu0 %v2362
        %2904 = vmatprep.subr.mxu0 0.0
        %2905 = vmatpush1.msra.mxu0 %v2363
        %2906 = vmatprep.subr.mxu0 0.0
        %2907 = vmatpush1.msra.mxu0 %v2364
        %2908 = vmatprep.subr.mxu0 0.0
        %2909 = vmatpush1.msra.mxu0 %v2365
        %2910 = vmatprep.subr.mxu0 0.0
        %2911 = vmatpush1.msra.mxu0 %v2366
        %2912 = vmatprep.subr.mxu0 0.0
        %2913 = vmatpush1.msra.mxu0 %v2367
        %2914 = vmatprep.subr.mxu0 0.0
        %2915 = vmatpush1.msra.mxu0 %v2368
        %2916 = vmatprep.subr.mxu0 0.0
        %2917 = vmatpush1.msra.mxu0 %v2369
        %2918 = vmatprep.subr.mxu0 0.0
        %2919 = vmatpush1.msra.mxu0 %v2370
        %2920 = vmatprep.subr.mxu0 0.0
        %2921 = vmatpush1.msra.mxu0 %v2371
        %2922 = vmatprep.subr.mxu0 0.0
        %2923 = vmatpush1.msra.mxu0 %v2372
        %2924 = vmatprep.subr.mxu0 0.0
        %2925 = vmatpush1.msra.mxu0 %v2373
        %2926 = vmatprep.subr.mxu0 0.0
        %2927 = vmatpush1.msra.mxu0 %v2374
        %2928 = vmatprep.subr.mxu0 0.0
        %2929 = vmatpush1.msra.mxu0 %v2375
        %2930 = vmatprep.subr.mxu0 0.0
        %2931 = vmatpush1.msra.mxu0 %v2376
        %2932 = vmatprep.subr.mxu0 0.0
        %2933 = vmatpush1.msra.mxu0 %v2377
        %2934 = vmatprep.subr.mxu0 0.0
        %2935 = vmatpush1.msra.mxu0 %v2378
        %2936 = vmatprep.subr.mxu0 0.0
        %2937 = vmatpush1.msra.mxu0 %v2379
        %2938 = vmatprep.subr.mxu0 0.0
        %2939 = vmatpush1.msra.mxu0 %v2380
        %2940 = vmatprep.subr.mxu0 0.0
        %2941 = vmatpush1.msra.mxu0 %v2381
        %2942 = vmatprep.subr.mxu0 0.0
        %2943 = vmatpush1.msra.mxu0 %v2382
        %2944 = vmatprep.mubr.f32.mxu0 %v2126
        %2945 = vmatmul.mubr.f32.gmra.mrb[0].mxu0 %v2125
        %v2946 = vpop.f32.mrb[0].mxu0
        %v2947 = vadd.f32 %v2877, %v2946
        %v2948 = vpop.f32.mrb[0].mxu0
        %2949 = vdwg.mxu0
        %2950 = vst [vmem:[%s6] sm:$0xff] %v2947
      $region60: #{hrnet_forward.23} parent=43 // pred_fallthru
        _
      // Predicated region
      $region61: #{hrnet_forward.23} parent=43 // pred_check
        %p2951 = pneg %p175
      $region62: #{hrnet_forward.23} parent=43 // pred_check_branch
        %2953 = sbr.rel (%p2951) target = $region64
      $region63: #{hrnet_forward.23} parent=43 // pred_region
        _
      $region64: #{hrnet_forward.23} parent=43 // pred_fallthru
        _
      // Predicated region
      $region65: #{hrnet_forward.23} parent=43 // pred_check
        %p2954 = pneg %p175
      $region66: #{hrnet_forward.23} parent=43 // pred_check_branch
        %2956 = sbr.rel (%p2954) target = $region68
      $region67: #{hrnet_forward.23} parent=43 // pred_region
        _
      $region68: #{hrnet_forward.23} parent=43 // pred_fallthru
        _
    $region44: #{hrnet_forward.23} parent=5 // pred_fallthru
      _
    %p2957 = scmp.le.s32.totalorder 2, %s12
    // Predicated region
    $region69: #{hrnet_forward.23} parent=5 // pred_check
      %p2958 = pneg %p2957
    $region70: #{hrnet_forward.23} parent=5 // pred_check_branch
      %2960 = sbr.rel (%p2958) target = $region72
    $region71: #{hrnet_forward.23} parent=5 // pred_region
      %s2961 = ssub.s32 %s12, 2
    $region72: #{hrnet_forward.23} parent=5 // pred_fallthru
      _
  $region6: #{hrnet_forward.23} parent=0 // loop_footer
    %s16 = sadd.s32 1, %s12
  $region7: #{hrnet_forward.23} parent=0 // loop_footer_branch
    %11 = sbr.rel target = $region3
  $region8: #{hrnet_forward.23} parent=0 // loop_exit
    _

</llo_original>
